<compile_context>
chip_gen: v7x
topology: tpu7x:2x2x1
jax: 0.10.0
libtpu: 0.0.40
codegen_flags: <defaults>
</compile_context>

<pallas_src>
from functools import partial

import jax
import jax.numpy as jnp
from jax.experimental import pallas as pl
from jax.experimental.pallas import tpu as pltpu  # noqa: F401  (TPU backend)

jax.config.update("jax_default_matmul_precision", "highest")


def bert_gnn_kernel(x_ref, sup_ref, mask_ref,
                    wenc_ref, benc_ref,
                    wa3_ref, ba3_ref, wx2_ref, bx2_ref, wh1_ref, bh1_ref,
                    watt_ref, batt_ref, wemb_ref, bemb_ref, wmlp_ref, bmlp_ref,
                    out_ref, *, hidden, steps):
    b, n, d_in = x_ref.shape
    h = hidden

    x = x_ref[...].astype(jnp.float32).reshape(b * n, d_in)      # (b*n, d_in)
    sup = sup_ref[...].astype(jnp.float32)                       # (b, n, n)
    mask3 = mask_ref[...].astype(jnp.float32)                    # (b, n, 1)
    mask2 = mask3.reshape(b * n, 1)                              # (b*n, 1)

    # ---- GraphLayer: encode -> tanh -> mask (dropout = identity in eval) ----
    enc = jnp.dot(x, wenc_ref[...], preferred_element_type=jnp.float32) + benc_ref[...]
    out = mask2 * jnp.tanh(enc)                                  # (b*n, h)

    # ---- GraphLayer: `steps` GRU-unit iterations over the graph support ----
    for _ in range(steps):
        # a = support @ x   (batched graph propagation)
        a = jnp.einsum("bij,bjh->bih", sup, out.reshape(b, n, h),
                       preferred_element_type=jnp.float32).reshape(b * n, h)
        # Fused gate matmuls: one (h, 3h) on `a`, one (h, 2h) on `x`.
        a3 = jnp.dot(a, wa3_ref[...], preferred_element_type=jnp.float32) + ba3_ref[...]
        x2 = jnp.dot(out, wx2_ref[...], preferred_element_type=jnp.float32) + bx2_ref[...]
        z = jax.nn.sigmoid(a3[:, 0:h] + x2[:, 0:h])              # update gate
        r = jax.nn.sigmoid(a3[:, h:2 * h] + x2[:, h:2 * h])      # reset gate
        h1 = jnp.dot(r * out, wh1_ref[...],
                     preferred_element_type=jnp.float32) + bh1_ref[...]
        hc = jnp.tanh(mask2 * (a3[:, 2 * h:3 * h] + h1))         # candidate
        out = hc * z + out * (1.0 - z)

    # ---- ReadoutLayer ----
    att = jax.nn.sigmoid(jnp.dot(out, watt_ref[...],
                                 preferred_element_type=jnp.float32) + batt_ref[...])
    emb = jnp.tanh(jnp.dot(out, wemb_ref[...],
                           preferred_element_type=jnp.float32) + bemb_ref[...])
    g = (mask2 * att * emb).reshape(b, n, h)                     # (b, n, h)
    n_valid = jnp.sum(mask3, axis=1)                             # (b, 1)
    neg = (mask3 - 1.0) * 1e9                                    # (b, n, 1)
    g_max = jnp.max(g + neg, axis=1)                             # (b, h)
    g_pool = jnp.sum(g, axis=1) / n_valid + g_max                # (b, h)
    logits = jnp.dot(g_pool, wmlp_ref[...],
                     preferred_element_type=jnp.float32) + bmlp_ref[...]
    out_ref[...] = logits.astype(out_ref.dtype)


def bert_gnn_pallas(x, support, mask, p, *, hidden, steps, output_dim):
    b, n, _ = x.shape
    kern = partial(bert_gnn_kernel, hidden=hidden, steps=steps)
    # Single invocation, whole-array VMEM blocks (shapes are tiny); no grid needed.
    return pl.pallas_call(
        kern,
        out_shape=jax.ShapeDtypeStruct((b, output_dim), x.dtype),
    )(x, support, mask,
      p["wenc"], p["benc"],
      p["wa3"], p["ba3"], p["wx2"], p["bx2"], p["wh1"], p["bh1"],
      p["watt"], p["batt"], p["wemb"], p["bemb"], p["wmlp"], p["bmlp"])


def prep_kernel_params(p):
    """One-time constant transform: fuse GRU gate weights, make biases 2D."""
    return dict(
        wenc=p["wenc"], benc=p["benc"].reshape(1, -1),
        wa3=jnp.concatenate([p["wz0"], p["wr0"], p["wh0"]], axis=1),
        ba3=jnp.concatenate([p["bz0"], p["br0"], p["bh0"]]).reshape(1, -1),
        wx2=jnp.concatenate([p["wz1"], p["wr1"]], axis=1),
        bx2=jnp.concatenate([p["bz1"], p["br1"]]).reshape(1, -1),
        wh1=p["wh1"], bh1=p["bh1"].reshape(1, -1),
        watt=p["watt"], batt=p["batt"].reshape(1, -1),
        wemb=p["wemb"], bemb=p["bemb"].reshape(1, -1),
        wmlp=p["wmlp"], bmlp=p["bmlp"].reshape(1, -1),
    )


def bert_gnn_ref(x, support, mask, p, *, steps):
    """Pure-JAX reference mirroring the PyTorch eval-mode forward."""
    h = mask * jnp.tanh(x @ p["wenc"] + p["benc"])
    for _ in range(steps):
        a = jnp.einsum("bij,bjh->bih", support, h)
        z = jax.nn.sigmoid(a @ p["wz0"] + p["bz0"] + h @ p["wz1"] + p["bz1"])
        r = jax.nn.sigmoid(a @ p["wr0"] + p["br0"] + h @ p["wr1"] + p["br1"])
        hc = jnp.tanh(mask * (a @ p["wh0"] + p["bh0"] + (r * h) @ p["wh1"] + p["bh1"]))
        h = hc * z + h * (1.0 - z)
    att = jax.nn.sigmoid(h @ p["watt"] + p["batt"])
    emb = jnp.tanh(h @ p["wemb"] + p["bemb"])
    n_valid = mask.sum(axis=1)
    neg = (mask - 1.0) * 1e9
    g = mask * att * emb
    g_max = (g + neg).max(axis=1)
    g_pool = g.sum(axis=1) / n_valid + g_max
    return g_pool @ p["wmlp"] + p["bmlp"]


if __name__ == "__main__":
    b, n, d_in, hidden, out_dim, steps = 2, 8, 32, 32, 8, 2

    key = jax.random.PRNGKey(0)
    ks = jax.random.split(key, 22)

    def w(k, shape):
        # nn.init.normal_(std=0.1); generated directly as (in, out) — same
        # distribution as transposing the PyTorch (out, in) weight.
        return 0.1 * jax.random.normal(k, shape, dtype=jnp.float32)

    x = jax.random.normal(ks[0], (b, n, d_in), dtype=jnp.float32)       # BERT hidden states
    support = 0.5 * jax.random.normal(ks[1], (b, n, n), dtype=jnp.float32)
    lengths = jnp.array([6, 8])
    mask = (jnp.arange(n)[None, :] < lengths[:, None]).astype(jnp.float32)[:, :, None]

    raw = dict(
        wenc=w(ks[2], (d_in, hidden)),  benc=w(ks[3], (hidden,)),
        wz0=w(ks[4], (hidden, hidden)), bz0=w(ks[5], (hidden,)),
        wz1=w(ks[6], (hidden, hidden)), bz1=w(ks[7], (hidden,)),
        wr0=w(ks[8], (hidden, hidden)), br0=w(ks[9], (hidden,)),
        wr1=w(ks[10], (hidden, hidden)), br1=w(ks[11], (hidden,)),
        wh0=w(ks[12], (hidden, hidden)), bh0=w(ks[13], (hidden,)),
        wh1=w(ks[14], (hidden, hidden)), bh1=w(ks[15], (hidden,)),
        watt=w(ks[16], (hidden, 1)),    batt=w(ks[17], (1,)),
        wemb=w(ks[18], (hidden, hidden)), bemb=w(ks[19], (hidden,)),
        wmlp=w(ks[20], (hidden, out_dim)), bmlp=w(ks[21], (out_dim,)),
    )
    kparams = prep_kernel_params(raw)

    y = bert_gnn_pallas(x, support, mask, kparams,
                        hidden=hidden, steps=steps, output_dim=out_dim)
    y = jax.block_until_ready(y)

    y_ref = bert_gnn_ref(x, support, mask, raw, steps=steps)

    assert y.shape == (b, out_dim), y.shape
    max_err = float(jnp.max(jnp.abs(y - y_ref)))
    assert jnp.allclose(y, y_ref, atol=2e-4, rtol=2e-4), max_err

    print("KERNEL_OK")
</pallas_src>

<mosaic_0001>
module attributes {stable_mosaic.version = 11 : i64} {
  func.func @bert_gnn_kernel(%arg0: memref<2x8x32xf32, #tpu.memory_space<vmem>>, %arg1: memref<2x8x8xf32, #tpu.memory_space<vmem>>, %arg2: memref<2x8x1xf32, #tpu.memory_space<vmem>>, %arg3: memref<32x32xf32, #tpu.memory_space<vmem>>, %arg4: memref<1x32xf32, #tpu.memory_space<vmem>>, %arg5: memref<32x96xf32, #tpu.memory_space<vmem>>, %arg6: memref<1x96xf32, #tpu.memory_space<vmem>>, %arg7: memref<32x64xf32, #tpu.memory_space<vmem>>, %arg8: memref<1x64xf32, #tpu.memory_space<vmem>>, %arg9: memref<32x32xf32, #tpu.memory_space<vmem>>, %arg10: memref<1x32xf32, #tpu.memory_space<vmem>>, %arg11: memref<32x1xf32, #tpu.memory_space<vmem>>, %arg12: memref<1x1xf32, #tpu.memory_space<vmem>>, %arg13: memref<32x32xf32, #tpu.memory_space<vmem>>, %arg14: memref<1x32xf32, #tpu.memory_space<vmem>>, %arg15: memref<32x8xf32, #tpu.memory_space<vmem>>, %arg16: memref<1x8xf32, #tpu.memory_space<vmem>>, %arg17: memref<2x8xf32, #tpu.memory_space<vmem>>) attributes {dimension_semantics = [], scalar_prefetch = 0 : i64, scratch_operands = 0 : i64, tpu.core_type = #tpu.core_type<tc>} {
    %c0 = arith.constant 0 : index
    %c0_0 = arith.constant 0 : index
    %c0_1 = arith.constant 0 : index
    %0 = vector.load %arg0[%c0, %c0_0, %c0_1] : memref<2x8x32xf32, #tpu.memory_space<vmem>>, vector<2x8x32xf32>
    %1 = vector.shape_cast %0 : vector<2x8x32xf32> to vector<16x32xf32>
    %c0_2 = arith.constant 0 : index
    %c0_3 = arith.constant 0 : index
    %c0_4 = arith.constant 0 : index
    %2 = vector.load %arg1[%c0_2, %c0_3, %c0_4] : memref<2x8x8xf32, #tpu.memory_space<vmem>>, vector<2x8x8xf32>
    %c0_5 = arith.constant 0 : index
    %c0_6 = arith.constant 0 : index
    %c0_7 = arith.constant 0 : index
    %3 = vector.load %arg2[%c0_5, %c0_6, %c0_7] : memref<2x8x1xf32, #tpu.memory_space<vmem>>, vector<2x8x1xf32>
    %4 = vector.shape_cast %3 : vector<2x8x1xf32> to vector<16x1xf32>
    %c0_8 = arith.constant 0 : index
    %c0_9 = arith.constant 0 : index
    %5 = vector.load %arg3[%c0_8, %c0_9] : memref<32x32xf32, #tpu.memory_space<vmem>>, vector<32x32xf32>
    %cst = arith.constant dense<0.000000e+00> : vector<16x32xf32>
    %6 = tpu.matmul %1, %5, %cst {dimension_numbers = #tpu.dot_dimension_numbers<[1], [0], [0], [1], [0, 0, 1, 1], [], []>, precision = #tpu.contract_precision<fp32>} : vector<16x32xf32>, vector<32x32xf32>, vector<16x32xf32> -> vector<16x32xf32>
    %c0_10 = arith.constant 0 : index
    %c0_11 = arith.constant 0 : index
    %7 = vector.load %arg4[%c0_10, %c0_11] : memref<1x32xf32, #tpu.memory_space<vmem>>, vector<1x32xf32>
    %8 = vector.broadcast %7 : vector<1x32xf32> to vector<16x32xf32>
    %9 = arith.addf %6, %8 : vector<16x32xf32>
    %10 = math.tanh %9 : vector<16x32xf32>
    %11 = vector.broadcast %4 : vector<16x1xf32> to vector<16x32xf32>
    %12 = arith.mulf %11, %10 : vector<16x32xf32>
    %13 = vector.shape_cast %12 : vector<16x32xf32> to vector<2x8x32xf32>
    "tpu.trace_start"() <{level = 10 : i32, message = "bij,bjh->bih"}> : () -> ()
    %cst_12 = arith.constant dense<0.000000e+00> : vector<2x8x32xf32>
    %14 = tpu.matmul %2, %13, %cst_12 {dimension_numbers = #tpu.dot_dimension_numbers<[2], [1], [1], [2], [0, 0, 0, 1, 1, 2], [0], [0]>, precision = #tpu.contract_precision<fp32>} : vector<2x8x8xf32>, vector<2x8x32xf32>, vector<2x8x32xf32> -> vector<2x8x32xf32>
    "tpu.trace_stop"() : () -> ()
    %15 = vector.shape_cast %14 : vector<2x8x32xf32> to vector<16x32xf32>
    %c0_13 = arith.constant 0 : index
    %c0_14 = arith.constant 0 : index
    %16 = vector.load %arg5[%c0_13, %c0_14] : memref<32x96xf32, #tpu.memory_space<vmem>>, vector<32x96xf32>
    %cst_15 = arith.constant dense<0.000000e+00> : vector<16x96xf32>
    %17 = tpu.matmul %15, %16, %cst_15 {dimension_numbers = #tpu.dot_dimension_numbers<[1], [0], [0], [1], [0, 0, 1, 1], [], []>, precision = #tpu.contract_precision<fp32>} : vector<16x32xf32>, vector<32x96xf32>, vector<16x96xf32> -> vector<16x96xf32>
    %c0_16 = arith.constant 0 : index
    %c0_17 = arith.constant 0 : index
    %18 = vector.load %arg6[%c0_16, %c0_17] : memref<1x96xf32, #tpu.memory_space<vmem>>, vector<1x96xf32>
    %19 = vector.broadcast %18 : vector<1x96xf32> to vector<16x96xf32>
    %20 = arith.addf %17, %19 : vector<16x96xf32>
    %c0_18 = arith.constant 0 : index
    %c0_19 = arith.constant 0 : index
    %21 = vector.load %arg7[%c0_18, %c0_19] : memref<32x64xf32, #tpu.memory_space<vmem>>, vector<32x64xf32>
    %cst_20 = arith.constant dense<0.000000e+00> : vector<16x64xf32>
    %22 = tpu.matmul %12, %21, %cst_20 {dimension_numbers = #tpu.dot_dimension_numbers<[1], [0], [0], [1], [0, 0, 1, 1], [], []>, precision = #tpu.contract_precision<fp32>} : vector<16x32xf32>, vector<32x64xf32>, vector<16x64xf32> -> vector<16x64xf32>
    %c0_21 = arith.constant 0 : index
    %c0_22 = arith.constant 0 : index
    %23 = vector.load %arg8[%c0_21, %c0_22] : memref<1x64xf32, #tpu.memory_space<vmem>>, vector<1x64xf32>
    %24 = vector.broadcast %23 : vector<1x64xf32> to vector<16x64xf32>
    %25 = arith.addf %22, %24 : vector<16x64xf32>
    %26 = vector.extract_strided_slice %20 {offsets = [0, 0], sizes = [16, 32], strides = [1, 1]} : vector<16x96xf32> to vector<16x32xf32>
    %27 = vector.extract_strided_slice %25 {offsets = [0, 0], sizes = [16, 32], strides = [1, 1]} : vector<16x64xf32> to vector<16x32xf32>
    %28 = arith.addf %26, %27 : vector<16x32xf32>
    %29 = arith.negf %28 : vector<16x32xf32>
    %30 = math.exp %29 : vector<16x32xf32>
    %cst_23 = arith.constant 1.000000e+00 : f32
    %31 = vector.broadcast %cst_23 : f32 to vector<16x32xf32>
    %32 = arith.addf %31, %30 : vector<16x32xf32>
    %33 = arith.divf %31, %32 : vector<16x32xf32>
    %34 = vector.extract_strided_slice %20 {offsets = [0, 32], sizes = [16, 32], strides = [1, 1]} : vector<16x96xf32> to vector<16x32xf32>
    %35 = vector.extract_strided_slice %25 {offsets = [0, 32], sizes = [16, 32], strides = [1, 1]} : vector<16x64xf32> to vector<16x32xf32>
    %36 = arith.addf %34, %35 : vector<16x32xf32>
    %37 = arith.negf %36 : vector<16x32xf32>
    %38 = math.exp %37 : vector<16x32xf32>
    %cst_24 = arith.constant 1.000000e+00 : f32
    %39 = vector.broadcast %cst_24 : f32 to vector<16x32xf32>
    %40 = arith.addf %39, %38 : vector<16x32xf32>
    %41 = arith.divf %39, %40 : vector<16x32xf32>
    %42 = arith.mulf %41, %12 : vector<16x32xf32>
    %c0_25 = arith.constant 0 : index
    %c0_26 = arith.constant 0 : index
    %43 = vector.load %arg9[%c0_25, %c0_26] : memref<32x32xf32, #tpu.memory_space<vmem>>, vector<32x32xf32>
    %cst_27 = arith.constant dense<0.000000e+00> : vector<16x32xf32>
    %44 = tpu.matmul %42, %43, %cst_27 {dimension_numbers = #tpu.dot_dimension_numbers<[1], [0], [0], [1], [0, 0, 1, 1], [], []>, precision = #tpu.contract_precision<fp32>} : vector<16x32xf32>, vector<32x32xf32>, vector<16x32xf32> -> vector<16x32xf32>
    %c0_28 = arith.constant 0 : index
    %c0_29 = arith.constant 0 : index
    %45 = vector.load %arg10[%c0_28, %c0_29] : memref<1x32xf32, #tpu.memory_space<vmem>>, vector<1x32xf32>
    %46 = vector.broadcast %45 : vector<1x32xf32> to vector<16x32xf32>
    %47 = arith.addf %44, %46 : vector<16x32xf32>
    %48 = vector.extract_strided_slice %20 {offsets = [0, 64], sizes = [16, 32], strides = [1, 1]} : vector<16x96xf32> to vector<16x32xf32>
    %49 = arith.addf %48, %47 : vector<16x32xf32>
    %50 = vector.broadcast %4 : vector<16x1xf32> to vector<16x32xf32>
    %51 = arith.mulf %50, %49 : vector<16x32xf32>
    %52 = math.tanh %51 : vector<16x32xf32>
    %53 = arith.mulf %52, %33 : vector<16x32xf32>
    %cst_30 = arith.constant 1.000000e+00 : f32
    %54 = vector.broadcast %cst_30 : f32 to vector<16x32xf32>
    %55 = arith.subf %54, %33 : vector<16x32xf32>
    %56 = arith.mulf %12, %55 : vector<16x32xf32>
    %57 = arith.addf %53, %56 : vector<16x32xf32>
    %58 = vector.shape_cast %57 : vector<16x32xf32> to vector<2x8x32xf32>
    "tpu.trace_start"() <{level = 10 : i32, message = "bij,bjh->bih"}> : () -> ()
    %cst_31 = arith.constant dense<0.000000e+00> : vector<2x8x32xf32>
    %59 = tpu.matmul %2, %58, %cst_31 {dimension_numbers = #tpu.dot_dimension_numbers<[2], [1], [1], [2], [0, 0, 0, 1, 1, 2], [0], [0]>, precision = #tpu.contract_precision<fp32>} : vector<2x8x8xf32>, vector<2x8x32xf32>, vector<2x8x32xf32> -> vector<2x8x32xf32>
    "tpu.trace_stop"() : () -> ()
    %60 = vector.shape_cast %59 : vector<2x8x32xf32> to vector<16x32xf32>
    %c0_32 = arith.constant 0 : index
    %c0_33 = arith.constant 0 : index
    %61 = vector.load %arg5[%c0_32, %c0_33] : memref<32x96xf32, #tpu.memory_space<vmem>>, vector<32x96xf32>
    %cst_34 = arith.constant dense<0.000000e+00> : vector<16x96xf32>
    %62 = tpu.matmul %60, %61, %cst_34 {dimension_numbers = #tpu.dot_dimension_numbers<[1], [0], [0], [1], [0, 0, 1, 1], [], []>, precision = #tpu.contract_precision<fp32>} : vector<16x32xf32>, vector<32x96xf32>, vector<16x96xf32> -> vector<16x96xf32>
    %c0_35 = arith.constant 0 : index
    %c0_36 = arith.constant 0 : index
    %63 = vector.load %arg6[%c0_35, %c0_36] : memref<1x96xf32, #tpu.memory_space<vmem>>, vector<1x96xf32>
    %64 = vector.broadcast %63 : vector<1x96xf32> to vector<16x96xf32>
    %65 = arith.addf %62, %64 : vector<16x96xf32>
    %c0_37 = arith.constant 0 : index
    %c0_38 = arith.constant 0 : index
    %66 = vector.load %arg7[%c0_37, %c0_38] : memref<32x64xf32, #tpu.memory_space<vmem>>, vector<32x64xf32>
    %cst_39 = arith.constant dense<0.000000e+00> : vector<16x64xf32>
    %67 = tpu.matmul %57, %66, %cst_39 {dimension_numbers = #tpu.dot_dimension_numbers<[1], [0], [0], [1], [0, 0, 1, 1], [], []>, precision = #tpu.contract_precision<fp32>} : vector<16x32xf32>, vector<32x64xf32>, vector<16x64xf32> -> vector<16x64xf32>
    %c0_40 = arith.constant 0 : index
    %c0_41 = arith.constant 0 : index
    %68 = vector.load %arg8[%c0_40, %c0_41] : memref<1x64xf32, #tpu.memory_space<vmem>>, vector<1x64xf32>
    %69 = vector.broadcast %68 : vector<1x64xf32> to vector<16x64xf32>
    %70 = arith.addf %67, %69 : vector<16x64xf32>
    %71 = vector.extract_strided_slice %65 {offsets = [0, 0], sizes = [16, 32], strides = [1, 1]} : vector<16x96xf32> to vector<16x32xf32>
    %72 = vector.extract_strided_slice %70 {offsets = [0, 0], sizes = [16, 32], strides = [1, 1]} : vector<16x64xf32> to vector<16x32xf32>
    %73 = arith.addf %71, %72 : vector<16x32xf32>
    %74 = arith.negf %73 : vector<16x32xf32>
    %75 = math.exp %74 : vector<16x32xf32>
    %cst_42 = arith.constant 1.000000e+00 : f32
    %76 = vector.broadcast %cst_42 : f32 to vector<16x32xf32>
    %77 = arith.addf %76, %75 : vector<16x32xf32>
    %78 = arith.divf %76, %77 : vector<16x32xf32>
    %79 = vector.extract_strided_slice %65 {offsets = [0, 32], sizes = [16, 32], strides = [1, 1]} : vector<16x96xf32> to vector<16x32xf32>
    %80 = vector.extract_strided_slice %70 {offsets = [0, 32], sizes = [16, 32], strides = [1, 1]} : vector<16x64xf32> to vector<16x32xf32>
    %81 = arith.addf %79, %80 : vector<16x32xf32>
    %82 = arith.negf %81 : vector<16x32xf32>
    %83 = math.exp %82 : vector<16x32xf32>
    %cst_43 = arith.constant 1.000000e+00 : f32
    %84 = vector.broadcast %cst_43 : f32 to vector<16x32xf32>
    %85 = arith.addf %84, %83 : vector<16x32xf32>
    %86 = arith.divf %84, %85 : vector<16x32xf32>
    %87 = arith.mulf %86, %57 : vector<16x32xf32>
    %c0_44 = arith.constant 0 : index
    %c0_45 = arith.constant 0 : index
    %88 = vector.load %arg9[%c0_44, %c0_45] : memref<32x32xf32, #tpu.memory_space<vmem>>, vector<32x32xf32>
    %cst_46 = arith.constant dense<0.000000e+00> : vector<16x32xf32>
    %89 = tpu.matmul %87, %88, %cst_46 {dimension_numbers = #tpu.dot_dimension_numbers<[1], [0], [0], [1], [0, 0, 1, 1], [], []>, precision = #tpu.contract_precision<fp32>} : vector<16x32xf32>, vector<32x32xf32>, vector<16x32xf32> -> vector<16x32xf32>
    %c0_47 = arith.constant 0 : index
    %c0_48 = arith.constant 0 : index
    %90 = vector.load %arg10[%c0_47, %c0_48] : memref<1x32xf32, #tpu.memory_space<vmem>>, vector<1x32xf32>
    %91 = vector.broadcast %90 : vector<1x32xf32> to vector<16x32xf32>
    %92 = arith.addf %89, %91 : vector<16x32xf32>
    %93 = vector.extract_strided_slice %65 {offsets = [0, 64], sizes = [16, 32], strides = [1, 1]} : vector<16x96xf32> to vector<16x32xf32>
    %94 = arith.addf %93, %92 : vector<16x32xf32>
    %95 = vector.broadcast %4 : vector<16x1xf32> to vector<16x32xf32>
    %96 = arith.mulf %95, %94 : vector<16x32xf32>
    %97 = math.tanh %96 : vector<16x32xf32>
    %98 = arith.mulf %97, %78 : vector<16x32xf32>
    %cst_49 = arith.constant 1.000000e+00 : f32
    %99 = vector.broadcast %cst_49 : f32 to vector<16x32xf32>
    %100 = arith.subf %99, %78 : vector<16x32xf32>
    %101 = arith.mulf %57, %100 : vector<16x32xf32>
    %102 = arith.addf %98, %101 : vector<16x32xf32>
    %c0_50 = arith.constant 0 : index
    %c0_51 = arith.constant 0 : index
    %103 = vector.load %arg11[%c0_50, %c0_51] : memref<32x1xf32, #tpu.memory_space<vmem>>, vector<32x1xf32>
    %cst_52 = arith.constant dense<0.000000e+00> : vector<16x1xf32>
    %104 = tpu.matmul %102, %103, %cst_52 {dimension_numbers = #tpu.dot_dimension_numbers<[1], [0], [0], [1], [0, 0, 1, 1], [], []>, precision = #tpu.contract_precision<fp32>} : vector<16x32xf32>, vector<32x1xf32>, vector<16x1xf32> -> vector<16x1xf32>
    %c0_53 = arith.constant 0 : index
    %c0_54 = arith.constant 0 : index
    %105 = vector.load %arg12[%c0_53, %c0_54] : memref<1x1xf32, #tpu.memory_space<vmem>>, vector<1x1xf32>
    %106 = vector.broadcast %105 : vector<1x1xf32> to vector<16x1xf32>
    %107 = arith.addf %104, %106 : vector<16x1xf32>
    %108 = arith.negf %107 : vector<16x1xf32>
    %109 = math.exp %108 : vector<16x1xf32>
    %cst_55 = arith.constant 1.000000e+00 : f32
    %110 = vector.broadcast %cst_55 : f32 to vector<16x1xf32>
    %111 = arith.addf %110, %109 : vector<16x1xf32>
    %112 = arith.divf %110, %111 : vector<16x1xf32>
    %c0_56 = arith.constant 0 : index
    %c0_57 = arith.constant 0 : index
    %113 = vector.load %arg13[%c0_56, %c0_57] : memref<32x32xf32, #tpu.memory_space<vmem>>, vector<32x32xf32>
    %cst_58 = arith.constant dense<0.000000e+00> : vector<16x32xf32>
    %114 = tpu.matmul %102, %113, %cst_58 {dimension_numbers = #tpu.dot_dimension_numbers<[1], [0], [0], [1], [0, 0, 1, 1], [], []>, precision = #tpu.contract_precision<fp32>} : vector<16x32xf32>, vector<32x32xf32>, vector<16x32xf32> -> vector<16x32xf32>
    %c0_59 = arith.constant 0 : index
    %c0_60 = arith.constant 0 : index
    %115 = vector.load %arg14[%c0_59, %c0_60] : memref<1x32xf32, #tpu.memory_space<vmem>>, vector<1x32xf32>
    %116 = vector.broadcast %115 : vector<1x32xf32> to vector<16x32xf32>
    %117 = arith.addf %114, %116 : vector<16x32xf32>
    %118 = math.tanh %117 : vector<16x32xf32>
    %119 = arith.mulf %4, %112 : vector<16x1xf32>
    %120 = vector.broadcast %119 : vector<16x1xf32> to vector<16x32xf32>
    %121 = arith.mulf %120, %118 : vector<16x32xf32>
    %122 = vector.shape_cast %121 : vector<16x32xf32> to vector<2x8x32xf32>
    %cst_61 = arith.constant dense<0.000000e+00> : vector<2x1xf32>
    %123 = vector.multi_reduction <add>, %3, %cst_61 [1] : vector<2x8x1xf32> to vector<2x1xf32>
    %cst_62 = arith.constant 1.000000e+00 : f32
    %124 = vector.broadcast %cst_62 : f32 to vector<2x8x1xf32>
    %125 = arith.subf %3, %124 : vector<2x8x1xf32>
    %cst_63 = arith.constant 1.000000e+09 : f32
    %126 = vector.broadcast %cst_63 : f32 to vector<2x8x1xf32>
    %127 = arith.mulf %125, %126 : vector<2x8x1xf32>
    %128 = vector.broadcast %127 : vector<2x8x1xf32> to vector<2x8x32xf32>
    %129 = arith.addf %122, %128 : vector<2x8x32xf32>
    %cst_64 = arith.constant dense<0xFF800000> : vector<2x32xf32>
    %130 = vector.multi_reduction <maximumf>, %129, %cst_64 [1] : vector<2x8x32xf32> to vector<2x32xf32>
    %cst_65 = arith.constant dense<0.000000e+00> : vector<2x32xf32>
    %131 = vector.multi_reduction <add>, %122, %cst_65 [1] : vector<2x8x32xf32> to vector<2x32xf32>
    %132 = vector.broadcast %123 : vector<2x1xf32> to vector<2x32xf32>
    %133 = arith.divf %131, %132 : vector<2x32xf32>
    %134 = arith.addf %133, %130 : vector<2x32xf32>
    %c0_66 = arith.constant 0 : index
    %c0_67 = arith.constant 0 : index
    %135 = vector.load %arg15[%c0_66, %c0_67] : memref<32x8xf32, #tpu.memory_space<vmem>>, vector<32x8xf32>
    %cst_68 = arith.constant dense<0.000000e+00> : vector<2x8xf32>
    %136 = tpu.matmul %134, %135, %cst_68 {dimension_numbers = #tpu.dot_dimension_numbers<[1], [0], [0], [1], [0, 0, 1, 1], [], []>, precision = #tpu.contract_precision<fp32>} : vector<2x32xf32>, vector<32x8xf32>, vector<2x8xf32> -> vector<2x8xf32>
    %c0_69 = arith.constant 0 : index
    %c0_70 = arith.constant 0 : index
    %137 = vector.load %arg16[%c0_69, %c0_70] : memref<1x8xf32, #tpu.memory_space<vmem>>, vector<1x8xf32>
    %138 = vector.broadcast %137 : vector<1x8xf32> to vector<2x8xf32>
    %139 = arith.addf %136, %138 : vector<2x8xf32>
    %c0_71 = arith.constant 0 : index
    %c0_72 = arith.constant 0 : index
    %140 = vector.load %arg17[%c0_71, %c0_72] : memref<2x8xf32, #tpu.memory_space<vmem>>, vector<2x8xf32>
    tpu.vector_store %arg17[%c0_71, %c0_72], %139 {strides = array<i32>} : memref<2x8xf32, #tpu.memory_space<vmem>>, vector<2x8xf32>,
    return
  }
}

</mosaic_0001>

<llo_original>
// kernel: tpu_custom_call.1
$region0: #{tpu_custom_call.1}
  #allocation0 [shape = 'u32[]', space=smem, size = 0x4, offset = 0x4, fixed_abs, tag = 'smem constant byte address 0x4 - core index']
  #allocation1 [shape = 'u32[144,128]{1,0:T(1,128)}', space=vmem, size = 0x12000, scoped, tag = 'internal scratch']
  #allocation2 [shape = 'f32[1,1]{1,0:T(1,128)S(1)}', space=vmem, size = 0x200, scoped, tag = 'scoped memory for tpu_custom_call.1']
  %s0 = inlined_call_operand.hbm [shape: f32[2,8,32], index: 0, kind: input, shape index: {}]
  %s1 = inlined_call_operand.hbm [shape: f32[2,8,8], index: 1, kind: input, shape index: {}]
  %s2 = inlined_call_operand.vmem [shape: f32[2,8,1], index: 2, kind: input, shape index: {}]
  %s3 = inlined_call_operand.vmem [shape: f32[32,32], index: 3, kind: input, shape index: {}]
  %s4 = inlined_call_operand.hbm [shape: f32[1,32], index: 4, kind: input, shape index: {}]
  %s5 = inlined_call_operand.vmem [shape: f32[32,96], index: 5, kind: input, shape index: {}]
  %s6 = inlined_call_operand.hbm [shape: f32[1,96], index: 6, kind: input, shape index: {}]
  %s7 = inlined_call_operand.vmem [shape: f32[32,64], index: 7, kind: input, shape index: {}]
  %s8 = inlined_call_operand.hbm [shape: f32[1,64], index: 8, kind: input, shape index: {}]
  %s9 = inlined_call_operand.vmem [shape: f32[32,32], index: 9, kind: input, shape index: {}]
  %s10 = inlined_call_operand.hbm [shape: f32[1,32], index: 10, kind: input, shape index: {}]
  %s11 = inlined_call_operand.vmem [shape: f32[32,1], index: 11, kind: input, shape index: {}]
  %s12 = inlined_call_operand.<no memory space> [shape: f32[1,1], index: 12, kind: input, shape index: {}]
  %s13 = inlined_call_operand.hbm [shape: f32[32,32], index: 13, kind: input, shape index: {}]
  %s14 = inlined_call_operand.vmem [shape: f32[1,32], index: 14, kind: input, shape index: {}]
  %s15 = inlined_call_operand.vmem [shape: f32[32,8], index: 15, kind: input, shape index: {}]
  %s16 = inlined_call_operand.vmem [shape: f32[1,8], index: 16, kind: input, shape index: {}]
  %s17 = inlined_call_operand.hbm [shape: f32[2,8], index: 17, kind: output, shape index: {}]
  %s18 = sld [smem:[#allocation0]]
  $region106: #{tpu_custom_call.1} parent=0
    _
  %s20 = ssub.s32 1, %s18
  %s21 = scalar_select 0, %s20, %s18
  %v22 = vstv %s12
  %23 = vst [vmem:[#allocation2] sm:$0x1] %v22
  $region1: #{tpu_custom_call.1} parent=0
    #allocation3 [shape = 'u8[8192]{0}', space=vmem, size = 0x2000, scoped, tag = 'input window, operand 0, single buffered']
    #allocation4 [shape = 's32[1]{0}', space=sflag, size = 0x4, scoped, tag = 'scoped memory for tpu_custom_call.1']
    #allocation5 [shape = 's32[1]{0}', space=sflag, size = 0x4, scoped, tag = 'scoped memory for tpu_custom_call.1']
    #allocation6 [shape = 'u8[8192]{0}', space=vmem, size = 0x2000, scoped, tag = 'input window, operand 1, single buffered']
    #allocation7 [shape = 's32[1]{0}', space=sflag, size = 0x4, scoped, tag = 'scoped memory for tpu_custom_call.1']
    #allocation8 [shape = 'u8[512]{0}', space=vmem, size = 0x400, scoped, tag = 'input window, operand 4, single buffered']
    #allocation9 [shape = 'u8[512]{0}', space=vmem, size = 0x400, scoped, tag = 'input window, operand 6, single buffered']
    #allocation10 [shape = 's32[1]{0}', space=sflag, size = 0x4, scoped, tag = 'scoped memory for tpu_custom_call.1']
    #allocation11 [shape = 'u8[512]{0}', space=vmem, size = 0x400, scoped, tag = 'input window, operand 8, single buffered']
    #allocation12 [shape = 'u8[512]{0}', space=vmem, size = 0x400, scoped, tag = 'input window, operand 10, single buffered']
    #allocation13 [shape = 's32[1]{0}', space=sflag, size = 0x4, scoped, tag = 'scoped memory for tpu_custom_call.1']
    #allocation14 [shape = 'u8[16384]{0}', space=vmem, size = 0x4000, scoped, tag = 'input window, operand 13, single buffered']
    #allocation15 [shape = 'u8[1024]{0}', space=vmem, size = 0x400, scoped, tag = 'output window, operand 0, single buffered']
    %24 = vsyncpa [#allocation4], 0
    %25 = vsyncpa [#allocation7], 0
    %26 = vsyncpa [#allocation10], 0
    %27 = vsyncpa [#allocation13], 0
    %28 = vsyncpa [#allocation5], 0
    // Predicated region
    $region2: #{tpu_custom_call.1} parent=1 // pred_check
      _
    $region3: #{tpu_custom_call.1} parent=1 // pred_check_branch
      %30 = sbr.rel (0) target = $region5
    $region4: #{tpu_custom_call.1} parent=1 // pred_region
      %s32 = ssub.s32 256, 256
      %33 = vsyncadd [#allocation4], %s32
      %s34 = sshll.u32 [#allocation3], 4
      %s35 = int_to_ptr.vmem [resolvable:$true] %s34
      %40 = dma.hbm_to_vmem [thread:$0]  %s0, 256, %s35, [#allocation4], 128, 128, 8
    $region5: #{tpu_custom_call.1} parent=1 // pred_fallthru
      _
    // Predicated region
    $region6: #{tpu_custom_call.1} parent=1 // pred_check
      _
    $region7: #{tpu_custom_call.1} parent=1 // pred_check_branch
      %42 = sbr.rel (0) target = $region9
    $region8: #{tpu_custom_call.1} parent=1 // pred_region
      %s44 = ssub.s32 256, 256
      %45 = vsyncadd [#allocation7], %s44
      %s46 = sshll.u32 [#allocation6], 4
      %s47 = int_to_ptr.vmem [resolvable:$true] %s46
      %52 = dma.hbm_to_vmem [thread:$0]  %s1, 256, %s47, [#allocation7], 128, 128, 8
    $region9: #{tpu_custom_call.1} parent=1 // pred_fallthru
      _
    // Predicated region
    $region10: #{tpu_custom_call.1} parent=1 // pred_check
      _
    $region11: #{tpu_custom_call.1} parent=1 // pred_check_branch
      %54 = sbr.rel (0) target = $region13
    $region12: #{tpu_custom_call.1} parent=1 // pred_region
      _
    $region13: #{tpu_custom_call.1} parent=1 // pred_fallthru
      _
    // Predicated region
    $region14: #{tpu_custom_call.1} parent=1 // pred_check
      _
    $region15: #{tpu_custom_call.1} parent=1 // pred_check_branch
      %56 = sbr.rel (0) target = $region17
    $region16: #{tpu_custom_call.1} parent=1 // pred_region
      _
    $region17: #{tpu_custom_call.1} parent=1 // pred_fallthru
      _
    // Predicated region
    $region18: #{tpu_custom_call.1} parent=1 // pred_check
      _
    $region19: #{tpu_custom_call.1} parent=1 // pred_check_branch
      %58 = sbr.rel (0) target = $region21
    $region20: #{tpu_custom_call.1} parent=1 // pred_region
      %s60 = ssub.s32 16, 16
      %61 = vsyncadd [#allocation7], %s60
      %s63 = sshll.u32 [#allocation8], 4
      %s64 = int_to_ptr.vmem [resolvable:$true] %s63
      %66 = dma.hbm_to_vmem [thread:$0]  %s4, 16, %s64, [#allocation7]
    $region21: #{tpu_custom_call.1} parent=1 // pred_fallthru
      _
    // Predicated region
    $region22: #{tpu_custom_call.1} parent=1 // pred_check
      _
    $region23: #{tpu_custom_call.1} parent=1 // pred_check_branch
      %68 = sbr.rel (0) target = $region25
    $region24: #{tpu_custom_call.1} parent=1 // pred_region
      _
    $region25: #{tpu_custom_call.1} parent=1 // pred_fallthru
      _
    // Predicated region
    $region26: #{tpu_custom_call.1} parent=1 // pred_check
      _
    $region27: #{tpu_custom_call.1} parent=1 // pred_check_branch
      %70 = sbr.rel (0) target = $region29
    $region28: #{tpu_custom_call.1} parent=1 // pred_region
      %s72 = ssub.s32 16, 16
      %73 = vsyncadd [#allocation10], %s72
      %s75 = sshll.u32 [#allocation9], 4
      %s76 = int_to_ptr.vmem [resolvable:$true] %s75
      %78 = dma.hbm_to_vmem [thread:$0]  %s6, 16, %s76, [#allocation10]
    $region29: #{tpu_custom_call.1} parent=1 // pred_fallthru
      _
    // Predicated region
    $region30: #{tpu_custom_call.1} parent=1 // pred_check
      _
    $region31: #{tpu_custom_call.1} parent=1 // pred_check_branch
      %80 = sbr.rel (0) target = $region33
    $region32: #{tpu_custom_call.1} parent=1 // pred_region
      _
    $region33: #{tpu_custom_call.1} parent=1 // pred_fallthru
      _
    // Predicated region
    $region34: #{tpu_custom_call.1} parent=1 // pred_check
      _
    $region35: #{tpu_custom_call.1} parent=1 // pred_check_branch
      %82 = sbr.rel (0) target = $region37
    $region36: #{tpu_custom_call.1} parent=1 // pred_region
      %s84 = ssub.s32 16, 16
      %85 = vsyncadd [#allocation10], %s84
      %s87 = sshll.u32 [#allocation11], 4
      %s88 = int_to_ptr.vmem [resolvable:$true] %s87
      %90 = dma.hbm_to_vmem [thread:$0]  %s8, 16, %s88, [#allocation10]
    $region37: #{tpu_custom_call.1} parent=1 // pred_fallthru
      _
    // Predicated region
    $region38: #{tpu_custom_call.1} parent=1 // pred_check
      _
    $region39: #{tpu_custom_call.1} parent=1 // pred_check_branch
      %92 = sbr.rel (0) target = $region41
    $region40: #{tpu_custom_call.1} parent=1 // pred_region
      _
    $region41: #{tpu_custom_call.1} parent=1 // pred_fallthru
      _
    // Predicated region
    $region42: #{tpu_custom_call.1} parent=1 // pred_check
      _
    $region43: #{tpu_custom_call.1} parent=1 // pred_check_branch
      %94 = sbr.rel (0) target = $region45
    $region44: #{tpu_custom_call.1} parent=1 // pred_region
      %s96 = ssub.s32 16, 16
      %97 = vsyncadd [#allocation13], %s96
      %s99 = sshll.u32 [#allocation12], 4
      %s100 = int_to_ptr.vmem [resolvable:$true] %s99
      %102 = dma.hbm_to_vmem [thread:$0]  %s10, 16, %s100, [#allocation13]
    $region45: #{tpu_custom_call.1} parent=1 // pred_fallthru
      _
    // Predicated region
    $region46: #{tpu_custom_call.1} parent=1 // pred_check
      _
    $region47: #{tpu_custom_call.1} parent=1 // pred_check_branch
      %104 = sbr.rel (0) target = $region49
    $region48: #{tpu_custom_call.1} parent=1 // pred_region
      _
    $region49: #{tpu_custom_call.1} parent=1 // pred_fallthru
      _
    // Predicated region
    $region50: #{tpu_custom_call.1} parent=1 // pred_check
      _
    $region51: #{tpu_custom_call.1} parent=1 // pred_check_branch
      %106 = sbr.rel (0) target = $region53
    $region52: #{tpu_custom_call.1} parent=1 // pred_region
      _
    $region53: #{tpu_custom_call.1} parent=1 // pred_fallthru
      _
    // Predicated region
    $region54: #{tpu_custom_call.1} parent=1 // pred_check
      _
    $region55: #{tpu_custom_call.1} parent=1 // pred_check_branch
      %108 = sbr.rel (0) target = $region57
    $region56: #{tpu_custom_call.1} parent=1 // pred_region
      %s110 = ssub.s32 512, 512
      %111 = vsyncadd [#allocation13], %s110
      %s112 = sshll.u32 [#allocation14], 4
      %s113 = int_to_ptr.vmem [resolvable:$true] %s112
      %118 = dma.hbm_to_vmem [thread:$0]  %s13, 512, %s113, [#allocation13], 128, 128, 8
    $region57: #{tpu_custom_call.1} parent=1 // pred_fallthru
      _
    // Predicated region
    $region58: #{tpu_custom_call.1} parent=1 // pred_check
      _
    $region59: #{tpu_custom_call.1} parent=1 // pred_check_branch
      %120 = sbr.rel (0) target = $region61
    $region60: #{tpu_custom_call.1} parent=1 // pred_region
      _
    $region61: #{tpu_custom_call.1} parent=1 // pred_fallthru
      _
    // Predicated region
    $region62: #{tpu_custom_call.1} parent=1 // pred_check
      _
    $region63: #{tpu_custom_call.1} parent=1 // pred_check_branch
      %122 = sbr.rel (0) target = $region65
    $region64: #{tpu_custom_call.1} parent=1 // pred_region
      _
    $region65: #{tpu_custom_call.1} parent=1 // pred_fallthru
      _
    // Predicated region
    $region66: #{tpu_custom_call.1} parent=1 // pred_check
      _
    $region67: #{tpu_custom_call.1} parent=1 // pred_check_branch
      %124 = sbr.rel (0) target = $region69
    $region68: #{tpu_custom_call.1} parent=1 // pred_region
      _
    $region69: #{tpu_custom_call.1} parent=1 // pred_fallthru
      _
    // Predicated region
    $region70: #{tpu_custom_call.1} parent=1 // pred_check
      _
    $region71: #{tpu_custom_call.1} parent=1 // pred_check_branch
      %126 = sbr.rel (0) target = $region73
    $region72: #{tpu_custom_call.1} parent=1 // pred_region
      %127 = dma.done [#allocation4], 256
    $region73: #{tpu_custom_call.1} parent=1 // pred_fallthru
      _
    // Predicated region
    $region74: #{tpu_custom_call.1} parent=1 // pred_check
      _
    $region75: #{tpu_custom_call.1} parent=1 // pred_check_branch
      %129 = sbr.rel (0) target = $region77
    $region76: #{tpu_custom_call.1} parent=1 // pred_region
      %130 = dma.done [#allocation7], 256
    $region77: #{tpu_custom_call.1} parent=1 // pred_fallthru
      _
    // Predicated region
    $region78: #{tpu_custom_call.1} parent=1 // pred_check
      _
    $region79: #{tpu_custom_call.1} parent=1 // pred_check_branch
      %132 = sbr.rel (0) target = $region81
    $region80: #{tpu_custom_call.1} parent=1 // pred_region
      %133 = dma.done [#allocation7], 16
    $region81: #{tpu_custom_call.1} parent=1 // pred_fallthru
      _
    // Predicated region
    $region82: #{tpu_custom_call.1} parent=1 // pred_check
      _
    $region83: #{tpu_custom_call.1} parent=1 // pred_check_branch
      %135 = sbr.rel (0) target = $region85
    $region84: #{tpu_custom_call.1} parent=1 // pred_region
      %136 = dma.done [#allocation10], 16
    $region85: #{tpu_custom_call.1} parent=1 // pred_fallthru
      _
    // Predicated region
    $region86: #{tpu_custom_call.1} parent=1 // pred_check
      _
    $region87: #{tpu_custom_call.1} parent=1 // pred_check_branch
      %138 = sbr.rel (0) target = $region89
    $region88: #{tpu_custom_call.1} parent=1 // pred_region
      %139 = dma.done [#allocation10], 16
    $region89: #{tpu_custom_call.1} parent=1 // pred_fallthru
      _
    // Predicated region
    $region90: #{tpu_custom_call.1} parent=1 // pred_check
      _
    $region91: #{tpu_custom_call.1} parent=1 // pred_check_branch
      %141 = sbr.rel (0) target = $region93
    $region92: #{tpu_custom_call.1} parent=1 // pred_region
      %142 = dma.done [#allocation13], 16
    $region93: #{tpu_custom_call.1} parent=1 // pred_fallthru
      _
    // Predicated region
    $region94: #{tpu_custom_call.1} parent=1 // pred_check
      _
    $region95: #{tpu_custom_call.1} parent=1 // pred_check_branch
      %144 = sbr.rel (0) target = $region97
    $region96: #{tpu_custom_call.1} parent=1 // pred_region
      %145 = dma.done [#allocation13], 512
    $region97: #{tpu_custom_call.1} parent=1 // pred_fallthru
      _
    %v146 = vld [vmem:[#allocation3] sm:$0xff]
    %v147 = vld [vmem:[#allocation3 + $0x8] sm:$0xff]
    %v148 = vld [vmem:[#allocation6] sm:$0xff]
    %v149 = vld [vmem:[#allocation6 + $0x8] sm:$0xff]
    %v150 = vld [vmem:[%s2] sm:$0xff]
    %v151 = vld [vmem:[%s2 + $0x8] sm:$0xff]
    %v152 = vld [vmem:[%s3] sm:$0xff]
    %v153 = vld [vmem:[%s3 + $0x8] sm:$0xff]
    %v154 = vld [vmem:[%s3 + $0x10] sm:$0xff]
    %v155 = vld [vmem:[%s3 + $0x18] sm:$0xff]
    %v156 = vld [vmem:[#allocation8] sm:$0x1]
    %v158 = vlaneseq
    %v159 = vshrl.u32 %v158, 7
    %v160 = vsub.s32 0, %v159
    %v161 = vrot.slane %v156, %v160
    %vm163 = vcmask 261120
    %v165 = vsel %vm163, %v146, 0
    %v168 = vsel %vm163, %v147, 0
    %170 = vmatprep.subr.mxu0 0.0
    %v171 = vand.u32 %v152, 4294901760
    %172 = vmatpush1.msra.mxu0 %v171
    %173 = vmatprep.subr.mxu0 0.0
    %v174 = vand.u32 %v153, 4294901760
    %175 = vmatpush1.msra.mxu0 %v174
    %176 = vmatprep.subr.mxu0 0.0
    %v177 = vand.u32 %v154, 4294901760
    %178 = vmatpush1.msra.mxu0 %v177
    %179 = vmatprep.subr.mxu0 0.0
    %v180 = vand.u32 %v155, 4294901760
    %181 = vmatpush1.msra.mxu0 %v180
    %182 = vmatprep.subr.mxu0 0.0
    %183 = vmatpush1.msra.mxu0 0.0
    %184 = vmatprep.subr.mxu0 0.0
    %185 = vmatpush1.msra.mxu0 0.0
    %186 = vmatprep.subr.mxu0 0.0
    %187 = vmatpush1.msra.mxu0 0.0
    %188 = vmatprep.subr.mxu0 0.0
    %189 = vmatpush1.msra.mxu0 0.0
    %190 = vmatprep.subr.mxu0 0.0
    %191 = vmatpush1.msra.mxu0 0.0
    %192 = vmatprep.subr.mxu0 0.0
    %193 = vmatpush1.msra.mxu0 0.0
    %194 = vmatprep.subr.mxu0 0.0
    %195 = vmatpush1.msra.mxu0 0.0
    %196 = vmatprep.subr.mxu0 0.0
    %197 = vmatpush1.msra.mxu0 0.0
    %198 = vmatprep.subr.mxu0 0.0
    %199 = vmatpush1.msra.mxu0 0.0
    %200 = vmatprep.subr.mxu0 0.0
    %201 = vmatpush1.msra.mxu0 0.0
    %202 = vmatprep.subr.mxu0 0.0
    %203 = vmatpush1.msra.mxu0 0.0
    %204 = vmatprep.subr.mxu0 0.0
    %205 = vmatpush1.msra.mxu0 0.0
    %206 = vmatprep.subr.mxu0 0.0
    %207 = vmatpush1.msra.mxu0 0.0
    %208 = vmatprep.subr.mxu0 0.0
    %209 = vmatpush1.msra.mxu0 0.0
    %210 = vmatprep.subr.mxu0 0.0
    %211 = vmatpush1.msra.mxu0 0.0
    %212 = vmatprep.subr.mxu0 0.0
    %213 = vmatpush1.msra.mxu0 0.0
    %214 = vmatprep.subr.mxu0 0.0
    %215 = vmatpush1.msra.mxu0 0.0
    %216 = vmatprep.subr.mxu0 0.0
    %217 = vmatpush1.msra.mxu0 0.0
    %218 = vmatprep.subr.mxu0 0.0
    %219 = vmatpush1.msra.mxu0 0.0
    %220 = vmatprep.subr.mxu0 0.0
    %221 = vmatpush1.msra.mxu0 0.0
    %222 = vmatprep.subr.mxu0 0.0
    %223 = vmatpush1.msra.mxu0 0.0
    %224 = vmatprep.subr.mxu0 0.0
    %225 = vmatpush1.msra.mxu0 0.0
    %226 = vmatprep.subr.mxu0 0.0
    %227 = vmatpush1.msra.mxu0 0.0
    %228 = vmatprep.subr.mxu0 0.0
    %229 = vmatpush1.msra.mxu0 0.0
    %230 = vmatprep.subr.mxu0 0.0
    %231 = vmatpush1.msra.mxu0 0.0
    %232 = vmatprep.subr.mxu0 0.0
    %233 = vmatpush1.msra.mxu0 0.0
    %234 = vmatprep.subr.mxu0 0.0
    %235 = vmatpush1.msra.mxu0 0.0
    %236 = vmatprep.subr.mxu0 0.0
    %237 = vmatpush1.msra.mxu0 0.0
    %238 = vmatprep.mubr.f32.mxu0 0.0
    %v239 = vand.u32 %v165, 4294901760
    %v240 = vsub.f32 %v165, %v239
    %v241 = vand.u32 %v240, 4294901760
    %v242 = vsub.f32 %v240, %v241
    %v243 = vand.u32 %v242, 4294901760
    %244 = vmatmul.mubr.f32.gmra.mrb[0].mxu0 %v243
    %v245 = vpop.f32.mrb[0].mxu0
    %v246 = vadd.f32 %v161, %v245
    %v247 = vpop.f32.mrb[0].mxu0
    %248 = vmatprep.mubr.f32.mxu0 0.0
    %v249 = vand.u32 %v168, 4294901760
    %v250 = vsub.f32 %v168, %v249
    %v251 = vand.u32 %v250, 4294901760
    %v252 = vsub.f32 %v250, %v251
    %v253 = vand.u32 %v252, 4294901760
    %254 = vmatmul.mubr.f32.gmra.mrb[0].mxu0 %v253
    %v255 = vpop.f32.mrb[0].mxu0
    %v256 = vadd.f32 %v161, %v255
    %v257 = vpop.f32.mrb[0].mxu0
    %258 = vdwg.mxu0
    %259 = vmatprep.subr.mxu0 0.0
    %v260 = vand.u32 %v152, 4294901760
    %v261 = vsub.f32 %v152, %v260
    %v262 = vand.u32 %v261, 4294901760
    %v263 = vsub.f32 %v261, %v262
    %v264 = vand.u32 %v263, 4294901760
    %265 = vmatpush1.msra.mxu0 %v264
    %266 = vmatprep.subr.mxu0 0.0
    %v267 = vand.u32 %v153, 4294901760
    %v268 = vsub.f32 %v153, %v267
    %v269 = vand.u32 %v268, 4294901760
    %v270 = vsub.f32 %v268, %v269
    %v271 = vand.u32 %v270, 4294901760
    %272 = vmatpush1.msra.mxu0 %v271
    %273 = vmatprep.subr.mxu0 0.0
    %v274 = vand.u32 %v154, 4294901760
    %v275 = vsub.f32 %v154, %v274
    %v276 = vand.u32 %v275, 4294901760
    %v277 = vsub.f32 %v275, %v276
    %v278 = vand.u32 %v277, 4294901760
    %279 = vmatpush1.msra.mxu0 %v278
    %280 = vmatprep.subr.mxu0 0.0
    %v281 = vand.u32 %v155, 4294901760
    %v282 = vsub.f32 %v155, %v281
    %v283 = vand.u32 %v282, 4294901760
    %v284 = vsub.f32 %v282, %v283
    %v285 = vand.u32 %v284, 4294901760
    %286 = vmatpush1.msra.mxu0 %v285
    %287 = vmatprep.subr.mxu0 0.0
    %288 = vmatpush1.msra.mxu0 0.0
    %289 = vmatprep.subr.mxu0 0.0
    %290 = vmatpush1.msra.mxu0 0.0
    %291 = vmatprep.subr.mxu0 0.0
    %292 = vmatpush1.msra.mxu0 0.0
    %293 = vmatprep.subr.mxu0 0.0
    %294 = vmatpush1.msra.mxu0 0.0
    %295 = vmatprep.subr.mxu0 0.0
    %296 = vmatpush1.msra.mxu0 0.0
    %297 = vmatprep.subr.mxu0 0.0
    %298 = vmatpush1.msra.mxu0 0.0
    %299 = vmatprep.subr.mxu0 0.0
    %300 = vmatpush1.msra.mxu0 0.0
    %301 = vmatprep.subr.mxu0 0.0
    %302 = vmatpush1.msra.mxu0 0.0
    %303 = vmatprep.subr.mxu0 0.0
    %304 = vmatpush1.msra.mxu0 0.0
    %305 = vmatprep.subr.mxu0 0.0
    %306 = vmatpush1.msra.mxu0 0.0
    %307 = vmatprep.subr.mxu0 0.0
    %308 = vmatpush1.msra.mxu0 0.0
    %309 = vmatprep.subr.mxu0 0.0
    %310 = vmatpush1.msra.mxu0 0.0
    %311 = vmatprep.subr.mxu0 0.0
    %312 = vmatpush1.msra.mxu0 0.0
    %313 = vmatprep.subr.mxu0 0.0
    %314 = vmatpush1.msra.mxu0 0.0
    %315 = vmatprep.subr.mxu0 0.0
    %316 = vmatpush1.msra.mxu0 0.0
    %317 = vmatprep.subr.mxu0 0.0
    %318 = vmatpush1.msra.mxu0 0.0
    %319 = vmatprep.subr.mxu0 0.0
    %320 = vmatpush1.msra.mxu0 0.0
    %321 = vmatprep.subr.mxu0 0.0
    %322 = vmatpush1.msra.mxu0 0.0
    %323 = vmatprep.subr.mxu0 0.0
    %324 = vmatpush1.msra.mxu0 0.0
    %325 = vmatprep.subr.mxu0 0.0
    %326 = vmatpush1.msra.mxu0 0.0
    %327 = vmatprep.subr.mxu0 0.0
    %328 = vmatpush1.msra.mxu0 0.0
    %329 = vmatprep.subr.mxu0 0.0
    %330 = vmatpush1.msra.mxu0 0.0
    %331 = vmatprep.subr.mxu0 0.0
    %332 = vmatpush1.msra.mxu0 0.0
    %333 = vmatprep.subr.mxu0 0.0
    %334 = vmatpush1.msra.mxu0 0.0
    %335 = vmatprep.subr.mxu0 0.0
    %336 = vmatpush1.msra.mxu0 0.0
    %337 = vmatprep.subr.mxu0 0.0
    %338 = vmatpush1.msra.mxu0 0.0
    %339 = vmatprep.subr.mxu0 0.0
    %340 = vmatpush1.msra.mxu0 0.0
    %341 = vmatprep.subr.mxu0 0.0
    %342 = vmatpush1.msra.mxu0 0.0
    %343 = vmatprep.mubr.f32.mxu0 0.0
    %v344 = vand.u32 %v165, 4294901760
    %345 = vmatmul.mubr.f32.gmra.mrb[0].mxu0 %v344
    %v346 = vpop.f32.mrb[0].mxu0
    %v347 = vadd.f32 %v246, %v346
    %v348 = vpop.f32.mrb[0].mxu0
    %349 = vmatprep.mubr.f32.mxu0 0.0
    %v350 = vand.u32 %v168, 4294901760
    %351 = vmatmul.mubr.f32.gmra.mrb[0].mxu0 %v350
    %v352 = vpop.f32.mrb[0].mxu0
    %v353 = vadd.f32 %v256, %v352
    %v354 = vpop.f32.mrb[0].mxu0
    %355 = vdwg.mxu0
    %356 = vmatprep.subr.mxu0 0.0
    %v357 = vand.u32 %v152, 4294901760
    %v358 = vsub.f32 %v152, %v357
    %359 = vmatpush1.msra.mxu0 %v358
    %360 = vmatprep.subr.mxu0 0.0
    %v361 = vand.u32 %v153, 4294901760
    %v362 = vsub.f32 %v153, %v361
    %363 = vmatpush1.msra.mxu0 %v362
    %364 = vmatprep.subr.mxu0 0.0
    %v365 = vand.u32 %v154, 4294901760
    %v366 = vsub.f32 %v154, %v365
    %367 = vmatpush1.msra.mxu0 %v366
    %368 = vmatprep.subr.mxu0 0.0
    %v369 = vand.u32 %v155, 4294901760
    %v370 = vsub.f32 %v155, %v369
    %371 = vmatpush1.msra.mxu0 %v370
    %372 = vmatprep.subr.mxu0 0.0
    %373 = vmatpush1.msra.mxu0 0.0
    %374 = vmatprep.subr.mxu0 0.0
    %375 = vmatpush1.msra.mxu0 0.0
    %376 = vmatprep.subr.mxu0 0.0
    %377 = vmatpush1.msra.mxu0 0.0
    %378 = vmatprep.subr.mxu0 0.0
    %379 = vmatpush1.msra.mxu0 0.0
    %380 = vmatprep.subr.mxu0 0.0
    %381 = vmatpush1.msra.mxu0 0.0
    %382 = vmatprep.subr.mxu0 0.0
    %383 = vmatpush1.msra.mxu0 0.0
    %384 = vmatprep.subr.mxu0 0.0
    %385 = vmatpush1.msra.mxu0 0.0
    %386 = vmatprep.subr.mxu0 0.0
    %387 = vmatpush1.msra.mxu0 0.0
    %388 = vmatprep.subr.mxu0 0.0
    %389 = vmatpush1.msra.mxu0 0.0
    %390 = vmatprep.subr.mxu0 0.0
    %391 = vmatpush1.msra.mxu0 0.0
    %392 = vmatprep.subr.mxu0 0.0
    %393 = vmatpush1.msra.mxu0 0.0
    %394 = vmatprep.subr.mxu0 0.0
    %395 = vmatpush1.msra.mxu0 0.0
    %396 = vmatprep.subr.mxu0 0.0
    %397 = vmatpush1.msra.mxu0 0.0
    %398 = vmatprep.subr.mxu0 0.0
    %399 = vmatpush1.msra.mxu0 0.0
    %400 = vmatprep.subr.mxu0 0.0
    %401 = vmatpush1.msra.mxu0 0.0
    %402 = vmatprep.subr.mxu0 0.0
    %403 = vmatpush1.msra.mxu0 0.0
    %404 = vmatprep.subr.mxu0 0.0
    %405 = vmatpush1.msra.mxu0 0.0
    %406 = vmatprep.subr.mxu0 0.0
    %407 = vmatpush1.msra.mxu0 0.0
    %408 = vmatprep.subr.mxu0 0.0
    %409 = vmatpush1.msra.mxu0 0.0
    %410 = vmatprep.subr.mxu0 0.0
    %411 = vmatpush1.msra.mxu0 0.0
    %412 = vmatprep.subr.mxu0 0.0
    %413 = vmatpush1.msra.mxu0 0.0
    %414 = vmatprep.subr.mxu0 0.0
    %415 = vmatpush1.msra.mxu0 0.0
    %416 = vmatprep.subr.mxu0 0.0
    %417 = vmatpush1.msra.mxu0 0.0
    %418 = vmatprep.subr.mxu0 0.0
    %419 = vmatpush1.msra.mxu0 0.0
    %420 = vmatprep.subr.mxu0 0.0
    %421 = vmatpush1.msra.mxu0 0.0
    %422 = vmatprep.subr.mxu0 0.0
    %423 = vmatpush1.msra.mxu0 0.0
    %424 = vmatprep.subr.mxu0 0.0
    %425 = vmatpush1.msra.mxu0 0.0
    %426 = vmatprep.subr.mxu0 0.0
    %427 = vmatpush1.msra.mxu0 0.0
    %428 = vmatprep.mubr.f32.mxu0 0.0
    %v429 = vand.u32 %v165, 4294901760
    %v430 = vsub.f32 %v165, %v429
    %431 = vmatmul.mubr.f32.gmra.mrb[0].mxu0 %v430
    %v432 = vpop.f32.mrb[0].mxu0
    %v433 = vadd.f32 %v347, %v432
    %v434 = vpop.f32.mrb[0].mxu0
    %435 = vmatprep.mubr.f32.mxu0 0.0
    %v436 = vand.u32 %v168, 4294901760
    %v437 = vsub.f32 %v168, %v436
    %438 = vmatmul.mubr.f32.gmra.mrb[0].mxu0 %v437
    %v439 = vpop.f32.mrb[0].mxu0
    %v440 = vadd.f32 %v353, %v439
    %v441 = vpop.f32.mrb[0].mxu0
    %442 = vdwg.mxu0
    %443 = vmatprep.subr.mxu0 0.0
    %v444 = vand.u32 %v152, 4294901760
    %445 = vmatpush1.msra.mxu0 %v444
    %446 = vmatprep.subr.mxu0 0.0
    %v447 = vand.u32 %v153, 4294901760
    %448 = vmatpush1.msra.mxu0 %v447
    %449 = vmatprep.subr.mxu0 0.0
    %v450 = vand.u32 %v154, 4294901760
    %451 = vmatpush1.msra.mxu0 %v450
    %452 = vmatprep.subr.mxu0 0.0
    %v453 = vand.u32 %v155, 4294901760
    %454 = vmatpush1.msra.mxu0 %v453
    %455 = vmatprep.subr.mxu0 0.0
    %456 = vmatpush1.msra.mxu0 0.0
    %457 = vmatprep.subr.mxu0 0.0
    %458 = vmatpush1.msra.mxu0 0.0
    %459 = vmatprep.subr.mxu0 0.0
    %460 = vmatpush1.msra.mxu0 0.0
    %461 = vmatprep.subr.mxu0 0.0
    %462 = vmatpush1.msra.mxu0 0.0
    %463 = vmatprep.subr.mxu0 0.0
    %464 = vmatpush1.msra.mxu0 0.0
    %465 = vmatprep.subr.mxu0 0.0
    %466 = vmatpush1.msra.mxu0 0.0
    %467 = vmatprep.subr.mxu0 0.0
    %468 = vmatpush1.msra.mxu0 0.0
    %469 = vmatprep.subr.mxu0 0.0
    %470 = vmatpush1.msra.mxu0 0.0
    %471 = vmatprep.subr.mxu0 0.0
    %472 = vmatpush1.msra.mxu0 0.0
    %473 = vmatprep.subr.mxu0 0.0
    %474 = vmatpush1.msra.mxu0 0.0
    %475 = vmatprep.subr.mxu0 0.0
    %476 = vmatpush1.msra.mxu0 0.0
    %477 = vmatprep.subr.mxu0 0.0
    %478 = vmatpush1.msra.mxu0 0.0
    %479 = vmatprep.subr.mxu0 0.0
    %480 = vmatpush1.msra.mxu0 0.0
    %481 = vmatprep.subr.mxu0 0.0
    %482 = vmatpush1.msra.mxu0 0.0
    %483 = vmatprep.subr.mxu0 0.0
    %484 = vmatpush1.msra.mxu0 0.0
    %485 = vmatprep.subr.mxu0 0.0
    %486 = vmatpush1.msra.mxu0 0.0
    %487 = vmatprep.subr.mxu0 0.0
    %488 = vmatpush1.msra.mxu0 0.0
    %489 = vmatprep.subr.mxu0 0.0
    %490 = vmatpush1.msra.mxu0 0.0
    %491 = vmatprep.subr.mxu0 0.0
    %492 = vmatpush1.msra.mxu0 0.0
    %493 = vmatprep.subr.mxu0 0.0
    %494 = vmatpush1.msra.mxu0 0.0
    %495 = vmatprep.subr.mxu0 0.0
    %496 = vmatpush1.msra.mxu0 0.0
    %497 = vmatprep.subr.mxu0 0.0
    %498 = vmatpush1.msra.mxu0 0.0
    %499 = vmatprep.subr.mxu0 0.0
    %500 = vmatpush1.msra.mxu0 0.0
    %501 = vmatprep.subr.mxu0 0.0
    %502 = vmatpush1.msra.mxu0 0.0
    %503 = vmatprep.subr.mxu0 0.0
    %504 = vmatpush1.msra.mxu0 0.0
    %505 = vmatprep.subr.mxu0 0.0
    %506 = vmatpush1.msra.mxu0 0.0
    %507 = vmatprep.subr.mxu0 0.0
    %508 = vmatpush1.msra.mxu0 0.0
    %509 = vmatprep.subr.mxu0 0.0
    %510 = vmatpush1.msra.mxu0 0.0
    %511 = vmatprep.mubr.f32.mxu0 0.0
    %v512 = vand.u32 %v165, 4294901760
    %v513 = vsub.f32 %v165, %v512
    %v514 = vand.u32 %v513, 4294901760
    %515 = vmatmul.mubr.f32.gmra.mrb[0].mxu0 %v514
    %v516 = vpop.f32.mrb[0].mxu0
    %v517 = vadd.f32 %v433, %v516
    %v518 = vpop.f32.mrb[0].mxu0
    %519 = vmatprep.mubr.f32.mxu0 0.0
    %v520 = vand.u32 %v168, 4294901760
    %v521 = vsub.f32 %v168, %v520
    %v522 = vand.u32 %v521, 4294901760
    %523 = vmatmul.mubr.f32.gmra.mrb[0].mxu0 %v522
    %v524 = vpop.f32.mrb[0].mxu0
    %v525 = vadd.f32 %v440, %v524
    %v526 = vpop.f32.mrb[0].mxu0
    %527 = vdwg.mxu0
    %528 = vmatprep.subr.mxu0 0.0
    %v529 = vand.u32 %v152, 4294901760
    %v530 = vsub.f32 %v152, %v529
    %v531 = vand.u32 %v530, 4294901760
    %532 = vmatpush1.msra.mxu0 %v531
    %533 = vmatprep.subr.mxu0 0.0
    %v534 = vand.u32 %v153, 4294901760
    %v535 = vsub.f32 %v153, %v534
    %v536 = vand.u32 %v535, 4294901760
    %537 = vmatpush1.msra.mxu0 %v536
    %538 = vmatprep.subr.mxu0 0.0
    %v539 = vand.u32 %v154, 4294901760
    %v540 = vsub.f32 %v154, %v539
    %v541 = vand.u32 %v540, 4294901760
    %542 = vmatpush1.msra.mxu0 %v541
    %543 = vmatprep.subr.mxu0 0.0
    %v544 = vand.u32 %v155, 4294901760
    %v545 = vsub.f32 %v155, %v544
    %v546 = vand.u32 %v545, 4294901760
    %547 = vmatpush1.msra.mxu0 %v546
    %548 = vmatprep.subr.mxu0 0.0
    %549 = vmatpush1.msra.mxu0 0.0
    %550 = vmatprep.subr.mxu0 0.0
    %551 = vmatpush1.msra.mxu0 0.0
    %552 = vmatprep.subr.mxu0 0.0
    %553 = vmatpush1.msra.mxu0 0.0
    %554 = vmatprep.subr.mxu0 0.0
    %555 = vmatpush1.msra.mxu0 0.0
    %556 = vmatprep.subr.mxu0 0.0
    %557 = vmatpush1.msra.mxu0 0.0
    %558 = vmatprep.subr.mxu0 0.0
    %559 = vmatpush1.msra.mxu0 0.0
    %560 = vmatprep.subr.mxu0 0.0
    %561 = vmatpush1.msra.mxu0 0.0
    %562 = vmatprep.subr.mxu0 0.0
    %563 = vmatpush1.msra.mxu0 0.0
    %564 = vmatprep.subr.mxu0 0.0
    %565 = vmatpush1.msra.mxu0 0.0
    %566 = vmatprep.subr.mxu0 0.0
    %567 = vmatpush1.msra.mxu0 0.0
    %568 = vmatprep.subr.mxu0 0.0
    %569 = vmatpush1.msra.mxu0 0.0
    %570 = vmatprep.subr.mxu0 0.0
    %571 = vmatpush1.msra.mxu0 0.0
    %572 = vmatprep.subr.mxu0 0.0
    %573 = vmatpush1.msra.mxu0 0.0
    %574 = vmatprep.subr.mxu0 0.0
    %575 = vmatpush1.msra.mxu0 0.0
    %576 = vmatprep.subr.mxu0 0.0
    %577 = vmatpush1.msra.mxu0 0.0
    %578 = vmatprep.subr.mxu0 0.0
    %579 = vmatpush1.msra.mxu0 0.0
    %580 = vmatprep.subr.mxu0 0.0
    %581 = vmatpush1.msra.mxu0 0.0
    %582 = vmatprep.subr.mxu0 0.0
    %583 = vmatpush1.msra.mxu0 0.0
    %584 = vmatprep.subr.mxu0 0.0
    %585 = vmatpush1.msra.mxu0 0.0
    %586 = vmatprep.subr.mxu0 0.0
    %587 = vmatpush1.msra.mxu0 0.0
    %588 = vmatprep.subr.mxu0 0.0
    %589 = vmatpush1.msra.mxu0 0.0
    %590 = vmatprep.subr.mxu0 0.0
    %591 = vmatpush1.msra.mxu0 0.0
    %592 = vmatprep.subr.mxu0 0.0
    %593 = vmatpush1.msra.mxu0 0.0
    %594 = vmatprep.subr.mxu0 0.0
    %595 = vmatpush1.msra.mxu0 0.0
    %596 = vmatprep.subr.mxu0 0.0
    %597 = vmatpush1.msra.mxu0 0.0
    %598 = vmatprep.subr.mxu0 0.0
    %599 = vmatpush1.msra.mxu0 0.0
    %600 = vmatprep.subr.mxu0 0.0
    %601 = vmatpush1.msra.mxu0 0.0
    %602 = vmatprep.subr.mxu0 0.0
    %603 = vmatpush1.msra.mxu0 0.0
    %604 = vmatprep.mubr.f32.mxu0 0.0
    %v605 = vand.u32 %v165, 4294901760
    %606 = vmatmul.mubr.f32.gmra.mrb[0].mxu0 %v605
    %v607 = vpop.f32.mrb[0].mxu0
    %v608 = vadd.f32 %v517, %v607
    %v609 = vpop.f32.mrb[0].mxu0
    %610 = vmatprep.mubr.f32.mxu0 0.0
    %v611 = vand.u32 %v168, 4294901760
    %612 = vmatmul.mubr.f32.gmra.mrb[0].mxu0 %v611
    %v613 = vpop.f32.mrb[0].mxu0
    %v614 = vadd.f32 %v525, %v613
    %v615 = vpop.f32.mrb[0].mxu0
    %616 = vdwg.mxu0
    %617 = vmatprep.subr.mxu0 0.0
    %v618 = vand.u32 %v152, 4294901760
    %619 = vmatpush1.msra.mxu0 %v618
    %620 = vmatprep.subr.mxu0 0.0
    %v621 = vand.u32 %v153, 4294901760
    %622 = vmatpush1.msra.mxu0 %v621
    %623 = vmatprep.subr.mxu0 0.0
    %v624 = vand.u32 %v154, 4294901760
    %625 = vmatpush1.msra.mxu0 %v624
    %626 = vmatprep.subr.mxu0 0.0
    %v627 = vand.u32 %v155, 4294901760
    %628 = vmatpush1.msra.mxu0 %v627
    %629 = vmatprep.subr.mxu0 0.0
    %630 = vmatpush1.msra.mxu0 0.0
    %631 = vmatprep.subr.mxu0 0.0
    %632 = vmatpush1.msra.mxu0 0.0
    %633 = vmatprep.subr.mxu0 0.0
    %634 = vmatpush1.msra.mxu0 0.0
    %635 = vmatprep.subr.mxu0 0.0
    %636 = vmatpush1.msra.mxu0 0.0
    %637 = vmatprep.subr.mxu0 0.0
    %638 = vmatpush1.msra.mxu0 0.0
    %639 = vmatprep.subr.mxu0 0.0
    %640 = vmatpush1.msra.mxu0 0.0
    %641 = vmatprep.subr.mxu0 0.0
    %642 = vmatpush1.msra.mxu0 0.0
    %643 = vmatprep.subr.mxu0 0.0
    %644 = vmatpush1.msra.mxu0 0.0
    %645 = vmatprep.subr.mxu0 0.0
    %646 = vmatpush1.msra.mxu0 0.0
    %647 = vmatprep.subr.mxu0 0.0
    %648 = vmatpush1.msra.mxu0 0.0
    %649 = vmatprep.subr.mxu0 0.0
    %650 = vmatpush1.msra.mxu0 0.0
    %651 = vmatprep.subr.mxu0 0.0
    %652 = vmatpush1.msra.mxu0 0.0
    %653 = vmatprep.subr.mxu0 0.0
    %654 = vmatpush1.msra.mxu0 0.0
    %655 = vmatprep.subr.mxu0 0.0
    %656 = vmatpush1.msra.mxu0 0.0
    %657 = vmatprep.subr.mxu0 0.0
    %658 = vmatpush1.msra.mxu0 0.0
    %659 = vmatprep.subr.mxu0 0.0
    %660 = vmatpush1.msra.mxu0 0.0
    %661 = vmatprep.subr.mxu0 0.0
    %662 = vmatpush1.msra.mxu0 0.0
    %663 = vmatprep.subr.mxu0 0.0
    %664 = vmatpush1.msra.mxu0 0.0
    %665 = vmatprep.subr.mxu0 0.0
    %666 = vmatpush1.msra.mxu0 0.0
    %667 = vmatprep.subr.mxu0 0.0
    %668 = vmatpush1.msra.mxu0 0.0
    %669 = vmatprep.subr.mxu0 0.0
    %670 = vmatpush1.msra.mxu0 0.0
    %671 = vmatprep.subr.mxu0 0.0
    %672 = vmatpush1.msra.mxu0 0.0
    %673 = vmatprep.subr.mxu0 0.0
    %674 = vmatpush1.msra.mxu0 0.0
    %675 = vmatprep.subr.mxu0 0.0
    %676 = vmatpush1.msra.mxu0 0.0
    %677 = vmatprep.subr.mxu0 0.0
    %678 = vmatpush1.msra.mxu0 0.0
    %679 = vmatprep.subr.mxu0 0.0
    %680 = vmatpush1.msra.mxu0 0.0
    %681 = vmatprep.subr.mxu0 0.0
    %682 = vmatpush1.msra.mxu0 0.0
    %683 = vmatprep.subr.mxu0 0.0
    %684 = vmatpush1.msra.mxu0 0.0
    %685 = vmatprep.mubr.f32.mxu0 0.0
    %v686 = vand.u32 %v165, 4294901760
    %687 = vmatmul.mubr.f32.gmra.mrb[0].mxu0 %v686
    %v688 = vpop.f32.mrb[0].mxu0
    %v689 = vadd.f32 %v608, %v688
    %v690 = vpop.f32.mrb[0].mxu0
    %691 = vmatprep.mubr.f32.mxu0 0.0
    %v692 = vand.u32 %v168, 4294901760
    %693 = vmatmul.mubr.f32.gmra.mrb[0].mxu0 %v692
    %v694 = vpop.f32.mrb[0].mxu0
    %v695 = vadd.f32 %v614, %v694
    %v696 = vpop.f32.mrb[0].mxu0
    %697 = vdwg.mxu0
    %v698 = vtanh.pop %v689
    %v699 = vtanh.pop %v695
    %701 = vset.pattern.permute.xlu0 0
    %702 = vperm.xlu0 %701, %v150
    %v703 = vpop.permute.xlu0 %702
    %706 = vset.pattern.permute.xlu0 0
    %707 = vperm.xlu0 %706, %v151
    %v708 = vpop.permute.xlu0 %707
    %v710 = vmul.f32 %v703, %v698
    %v711 = vmul.f32 %v708, %v699
    %vm712 = vcmask 64512
    %v714 = vsel %vm712, %v148, 0
    %716 = vmatprep.subr.mxu0 0.0
    %v717 = vand.u32 %v710, 4294901760
    %718 = vmatpush1.msra.mxu0 %v717
    %719 = vmatprep.subr.mxu0 0.0
    %720 = vmatpush1.msra.mxu0 0.0
    %721 = vmatprep.subr.mxu0 0.0
    %722 = vmatpush1.msra.mxu0 0.0
    %723 = vmatprep.subr.mxu0 0.0
    %724 = vmatpush1.msra.mxu0 0.0
    %725 = vmatprep.subr.mxu0 0.0
    %726 = vmatpush1.msra.mxu0 0.0
    %727 = vmatprep.subr.mxu0 0.0
    %728 = vmatpush1.msra.mxu0 0.0
    %729 = vmatprep.subr.mxu0 0.0
    %730 = vmatpush1.msra.mxu0 0.0
    %731 = vmatprep.subr.mxu0 0.0
    %732 = vmatpush1.msra.mxu0 0.0
    %733 = vmatprep.subr.mxu0 0.0
    %734 = vmatpush1.msra.mxu0 0.0
    %735 = vmatprep.subr.mxu0 0.0
    %736 = vmatpush1.msra.mxu0 0.0
    %737 = vmatprep.subr.mxu0 0.0
    %738 = vmatpush1.msra.mxu0 0.0
    %739 = vmatprep.subr.mxu0 0.0
    %740 = vmatpush1.msra.mxu0 0.0
    %741 = vmatprep.subr.mxu0 0.0
    %742 = vmatpush1.msra.mxu0 0.0
    %743 = vmatprep.subr.mxu0 0.0
    %744 = vmatpush1.msra.mxu0 0.0
    %745 = vmatprep.subr.mxu0 0.0
    %746 = vmatpush1.msra.mxu0 0.0
    %747 = vmatprep.subr.mxu0 0.0
    %748 = vmatpush1.msra.mxu0 0.0
    %749 = vmatprep.subr.mxu0 0.0
    %750 = vmatpush1.msra.mxu0 0.0
    %751 = vmatprep.subr.mxu0 0.0
    %752 = vmatpush1.msra.mxu0 0.0
    %753 = vmatprep.subr.mxu0 0.0
    %754 = vmatpush1.msra.mxu0 0.0
    %755 = vmatprep.subr.mxu0 0.0
    %756 = vmatpush1.msra.mxu0 0.0
    %757 = vmatprep.subr.mxu0 0.0
    %758 = vmatpush1.msra.mxu0 0.0
    %759 = vmatprep.subr.mxu0 0.0
    %760 = vmatpush1.msra.mxu0 0.0
    %761 = vmatprep.subr.mxu0 0.0
    %762 = vmatpush1.msra.mxu0 0.0
    %763 = vmatprep.subr.mxu0 0.0
    %764 = vmatpush1.msra.mxu0 0.0
    %765 = vmatprep.subr.mxu0 0.0
    %766 = vmatpush1.msra.mxu0 0.0
    %767 = vmatprep.subr.mxu0 0.0
    %768 = vmatpush1.msra.mxu0 0.0
    %769 = vmatprep.subr.mxu0 0.0
    %770 = vmatpush1.msra.mxu0 0.0
    %771 = vmatprep.subr.mxu0 0.0
    %772 = vmatpush1.msra.mxu0 0.0
    %773 = vmatprep.subr.mxu0 0.0
    %774 = vmatpush1.msra.mxu0 0.0
    %775 = vmatprep.subr.mxu0 0.0
    %776 = vmatpush1.msra.mxu0 0.0
    %777 = vmatprep.subr.mxu0 0.0
    %778 = vmatpush1.msra.mxu0 0.0
    %779 = vmatprep.subr.mxu0 0.0
    %780 = vmatpush1.msra.mxu0 0.0
    %781 = vmatprep.mubr.f32.mxu0 0.0
    %v782 = vand.u32 %v714, 4294901760
    %v783 = vsub.f32 %v714, %v782
    %v784 = vand.u32 %v783, 4294901760
    %v785 = vsub.f32 %v783, %v784
    %v786 = vand.u32 %v785, 4294901760
    %787 = vmatmul.mubr.f32.gmra.mrb[0].mxu0 %v786
    %v788 = vpop.f32.mrb[0].mxu0
    %v789 = vadd.f32 0.0, %v788
    %v790 = vpop.f32.mrb[0].mxu0
    %791 = vdwg.mxu0
    %792 = vmatprep.subr.mxu0 0.0
    %v793 = vand.u32 %v710, 4294901760
    %v794 = vsub.f32 %v710, %v793
    %v795 = vand.u32 %v794, 4294901760
    %v796 = vsub.f32 %v794, %v795
    %v797 = vand.u32 %v796, 4294901760
    %798 = vmatpush1.msra.mxu0 %v797
    %799 = vmatprep.subr.mxu0 0.0
    %800 = vmatpush1.msra.mxu0 0.0
    %801 = vmatprep.subr.mxu0 0.0
    %802 = vmatpush1.msra.mxu0 0.0
    %803 = vmatprep.subr.mxu0 0.0
    %804 = vmatpush1.msra.mxu0 0.0
    %805 = vmatprep.subr.mxu0 0.0
    %806 = vmatpush1.msra.mxu0 0.0
    %807 = vmatprep.subr.mxu0 0.0
    %808 = vmatpush1.msra.mxu0 0.0
    %809 = vmatprep.subr.mxu0 0.0
    %810 = vmatpush1.msra.mxu0 0.0
    %811 = vmatprep.subr.mxu0 0.0
    %812 = vmatpush1.msra.mxu0 0.0
    %813 = vmatprep.subr.mxu0 0.0
    %814 = vmatpush1.msra.mxu0 0.0
    %815 = vmatprep.subr.mxu0 0.0
    %816 = vmatpush1.msra.mxu0 0.0
    %817 = vmatprep.subr.mxu0 0.0
    %818 = vmatpush1.msra.mxu0 0.0
    %819 = vmatprep.subr.mxu0 0.0
    %820 = vmatpush1.msra.mxu0 0.0
    %821 = vmatprep.subr.mxu0 0.0
    %822 = vmatpush1.msra.mxu0 0.0
    %823 = vmatprep.subr.mxu0 0.0
    %824 = vmatpush1.msra.mxu0 0.0
    %825 = vmatprep.subr.mxu0 0.0
    %826 = vmatpush1.msra.mxu0 0.0
    %827 = vmatprep.subr.mxu0 0.0
    %828 = vmatpush1.msra.mxu0 0.0
    %829 = vmatprep.subr.mxu0 0.0
    %830 = vmatpush1.msra.mxu0 0.0
    %831 = vmatprep.subr.mxu0 0.0
    %832 = vmatpush1.msra.mxu0 0.0
    %833 = vmatprep.subr.mxu0 0.0
    %834 = vmatpush1.msra.mxu0 0.0
    %835 = vmatprep.subr.mxu0 0.0
    %836 = vmatpush1.msra.mxu0 0.0
    %837 = vmatprep.subr.mxu0 0.0
    %838 = vmatpush1.msra.mxu0 0.0
    %839 = vmatprep.subr.mxu0 0.0
    %840 = vmatpush1.msra.mxu0 0.0
    %841 = vmatprep.subr.mxu0 0.0
    %842 = vmatpush1.msra.mxu0 0.0
    %843 = vmatprep.subr.mxu0 0.0
    %844 = vmatpush1.msra.mxu0 0.0
    %845 = vmatprep.subr.mxu0 0.0
    %846 = vmatpush1.msra.mxu0 0.0
    %847 = vmatprep.subr.mxu0 0.0
    %848 = vmatpush1.msra.mxu0 0.0
    %849 = vmatprep.subr.mxu0 0.0
    %850 = vmatpush1.msra.mxu0 0.0
    %851 = vmatprep.subr.mxu0 0.0
    %852 = vmatpush1.msra.mxu0 0.0
    %853 = vmatprep.subr.mxu0 0.0
    %854 = vmatpush1.msra.mxu0 0.0
    %855 = vmatprep.subr.mxu0 0.0
    %856 = vmatpush1.msra.mxu0 0.0
    %857 = vmatprep.subr.mxu0 0.0
    %858 = vmatpush1.msra.mxu0 0.0
    %859 = vmatprep.subr.mxu0 0.0
    %860 = vmatpush1.msra.mxu0 0.0
    %861 = vmatprep.mubr.f32.mxu0 0.0
    %v862 = vand.u32 %v714, 4294901760
    %863 = vmatmul.mubr.f32.gmra.mrb[0].mxu0 %v862
    %v864 = vpop.f32.mrb[0].mxu0
    %v865 = vadd.f32 %v789, %v864
    %v866 = vpop.f32.mrb[0].mxu0
    %867 = vdwg.mxu0
    %868 = vmatprep.subr.mxu0 0.0
    %v869 = vand.u32 %v710, 4294901760
    %v870 = vsub.f32 %v710, %v869
    %871 = vmatpush1.msra.mxu0 %v870
    %872 = vmatprep.subr.mxu0 0.0
    %873 = vmatpush1.msra.mxu0 0.0
    %874 = vmatprep.subr.mxu0 0.0
    %875 = vmatpush1.msra.mxu0 0.0
    %876 = vmatprep.subr.mxu0 0.0
    %877 = vmatpush1.msra.mxu0 0.0
    %878 = vmatprep.subr.mxu0 0.0
    %879 = vmatpush1.msra.mxu0 0.0
    %880 = vmatprep.subr.mxu0 0.0
    %881 = vmatpush1.msra.mxu0 0.0
    %882 = vmatprep.subr.mxu0 0.0
    %883 = vmatpush1.msra.mxu0 0.0
    %884 = vmatprep.subr.mxu0 0.0
    %885 = vmatpush1.msra.mxu0 0.0
    %886 = vmatprep.subr.mxu0 0.0
    %887 = vmatpush1.msra.mxu0 0.0
    %888 = vmatprep.subr.mxu0 0.0
    %889 = vmatpush1.msra.mxu0 0.0
    %890 = vmatprep.subr.mxu0 0.0
    %891 = vmatpush1.msra.mxu0 0.0
    %892 = vmatprep.subr.mxu0 0.0
    %893 = vmatpush1.msra.mxu0 0.0
    %894 = vmatprep.subr.mxu0 0.0
    %895 = vmatpush1.msra.mxu0 0.0
    %896 = vmatprep.subr.mxu0 0.0
    %897 = vmatpush1.msra.mxu0 0.0
    %898 = vmatprep.subr.mxu0 0.0
    %899 = vmatpush1.msra.mxu0 0.0
    %900 = vmatprep.subr.mxu0 0.0
    %901 = vmatpush1.msra.mxu0 0.0
    %902 = vmatprep.subr.mxu0 0.0
    %903 = vmatpush1.msra.mxu0 0.0
    %904 = vmatprep.subr.mxu0 0.0
    %905 = vmatpush1.msra.mxu0 0.0
    %906 = vmatprep.subr.mxu0 0.0
    %907 = vmatpush1.msra.mxu0 0.0
    %908 = vmatprep.subr.mxu0 0.0
    %909 = vmatpush1.msra.mxu0 0.0
    %910 = vmatprep.subr.mxu0 0.0
    %911 = vmatpush1.msra.mxu0 0.0
    %912 = vmatprep.subr.mxu0 0.0
    %913 = vmatpush1.msra.mxu0 0.0
    %914 = vmatprep.subr.mxu0 0.0
    %915 = vmatpush1.msra.mxu0 0.0
    %916 = vmatprep.subr.mxu0 0.0
    %917 = vmatpush1.msra.mxu0 0.0
    %918 = vmatprep.subr.mxu0 0.0
    %919 = vmatpush1.msra.mxu0 0.0
    %920 = vmatprep.subr.mxu0 0.0
    %921 = vmatpush1.msra.mxu0 0.0
    %922 = vmatprep.subr.mxu0 0.0
    %923 = vmatpush1.msra.mxu0 0.0
    %924 = vmatprep.subr.mxu0 0.0
    %925 = vmatpush1.msra.mxu0 0.0
    %926 = vmatprep.subr.mxu0 0.0
    %927 = vmatpush1.msra.mxu0 0.0
    %928 = vmatprep.subr.mxu0 0.0
    %929 = vmatpush1.msra.mxu0 0.0
    %930 = vmatprep.subr.mxu0 0.0
    %931 = vmatpush1.msra.mxu0 0.0
    %932 = vmatprep.subr.mxu0 0.0
    %933 = vmatpush1.msra.mxu0 0.0
    %934 = vmatprep.mubr.f32.mxu0 0.0
    %v935 = vand.u32 %v714, 4294901760
    %v936 = vsub.f32 %v714, %v935
    %937 = vmatmul.mubr.f32.gmra.mrb[0].mxu0 %v936
    %v938 = vpop.f32.mrb[0].mxu0
    %v939 = vadd.f32 %v865, %v938
    %v940 = vpop.f32.mrb[0].mxu0
    %941 = vdwg.mxu0
    %942 = vmatprep.subr.mxu0 0.0
    %v943 = vand.u32 %v710, 4294901760
    %944 = vmatpush1.msra.mxu0 %v943
    %945 = vmatprep.subr.mxu0 0.0
    %946 = vmatpush1.msra.mxu0 0.0
    %947 = vmatprep.subr.mxu0 0.0
    %948 = vmatpush1.msra.mxu0 0.0
    %949 = vmatprep.subr.mxu0 0.0
    %950 = vmatpush1.msra.mxu0 0.0
    %951 = vmatprep.subr.mxu0 0.0
    %952 = vmatpush1.msra.mxu0 0.0
    %953 = vmatprep.subr.mxu0 0.0
    %954 = vmatpush1.msra.mxu0 0.0
    %955 = vmatprep.subr.mxu0 0.0
    %956 = vmatpush1.msra.mxu0 0.0
    %957 = vmatprep.subr.mxu0 0.0
    %958 = vmatpush1.msra.mxu0 0.0
    %959 = vmatprep.subr.mxu0 0.0
    %960 = vmatpush1.msra.mxu0 0.0
    %961 = vmatprep.subr.mxu0 0.0
    %962 = vmatpush1.msra.mxu0 0.0
    %963 = vmatprep.subr.mxu0 0.0
    %964 = vmatpush1.msra.mxu0 0.0
    %965 = vmatprep.subr.mxu0 0.0
    %966 = vmatpush1.msra.mxu0 0.0
    %967 = vmatprep.subr.mxu0 0.0
    %968 = vmatpush1.msra.mxu0 0.0
    %969 = vmatprep.subr.mxu0 0.0
    %970 = vmatpush1.msra.mxu0 0.0
    %971 = vmatprep.subr.mxu0 0.0
    %972 = vmatpush1.msra.mxu0 0.0
    %973 = vmatprep.subr.mxu0 0.0
    %974 = vmatpush1.msra.mxu0 0.0
    %975 = vmatprep.subr.mxu0 0.0
    %976 = vmatpush1.msra.mxu0 0.0
    %977 = vmatprep.subr.mxu0 0.0
    %978 = vmatpush1.msra.mxu0 0.0
    %979 = vmatprep.subr.mxu0 0.0
    %980 = vmatpush1.msra.mxu0 0.0
    %981 = vmatprep.subr.mxu0 0.0
    %982 = vmatpush1.msra.mxu0 0.0
    %983 = vmatprep.subr.mxu0 0.0
    %984 = vmatpush1.msra.mxu0 0.0
    %985 = vmatprep.subr.mxu0 0.0
    %986 = vmatpush1.msra.mxu0 0.0
    %987 = vmatprep.subr.mxu0 0.0
    %988 = vmatpush1.msra.mxu0 0.0
    %989 = vmatprep.subr.mxu0 0.0
    %990 = vmatpush1.msra.mxu0 0.0
    %991 = vmatprep.subr.mxu0 0.0
    %992 = vmatpush1.msra.mxu0 0.0
    %993 = vmatprep.subr.mxu0 0.0
    %994 = vmatpush1.msra.mxu0 0.0
    %995 = vmatprep.subr.mxu0 0.0
    %996 = vmatpush1.msra.mxu0 0.0
    %997 = vmatprep.subr.mxu0 0.0
    %998 = vmatpush1.msra.mxu0 0.0
    %999 = vmatprep.subr.mxu0 0.0
    %1000 = vmatpush1.msra.mxu0 0.0
    %1001 = vmatprep.subr.mxu0 0.0
    %1002 = vmatpush1.msra.mxu0 0.0
    %1003 = vmatprep.subr.mxu0 0.0
    %1004 = vmatpush1.msra.mxu0 0.0
    %1005 = vmatprep.subr.mxu0 0.0
    %1006 = vmatpush1.msra.mxu0 0.0
    %1007 = vmatprep.mubr.f32.mxu0 0.0
    %v1008 = vand.u32 %v714, 4294901760
    %v1009 = vsub.f32 %v714, %v1008
    %v1010 = vand.u32 %v1009, 4294901760
    %1011 = vmatmul.mubr.f32.gmra.mrb[0].mxu0 %v1010
    %v1012 = vpop.f32.mrb[0].mxu0
    %v1013 = vadd.f32 %v939, %v1012
    %v1014 = vpop.f32.mrb[0].mxu0
    %1015 = vdwg.mxu0
    %1016 = vmatprep.subr.mxu0 0.0
    %v1017 = vand.u32 %v710, 4294901760
    %v1018 = vsub.f32 %v710, %v1017
    %v1019 = vand.u32 %v1018, 4294901760
    %1020 = vmatpush1.msra.mxu0 %v1019
    %1021 = vmatprep.subr.mxu0 0.0
    %1022 = vmatpush1.msra.mxu0 0.0
    %1023 = vmatprep.subr.mxu0 0.0
    %1024 = vmatpush1.msra.mxu0 0.0
    %1025 = vmatprep.subr.mxu0 0.0
    %1026 = vmatpush1.msra.mxu0 0.0
    %1027 = vmatprep.subr.mxu0 0.0
    %1028 = vmatpush1.msra.mxu0 0.0
    %1029 = vmatprep.subr.mxu0 0.0
    %1030 = vmatpush1.msra.mxu0 0.0
    %1031 = vmatprep.subr.mxu0 0.0
    %1032 = vmatpush1.msra.mxu0 0.0
    %1033 = vmatprep.subr.mxu0 0.0
    %1034 = vmatpush1.msra.mxu0 0.0
    %1035 = vmatprep.subr.mxu0 0.0
    %1036 = vmatpush1.msra.mxu0 0.0
    %1037 = vmatprep.subr.mxu0 0.0
    %1038 = vmatpush1.msra.mxu0 0.0
    %1039 = vmatprep.subr.mxu0 0.0
    %1040 = vmatpush1.msra.mxu0 0.0
    %1041 = vmatprep.subr.mxu0 0.0
    %1042 = vmatpush1.msra.mxu0 0.0
    %1043 = vmatprep.subr.mxu0 0.0
    %1044 = vmatpush1.msra.mxu0 0.0
    %1045 = vmatprep.subr.mxu0 0.0
    %1046 = vmatpush1.msra.mxu0 0.0
    %1047 = vmatprep.subr.mxu0 0.0
    %1048 = vmatpush1.msra.mxu0 0.0
    %1049 = vmatprep.subr.mxu0 0.0
    %1050 = vmatpush1.msra.mxu0 0.0
    %1051 = vmatprep.subr.mxu0 0.0
    %1052 = vmatpush1.msra.mxu0 0.0
    %1053 = vmatprep.subr.mxu0 0.0
    %1054 = vmatpush1.msra.mxu0 0.0
    %1055 = vmatprep.subr.mxu0 0.0
    %1056 = vmatpush1.msra.mxu0 0.0
    %1057 = vmatprep.subr.mxu0 0.0
    %1058 = vmatpush1.msra.mxu0 0.0
    %1059 = vmatprep.subr.mxu0 0.0
    %1060 = vmatpush1.msra.mxu0 0.0
    %1061 = vmatprep.subr.mxu0 0.0
    %1062 = vmatpush1.msra.mxu0 0.0
    %1063 = vmatprep.subr.mxu0 0.0
    %1064 = vmatpush1.msra.mxu0 0.0
    %1065 = vmatprep.subr.mxu0 0.0
    %1066 = vmatpush1.msra.mxu0 0.0
    %1067 = vmatprep.subr.mxu0 0.0
    %1068 = vmatpush1.msra.mxu0 0.0
    %1069 = vmatprep.subr.mxu0 0.0
    %1070 = vmatpush1.msra.mxu0 0.0
    %1071 = vmatprep.subr.mxu0 0.0
    %1072 = vmatpush1.msra.mxu0 0.0
    %1073 = vmatprep.subr.mxu0 0.0
    %1074 = vmatpush1.msra.mxu0 0.0
    %1075 = vmatprep.subr.mxu0 0.0
    %1076 = vmatpush1.msra.mxu0 0.0
    %1077 = vmatprep.subr.mxu0 0.0
    %1078 = vmatpush1.msra.mxu0 0.0
    %1079 = vmatprep.subr.mxu0 0.0
    %1080 = vmatpush1.msra.mxu0 0.0
    %1081 = vmatprep.subr.mxu0 0.0
    %1082 = vmatpush1.msra.mxu0 0.0
    %1083 = vmatprep.mubr.f32.mxu0 0.0
    %v1084 = vand.u32 %v714, 4294901760
    %1085 = vmatmul.mubr.f32.gmra.mrb[0].mxu0 %v1084
    %v1086 = vpop.f32.mrb[0].mxu0
    %v1087 = vadd.f32 %v1013, %v1086
    %v1088 = vpop.f32.mrb[0].mxu0
    %1089 = vdwg.mxu0
    %1090 = vmatprep.subr.mxu0 0.0
    %v1091 = vand.u32 %v710, 4294901760
    %1092 = vmatpush1.msra.mxu0 %v1091
    %1093 = vmatprep.subr.mxu0 0.0
    %1094 = vmatpush1.msra.mxu0 0.0
    %1095 = vmatprep.subr.mxu0 0.0
    %1096 = vmatpush1.msra.mxu0 0.0
    %1097 = vmatprep.subr.mxu0 0.0
    %1098 = vmatpush1.msra.mxu0 0.0
    %1099 = vmatprep.subr.mxu0 0.0
    %1100 = vmatpush1.msra.mxu0 0.0
    %1101 = vmatprep.subr.mxu0 0.0
    %1102 = vmatpush1.msra.mxu0 0.0
    %1103 = vmatprep.subr.mxu0 0.0
    %1104 = vmatpush1.msra.mxu0 0.0
    %1105 = vmatprep.subr.mxu0 0.0
    %1106 = vmatpush1.msra.mxu0 0.0
    %1107 = vmatprep.subr.mxu0 0.0
    %1108 = vmatpush1.msra.mxu0 0.0
    %1109 = vmatprep.subr.mxu0 0.0
    %1110 = vmatpush1.msra.mxu0 0.0
    %1111 = vmatprep.subr.mxu0 0.0
    %1112 = vmatpush1.msra.mxu0 0.0
    %1113 = vmatprep.subr.mxu0 0.0
    %1114 = vmatpush1.msra.mxu0 0.0
    %1115 = vmatprep.subr.mxu0 0.0
    %1116 = vmatpush1.msra.mxu0 0.0
    %1117 = vmatprep.subr.mxu0 0.0
    %1118 = vmatpush1.msra.mxu0 0.0
    %1119 = vmatprep.subr.mxu0 0.0
    %1120 = vmatpush1.msra.mxu0 0.0
    %1121 = vmatprep.subr.mxu0 0.0
    %1122 = vmatpush1.msra.mxu0 0.0
    %1123 = vmatprep.subr.mxu0 0.0
    %1124 = vmatpush1.msra.mxu0 0.0
    %1125 = vmatprep.subr.mxu0 0.0
    %1126 = vmatpush1.msra.mxu0 0.0
    %1127 = vmatprep.subr.mxu0 0.0
    %1128 = vmatpush1.msra.mxu0 0.0
    %1129 = vmatprep.subr.mxu0 0.0
    %1130 = vmatpush1.msra.mxu0 0.0
    %1131 = vmatprep.subr.mxu0 0.0
    %1132 = vmatpush1.msra.mxu0 0.0
    %1133 = vmatprep.subr.mxu0 0.0
    %1134 = vmatpush1.msra.mxu0 0.0
    %1135 = vmatprep.subr.mxu0 0.0
    %1136 = vmatpush1.msra.mxu0 0.0
    %1137 = vmatprep.subr.mxu0 0.0
    %1138 = vmatpush1.msra.mxu0 0.0
    %1139 = vmatprep.subr.mxu0 0.0
    %1140 = vmatpush1.msra.mxu0 0.0
    %1141 = vmatprep.subr.mxu0 0.0
    %1142 = vmatpush1.msra.mxu0 0.0
    %1143 = vmatprep.subr.mxu0 0.0
    %1144 = vmatpush1.msra.mxu0 0.0
    %1145 = vmatprep.subr.mxu0 0.0
    %1146 = vmatpush1.msra.mxu0 0.0
    %1147 = vmatprep.subr.mxu0 0.0
    %1148 = vmatpush1.msra.mxu0 0.0
    %1149 = vmatprep.subr.mxu0 0.0
    %1150 = vmatpush1.msra.mxu0 0.0
    %1151 = vmatprep.subr.mxu0 0.0
    %1152 = vmatpush1.msra.mxu0 0.0
    %1153 = vmatprep.subr.mxu0 0.0
    %1154 = vmatpush1.msra.mxu0 0.0
    %1155 = vmatprep.mubr.f32.mxu0 0.0
    %v1156 = vand.u32 %v714, 4294901760
    %1157 = vmatmul.mubr.f32.gmra.mrb[0].mxu0 %v1156
    %v1158 = vpop.f32.mrb[0].mxu0
    %v1159 = vadd.f32 %v1087, %v1158
    %v1160 = vpop.f32.mrb[0].mxu0
    %1161 = vdwg.mxu0
    %v1163 = vsel %vm712, %v149, 0
    %1165 = vmatprep.subr.mxu0 0.0
    %v1166 = vand.u32 %v711, 4294901760
    %1167 = vmatpush1.msra.mxu0 %v1166
    %1168 = vmatprep.subr.mxu0 0.0
    %1169 = vmatpush1.msra.mxu0 0.0
    %1170 = vmatprep.subr.mxu0 0.0
    %1171 = vmatpush1.msra.mxu0 0.0
    %1172 = vmatprep.subr.mxu0 0.0
    %1173 = vmatpush1.msra.mxu0 0.0
    %1174 = vmatprep.subr.mxu0 0.0
    %1175 = vmatpush1.msra.mxu0 0.0
    %1176 = vmatprep.subr.mxu0 0.0
    %1177 = vmatpush1.msra.mxu0 0.0
    %1178 = vmatprep.subr.mxu0 0.0
    %1179 = vmatpush1.msra.mxu0 0.0
    %1180 = vmatprep.subr.mxu0 0.0
    %1181 = vmatpush1.msra.mxu0 0.0
    %1182 = vmatprep.subr.mxu0 0.0
    %1183 = vmatpush1.msra.mxu0 0.0
    %1184 = vmatprep.subr.mxu0 0.0
    %1185 = vmatpush1.msra.mxu0 0.0
    %1186 = vmatprep.subr.mxu0 0.0
    %1187 = vmatpush1.msra.mxu0 0.0
    %1188 = vmatprep.subr.mxu0 0.0
    %1189 = vmatpush1.msra.mxu0 0.0
    %1190 = vmatprep.subr.mxu0 0.0
    %1191 = vmatpush1.msra.mxu0 0.0
    %1192 = vmatprep.subr.mxu0 0.0
    %1193 = vmatpush1.msra.mxu0 0.0
    %1194 = vmatprep.subr.mxu0 0.0
    %1195 = vmatpush1.msra.mxu0 0.0
    %1196 = vmatprep.subr.mxu0 0.0
    %1197 = vmatpush1.msra.mxu0 0.0
    %1198 = vmatprep.subr.mxu0 0.0
    %1199 = vmatpush1.msra.mxu0 0.0
    %1200 = vmatprep.subr.mxu0 0.0
    %1201 = vmatpush1.msra.mxu0 0.0
    %1202 = vmatprep.subr.mxu0 0.0
    %1203 = vmatpush1.msra.mxu0 0.0
    %1204 = vmatprep.subr.mxu0 0.0
    %1205 = vmatpush1.msra.mxu0 0.0
    %1206 = vmatprep.subr.mxu0 0.0
    %1207 = vmatpush1.msra.mxu0 0.0
    %1208 = vmatprep.subr.mxu0 0.0
    %1209 = vmatpush1.msra.mxu0 0.0
    %1210 = vmatprep.subr.mxu0 0.0
    %1211 = vmatpush1.msra.mxu0 0.0
    %1212 = vmatprep.subr.mxu0 0.0
    %1213 = vmatpush1.msra.mxu0 0.0
    %1214 = vmatprep.subr.mxu0 0.0
    %1215 = vmatpush1.msra.mxu0 0.0
    %1216 = vmatprep.subr.mxu0 0.0
    %1217 = vmatpush1.msra.mxu0 0.0
    %1218 = vmatprep.subr.mxu0 0.0
    %1219 = vmatpush1.msra.mxu0 0.0
    %1220 = vmatprep.subr.mxu0 0.0
    %1221 = vmatpush1.msra.mxu0 0.0
    %1222 = vmatprep.subr.mxu0 0.0
    %1223 = vmatpush1.msra.mxu0 0.0
    %1224 = vmatprep.subr.mxu0 0.0
    %1225 = vmatpush1.msra.mxu0 0.0
    %1226 = vmatprep.subr.mxu0 0.0
    %1227 = vmatpush1.msra.mxu0 0.0
    %1228 = vmatprep.subr.mxu0 0.0
    %1229 = vmatpush1.msra.mxu0 0.0
    %1230 = vmatprep.mubr.f32.mxu0 0.0
    %v1231 = vand.u32 %v1163, 4294901760
    %v1232 = vsub.f32 %v1163, %v1231
    %v1233 = vand.u32 %v1232, 4294901760
    %v1234 = vsub.f32 %v1232, %v1233
    %v1235 = vand.u32 %v1234, 4294901760
    %1236 = vmatmul.mubr.f32.gmra.mrb[0].mxu0 %v1235
    %v1237 = vpop.f32.mrb[0].mxu0
    %v1238 = vadd.f32 0.0, %v1237
    %v1239 = vpop.f32.mrb[0].mxu0
    %1240 = vdwg.mxu0
    %1241 = vmatprep.subr.mxu0 0.0
    %v1242 = vand.u32 %v711, 4294901760
    %v1243 = vsub.f32 %v711, %v1242
    %v1244 = vand.u32 %v1243, 4294901760
    %v1245 = vsub.f32 %v1243, %v1244
    %v1246 = vand.u32 %v1245, 4294901760
    %1247 = vmatpush1.msra.mxu0 %v1246
    %1248 = vmatprep.subr.mxu0 0.0
    %1249 = vmatpush1.msra.mxu0 0.0
    %1250 = vmatprep.subr.mxu0 0.0
    %1251 = vmatpush1.msra.mxu0 0.0
    %1252 = vmatprep.subr.mxu0 0.0
    %1253 = vmatpush1.msra.mxu0 0.0
    %1254 = vmatprep.subr.mxu0 0.0
    %1255 = vmatpush1.msra.mxu0 0.0
    %1256 = vmatprep.subr.mxu0 0.0
    %1257 = vmatpush1.msra.mxu0 0.0
    %1258 = vmatprep.subr.mxu0 0.0
    %1259 = vmatpush1.msra.mxu0 0.0
    %1260 = vmatprep.subr.mxu0 0.0
    %1261 = vmatpush1.msra.mxu0 0.0
    %1262 = vmatprep.subr.mxu0 0.0
    %1263 = vmatpush1.msra.mxu0 0.0
    %1264 = vmatprep.subr.mxu0 0.0
    %1265 = vmatpush1.msra.mxu0 0.0
    %1266 = vmatprep.subr.mxu0 0.0
    %1267 = vmatpush1.msra.mxu0 0.0
    %1268 = vmatprep.subr.mxu0 0.0
    %1269 = vmatpush1.msra.mxu0 0.0
    %1270 = vmatprep.subr.mxu0 0.0
    %1271 = vmatpush1.msra.mxu0 0.0
    %1272 = vmatprep.subr.mxu0 0.0
    %1273 = vmatpush1.msra.mxu0 0.0
    %1274 = vmatprep.subr.mxu0 0.0
    %1275 = vmatpush1.msra.mxu0 0.0
    %1276 = vmatprep.subr.mxu0 0.0
    %1277 = vmatpush1.msra.mxu0 0.0
    %1278 = vmatprep.subr.mxu0 0.0
    %1279 = vmatpush1.msra.mxu0 0.0
    %1280 = vmatprep.subr.mxu0 0.0
    %1281 = vmatpush1.msra.mxu0 0.0
    %1282 = vmatprep.subr.mxu0 0.0
    %1283 = vmatpush1.msra.mxu0 0.0
    %1284 = vmatprep.subr.mxu0 0.0
    %1285 = vmatpush1.msra.mxu0 0.0
    %1286 = vmatprep.subr.mxu0 0.0
    %1287 = vmatpush1.msra.mxu0 0.0
    %1288 = vmatprep.subr.mxu0 0.0
    %1289 = vmatpush1.msra.mxu0 0.0
    %1290 = vmatprep.subr.mxu0 0.0
    %1291 = vmatpush1.msra.mxu0 0.0
    %1292 = vmatprep.subr.mxu0 0.0
    %1293 = vmatpush1.msra.mxu0 0.0
    %1294 = vmatprep.subr.mxu0 0.0
    %1295 = vmatpush1.msra.mxu0 0.0
    %1296 = vmatprep.subr.mxu0 0.0
    %1297 = vmatpush1.msra.mxu0 0.0
    %1298 = vmatprep.subr.mxu0 0.0
    %1299 = vmatpush1.msra.mxu0 0.0
    %1300 = vmatprep.subr.mxu0 0.0
    %1301 = vmatpush1.msra.mxu0 0.0
    %1302 = vmatprep.subr.mxu0 0.0
    %1303 = vmatpush1.msra.mxu0 0.0
    %1304 = vmatprep.subr.mxu0 0.0
    %1305 = vmatpush1.msra.mxu0 0.0
    %1306 = vmatprep.subr.mxu0 0.0
    %1307 = vmatpush1.msra.mxu0 0.0
    %1308 = vmatprep.subr.mxu0 0.0
    %1309 = vmatpush1.msra.mxu0 0.0
    %1310 = vmatprep.mubr.f32.mxu0 0.0
    %v1311 = vand.u32 %v1163, 4294901760
    %1312 = vmatmul.mubr.f32.gmra.mrb[0].mxu0 %v1311
    %v1313 = vpop.f32.mrb[0].mxu0
    %v1314 = vadd.f32 %v1238, %v1313
    %v1315 = vpop.f32.mrb[0].mxu0
    %1316 = vdwg.mxu0
    %1317 = vmatprep.subr.mxu0 0.0
    %v1318 = vand.u32 %v711, 4294901760
    %v1319 = vsub.f32 %v711, %v1318
    %1320 = vmatpush1.msra.mxu0 %v1319
    %1321 = vmatprep.subr.mxu0 0.0
    %1322 = vmatpush1.msra.mxu0 0.0
    %1323 = vmatprep.subr.mxu0 0.0
    %1324 = vmatpush1.msra.mxu0 0.0
    %1325 = vmatprep.subr.mxu0 0.0
    %1326 = vmatpush1.msra.mxu0 0.0
    %1327 = vmatprep.subr.mxu0 0.0
    %1328 = vmatpush1.msra.mxu0 0.0
    %1329 = vmatprep.subr.mxu0 0.0
    %1330 = vmatpush1.msra.mxu0 0.0
    %1331 = vmatprep.subr.mxu0 0.0
    %1332 = vmatpush1.msra.mxu0 0.0
    %1333 = vmatprep.subr.mxu0 0.0
    %1334 = vmatpush1.msra.mxu0 0.0
    %1335 = vmatprep.subr.mxu0 0.0
    %1336 = vmatpush1.msra.mxu0 0.0
    %1337 = vmatprep.subr.mxu0 0.0
    %1338 = vmatpush1.msra.mxu0 0.0
    %1339 = vmatprep.subr.mxu0 0.0
    %1340 = vmatpush1.msra.mxu0 0.0
    %1341 = vmatprep.subr.mxu0 0.0
    %1342 = vmatpush1.msra.mxu0 0.0
    %1343 = vmatprep.subr.mxu0 0.0
    %1344 = vmatpush1.msra.mxu0 0.0
    %1345 = vmatprep.subr.mxu0 0.0
    %1346 = vmatpush1.msra.mxu0 0.0
    %1347 = vmatprep.subr.mxu0 0.0
    %1348 = vmatpush1.msra.mxu0 0.0
    %1349 = vmatprep.subr.mxu0 0.0
    %1350 = vmatpush1.msra.mxu0 0.0
    %1351 = vmatprep.subr.mxu0 0.0
    %1352 = vmatpush1.msra.mxu0 0.0
    %1353 = vmatprep.subr.mxu0 0.0
    %1354 = vmatpush1.msra.mxu0 0.0
    %1355 = vmatprep.subr.mxu0 0.0
    %1356 = vmatpush1.msra.mxu0 0.0
    %1357 = vmatprep.subr.mxu0 0.0
    %1358 = vmatpush1.msra.mxu0 0.0
    %1359 = vmatprep.subr.mxu0 0.0
    %1360 = vmatpush1.msra.mxu0 0.0
    %1361 = vmatprep.subr.mxu0 0.0
    %1362 = vmatpush1.msra.mxu0 0.0
    %1363 = vmatprep.subr.mxu0 0.0
    %1364 = vmatpush1.msra.mxu0 0.0
    %1365 = vmatprep.subr.mxu0 0.0
    %1366 = vmatpush1.msra.mxu0 0.0
    %1367 = vmatprep.subr.mxu0 0.0
    %1368 = vmatpush1.msra.mxu0 0.0
    %1369 = vmatprep.subr.mxu0 0.0
    %1370 = vmatpush1.msra.mxu0 0.0
    %1371 = vmatprep.subr.mxu0 0.0
    %1372 = vmatpush1.msra.mxu0 0.0
    %1373 = vmatprep.subr.mxu0 0.0
    %1374 = vmatpush1.msra.mxu0 0.0
    %1375 = vmatprep.subr.mxu0 0.0
    %1376 = vmatpush1.msra.mxu0 0.0
    %1377 = vmatprep.subr.mxu0 0.0
    %1378 = vmatpush1.msra.mxu0 0.0
    %1379 = vmatprep.subr.mxu0 0.0
    %1380 = vmatpush1.msra.mxu0 0.0
    %1381 = vmatprep.subr.mxu0 0.0
    %1382 = vmatpush1.msra.mxu0 0.0
    %1383 = vmatprep.mubr.f32.mxu0 0.0
    %v1384 = vand.u32 %v1163, 4294901760
    %v1385 = vsub.f32 %v1163, %v1384
    %1386 = vmatmul.mubr.f32.gmra.mrb[0].mxu0 %v1385
    %v1387 = vpop.f32.mrb[0].mxu0
    %v1388 = vadd.f32 %v1314, %v1387
    %v1389 = vpop.f32.mrb[0].mxu0
    %1390 = vdwg.mxu0
    %1391 = vmatprep.subr.mxu0 0.0
    %v1392 = vand.u32 %v711, 4294901760
    %1393 = vmatpush1.msra.mxu0 %v1392
    %1394 = vmatprep.subr.mxu0 0.0
    %1395 = vmatpush1.msra.mxu0 0.0
    %1396 = vmatprep.subr.mxu0 0.0
    %1397 = vmatpush1.msra.mxu0 0.0
    %1398 = vmatprep.subr.mxu0 0.0
    %1399 = vmatpush1.msra.mxu0 0.0
    %1400 = vmatprep.subr.mxu0 0.0
    %1401 = vmatpush1.msra.mxu0 0.0
    %1402 = vmatprep.subr.mxu0 0.0
    %1403 = vmatpush1.msra.mxu0 0.0
    %1404 = vmatprep.subr.mxu0 0.0
    %1405 = vmatpush1.msra.mxu0 0.0
    %1406 = vmatprep.subr.mxu0 0.0
    %1407 = vmatpush1.msra.mxu0 0.0
    %1408 = vmatprep.subr.mxu0 0.0
    %1409 = vmatpush1.msra.mxu0 0.0
    %1410 = vmatprep.subr.mxu0 0.0
    %1411 = vmatpush1.msra.mxu0 0.0
    %1412 = vmatprep.subr.mxu0 0.0
    %1413 = vmatpush1.msra.mxu0 0.0
    %1414 = vmatprep.subr.mxu0 0.0
    %1415 = vmatpush1.msra.mxu0 0.0
    %1416 = vmatprep.subr.mxu0 0.0
    %1417 = vmatpush1.msra.mxu0 0.0
    %1418 = vmatprep.subr.mxu0 0.0
    %1419 = vmatpush1.msra.mxu0 0.0
    %1420 = vmatprep.subr.mxu0 0.0
    %1421 = vmatpush1.msra.mxu0 0.0
    %1422 = vmatprep.subr.mxu0 0.0
    %1423 = vmatpush1.msra.mxu0 0.0
    %1424 = vmatprep.subr.mxu0 0.0
    %1425 = vmatpush1.msra.mxu0 0.0
    %1426 = vmatprep.subr.mxu0 0.0
    %1427 = vmatpush1.msra.mxu0 0.0
    %1428 = vmatprep.subr.mxu0 0.0
    %1429 = vmatpush1.msra.mxu0 0.0
    %1430 = vmatprep.subr.mxu0 0.0
    %1431 = vmatpush1.msra.mxu0 0.0
    %1432 = vmatprep.subr.mxu0 0.0
    %1433 = vmatpush1.msra.mxu0 0.0
    %1434 = vmatprep.subr.mxu0 0.0
    %1435 = vmatpush1.msra.mxu0 0.0
    %1436 = vmatprep.subr.mxu0 0.0
    %1437 = vmatpush1.msra.mxu0 0.0
    %1438 = vmatprep.subr.mxu0 0.0
    %1439 = vmatpush1.msra.mxu0 0.0
    %1440 = vmatprep.subr.mxu0 0.0
    %1441 = vmatpush1.msra.mxu0 0.0
    %1442 = vmatprep.subr.mxu0 0.0
    %1443 = vmatpush1.msra.mxu0 0.0
    %1444 = vmatprep.subr.mxu0 0.0
    %1445 = vmatpush1.msra.mxu0 0.0
    %1446 = vmatprep.subr.mxu0 0.0
    %1447 = vmatpush1.msra.mxu0 0.0
    %1448 = vmatprep.subr.mxu0 0.0
    %1449 = vmatpush1.msra.mxu0 0.0
    %1450 = vmatprep.subr.mxu0 0.0
    %1451 = vmatpush1.msra.mxu0 0.0
    %1452 = vmatprep.subr.mxu0 0.0
    %1453 = vmatpush1.msra.mxu0 0.0
    %1454 = vmatprep.subr.mxu0 0.0
    %1455 = vmatpush1.msra.mxu0 0.0
    %1456 = vmatprep.mubr.f32.mxu0 0.0
    %v1457 = vand.u32 %v1163, 4294901760
    %v1458 = vsub.f32 %v1163, %v1457
    %v1459 = vand.u32 %v1458, 4294901760
    %1460 = vmatmul.mubr.f32.gmra.mrb[0].mxu0 %v1459
    %v1461 = vpop.f32.mrb[0].mxu0
    %v1462 = vadd.f32 %v1388, %v1461
    %v1463 = vpop.f32.mrb[0].mxu0
    %1464 = vdwg.mxu0
    %1465 = vmatprep.subr.mxu0 0.0
    %v1466 = vand.u32 %v711, 4294901760
    %v1467 = vsub.f32 %v711, %v1466
    %v1468 = vand.u32 %v1467, 4294901760
    %1469 = vmatpush1.msra.mxu0 %v1468
    %1470 = vmatprep.subr.mxu0 0.0
    %1471 = vmatpush1.msra.mxu0 0.0
    %1472 = vmatprep.subr.mxu0 0.0
    %1473 = vmatpush1.msra.mxu0 0.0
    %1474 = vmatprep.subr.mxu0 0.0
    %1475 = vmatpush1.msra.mxu0 0.0
    %1476 = vmatprep.subr.mxu0 0.0
    %1477 = vmatpush1.msra.mxu0 0.0
    %1478 = vmatprep.subr.mxu0 0.0
    %1479 = vmatpush1.msra.mxu0 0.0
    %1480 = vmatprep.subr.mxu0 0.0
    %1481 = vmatpush1.msra.mxu0 0.0
    %1482 = vmatprep.subr.mxu0 0.0
    %1483 = vmatpush1.msra.mxu0 0.0
    %1484 = vmatprep.subr.mxu0 0.0
    %1485 = vmatpush1.msra.mxu0 0.0
    %1486 = vmatprep.subr.mxu0 0.0
    %1487 = vmatpush1.msra.mxu0 0.0
    %1488 = vmatprep.subr.mxu0 0.0
    %1489 = vmatpush1.msra.mxu0 0.0
    %1490 = vmatprep.subr.mxu0 0.0
    %1491 = vmatpush1.msra.mxu0 0.0
    %1492 = vmatprep.subr.mxu0 0.0
    %1493 = vmatpush1.msra.mxu0 0.0
    %1494 = vmatprep.subr.mxu0 0.0
    %1495 = vmatpush1.msra.mxu0 0.0
    %1496 = vmatprep.subr.mxu0 0.0
    %1497 = vmatpush1.msra.mxu0 0.0
    %1498 = vmatprep.subr.mxu0 0.0
    %1499 = vmatpush1.msra.mxu0 0.0
    %1500 = vmatprep.subr.mxu0 0.0
    %1501 = vmatpush1.msra.mxu0 0.0
    %1502 = vmatprep.subr.mxu0 0.0
    %1503 = vmatpush1.msra.mxu0 0.0
    %1504 = vmatprep.subr.mxu0 0.0
    %1505 = vmatpush1.msra.mxu0 0.0
    %1506 = vmatprep.subr.mxu0 0.0
    %1507 = vmatpush1.msra.mxu0 0.0
    %1508 = vmatprep.subr.mxu0 0.0
    %1509 = vmatpush1.msra.mxu0 0.0
    %1510 = vmatprep.subr.mxu0 0.0
    %1511 = vmatpush1.msra.mxu0 0.0
    %1512 = vmatprep.subr.mxu0 0.0
    %1513 = vmatpush1.msra.mxu0 0.0
    %1514 = vmatprep.subr.mxu0 0.0
    %1515 = vmatpush1.msra.mxu0 0.0
    %1516 = vmatprep.subr.mxu0 0.0
    %1517 = vmatpush1.msra.mxu0 0.0
    %1518 = vmatprep.subr.mxu0 0.0
    %1519 = vmatpush1.msra.mxu0 0.0
    %1520 = vmatprep.subr.mxu0 0.0
    %1521 = vmatpush1.msra.mxu0 0.0
    %1522 = vmatprep.subr.mxu0 0.0
    %1523 = vmatpush1.msra.mxu0 0.0
    %1524 = vmatprep.subr.mxu0 0.0
    %1525 = vmatpush1.msra.mxu0 0.0
    %1526 = vmatprep.subr.mxu0 0.0
    %1527 = vmatpush1.msra.mxu0 0.0
    %1528 = vmatprep.subr.mxu0 0.0
    %1529 = vmatpush1.msra.mxu0 0.0
    %1530 = vmatprep.subr.mxu0 0.0
    %1531 = vmatpush1.msra.mxu0 0.0
    %1532 = vmatprep.mubr.f32.mxu0 0.0
    %v1533 = vand.u32 %v1163, 4294901760
    %1534 = vmatmul.mubr.f32.gmra.mrb[0].mxu0 %v1533
    %v1535 = vpop.f32.mrb[0].mxu0
    %v1536 = vadd.f32 %v1462, %v1535
    %v1537 = vpop.f32.mrb[0].mxu0
    %1538 = vdwg.mxu0
    %1539 = vmatprep.subr.mxu0 0.0
    %v1540 = vand.u32 %v711, 4294901760
    %1541 = vmatpush1.msra.mxu0 %v1540
    %1542 = vmatprep.subr.mxu0 0.0
    %1543 = vmatpush1.msra.mxu0 0.0
    %1544 = vmatprep.subr.mxu0 0.0
    %1545 = vmatpush1.msra.mxu0 0.0
    %1546 = vmatprep.subr.mxu0 0.0
    %1547 = vmatpush1.msra.mxu0 0.0
    %1548 = vmatprep.subr.mxu0 0.0
    %1549 = vmatpush1.msra.mxu0 0.0
    %1550 = vmatprep.subr.mxu0 0.0
    %1551 = vmatpush1.msra.mxu0 0.0
    %1552 = vmatprep.subr.mxu0 0.0
    %1553 = vmatpush1.msra.mxu0 0.0
    %1554 = vmatprep.subr.mxu0 0.0
    %1555 = vmatpush1.msra.mxu0 0.0
    %1556 = vmatprep.subr.mxu0 0.0
    %1557 = vmatpush1.msra.mxu0 0.0
    %1558 = vmatprep.subr.mxu0 0.0
    %1559 = vmatpush1.msra.mxu0 0.0
    %1560 = vmatprep.subr.mxu0 0.0
    %1561 = vmatpush1.msra.mxu0 0.0
    %1562 = vmatprep.subr.mxu0 0.0
    %1563 = vmatpush1.msra.mxu0 0.0
    %1564 = vmatprep.subr.mxu0 0.0
    %1565 = vmatpush1.msra.mxu0 0.0
    %1566 = vmatprep.subr.mxu0 0.0
    %1567 = vmatpush1.msra.mxu0 0.0
    %1568 = vmatprep.subr.mxu0 0.0
    %1569 = vmatpush1.msra.mxu0 0.0
    %1570 = vmatprep.subr.mxu0 0.0
    %1571 = vmatpush1.msra.mxu0 0.0
    %1572 = vmatprep.subr.mxu0 0.0
    %1573 = vmatpush1.msra.mxu0 0.0
    %1574 = vmatprep.subr.mxu0 0.0
    %1575 = vmatpush1.msra.mxu0 0.0
    %1576 = vmatprep.subr.mxu0 0.0
    %1577 = vmatpush1.msra.mxu0 0.0
    %1578 = vmatprep.subr.mxu0 0.0
    %1579 = vmatpush1.msra.mxu0 0.0
    %1580 = vmatprep.subr.mxu0 0.0
    %1581 = vmatpush1.msra.mxu0 0.0
    %1582 = vmatprep.subr.mxu0 0.0
    %1583 = vmatpush1.msra.mxu0 0.0
    %1584 = vmatprep.subr.mxu0 0.0
    %1585 = vmatpush1.msra.mxu0 0.0
    %1586 = vmatprep.subr.mxu0 0.0
    %1587 = vmatpush1.msra.mxu0 0.0
    %1588 = vmatprep.subr.mxu0 0.0
    %1589 = vmatpush1.msra.mxu0 0.0
    %1590 = vmatprep.subr.mxu0 0.0
    %1591 = vmatpush1.msra.mxu0 0.0
    %1592 = vmatprep.subr.mxu0 0.0
    %1593 = vmatpush1.msra.mxu0 0.0
    %1594 = vmatprep.subr.mxu0 0.0
    %1595 = vmatpush1.msra.mxu0 0.0
    %1596 = vmatprep.subr.mxu0 0.0
    %1597 = vmatpush1.msra.mxu0 0.0
    %1598 = vmatprep.subr.mxu0 0.0
    %1599 = vmatpush1.msra.mxu0 0.0
    %1600 = vmatprep.subr.mxu0 0.0
    %1601 = vmatpush1.msra.mxu0 0.0
    %1602 = vmatprep.subr.mxu0 0.0
    %1603 = vmatpush1.msra.mxu0 0.0
    %1604 = vmatprep.mubr.f32.mxu0 0.0
    %v1605 = vand.u32 %v1163, 4294901760
    %1606 = vmatmul.mubr.f32.gmra.mrb[0].mxu0 %v1605
    %v1607 = vpop.f32.mrb[0].mxu0
    %v1608 = vadd.f32 %v1536, %v1607
    %v1609 = vpop.f32.mrb[0].mxu0
    %1610 = vdwg.mxu0
    %v1611 = vld [vmem:[%s5] sm:$0xff]
    %v1612 = vld [vmem:[%s5 + $0x8] sm:$0xff]
    %v1613 = vld [vmem:[%s5 + $0x10] sm:$0xff]
    %v1614 = vld [vmem:[%s5 + $0x18] sm:$0xff]
    %v1615 = vld [vmem:[#allocation9] sm:$0x1]
    %v1617 = vlaneseq
    %v1618 = vshrl.u32 %v1617, 7
    %v1619 = vsub.s32 0, %v1618
    %v1620 = vrot.slane %v1615, %v1619
    %v1623 = vsel %vm163, %v1159, 0
    %v1626 = vsel %vm163, %v1608, 0
    %1628 = vmatprep.subr.mxu0 0.0
    %v1629 = vand.u32 %v1611, 4294901760
    %1630 = vmatpush1.msra.mxu0 %v1629
    %1631 = vmatprep.subr.mxu0 0.0
    %v1632 = vand.u32 %v1612, 4294901760
    %1633 = vmatpush1.msra.mxu0 %v1632
    %1634 = vmatprep.subr.mxu0 0.0
    %v1635 = vand.u32 %v1613, 4294901760
    %1636 = vmatpush1.msra.mxu0 %v1635
    %1637 = vmatprep.subr.mxu0 0.0
    %v1638 = vand.u32 %v1614, 4294901760
    %1639 = vmatpush1.msra.mxu0 %v1638
    %1640 = vmatprep.subr.mxu0 0.0
    %1641 = vmatpush1.msra.mxu0 0.0
    %1642 = vmatprep.subr.mxu0 0.0
    %1643 = vmatpush1.msra.mxu0 0.0
    %1644 = vmatprep.subr.mxu0 0.0
    %1645 = vmatpush1.msra.mxu0 0.0
    %1646 = vmatprep.subr.mxu0 0.0
    %1647 = vmatpush1.msra.mxu0 0.0
    %1648 = vmatprep.subr.mxu0 0.0
    %1649 = vmatpush1.msra.mxu0 0.0
    %1650 = vmatprep.subr.mxu0 0.0
    %1651 = vmatpush1.msra.mxu0 0.0
    %1652 = vmatprep.subr.mxu0 0.0
    %1653 = vmatpush1.msra.mxu0 0.0
    %1654 = vmatprep.subr.mxu0 0.0
    %1655 = vmatpush1.msra.mxu0 0.0
    %1656 = vmatprep.subr.mxu0 0.0
    %1657 = vmatpush1.msra.mxu0 0.0
    %1658 = vmatprep.subr.mxu0 0.0
    %1659 = vmatpush1.msra.mxu0 0.0
    %1660 = vmatprep.subr.mxu0 0.0
    %1661 = vmatpush1.msra.mxu0 0.0
    %1662 = vmatprep.subr.mxu0 0.0
    %1663 = vmatpush1.msra.mxu0 0.0
    %1664 = vmatprep.subr.mxu0 0.0
    %1665 = vmatpush1.msra.mxu0 0.0
    %1666 = vmatprep.subr.mxu0 0.0
    %1667 = vmatpush1.msra.mxu0 0.0
    %1668 = vmatprep.subr.mxu0 0.0
    %1669 = vmatpush1.msra.mxu0 0.0
    %1670 = vmatprep.subr.mxu0 0.0
    %1671 = vmatpush1.msra.mxu0 0.0
    %1672 = vmatprep.subr.mxu0 0.0
    %1673 = vmatpush1.msra.mxu0 0.0
    %1674 = vmatprep.subr.mxu0 0.0
    %1675 = vmatpush1.msra.mxu0 0.0
    %1676 = vmatprep.subr.mxu0 0.0
    %1677 = vmatpush1.msra.mxu0 0.0
    %1678 = vmatprep.subr.mxu0 0.0
    %1679 = vmatpush1.msra.mxu0 0.0
    %1680 = vmatprep.subr.mxu0 0.0
    %1681 = vmatpush1.msra.mxu0 0.0
    %1682 = vmatprep.subr.mxu0 0.0
    %1683 = vmatpush1.msra.mxu0 0.0
    %1684 = vmatprep.subr.mxu0 0.0
    %1685 = vmatpush1.msra.mxu0 0.0
    %1686 = vmatprep.subr.mxu0 0.0
    %1687 = vmatpush1.msra.mxu0 0.0
    %1688 = vmatprep.subr.mxu0 0.0
    %1689 = vmatpush1.msra.mxu0 0.0
    %1690 = vmatprep.subr.mxu0 0.0
    %1691 = vmatpush1.msra.mxu0 0.0
    %1692 = vmatprep.subr.mxu0 0.0
    %1693 = vmatpush1.msra.mxu0 0.0
    %1694 = vmatprep.subr.mxu0 0.0
    %1695 = vmatpush1.msra.mxu0 0.0
    %1696 = vmatprep.mubr.f32.mxu0 0.0
    %v1697 = vand.u32 %v1623, 4294901760
    %v1698 = vsub.f32 %v1623, %v1697
    %v1699 = vand.u32 %v1698, 4294901760
    %v1700 = vsub.f32 %v1698, %v1699
    %v1701 = vand.u32 %v1700, 4294901760
    %1702 = vmatmul.mubr.f32.gmra.mrb[0].mxu0 %v1701
    %v1703 = vpop.f32.mrb[0].mxu0
    %v1704 = vadd.f32 %v1620, %v1703
    %v1705 = vpop.f32.mrb[0].mxu0
    %1706 = vmatprep.mubr.f32.mxu0 0.0
    %v1707 = vand.u32 %v1626, 4294901760
    %v1708 = vsub.f32 %v1626, %v1707
    %v1709 = vand.u32 %v1708, 4294901760
    %v1710 = vsub.f32 %v1708, %v1709
    %v1711 = vand.u32 %v1710, 4294901760
    %1712 = vmatmul.mubr.f32.gmra.mrb[0].mxu0 %v1711
    %v1713 = vpop.f32.mrb[0].mxu0
    %v1714 = vadd.f32 %v1620, %v1713
    %v1715 = vpop.f32.mrb[0].mxu0
    %1716 = vdwg.mxu0
    %1717 = vmatprep.subr.mxu0 0.0
    %v1718 = vand.u32 %v1611, 4294901760
    %v1719 = vsub.f32 %v1611, %v1718
    %v1720 = vand.u32 %v1719, 4294901760
    %v1721 = vsub.f32 %v1719, %v1720
    %v1722 = vand.u32 %v1721, 4294901760
    %1723 = vmatpush1.msra.mxu0 %v1722
    %1724 = vmatprep.subr.mxu0 0.0
    %v1725 = vand.u32 %v1612, 4294901760
    %v1726 = vsub.f32 %v1612, %v1725
    %v1727 = vand.u32 %v1726, 4294901760
    %v1728 = vsub.f32 %v1726, %v1727
    %v1729 = vand.u32 %v1728, 4294901760
    %1730 = vmatpush1.msra.mxu0 %v1729
    %1731 = vmatprep.subr.mxu0 0.0
    %v1732 = vand.u32 %v1613, 4294901760
    %v1733 = vsub.f32 %v1613, %v1732
    %v1734 = vand.u32 %v1733, 4294901760
    %v1735 = vsub.f32 %v1733, %v1734
    %v1736 = vand.u32 %v1735, 4294901760
    %1737 = vmatpush1.msra.mxu0 %v1736
    %1738 = vmatprep.subr.mxu0 0.0
    %v1739 = vand.u32 %v1614, 4294901760
    %v1740 = vsub.f32 %v1614, %v1739
    %v1741 = vand.u32 %v1740, 4294901760
    %v1742 = vsub.f32 %v1740, %v1741
    %v1743 = vand.u32 %v1742, 4294901760
    %1744 = vmatpush1.msra.mxu0 %v1743
    %1745 = vmatprep.subr.mxu0 0.0
    %1746 = vmatpush1.msra.mxu0 0.0
    %1747 = vmatprep.subr.mxu0 0.0
    %1748 = vmatpush1.msra.mxu0 0.0
    %1749 = vmatprep.subr.mxu0 0.0
    %1750 = vmatpush1.msra.mxu0 0.0
    %1751 = vmatprep.subr.mxu0 0.0
    %1752 = vmatpush1.msra.mxu0 0.0
    %1753 = vmatprep.subr.mxu0 0.0
    %1754 = vmatpush1.msra.mxu0 0.0
    %1755 = vmatprep.subr.mxu0 0.0
    %1756 = vmatpush1.msra.mxu0 0.0
    %1757 = vmatprep.subr.mxu0 0.0
    %1758 = vmatpush1.msra.mxu0 0.0
    %1759 = vmatprep.subr.mxu0 0.0
    %1760 = vmatpush1.msra.mxu0 0.0
    %1761 = vmatprep.subr.mxu0 0.0
    %1762 = vmatpush1.msra.mxu0 0.0
    %1763 = vmatprep.subr.mxu0 0.0
    %1764 = vmatpush1.msra.mxu0 0.0
    %1765 = vmatprep.subr.mxu0 0.0
    %1766 = vmatpush1.msra.mxu0 0.0
    %1767 = vmatprep.subr.mxu0 0.0
    %1768 = vmatpush1.msra.mxu0 0.0
    %1769 = vmatprep.subr.mxu0 0.0
    %1770 = vmatpush1.msra.mxu0 0.0
    %1771 = vmatprep.subr.mxu0 0.0
    %1772 = vmatpush1.msra.mxu0 0.0
    %1773 = vmatprep.subr.mxu0 0.0
    %1774 = vmatpush1.msra.mxu0 0.0
    %1775 = vmatprep.subr.mxu0 0.0
    %1776 = vmatpush1.msra.mxu0 0.0
    %1777 = vmatprep.subr.mxu0 0.0
    %1778 = vmatpush1.msra.mxu0 0.0
    %1779 = vmatprep.subr.mxu0 0.0
    %1780 = vmatpush1.msra.mxu0 0.0
    %1781 = vmatprep.subr.mxu0 0.0
    %1782 = vmatpush1.msra.mxu0 0.0
    %1783 = vmatprep.subr.mxu0 0.0
    %1784 = vmatpush1.msra.mxu0 0.0
    %1785 = vmatprep.subr.mxu0 0.0
    %1786 = vmatpush1.msra.mxu0 0.0
    %1787 = vmatprep.subr.mxu0 0.0
    %1788 = vmatpush1.msra.mxu0 0.0
    %1789 = vmatprep.subr.mxu0 0.0
    %1790 = vmatpush1.msra.mxu0 0.0
    %1791 = vmatprep.subr.mxu0 0.0
    %1792 = vmatpush1.msra.mxu0 0.0
    %1793 = vmatprep.subr.mxu0 0.0
    %1794 = vmatpush1.msra.mxu0 0.0
    %1795 = vmatprep.subr.mxu0 0.0
    %1796 = vmatpush1.msra.mxu0 0.0
    %1797 = vmatprep.subr.mxu0 0.0
    %1798 = vmatpush1.msra.mxu0 0.0
    %1799 = vmatprep.subr.mxu0 0.0
    %1800 = vmatpush1.msra.mxu0 0.0
    %1801 = vmatprep.mubr.f32.mxu0 0.0
    %v1802 = vand.u32 %v1623, 4294901760
    %1803 = vmatmul.mubr.f32.gmra.mrb[0].mxu0 %v1802
    %v1804 = vpop.f32.mrb[0].mxu0
    %v1805 = vadd.f32 %v1704, %v1804
    %v1806 = vpop.f32.mrb[0].mxu0
    %1807 = vmatprep.mubr.f32.mxu0 0.0
    %v1808 = vand.u32 %v1626, 4294901760
    %1809 = vmatmul.mubr.f32.gmra.mrb[0].mxu0 %v1808
    %v1810 = vpop.f32.mrb[0].mxu0
    %v1811 = vadd.f32 %v1714, %v1810
    %v1812 = vpop.f32.mrb[0].mxu0
    %1813 = vdwg.mxu0
    %1814 = vmatprep.subr.mxu0 0.0
    %v1815 = vand.u32 %v1611, 4294901760
    %v1816 = vsub.f32 %v1611, %v1815
    %1817 = vmatpush1.msra.mxu0 %v1816
    %1818 = vmatprep.subr.mxu0 0.0
    %v1819 = vand.u32 %v1612, 4294901760
    %v1820 = vsub.f32 %v1612, %v1819
    %1821 = vmatpush1.msra.mxu0 %v1820
    %1822 = vmatprep.subr.mxu0 0.0
    %v1823 = vand.u32 %v1613, 4294901760
    %v1824 = vsub.f32 %v1613, %v1823
    %1825 = vmatpush1.msra.mxu0 %v1824
    %1826 = vmatprep.subr.mxu0 0.0
    %v1827 = vand.u32 %v1614, 4294901760
    %v1828 = vsub.f32 %v1614, %v1827
    %1829 = vmatpush1.msra.mxu0 %v1828
    %1830 = vmatprep.subr.mxu0 0.0
    %1831 = vmatpush1.msra.mxu0 0.0
    %1832 = vmatprep.subr.mxu0 0.0
    %1833 = vmatpush1.msra.mxu0 0.0
    %1834 = vmatprep.subr.mxu0 0.0
    %1835 = vmatpush1.msra.mxu0 0.0
    %1836 = vmatprep.subr.mxu0 0.0
    %1837 = vmatpush1.msra.mxu0 0.0
    %1838 = vmatprep.subr.mxu0 0.0
    %1839 = vmatpush1.msra.mxu0 0.0
    %1840 = vmatprep.subr.mxu0 0.0
    %1841 = vmatpush1.msra.mxu0 0.0
    %1842 = vmatprep.subr.mxu0 0.0
    %1843 = vmatpush1.msra.mxu0 0.0
    %1844 = vmatprep.subr.mxu0 0.0
    %1845 = vmatpush1.msra.mxu0 0.0
    %1846 = vmatprep.subr.mxu0 0.0
    %1847 = vmatpush1.msra.mxu0 0.0
    %1848 = vmatprep.subr.mxu0 0.0
    %1849 = vmatpush1.msra.mxu0 0.0
    %1850 = vmatprep.subr.mxu0 0.0
    %1851 = vmatpush1.msra.mxu0 0.0
    %1852 = vmatprep.subr.mxu0 0.0
    %1853 = vmatpush1.msra.mxu0 0.0
    %1854 = vmatprep.subr.mxu0 0.0
    %1855 = vmatpush1.msra.mxu0 0.0
    %1856 = vmatprep.subr.mxu0 0.0
    %1857 = vmatpush1.msra.mxu0 0.0
    %1858 = vmatprep.subr.mxu0 0.0
    %1859 = vmatpush1.msra.mxu0 0.0
    %1860 = vmatprep.subr.mxu0 0.0
    %1861 = vmatpush1.msra.mxu0 0.0
    %1862 = vmatprep.subr.mxu0 0.0
    %1863 = vmatpush1.msra.mxu0 0.0
    %1864 = vmatprep.subr.mxu0 0.0
    %1865 = vmatpush1.msra.mxu0 0.0
    %1866 = vmatprep.subr.mxu0 0.0
    %1867 = vmatpush1.msra.mxu0 0.0
    %1868 = vmatprep.subr.mxu0 0.0
    %1869 = vmatpush1.msra.mxu0 0.0
    %1870 = vmatprep.subr.mxu0 0.0
    %1871 = vmatpush1.msra.mxu0 0.0
    %1872 = vmatprep.subr.mxu0 0.0
    %1873 = vmatpush1.msra.mxu0 0.0
    %1874 = vmatprep.subr.mxu0 0.0
    %1875 = vmatpush1.msra.mxu0 0.0
    %1876 = vmatprep.subr.mxu0 0.0
    %1877 = vmatpush1.msra.mxu0 0.0
    %1878 = vmatprep.subr.mxu0 0.0
    %1879 = vmatpush1.msra.mxu0 0.0
    %1880 = vmatprep.subr.mxu0 0.0
    %1881 = vmatpush1.msra.mxu0 0.0
    %1882 = vmatprep.subr.mxu0 0.0
    %1883 = vmatpush1.msra.mxu0 0.0
    %1884 = vmatprep.subr.mxu0 0.0
    %1885 = vmatpush1.msra.mxu0 0.0
    %1886 = vmatprep.mubr.f32.mxu0 0.0
    %v1887 = vand.u32 %v1623, 4294901760
    %v1888 = vsub.f32 %v1623, %v1887
    %1889 = vmatmul.mubr.f32.gmra.mrb[0].mxu0 %v1888
    %v1890 = vpop.f32.mrb[0].mxu0
    %v1891 = vadd.f32 %v1805, %v1890
    %v1892 = vpop.f32.mrb[0].mxu0
    %1893 = vmatprep.mubr.f32.mxu0 0.0
    %v1894 = vand.u32 %v1626, 4294901760
    %v1895 = vsub.f32 %v1626, %v1894
    %1896 = vmatmul.mubr.f32.gmra.mrb[0].mxu0 %v1895
    %v1897 = vpop.f32.mrb[0].mxu0
    %v1898 = vadd.f32 %v1811, %v1897
    %v1899 = vpop.f32.mrb[0].mxu0
    %1900 = vdwg.mxu0
    %1901 = vmatprep.subr.mxu0 0.0
    %v1902 = vand.u32 %v1611, 4294901760
    %1903 = vmatpush1.msra.mxu0 %v1902
    %1904 = vmatprep.subr.mxu0 0.0
    %v1905 = vand.u32 %v1612, 4294901760
    %1906 = vmatpush1.msra.mxu0 %v1905
    %1907 = vmatprep.subr.mxu0 0.0
    %v1908 = vand.u32 %v1613, 4294901760
    %1909 = vmatpush1.msra.mxu0 %v1908
    %1910 = vmatprep.subr.mxu0 0.0
    %v1911 = vand.u32 %v1614, 4294901760
    %1912 = vmatpush1.msra.mxu0 %v1911
    %1913 = vmatprep.subr.mxu0 0.0
    %1914 = vmatpush1.msra.mxu0 0.0
    %1915 = vmatprep.subr.mxu0 0.0
    %1916 = vmatpush1.msra.mxu0 0.0
    %1917 = vmatprep.subr.mxu0 0.0
    %1918 = vmatpush1.msra.mxu0 0.0
    %1919 = vmatprep.subr.mxu0 0.0
    %1920 = vmatpush1.msra.mxu0 0.0
    %1921 = vmatprep.subr.mxu0 0.0
    %1922 = vmatpush1.msra.mxu0 0.0
    %1923 = vmatprep.subr.mxu0 0.0
    %1924 = vmatpush1.msra.mxu0 0.0
    %1925 = vmatprep.subr.mxu0 0.0
    %1926 = vmatpush1.msra.mxu0 0.0
    %1927 = vmatprep.subr.mxu0 0.0
    %1928 = vmatpush1.msra.mxu0 0.0
    %1929 = vmatprep.subr.mxu0 0.0
    %1930 = vmatpush1.msra.mxu0 0.0
    %1931 = vmatprep.subr.mxu0 0.0
    %1932 = vmatpush1.msra.mxu0 0.0
    %1933 = vmatprep.subr.mxu0 0.0
    %1934 = vmatpush1.msra.mxu0 0.0
    %1935 = vmatprep.subr.mxu0 0.0
    %1936 = vmatpush1.msra.mxu0 0.0
    %1937 = vmatprep.subr.mxu0 0.0
    %1938 = vmatpush1.msra.mxu0 0.0
    %1939 = vmatprep.subr.mxu0 0.0
    %1940 = vmatpush1.msra.mxu0 0.0
    %1941 = vmatprep.subr.mxu0 0.0
    %1942 = vmatpush1.msra.mxu0 0.0
    %1943 = vmatprep.subr.mxu0 0.0
    %1944 = vmatpush1.msra.mxu0 0.0
    %1945 = vmatprep.subr.mxu0 0.0
    %1946 = vmatpush1.msra.mxu0 0.0
    %1947 = vmatprep.subr.mxu0 0.0
    %1948 = vmatpush1.msra.mxu0 0.0
    %1949 = vmatprep.subr.mxu0 0.0
    %1950 = vmatpush1.msra.mxu0 0.0
    %1951 = vmatprep.subr.mxu0 0.0
    %1952 = vmatpush1.msra.mxu0 0.0
    %1953 = vmatprep.subr.mxu0 0.0
    %1954 = vmatpush1.msra.mxu0 0.0
    %1955 = vmatprep.subr.mxu0 0.0
    %1956 = vmatpush1.msra.mxu0 0.0
    %1957 = vmatprep.subr.mxu0 0.0
    %1958 = vmatpush1.msra.mxu0 0.0
    %1959 = vmatprep.subr.mxu0 0.0
    %1960 = vmatpush1.msra.mxu0 0.0
    %1961 = vmatprep.subr.mxu0 0.0
    %1962 = vmatpush1.msra.mxu0 0.0
    %1963 = vmatprep.subr.mxu0 0.0
    %1964 = vmatpush1.msra.mxu0 0.0
    %1965 = vmatprep.subr.mxu0 0.0
    %1966 = vmatpush1.msra.mxu0 0.0
    %1967 = vmatprep.subr.mxu0 0.0
    %1968 = vmatpush1.msra.mxu0 0.0
    %1969 = vmatprep.mubr.f32.mxu0 0.0
    %v1970 = vand.u32 %v1623, 4294901760
    %v1971 = vsub.f32 %v1623, %v1970
    %v1972 = vand.u32 %v1971, 4294901760
    %1973 = vmatmul.mubr.f32.gmra.mrb[0].mxu0 %v1972
    %v1974 = vpop.f32.mrb[0].mxu0
    %v1975 = vadd.f32 %v1891, %v1974
    %v1976 = vpop.f32.mrb[0].mxu0
    %1977 = vmatprep.mubr.f32.mxu0 0.0
    %v1978 = vand.u32 %v1626, 4294901760
    %v1979 = vsub.f32 %v1626, %v1978
    %v1980 = vand.u32 %v1979, 4294901760
    %1981 = vmatmul.mubr.f32.gmra.mrb[0].mxu0 %v1980
    %v1982 = vpop.f32.mrb[0].mxu0
    %v1983 = vadd.f32 %v1898, %v1982
    %v1984 = vpop.f32.mrb[0].mxu0
    %1985 = vdwg.mxu0
    %1986 = vmatprep.subr.mxu0 0.0
    %v1987 = vand.u32 %v1611, 4294901760
    %v1988 = vsub.f32 %v1611, %v1987
    %v1989 = vand.u32 %v1988, 4294901760
    %1990 = vmatpush1.msra.mxu0 %v1989
    %1991 = vmatprep.subr.mxu0 0.0
    %v1992 = vand.u32 %v1612, 4294901760
    %v1993 = vsub.f32 %v1612, %v1992
    %v1994 = vand.u32 %v1993, 4294901760
    %1995 = vmatpush1.msra.mxu0 %v1994
    %1996 = vmatprep.subr.mxu0 0.0
    %v1997 = vand.u32 %v1613, 4294901760
    %v1998 = vsub.f32 %v1613, %v1997
    %v1999 = vand.u32 %v1998, 4294901760
    %2000 = vmatpush1.msra.mxu0 %v1999
    %2001 = vmatprep.subr.mxu0 0.0
    %v2002 = vand.u32 %v1614, 4294901760
    %v2003 = vsub.f32 %v1614, %v2002
    %v2004 = vand.u32 %v2003, 4294901760
    %2005 = vmatpush1.msra.mxu0 %v2004
    %2006 = vmatprep.subr.mxu0 0.0
    %2007 = vmatpush1.msra.mxu0 0.0
    %2008 = vmatprep.subr.mxu0 0.0
    %2009 = vmatpush1.msra.mxu0 0.0
    %2010 = vmatprep.subr.mxu0 0.0
    %2011 = vmatpush1.msra.mxu0 0.0
    %2012 = vmatprep.subr.mxu0 0.0
    %2013 = vmatpush1.msra.mxu0 0.0
    %2014 = vmatprep.subr.mxu0 0.0
    %2015 = vmatpush1.msra.mxu0 0.0
    %2016 = vmatprep.subr.mxu0 0.0
    %2017 = vmatpush1.msra.mxu0 0.0
    %2018 = vmatprep.subr.mxu0 0.0
    %2019 = vmatpush1.msra.mxu0 0.0
    %2020 = vmatprep.subr.mxu0 0.0
    %2021 = vmatpush1.msra.mxu0 0.0
    %2022 = vmatprep.subr.mxu0 0.0
    %2023 = vmatpush1.msra.mxu0 0.0
    %2024 = vmatprep.subr.mxu0 0.0
    %2025 = vmatpush1.msra.mxu0 0.0
    %2026 = vmatprep.subr.mxu0 0.0
    %2027 = vmatpush1.msra.mxu0 0.0
    %2028 = vmatprep.subr.mxu0 0.0
    %2029 = vmatpush1.msra.mxu0 0.0
    %2030 = vmatprep.subr.mxu0 0.0
    %2031 = vmatpush1.msra.mxu0 0.0
    %2032 = vmatprep.subr.mxu0 0.0
    %2033 = vmatpush1.msra.mxu0 0.0
    %2034 = vmatprep.subr.mxu0 0.0
    %2035 = vmatpush1.msra.mxu0 0.0
    %2036 = vmatprep.subr.mxu0 0.0
    %2037 = vmatpush1.msra.mxu0 0.0
    %2038 = vmatprep.subr.mxu0 0.0
    %2039 = vmatpush1.msra.mxu0 0.0
    %2040 = vmatprep.subr.mxu0 0.0
    %2041 = vmatpush1.msra.mxu0 0.0
    %2042 = vmatprep.subr.mxu0 0.0
    %2043 = vmatpush1.msra.mxu0 0.0
    %2044 = vmatprep.subr.mxu0 0.0
    %2045 = vmatpush1.msra.mxu0 0.0
    %2046 = vmatprep.subr.mxu0 0.0
    %2047 = vmatpush1.msra.mxu0 0.0
    %2048 = vmatprep.subr.mxu0 0.0
    %2049 = vmatpush1.msra.mxu0 0.0
    %2050 = vmatprep.subr.mxu0 0.0
    %2051 = vmatpush1.msra.mxu0 0.0
    %2052 = vmatprep.subr.mxu0 0.0
    %2053 = vmatpush1.msra.mxu0 0.0
    %2054 = vmatprep.subr.mxu0 0.0
    %2055 = vmatpush1.msra.mxu0 0.0
    %2056 = vmatprep.subr.mxu0 0.0
    %2057 = vmatpush1.msra.mxu0 0.0
    %2058 = vmatprep.subr.mxu0 0.0
    %2059 = vmatpush1.msra.mxu0 0.0
    %2060 = vmatprep.subr.mxu0 0.0
    %2061 = vmatpush1.msra.mxu0 0.0
    %2062 = vmatprep.mubr.f32.mxu0 0.0
    %v2063 = vand.u32 %v1623, 4294901760
    %2064 = vmatmul.mubr.f32.gmra.mrb[0].mxu0 %v2063
    %v2065 = vpop.f32.mrb[0].mxu0
    %v2066 = vadd.f32 %v1975, %v2065
    %v2067 = vpop.f32.mrb[0].mxu0
    %2068 = vmatprep.mubr.f32.mxu0 0.0
    %v2069 = vand.u32 %v1626, 4294901760
    %2070 = vmatmul.mubr.f32.gmra.mrb[0].mxu0 %v2069
    %v2071 = vpop.f32.mrb[0].mxu0
    %v2072 = vadd.f32 %v1983, %v2071
    %v2073 = vpop.f32.mrb[0].mxu0
    %2074 = vdwg.mxu0
    %2075 = vmatprep.subr.mxu0 0.0
    %v2076 = vand.u32 %v1611, 4294901760
    %2077 = vmatpush1.msra.mxu0 %v2076
    %2078 = vmatprep.subr.mxu0 0.0
    %v2079 = vand.u32 %v1612, 4294901760
    %2080 = vmatpush1.msra.mxu0 %v2079
    %2081 = vmatprep.subr.mxu0 0.0
    %v2082 = vand.u32 %v1613, 4294901760
    %2083 = vmatpush1.msra.mxu0 %v2082
    %2084 = vmatprep.subr.mxu0 0.0
    %v2085 = vand.u32 %v1614, 4294901760
    %2086 = vmatpush1.msra.mxu0 %v2085
    %2087 = vmatprep.subr.mxu0 0.0
    %2088 = vmatpush1.msra.mxu0 0.0
    %2089 = vmatprep.subr.mxu0 0.0
    %2090 = vmatpush1.msra.mxu0 0.0
    %2091 = vmatprep.subr.mxu0 0.0
    %2092 = vmatpush1.msra.mxu0 0.0
    %2093 = vmatprep.subr.mxu0 0.0
    %2094 = vmatpush1.msra.mxu0 0.0
    %2095 = vmatprep.subr.mxu0 0.0
    %2096 = vmatpush1.msra.mxu0 0.0
    %2097 = vmatprep.subr.mxu0 0.0
    %2098 = vmatpush1.msra.mxu0 0.0
    %2099 = vmatprep.subr.mxu0 0.0
    %2100 = vmatpush1.msra.mxu0 0.0
    %2101 = vmatprep.subr.mxu0 0.0
    %2102 = vmatpush1.msra.mxu0 0.0
    %2103 = vmatprep.subr.mxu0 0.0
    %2104 = vmatpush1.msra.mxu0 0.0
    %2105 = vmatprep.subr.mxu0 0.0
    %2106 = vmatpush1.msra.mxu0 0.0
    %2107 = vmatprep.subr.mxu0 0.0
    %2108 = vmatpush1.msra.mxu0 0.0
    %2109 = vmatprep.subr.mxu0 0.0
    %2110 = vmatpush1.msra.mxu0 0.0
    %2111 = vmatprep.subr.mxu0 0.0
    %2112 = vmatpush1.msra.mxu0 0.0
    %2113 = vmatprep.subr.mxu0 0.0
    %2114 = vmatpush1.msra.mxu0 0.0
    %2115 = vmatprep.subr.mxu0 0.0
    %2116 = vmatpush1.msra.mxu0 0.0
    %2117 = vmatprep.subr.mxu0 0.0
    %2118 = vmatpush1.msra.mxu0 0.0
    %2119 = vmatprep.subr.mxu0 0.0
    %2120 = vmatpush1.msra.mxu0 0.0
    %2121 = vmatprep.subr.mxu0 0.0
    %2122 = vmatpush1.msra.mxu0 0.0
    %2123 = vmatprep.subr.mxu0 0.0
    %2124 = vmatpush1.msra.mxu0 0.0
    %2125 = vmatprep.subr.mxu0 0.0
    %2126 = vmatpush1.msra.mxu0 0.0
    %2127 = vmatprep.subr.mxu0 0.0
    %2128 = vmatpush1.msra.mxu0 0.0
    %2129 = vmatprep.subr.mxu0 0.0
    %2130 = vmatpush1.msra.mxu0 0.0
    %2131 = vmatprep.subr.mxu0 0.0
    %2132 = vmatpush1.msra.mxu0 0.0
    %2133 = vmatprep.subr.mxu0 0.0
    %2134 = vmatpush1.msra.mxu0 0.0
    %2135 = vmatprep.subr.mxu0 0.0
    %2136 = vmatpush1.msra.mxu0 0.0
    %2137 = vmatprep.subr.mxu0 0.0
    %2138 = vmatpush1.msra.mxu0 0.0
    %2139 = vmatprep.subr.mxu0 0.0
    %2140 = vmatpush1.msra.mxu0 0.0
    %2141 = vmatprep.subr.mxu0 0.0
    %2142 = vmatpush1.msra.mxu0 0.0
    %2143 = vmatprep.mubr.f32.mxu0 0.0
    %v2144 = vand.u32 %v1623, 4294901760
    %2145 = vmatmul.mubr.f32.gmra.mrb[0].mxu0 %v2144
    %v2146 = vpop.f32.mrb[0].mxu0
    %v2147 = vadd.f32 %v2066, %v2146
    %v2148 = vpop.f32.mrb[0].mxu0
    %2149 = vmatprep.mubr.f32.mxu0 0.0
    %v2150 = vand.u32 %v1626, 4294901760
    %2151 = vmatmul.mubr.f32.gmra.mrb[0].mxu0 %v2150
    %v2152 = vpop.f32.mrb[0].mxu0
    %v2153 = vadd.f32 %v2072, %v2152
    %v2154 = vpop.f32.mrb[0].mxu0
    %2155 = vdwg.mxu0
    %v2156 = vld [vmem:[%s7] sm:$0xff]
    %v2157 = vld [vmem:[%s7 + $0x8] sm:$0xff]
    %v2158 = vld [vmem:[%s7 + $0x10] sm:$0xff]
    %v2159 = vld [vmem:[%s7 + $0x18] sm:$0xff]
    %v2160 = vld [vmem:[#allocation11] sm:$0x1]
    %v2162 = vlaneseq
    %v2163 = vshrl.u32 %v2162, 7
    %v2164 = vsub.s32 0, %v2163
    %v2165 = vrot.slane %v2160, %v2164
    %v2168 = vsel %vm163, %v710, 0
    %v2171 = vsel %vm163, %v711, 0
    %2173 = vmatprep.subr.mxu0 0.0
    %v2174 = vand.u32 %v2156, 4294901760
    %2175 = vmatpush1.msra.mxu0 %v2174
    %2176 = vmatprep.subr.mxu0 0.0
    %v2177 = vand.u32 %v2157, 4294901760
    %2178 = vmatpush1.msra.mxu0 %v2177
    %2179 = vmatprep.subr.mxu0 0.0
    %v2180 = vand.u32 %v2158, 4294901760
    %2181 = vmatpush1.msra.mxu0 %v2180
    %2182 = vmatprep.subr.mxu0 0.0
    %v2183 = vand.u32 %v2159, 4294901760
    %2184 = vmatpush1.msra.mxu0 %v2183
    %2185 = vmatprep.subr.mxu0 0.0
    %2186 = vmatpush1.msra.mxu0 0.0
    %2187 = vmatprep.subr.mxu0 0.0
    %2188 = vmatpush1.msra.mxu0 0.0
    %2189 = vmatprep.subr.mxu0 0.0
    %2190 = vmatpush1.msra.mxu0 0.0
    %2191 = vmatprep.subr.mxu0 0.0
    %2192 = vmatpush1.msra.mxu0 0.0
    %2193 = vmatprep.subr.mxu0 0.0
    %2194 = vmatpush1.msra.mxu0 0.0
    %2195 = vmatprep.subr.mxu0 0.0
    %2196 = vmatpush1.msra.mxu0 0.0
    %2197 = vmatprep.subr.mxu0 0.0
    %2198 = vmatpush1.msra.mxu0 0.0
    %2199 = vmatprep.subr.mxu0 0.0
    %2200 = vmatpush1.msra.mxu0 0.0
    %2201 = vmatprep.subr.mxu0 0.0
    %2202 = vmatpush1.msra.mxu0 0.0
    %2203 = vmatprep.subr.mxu0 0.0
    %2204 = vmatpush1.msra.mxu0 0.0
    %2205 = vmatprep.subr.mxu0 0.0
    %2206 = vmatpush1.msra.mxu0 0.0
    %2207 = vmatprep.subr.mxu0 0.0
    %2208 = vmatpush1.msra.mxu0 0.0
    %2209 = vmatprep.subr.mxu0 0.0
    %2210 = vmatpush1.msra.mxu0 0.0
    %2211 = vmatprep.subr.mxu0 0.0
    %2212 = vmatpush1.msra.mxu0 0.0
    %2213 = vmatprep.subr.mxu0 0.0
    %2214 = vmatpush1.msra.mxu0 0.0
    %2215 = vmatprep.subr.mxu0 0.0
    %2216 = vmatpush1.msra.mxu0 0.0
    %2217 = vmatprep.subr.mxu0 0.0
    %2218 = vmatpush1.msra.mxu0 0.0
    %2219 = vmatprep.subr.mxu0 0.0
    %2220 = vmatpush1.msra.mxu0 0.0
    %2221 = vmatprep.subr.mxu0 0.0
    %2222 = vmatpush1.msra.mxu0 0.0
    %2223 = vmatprep.subr.mxu0 0.0
    %2224 = vmatpush1.msra.mxu0 0.0
    %2225 = vmatprep.subr.mxu0 0.0
    %2226 = vmatpush1.msra.mxu0 0.0
    %2227 = vmatprep.subr.mxu0 0.0
    %2228 = vmatpush1.msra.mxu0 0.0
    %2229 = vmatprep.subr.mxu0 0.0
    %2230 = vmatpush1.msra.mxu0 0.0
    %2231 = vmatprep.subr.mxu0 0.0
    %2232 = vmatpush1.msra.mxu0 0.0
    %2233 = vmatprep.subr.mxu0 0.0
    %2234 = vmatpush1.msra.mxu0 0.0
    %2235 = vmatprep.subr.mxu0 0.0
    %2236 = vmatpush1.msra.mxu0 0.0
    %2237 = vmatprep.subr.mxu0 0.0
    %2238 = vmatpush1.msra.mxu0 0.0
    %2239 = vmatprep.subr.mxu0 0.0
    %2240 = vmatpush1.msra.mxu0 0.0
    %2241 = vmatprep.mubr.f32.mxu0 0.0
    %v2242 = vand.u32 %v2168, 4294901760
    %v2243 = vsub.f32 %v2168, %v2242
    %v2244 = vand.u32 %v2243, 4294901760
    %v2245 = vsub.f32 %v2243, %v2244
    %v2246 = vand.u32 %v2245, 4294901760
    %2247 = vmatmul.mubr.f32.gmra.mrb[0].mxu0 %v2246
    %v2248 = vpop.f32.mrb[0].mxu0
    %v2249 = vadd.f32 %v2165, %v2248
    %v2250 = vpop.f32.mrb[0].mxu0
    %2251 = vmatprep.mubr.f32.mxu0 0.0
    %v2252 = vand.u32 %v2171, 4294901760
    %v2253 = vsub.f32 %v2171, %v2252
    %v2254 = vand.u32 %v2253, 4294901760
    %v2255 = vsub.f32 %v2253, %v2254
    %v2256 = vand.u32 %v2255, 4294901760
    %2257 = vmatmul.mubr.f32.gmra.mrb[0].mxu0 %v2256
    %v2258 = vpop.f32.mrb[0].mxu0
    %v2259 = vadd.f32 %v2165, %v2258
    %v2260 = vpop.f32.mrb[0].mxu0
    %2261 = vdwg.mxu0
    %2262 = vmatprep.subr.mxu0 0.0
    %v2263 = vand.u32 %v2156, 4294901760
    %v2264 = vsub.f32 %v2156, %v2263
    %v2265 = vand.u32 %v2264, 4294901760
    %v2266 = vsub.f32 %v2264, %v2265
    %v2267 = vand.u32 %v2266, 4294901760
    %2268 = vmatpush1.msra.mxu0 %v2267
    %2269 = vmatprep.subr.mxu0 0.0
    %v2270 = vand.u32 %v2157, 4294901760
    %v2271 = vsub.f32 %v2157, %v2270
    %v2272 = vand.u32 %v2271, 4294901760
    %v2273 = vsub.f32 %v2271, %v2272
    %v2274 = vand.u32 %v2273, 4294901760
    %2275 = vmatpush1.msra.mxu0 %v2274
    %2276 = vmatprep.subr.mxu0 0.0
    %v2277 = vand.u32 %v2158, 4294901760
    %v2278 = vsub.f32 %v2158, %v2277
    %v2279 = vand.u32 %v2278, 4294901760
    %v2280 = vsub.f32 %v2278, %v2279
    %v2281 = vand.u32 %v2280, 4294901760
    %2282 = vmatpush1.msra.mxu0 %v2281
    %2283 = vmatprep.subr.mxu0 0.0
    %v2284 = vand.u32 %v2159, 4294901760
    %v2285 = vsub.f32 %v2159, %v2284
    %v2286 = vand.u32 %v2285, 4294901760
    %v2287 = vsub.f32 %v2285, %v2286
    %v2288 = vand.u32 %v2287, 4294901760
    %2289 = vmatpush1.msra.mxu0 %v2288
    %2290 = vmatprep.subr.mxu0 0.0
    %2291 = vmatpush1.msra.mxu0 0.0
    %2292 = vmatprep.subr.mxu0 0.0
    %2293 = vmatpush1.msra.mxu0 0.0
    %2294 = vmatprep.subr.mxu0 0.0
    %2295 = vmatpush1.msra.mxu0 0.0
    %2296 = vmatprep.subr.mxu0 0.0
    %2297 = vmatpush1.msra.mxu0 0.0
    %2298 = vmatprep.subr.mxu0 0.0
    %2299 = vmatpush1.msra.mxu0 0.0
    %2300 = vmatprep.subr.mxu0 0.0
    %2301 = vmatpush1.msra.mxu0 0.0
    %2302 = vmatprep.subr.mxu0 0.0
    %2303 = vmatpush1.msra.mxu0 0.0
    %2304 = vmatprep.subr.mxu0 0.0
    %2305 = vmatpush1.msra.mxu0 0.0
    %2306 = vmatprep.subr.mxu0 0.0
    %2307 = vmatpush1.msra.mxu0 0.0
    %2308 = vmatprep.subr.mxu0 0.0
    %2309 = vmatpush1.msra.mxu0 0.0
    %2310 = vmatprep.subr.mxu0 0.0
    %2311 = vmatpush1.msra.mxu0 0.0
    %2312 = vmatprep.subr.mxu0 0.0
    %2313 = vmatpush1.msra.mxu0 0.0
    %2314 = vmatprep.subr.mxu0 0.0
    %2315 = vmatpush1.msra.mxu0 0.0
    %2316 = vmatprep.subr.mxu0 0.0
    %2317 = vmatpush1.msra.mxu0 0.0
    %2318 = vmatprep.subr.mxu0 0.0
    %2319 = vmatpush1.msra.mxu0 0.0
    %2320 = vmatprep.subr.mxu0 0.0
    %2321 = vmatpush1.msra.mxu0 0.0
    %2322 = vmatprep.subr.mxu0 0.0
    %2323 = vmatpush1.msra.mxu0 0.0
    %2324 = vmatprep.subr.mxu0 0.0
    %2325 = vmatpush1.msra.mxu0 0.0
    %2326 = vmatprep.subr.mxu0 0.0
    %2327 = vmatpush1.msra.mxu0 0.0
    %2328 = vmatprep.subr.mxu0 0.0
    %2329 = vmatpush1.msra.mxu0 0.0
    %2330 = vmatprep.subr.mxu0 0.0
    %2331 = vmatpush1.msra.mxu0 0.0
    %2332 = vmatprep.subr.mxu0 0.0
    %2333 = vmatpush1.msra.mxu0 0.0
    %2334 = vmatprep.subr.mxu0 0.0
    %2335 = vmatpush1.msra.mxu0 0.0
    %2336 = vmatprep.subr.mxu0 0.0
    %2337 = vmatpush1.msra.mxu0 0.0
    %2338 = vmatprep.subr.mxu0 0.0
    %2339 = vmatpush1.msra.mxu0 0.0
    %2340 = vmatprep.subr.mxu0 0.0
    %2341 = vmatpush1.msra.mxu0 0.0
    %2342 = vmatprep.subr.mxu0 0.0
    %2343 = vmatpush1.msra.mxu0 0.0
    %2344 = vmatprep.subr.mxu0 0.0
    %2345 = vmatpush1.msra.mxu0 0.0
    %2346 = vmatprep.mubr.f32.mxu0 0.0
    %v2347 = vand.u32 %v2168, 4294901760
    %2348 = vmatmul.mubr.f32.gmra.mrb[0].mxu0 %v2347
    %v2349 = vpop.f32.mrb[0].mxu0
    %v2350 = vadd.f32 %v2249, %v2349
    %v2351 = vpop.f32.mrb[0].mxu0
    %2352 = vmatprep.mubr.f32.mxu0 0.0
    %v2353 = vand.u32 %v2171, 4294901760
    %2354 = vmatmul.mubr.f32.gmra.mrb[0].mxu0 %v2353
    %v2355 = vpop.f32.mrb[0].mxu0
    %v2356 = vadd.f32 %v2259, %v2355
    %v2357 = vpop.f32.mrb[0].mxu0
    %2358 = vdwg.mxu0
    %2359 = vmatprep.subr.mxu0 0.0
    %v2360 = vand.u32 %v2156, 4294901760
    %v2361 = vsub.f32 %v2156, %v2360
    %2362 = vmatpush1.msra.mxu0 %v2361
    %2363 = vmatprep.subr.mxu0 0.0
    %v2364 = vand.u32 %v2157, 4294901760
    %v2365 = vsub.f32 %v2157, %v2364
    %2366 = vmatpush1.msra.mxu0 %v2365
    %2367 = vmatprep.subr.mxu0 0.0
    %v2368 = vand.u32 %v2158, 4294901760
    %v2369 = vsub.f32 %v2158, %v2368
    %2370 = vmatpush1.msra.mxu0 %v2369
    %2371 = vmatprep.subr.mxu0 0.0
    %v2372 = vand.u32 %v2159, 4294901760
    %v2373 = vsub.f32 %v2159, %v2372
    %2374 = vmatpush1.msra.mxu0 %v2373
    %2375 = vmatprep.subr.mxu0 0.0
    %2376 = vmatpush1.msra.mxu0 0.0
    %2377 = vmatprep.subr.mxu0 0.0
    %2378 = vmatpush1.msra.mxu0 0.0
    %2379 = vmatprep.subr.mxu0 0.0
    %2380 = vmatpush1.msra.mxu0 0.0
    %2381 = vmatprep.subr.mxu0 0.0
    %2382 = vmatpush1.msra.mxu0 0.0
    %2383 = vmatprep.subr.mxu0 0.0
    %2384 = vmatpush1.msra.mxu0 0.0
    %2385 = vmatprep.subr.mxu0 0.0
    %2386 = vmatpush1.msra.mxu0 0.0
    %2387 = vmatprep.subr.mxu0 0.0
    %2388 = vmatpush1.msra.mxu0 0.0
    %2389 = vmatprep.subr.mxu0 0.0
    %2390 = vmatpush1.msra.mxu0 0.0
    %2391 = vmatprep.subr.mxu0 0.0
    %2392 = vmatpush1.msra.mxu0 0.0
    %2393 = vmatprep.subr.mxu0 0.0
    %2394 = vmatpush1.msra.mxu0 0.0
    %2395 = vmatprep.subr.mxu0 0.0
    %2396 = vmatpush1.msra.mxu0 0.0
    %2397 = vmatprep.subr.mxu0 0.0
    %2398 = vmatpush1.msra.mxu0 0.0
    %2399 = vmatprep.subr.mxu0 0.0
    %2400 = vmatpush1.msra.mxu0 0.0
    %2401 = vmatprep.subr.mxu0 0.0
    %2402 = vmatpush1.msra.mxu0 0.0
    %2403 = vmatprep.subr.mxu0 0.0
    %2404 = vmatpush1.msra.mxu0 0.0
    %2405 = vmatprep.subr.mxu0 0.0
    %2406 = vmatpush1.msra.mxu0 0.0
    %2407 = vmatprep.subr.mxu0 0.0
    %2408 = vmatpush1.msra.mxu0 0.0
    %2409 = vmatprep.subr.mxu0 0.0
    %2410 = vmatpush1.msra.mxu0 0.0
    %2411 = vmatprep.subr.mxu0 0.0
    %2412 = vmatpush1.msra.mxu0 0.0
    %2413 = vmatprep.subr.mxu0 0.0
    %2414 = vmatpush1.msra.mxu0 0.0
    %2415 = vmatprep.subr.mxu0 0.0
    %2416 = vmatpush1.msra.mxu0 0.0
    %2417 = vmatprep.subr.mxu0 0.0
    %2418 = vmatpush1.msra.mxu0 0.0
    %2419 = vmatprep.subr.mxu0 0.0
    %2420 = vmatpush1.msra.mxu0 0.0
    %2421 = vmatprep.subr.mxu0 0.0
    %2422 = vmatpush1.msra.mxu0 0.0
    %2423 = vmatprep.subr.mxu0 0.0
    %2424 = vmatpush1.msra.mxu0 0.0
    %2425 = vmatprep.subr.mxu0 0.0
    %2426 = vmatpush1.msra.mxu0 0.0
    %2427 = vmatprep.subr.mxu0 0.0
    %2428 = vmatpush1.msra.mxu0 0.0
    %2429 = vmatprep.subr.mxu0 0.0
    %2430 = vmatpush1.msra.mxu0 0.0
    %2431 = vmatprep.mubr.f32.mxu0 0.0
    %v2432 = vand.u32 %v2168, 4294901760
    %v2433 = vsub.f32 %v2168, %v2432
    %2434 = vmatmul.mubr.f32.gmra.mrb[0].mxu0 %v2433
    %v2435 = vpop.f32.mrb[0].mxu0
    %v2436 = vadd.f32 %v2350, %v2435
    %v2437 = vpop.f32.mrb[0].mxu0
    %2438 = vmatprep.mubr.f32.mxu0 0.0
    %v2439 = vand.u32 %v2171, 4294901760
    %v2440 = vsub.f32 %v2171, %v2439
    %2441 = vmatmul.mubr.f32.gmra.mrb[0].mxu0 %v2440
    %v2442 = vpop.f32.mrb[0].mxu0
    %v2443 = vadd.f32 %v2356, %v2442
    %v2444 = vpop.f32.mrb[0].mxu0
    %2445 = vdwg.mxu0
    %2446 = vmatprep.subr.mxu0 0.0
    %v2447 = vand.u32 %v2156, 4294901760
    %2448 = vmatpush1.msra.mxu0 %v2447
    %2449 = vmatprep.subr.mxu0 0.0
    %v2450 = vand.u32 %v2157, 4294901760
    %2451 = vmatpush1.msra.mxu0 %v2450
    %2452 = vmatprep.subr.mxu0 0.0
    %v2453 = vand.u32 %v2158, 4294901760
    %2454 = vmatpush1.msra.mxu0 %v2453
    %2455 = vmatprep.subr.mxu0 0.0
    %v2456 = vand.u32 %v2159, 4294901760
    %2457 = vmatpush1.msra.mxu0 %v2456
    %2458 = vmatprep.subr.mxu0 0.0
    %2459 = vmatpush1.msra.mxu0 0.0
    %2460 = vmatprep.subr.mxu0 0.0
    %2461 = vmatpush1.msra.mxu0 0.0
    %2462 = vmatprep.subr.mxu0 0.0
    %2463 = vmatpush1.msra.mxu0 0.0
    %2464 = vmatprep.subr.mxu0 0.0
    %2465 = vmatpush1.msra.mxu0 0.0
    %2466 = vmatprep.subr.mxu0 0.0
    %2467 = vmatpush1.msra.mxu0 0.0
    %2468 = vmatprep.subr.mxu0 0.0
    %2469 = vmatpush1.msra.mxu0 0.0
    %2470 = vmatprep.subr.mxu0 0.0
    %2471 = vmatpush1.msra.mxu0 0.0
    %2472 = vmatprep.subr.mxu0 0.0
    %2473 = vmatpush1.msra.mxu0 0.0
    %2474 = vmatprep.subr.mxu0 0.0
    %2475 = vmatpush1.msra.mxu0 0.0
    %2476 = vmatprep.subr.mxu0 0.0
    %2477 = vmatpush1.msra.mxu0 0.0
    %2478 = vmatprep.subr.mxu0 0.0
    %2479 = vmatpush1.msra.mxu0 0.0
    %2480 = vmatprep.subr.mxu0 0.0
    %2481 = vmatpush1.msra.mxu0 0.0
    %2482 = vmatprep.subr.mxu0 0.0
    %2483 = vmatpush1.msra.mxu0 0.0
    %2484 = vmatprep.subr.mxu0 0.0
    %2485 = vmatpush1.msra.mxu0 0.0
    %2486 = vmatprep.subr.mxu0 0.0
    %2487 = vmatpush1.msra.mxu0 0.0
    %2488 = vmatprep.subr.mxu0 0.0
    %2489 = vmatpush1.msra.mxu0 0.0
    %2490 = vmatprep.subr.mxu0 0.0
    %2491 = vmatpush1.msra.mxu0 0.0
    %2492 = vmatprep.subr.mxu0 0.0
    %2493 = vmatpush1.msra.mxu0 0.0
    %2494 = vmatprep.subr.mxu0 0.0
    %2495 = vmatpush1.msra.mxu0 0.0
    %2496 = vmatprep.subr.mxu0 0.0
    %2497 = vmatpush1.msra.mxu0 0.0
    %2498 = vmatprep.subr.mxu0 0.0
    %2499 = vmatpush1.msra.mxu0 0.0
    %2500 = vmatprep.subr.mxu0 0.0
    %2501 = vmatpush1.msra.mxu0 0.0
    %2502 = vmatprep.subr.mxu0 0.0
    %2503 = vmatpush1.msra.mxu0 0.0
    %2504 = vmatprep.subr.mxu0 0.0
    %2505 = vmatpush1.msra.mxu0 0.0
    %2506 = vmatprep.subr.mxu0 0.0
    %2507 = vmatpush1.msra.mxu0 0.0
    %2508 = vmatprep.subr.mxu0 0.0
    %2509 = vmatpush1.msra.mxu0 0.0
    %2510 = vmatprep.subr.mxu0 0.0
    %2511 = vmatpush1.msra.mxu0 0.0
    %2512 = vmatprep.subr.mxu0 0.0
    %2513 = vmatpush1.msra.mxu0 0.0
    %2514 = vmatprep.mubr.f32.mxu0 0.0
    %v2515 = vand.u32 %v2168, 4294901760
    %v2516 = vsub.f32 %v2168, %v2515
    %v2517 = vand.u32 %v2516, 4294901760
    %2518 = vmatmul.mubr.f32.gmra.mrb[0].mxu0 %v2517
    %v2519 = vpop.f32.mrb[0].mxu0
    %v2520 = vadd.f32 %v2436, %v2519
    %v2521 = vpop.f32.mrb[0].mxu0
    %2522 = vmatprep.mubr.f32.mxu0 0.0
    %v2523 = vand.u32 %v2171, 4294901760
    %v2524 = vsub.f32 %v2171, %v2523
    %v2525 = vand.u32 %v2524, 4294901760
    %2526 = vmatmul.mubr.f32.gmra.mrb[0].mxu0 %v2525
    %v2527 = vpop.f32.mrb[0].mxu0
    %v2528 = vadd.f32 %v2443, %v2527
    %v2529 = vpop.f32.mrb[0].mxu0
    %2530 = vdwg.mxu0
    %2531 = vmatprep.subr.mxu0 0.0
    %v2532 = vand.u32 %v2156, 4294901760
    %v2533 = vsub.f32 %v2156, %v2532
    %v2534 = vand.u32 %v2533, 4294901760
    %2535 = vmatpush1.msra.mxu0 %v2534
    %2536 = vmatprep.subr.mxu0 0.0
    %v2537 = vand.u32 %v2157, 4294901760
    %v2538 = vsub.f32 %v2157, %v2537
    %v2539 = vand.u32 %v2538, 4294901760
    %2540 = vmatpush1.msra.mxu0 %v2539
    %2541 = vmatprep.subr.mxu0 0.0
    %v2542 = vand.u32 %v2158, 4294901760
    %v2543 = vsub.f32 %v2158, %v2542
    %v2544 = vand.u32 %v2543, 4294901760
    %2545 = vmatpush1.msra.mxu0 %v2544
    %2546 = vmatprep.subr.mxu0 0.0
    %v2547 = vand.u32 %v2159, 4294901760
    %v2548 = vsub.f32 %v2159, %v2547
    %v2549 = vand.u32 %v2548, 4294901760
    %2550 = vmatpush1.msra.mxu0 %v2549
    %2551 = vmatprep.subr.mxu0 0.0
    %2552 = vmatpush1.msra.mxu0 0.0
    %2553 = vmatprep.subr.mxu0 0.0
    %2554 = vmatpush1.msra.mxu0 0.0
    %2555 = vmatprep.subr.mxu0 0.0
    %2556 = vmatpush1.msra.mxu0 0.0
    %2557 = vmatprep.subr.mxu0 0.0
    %2558 = vmatpush1.msra.mxu0 0.0
    %2559 = vmatprep.subr.mxu0 0.0
    %2560 = vmatpush1.msra.mxu0 0.0
    %2561 = vmatprep.subr.mxu0 0.0
    %2562 = vmatpush1.msra.mxu0 0.0
    %2563 = vmatprep.subr.mxu0 0.0
    %2564 = vmatpush1.msra.mxu0 0.0
    %2565 = vmatprep.subr.mxu0 0.0
    %2566 = vmatpush1.msra.mxu0 0.0
    %2567 = vmatprep.subr.mxu0 0.0
    %2568 = vmatpush1.msra.mxu0 0.0
    %2569 = vmatprep.subr.mxu0 0.0
    %2570 = vmatpush1.msra.mxu0 0.0
    %2571 = vmatprep.subr.mxu0 0.0
    %2572 = vmatpush1.msra.mxu0 0.0
    %2573 = vmatprep.subr.mxu0 0.0
    %2574 = vmatpush1.msra.mxu0 0.0
    %2575 = vmatprep.subr.mxu0 0.0
    %2576 = vmatpush1.msra.mxu0 0.0
    %2577 = vmatprep.subr.mxu0 0.0
    %2578 = vmatpush1.msra.mxu0 0.0
    %2579 = vmatprep.subr.mxu0 0.0
    %2580 = vmatpush1.msra.mxu0 0.0
    %2581 = vmatprep.subr.mxu0 0.0
    %2582 = vmatpush1.msra.mxu0 0.0
    %2583 = vmatprep.subr.mxu0 0.0
    %2584 = vmatpush1.msra.mxu0 0.0
    %2585 = vmatprep.subr.mxu0 0.0
    %2586 = vmatpush1.msra.mxu0 0.0
    %2587 = vmatprep.subr.mxu0 0.0
    %2588 = vmatpush1.msra.mxu0 0.0
    %2589 = vmatprep.subr.mxu0 0.0
    %2590 = vmatpush1.msra.mxu0 0.0
    %2591 = vmatprep.subr.mxu0 0.0
    %2592 = vmatpush1.msra.mxu0 0.0
    %2593 = vmatprep.subr.mxu0 0.0
    %2594 = vmatpush1.msra.mxu0 0.0
    %2595 = vmatprep.subr.mxu0 0.0
    %2596 = vmatpush1.msra.mxu0 0.0
    %2597 = vmatprep.subr.mxu0 0.0
    %2598 = vmatpush1.msra.mxu0 0.0
    %2599 = vmatprep.subr.mxu0 0.0
    %2600 = vmatpush1.msra.mxu0 0.0
    %2601 = vmatprep.subr.mxu0 0.0
    %2602 = vmatpush1.msra.mxu0 0.0
    %2603 = vmatprep.subr.mxu0 0.0
    %2604 = vmatpush1.msra.mxu0 0.0
    %2605 = vmatprep.subr.mxu0 0.0
    %2606 = vmatpush1.msra.mxu0 0.0
    %2607 = vmatprep.mubr.f32.mxu0 0.0
    %v2608 = vand.u32 %v2168, 4294901760
    %2609 = vmatmul.mubr.f32.gmra.mrb[0].mxu0 %v2608
    %v2610 = vpop.f32.mrb[0].mxu0
    %v2611 = vadd.f32 %v2520, %v2610
    %v2612 = vpop.f32.mrb[0].mxu0
    %2613 = vmatprep.mubr.f32.mxu0 0.0
    %v2614 = vand.u32 %v2171, 4294901760
    %2615 = vmatmul.mubr.f32.gmra.mrb[0].mxu0 %v2614
    %v2616 = vpop.f32.mrb[0].mxu0
    %v2617 = vadd.f32 %v2528, %v2616
    %v2618 = vpop.f32.mrb[0].mxu0
    %2619 = vdwg.mxu0
    %2620 = vmatprep.subr.mxu0 0.0
    %v2621 = vand.u32 %v2156, 4294901760
    %2622 = vmatpush1.msra.mxu0 %v2621
    %2623 = vmatprep.subr.mxu0 0.0
    %v2624 = vand.u32 %v2157, 4294901760
    %2625 = vmatpush1.msra.mxu0 %v2624
    %2626 = vmatprep.subr.mxu0 0.0
    %v2627 = vand.u32 %v2158, 4294901760
    %2628 = vmatpush1.msra.mxu0 %v2627
    %2629 = vmatprep.subr.mxu0 0.0
    %v2630 = vand.u32 %v2159, 4294901760
    %2631 = vmatpush1.msra.mxu0 %v2630
    %2632 = vmatprep.subr.mxu0 0.0
    %2633 = vmatpush1.msra.mxu0 0.0
    %2634 = vmatprep.subr.mxu0 0.0
    %2635 = vmatpush1.msra.mxu0 0.0
    %2636 = vmatprep.subr.mxu0 0.0
    %2637 = vmatpush1.msra.mxu0 0.0
    %2638 = vmatprep.subr.mxu0 0.0
    %2639 = vmatpush1.msra.mxu0 0.0
    %2640 = vmatprep.subr.mxu0 0.0
    %2641 = vmatpush1.msra.mxu0 0.0
    %2642 = vmatprep.subr.mxu0 0.0
    %2643 = vmatpush1.msra.mxu0 0.0
    %2644 = vmatprep.subr.mxu0 0.0
    %2645 = vmatpush1.msra.mxu0 0.0
    %2646 = vmatprep.subr.mxu0 0.0
    %2647 = vmatpush1.msra.mxu0 0.0
    %2648 = vmatprep.subr.mxu0 0.0
    %2649 = vmatpush1.msra.mxu0 0.0
    %2650 = vmatprep.subr.mxu0 0.0
    %2651 = vmatpush1.msra.mxu0 0.0
    %2652 = vmatprep.subr.mxu0 0.0
    %2653 = vmatpush1.msra.mxu0 0.0
    %2654 = vmatprep.subr.mxu0 0.0
    %2655 = vmatpush1.msra.mxu0 0.0
    %2656 = vmatprep.subr.mxu0 0.0
    %2657 = vmatpush1.msra.mxu0 0.0
    %2658 = vmatprep.subr.mxu0 0.0
    %2659 = vmatpush1.msra.mxu0 0.0
    %2660 = vmatprep.subr.mxu0 0.0
    %2661 = vmatpush1.msra.mxu0 0.0
    %2662 = vmatprep.subr.mxu0 0.0
    %2663 = vmatpush1.msra.mxu0 0.0
    %2664 = vmatprep.subr.mxu0 0.0
    %2665 = vmatpush1.msra.mxu0 0.0
    %2666 = vmatprep.subr.mxu0 0.0
    %2667 = vmatpush1.msra.mxu0 0.0
    %2668 = vmatprep.subr.mxu0 0.0
    %2669 = vmatpush1.msra.mxu0 0.0
    %2670 = vmatprep.subr.mxu0 0.0
    %2671 = vmatpush1.msra.mxu0 0.0
    %2672 = vmatprep.subr.mxu0 0.0
    %2673 = vmatpush1.msra.mxu0 0.0
    %2674 = vmatprep.subr.mxu0 0.0
    %2675 = vmatpush1.msra.mxu0 0.0
    %2676 = vmatprep.subr.mxu0 0.0
    %2677 = vmatpush1.msra.mxu0 0.0
    %2678 = vmatprep.subr.mxu0 0.0
    %2679 = vmatpush1.msra.mxu0 0.0
    %2680 = vmatprep.subr.mxu0 0.0
    %2681 = vmatpush1.msra.mxu0 0.0
    %2682 = vmatprep.subr.mxu0 0.0
    %2683 = vmatpush1.msra.mxu0 0.0
    %2684 = vmatprep.subr.mxu0 0.0
    %2685 = vmatpush1.msra.mxu0 0.0
    %2686 = vmatprep.subr.mxu0 0.0
    %2687 = vmatpush1.msra.mxu0 0.0
    %2688 = vmatprep.mubr.f32.mxu0 0.0
    %v2689 = vand.u32 %v2168, 4294901760
    %2690 = vmatmul.mubr.f32.gmra.mrb[0].mxu0 %v2689
    %v2691 = vpop.f32.mrb[0].mxu0
    %v2692 = vadd.f32 %v2611, %v2691
    %v2693 = vpop.f32.mrb[0].mxu0
    %2694 = vmatprep.mubr.f32.mxu0 0.0
    %v2695 = vand.u32 %v2171, 4294901760
    %2696 = vmatmul.mubr.f32.gmra.mrb[0].mxu0 %v2695
    %v2697 = vpop.f32.mrb[0].mxu0
    %v2698 = vadd.f32 %v2617, %v2697
    %v2699 = vpop.f32.mrb[0].mxu0
    %2700 = vdwg.mxu0
    %v2701 = vadd.f32 %v2147, %v2692
    %v2702 = vadd.f32 %v2153, %v2698
    %v2703 = vxor.u32 %v2701, 2147483648
    %v2704 = vxor.u32 %v2702, 2147483648
    %v2705 = vmul.f32 %v2703, 1.442695
    %v2706 = vpow.pop %v2705
    %v2707 = vmul.f32 %v2704, 1.442695
    %v2708 = vpow.pop %v2707
    %v2709 = vadd.f32 %v2706, 1.0
    %v2710 = vadd.f32 %v2708, 1.0
    %v2711 = vrcp.pop %v2709
    %v2712 = vmul.f32 1.0, %v2711
    %v2713 = vrcp.pop %v2710
    %v2714 = vmul.f32 1.0, %v2713
    %2715 = vrot.lane.b32.xlu0 %v710, 32
    %v2716 = vpop.permute.xlu0 %2715
    %2717 = vrot.lane.b32.xlu0 %v711, 32
    %v2718 = vpop.permute.xlu0 %2717
    %v2721 = vmul.f32 %v2712, %v2716
    %v2722 = vmul.f32 %v2714, %v2718
    %v2723 = vld [vmem:[%s9] sm:$0xff]
    %v2724 = vld [vmem:[%s9 + $0x8] sm:$0xff]
    %v2725 = vld [vmem:[%s9 + $0x10] sm:$0xff]
    %v2726 = vld [vmem:[%s9 + $0x18] sm:$0xff]
    %v2727 = vld [vmem:[#allocation12] sm:$0x1]
    %v2729 = vlaneseq
    %v2730 = vshrl.u32 %v2729, 7
    %v2731 = vsub.s32 0, %v2730
    %v2732 = vrot.slane %v2727, %v2731
    %2736 = vrot.lane.b32.xlu0 %v2721, 96
    %v2737 = vpop.permute.xlu0 %2736
    %2738 = vrot.lane.b32.xlu0 %v2722, 96
    %v2739 = vpop.permute.xlu0 %2738
    %v2740 = vsel %vm163, %v2737, 0
    %v2742 = vsel %vm163, %v2739, 0
    %2744 = vmatprep.subr.mxu0 0.0
    %v2745 = vand.u32 %v2723, 4294901760
    %2746 = vmatpush1.msra.mxu0 %v2745
    %2747 = vmatprep.subr.mxu0 0.0
    %v2748 = vand.u32 %v2724, 4294901760
    %2749 = vmatpush1.msra.mxu0 %v2748
    %2750 = vmatprep.subr.mxu0 0.0
    %v2751 = vand.u32 %v2725, 4294901760
    %2752 = vmatpush1.msra.mxu0 %v2751
    %2753 = vmatprep.subr.mxu0 0.0
    %v2754 = vand.u32 %v2726, 4294901760
    %2755 = vmatpush1.msra.mxu0 %v2754
    %2756 = vmatprep.subr.mxu0 0.0
    %2757 = vmatpush1.msra.mxu0 0.0
    %2758 = vmatprep.subr.mxu0 0.0
    %2759 = vmatpush1.msra.mxu0 0.0
    %2760 = vmatprep.subr.mxu0 0.0
    %2761 = vmatpush1.msra.mxu0 0.0
    %2762 = vmatprep.subr.mxu0 0.0
    %2763 = vmatpush1.msra.mxu0 0.0
    %2764 = vmatprep.subr.mxu0 0.0
    %2765 = vmatpush1.msra.mxu0 0.0
    %2766 = vmatprep.subr.mxu0 0.0
    %2767 = vmatpush1.msra.mxu0 0.0
    %2768 = vmatprep.subr.mxu0 0.0
    %2769 = vmatpush1.msra.mxu0 0.0
    %2770 = vmatprep.subr.mxu0 0.0
    %2771 = vmatpush1.msra.mxu0 0.0
    %2772 = vmatprep.subr.mxu0 0.0
    %2773 = vmatpush1.msra.mxu0 0.0
    %2774 = vmatprep.subr.mxu0 0.0
    %2775 = vmatpush1.msra.mxu0 0.0
    %2776 = vmatprep.subr.mxu0 0.0
    %2777 = vmatpush1.msra.mxu0 0.0
    %2778 = vmatprep.subr.mxu0 0.0
    %2779 = vmatpush1.msra.mxu0 0.0
    %2780 = vmatprep.subr.mxu0 0.0
    %2781 = vmatpush1.msra.mxu0 0.0
    %2782 = vmatprep.subr.mxu0 0.0
    %2783 = vmatpush1.msra.mxu0 0.0
    %2784 = vmatprep.subr.mxu0 0.0
    %2785 = vmatpush1.msra.mxu0 0.0
    %2786 = vmatprep.subr.mxu0 0.0
    %2787 = vmatpush1.msra.mxu0 0.0
    %2788 = vmatprep.subr.mxu0 0.0
    %2789 = vmatpush1.msra.mxu0 0.0
    %2790 = vmatprep.subr.mxu0 0.0
    %2791 = vmatpush1.msra.mxu0 0.0
    %2792 = vmatprep.subr.mxu0 0.0
    %2793 = vmatpush1.msra.mxu0 0.0
    %2794 = vmatprep.subr.mxu0 0.0
    %2795 = vmatpush1.msra.mxu0 0.0
    %2796 = vmatprep.subr.mxu0 0.0
    %2797 = vmatpush1.msra.mxu0 0.0
    %2798 = vmatprep.subr.mxu0 0.0
    %2799 = vmatpush1.msra.mxu0 0.0
    %2800 = vmatprep.subr.mxu0 0.0
    %2801 = vmatpush1.msra.mxu0 0.0
    %2802 = vmatprep.subr.mxu0 0.0
    %2803 = vmatpush1.msra.mxu0 0.0
    %2804 = vmatprep.subr.mxu0 0.0
    %2805 = vmatpush1.msra.mxu0 0.0
    %2806 = vmatprep.subr.mxu0 0.0
    %2807 = vmatpush1.msra.mxu0 0.0
    %2808 = vmatprep.subr.mxu0 0.0
    %2809 = vmatpush1.msra.mxu0 0.0
    %2810 = vmatprep.subr.mxu0 0.0
    %2811 = vmatpush1.msra.mxu0 0.0
    %2812 = vmatprep.mubr.f32.mxu0 0.0
    %v2813 = vand.u32 %v2740, 4294901760
    %v2814 = vsub.f32 %v2740, %v2813
    %v2815 = vand.u32 %v2814, 4294901760
    %v2816 = vsub.f32 %v2814, %v2815
    %v2817 = vand.u32 %v2816, 4294901760
    %2818 = vmatmul.mubr.f32.gmra.mrb[0].mxu0 %v2817
    %v2819 = vpop.f32.mrb[0].mxu0
    %v2820 = vadd.f32 %v2732, %v2819
    %v2821 = vpop.f32.mrb[0].mxu0
    %2822 = vmatprep.mubr.f32.mxu0 0.0
    %v2823 = vand.u32 %v2742, 4294901760
    %v2824 = vsub.f32 %v2742, %v2823
    %v2825 = vand.u32 %v2824, 4294901760
    %v2826 = vsub.f32 %v2824, %v2825
    %v2827 = vand.u32 %v2826, 4294901760
    %2828 = vmatmul.mubr.f32.gmra.mrb[0].mxu0 %v2827
    %v2829 = vpop.f32.mrb[0].mxu0
    %v2830 = vadd.f32 %v2732, %v2829
    %v2831 = vpop.f32.mrb[0].mxu0
    %2832 = vdwg.mxu0
    %2833 = vmatprep.subr.mxu0 0.0
    %v2834 = vand.u32 %v2723, 4294901760
    %v2835 = vsub.f32 %v2723, %v2834
    %v2836 = vand.u32 %v2835, 4294901760
    %v2837 = vsub.f32 %v2835, %v2836
    %v2838 = vand.u32 %v2837, 4294901760
    %2839 = vmatpush1.msra.mxu0 %v2838
    %2840 = vmatprep.subr.mxu0 0.0
    %v2841 = vand.u32 %v2724, 4294901760
    %v2842 = vsub.f32 %v2724, %v2841
    %v2843 = vand.u32 %v2842, 4294901760
    %v2844 = vsub.f32 %v2842, %v2843
    %v2845 = vand.u32 %v2844, 4294901760
    %2846 = vmatpush1.msra.mxu0 %v2845
    %2847 = vmatprep.subr.mxu0 0.0
    %v2848 = vand.u32 %v2725, 4294901760
    %v2849 = vsub.f32 %v2725, %v2848
    %v2850 = vand.u32 %v2849, 4294901760
    %v2851 = vsub.f32 %v2849, %v2850
    %v2852 = vand.u32 %v2851, 4294901760
    %2853 = vmatpush1.msra.mxu0 %v2852
    %2854 = vmatprep.subr.mxu0 0.0
    %v2855 = vand.u32 %v2726, 4294901760
    %v2856 = vsub.f32 %v2726, %v2855
    %v2857 = vand.u32 %v2856, 4294901760
    %v2858 = vsub.f32 %v2856, %v2857
    %v2859 = vand.u32 %v2858, 4294901760
    %2860 = vmatpush1.msra.mxu0 %v2859
    %2861 = vmatprep.subr.mxu0 0.0
    %2862 = vmatpush1.msra.mxu0 0.0
    %2863 = vmatprep.subr.mxu0 0.0
    %2864 = vmatpush1.msra.mxu0 0.0
    %2865 = vmatprep.subr.mxu0 0.0
    %2866 = vmatpush1.msra.mxu0 0.0
    %2867 = vmatprep.subr.mxu0 0.0
    %2868 = vmatpush1.msra.mxu0 0.0
    %2869 = vmatprep.subr.mxu0 0.0
    %2870 = vmatpush1.msra.mxu0 0.0
    %2871 = vmatprep.subr.mxu0 0.0
    %2872 = vmatpush1.msra.mxu0 0.0
    %2873 = vmatprep.subr.mxu0 0.0
    %2874 = vmatpush1.msra.mxu0 0.0
    %2875 = vmatprep.subr.mxu0 0.0
    %2876 = vmatpush1.msra.mxu0 0.0
    %2877 = vmatprep.subr.mxu0 0.0
    %2878 = vmatpush1.msra.mxu0 0.0
    %2879 = vmatprep.subr.mxu0 0.0
    %2880 = vmatpush1.msra.mxu0 0.0
    %2881 = vmatprep.subr.mxu0 0.0
    %2882 = vmatpush1.msra.mxu0 0.0
    %2883 = vmatprep.subr.mxu0 0.0
    %2884 = vmatpush1.msra.mxu0 0.0
    %2885 = vmatprep.subr.mxu0 0.0
    %2886 = vmatpush1.msra.mxu0 0.0
    %2887 = vmatprep.subr.mxu0 0.0
    %2888 = vmatpush1.msra.mxu0 0.0
    %2889 = vmatprep.subr.mxu0 0.0
    %2890 = vmatpush1.msra.mxu0 0.0
    %2891 = vmatprep.subr.mxu0 0.0
    %2892 = vmatpush1.msra.mxu0 0.0
    %2893 = vmatprep.subr.mxu0 0.0
    %2894 = vmatpush1.msra.mxu0 0.0
    %2895 = vmatprep.subr.mxu0 0.0
    %2896 = vmatpush1.msra.mxu0 0.0
    %2897 = vmatprep.subr.mxu0 0.0
    %2898 = vmatpush1.msra.mxu0 0.0
    %2899 = vmatprep.subr.mxu0 0.0
    %2900 = vmatpush1.msra.mxu0 0.0
    %2901 = vmatprep.subr.mxu0 0.0
    %2902 = vmatpush1.msra.mxu0 0.0
    %2903 = vmatprep.subr.mxu0 0.0
    %2904 = vmatpush1.msra.mxu0 0.0
    %2905 = vmatprep.subr.mxu0 0.0
    %2906 = vmatpush1.msra.mxu0 0.0
    %2907 = vmatprep.subr.mxu0 0.0
    %2908 = vmatpush1.msra.mxu0 0.0
    %2909 = vmatprep.subr.mxu0 0.0
    %2910 = vmatpush1.msra.mxu0 0.0
    %2911 = vmatprep.subr.mxu0 0.0
    %2912 = vmatpush1.msra.mxu0 0.0
    %2913 = vmatprep.subr.mxu0 0.0
    %2914 = vmatpush1.msra.mxu0 0.0
    %2915 = vmatprep.subr.mxu0 0.0
    %2916 = vmatpush1.msra.mxu0 0.0
    %2917 = vmatprep.mubr.f32.mxu0 0.0
    %v2918 = vand.u32 %v2740, 4294901760
    %2919 = vmatmul.mubr.f32.gmra.mrb[0].mxu0 %v2918
    %v2920 = vpop.f32.mrb[0].mxu0
    %v2921 = vadd.f32 %v2820, %v2920
    %v2922 = vpop.f32.mrb[0].mxu0
    %2923 = vmatprep.mubr.f32.mxu0 0.0
    %v2924 = vand.u32 %v2742, 4294901760
    %2925 = vmatmul.mubr.f32.gmra.mrb[0].mxu0 %v2924
    %v2926 = vpop.f32.mrb[0].mxu0
    %v2927 = vadd.f32 %v2830, %v2926
    %v2928 = vpop.f32.mrb[0].mxu0
    %2929 = vdwg.mxu0
    %2930 = vmatprep.subr.mxu0 0.0
    %v2931 = vand.u32 %v2723, 4294901760
    %v2932 = vsub.f32 %v2723, %v2931
    %2933 = vmatpush1.msra.mxu0 %v2932
    %2934 = vmatprep.subr.mxu0 0.0
    %v2935 = vand.u32 %v2724, 4294901760
    %v2936 = vsub.f32 %v2724, %v2935
    %2937 = vmatpush1.msra.mxu0 %v2936
    %2938 = vmatprep.subr.mxu0 0.0
    %v2939 = vand.u32 %v2725, 4294901760
    %v2940 = vsub.f32 %v2725, %v2939
    %2941 = vmatpush1.msra.mxu0 %v2940
    %2942 = vmatprep.subr.mxu0 0.0
    %v2943 = vand.u32 %v2726, 4294901760
    %v2944 = vsub.f32 %v2726, %v2943
    %2945 = vmatpush1.msra.mxu0 %v2944
    %2946 = vmatprep.subr.mxu0 0.0
    %2947 = vmatpush1.msra.mxu0 0.0
    %2948 = vmatprep.subr.mxu0 0.0
    %2949 = vmatpush1.msra.mxu0 0.0
    %2950 = vmatprep.subr.mxu0 0.0
    %2951 = vmatpush1.msra.mxu0 0.0
    %2952 = vmatprep.subr.mxu0 0.0
    %2953 = vmatpush1.msra.mxu0 0.0
    %2954 = vmatprep.subr.mxu0 0.0
    %2955 = vmatpush1.msra.mxu0 0.0
    %2956 = vmatprep.subr.mxu0 0.0
    %2957 = vmatpush1.msra.mxu0 0.0
    %2958 = vmatprep.subr.mxu0 0.0
    %2959 = vmatpush1.msra.mxu0 0.0
    %2960 = vmatprep.subr.mxu0 0.0
    %2961 = vmatpush1.msra.mxu0 0.0
    %2962 = vmatprep.subr.mxu0 0.0
    %2963 = vmatpush1.msra.mxu0 0.0
    %2964 = vmatprep.subr.mxu0 0.0
    %2965 = vmatpush1.msra.mxu0 0.0
    %2966 = vmatprep.subr.mxu0 0.0
    %2967 = vmatpush1.msra.mxu0 0.0
    %2968 = vmatprep.subr.mxu0 0.0
    %2969 = vmatpush1.msra.mxu0 0.0
    %2970 = vmatprep.subr.mxu0 0.0
    %2971 = vmatpush1.msra.mxu0 0.0
    %2972 = vmatprep.subr.mxu0 0.0
    %2973 = vmatpush1.msra.mxu0 0.0
    %2974 = vmatprep.subr.mxu0 0.0
    %2975 = vmatpush1.msra.mxu0 0.0
    %2976 = vmatprep.subr.mxu0 0.0
    %2977 = vmatpush1.msra.mxu0 0.0
    %2978 = vmatprep.subr.mxu0 0.0
    %2979 = vmatpush1.msra.mxu0 0.0
    %2980 = vmatprep.subr.mxu0 0.0
    %2981 = vmatpush1.msra.mxu0 0.0
    %2982 = vmatprep.subr.mxu0 0.0
    %2983 = vmatpush1.msra.mxu0 0.0
    %2984 = vmatprep.subr.mxu0 0.0
    %2985 = vmatpush1.msra.mxu0 0.0
    %2986 = vmatprep.subr.mxu0 0.0
    %2987 = vmatpush1.msra.mxu0 0.0
    %2988 = vmatprep.subr.mxu0 0.0
    %2989 = vmatpush1.msra.mxu0 0.0
    %2990 = vmatprep.subr.mxu0 0.0
    %2991 = vmatpush1.msra.mxu0 0.0
    %2992 = vmatprep.subr.mxu0 0.0
    %2993 = vmatpush1.msra.mxu0 0.0
    %2994 = vmatprep.subr.mxu0 0.0
    %2995 = vmatpush1.msra.mxu0 0.0
    %2996 = vmatprep.subr.mxu0 0.0
    %2997 = vmatpush1.msra.mxu0 0.0
    %2998 = vmatprep.subr.mxu0 0.0
    %2999 = vmatpush1.msra.mxu0 0.0
    %3000 = vmatprep.subr.mxu0 0.0
    %3001 = vmatpush1.msra.mxu0 0.0
    %3002 = vmatprep.mubr.f32.mxu0 0.0
    %v3003 = vand.u32 %v2740, 4294901760
    %v3004 = vsub.f32 %v2740, %v3003
    %3005 = vmatmul.mubr.f32.gmra.mrb[0].mxu0 %v3004
    %v3006 = vpop.f32.mrb[0].mxu0
    %v3007 = vadd.f32 %v2921, %v3006
    %v3008 = vpop.f32.mrb[0].mxu0
    %3009 = vmatprep.mubr.f32.mxu0 0.0
    %v3010 = vand.u32 %v2742, 4294901760
    %v3011 = vsub.f32 %v2742, %v3010
    %3012 = vmatmul.mubr.f32.gmra.mrb[0].mxu0 %v3011
    %v3013 = vpop.f32.mrb[0].mxu0
    %v3014 = vadd.f32 %v2927, %v3013
    %v3015 = vpop.f32.mrb[0].mxu0
    %3016 = vdwg.mxu0
    %3017 = vmatprep.subr.mxu0 0.0
    %v3018 = vand.u32 %v2723, 4294901760
    %3019 = vmatpush1.msra.mxu0 %v3018
    %3020 = vmatprep.subr.mxu0 0.0
    %v3021 = vand.u32 %v2724, 4294901760
    %3022 = vmatpush1.msra.mxu0 %v3021
    %3023 = vmatprep.subr.mxu0 0.0
    %v3024 = vand.u32 %v2725, 4294901760
    %3025 = vmatpush1.msra.mxu0 %v3024
    %3026 = vmatprep.subr.mxu0 0.0
    %v3027 = vand.u32 %v2726, 4294901760
    %3028 = vmatpush1.msra.mxu0 %v3027
    %3029 = vmatprep.subr.mxu0 0.0
    %3030 = vmatpush1.msra.mxu0 0.0
    %3031 = vmatprep.subr.mxu0 0.0
    %3032 = vmatpush1.msra.mxu0 0.0
    %3033 = vmatprep.subr.mxu0 0.0
    %3034 = vmatpush1.msra.mxu0 0.0
    %3035 = vmatprep.subr.mxu0 0.0
    %3036 = vmatpush1.msra.mxu0 0.0
    %3037 = vmatprep.subr.mxu0 0.0
    %3038 = vmatpush1.msra.mxu0 0.0
    %3039 = vmatprep.subr.mxu0 0.0
    %3040 = vmatpush1.msra.mxu0 0.0
    %3041 = vmatprep.subr.mxu0 0.0
    %3042 = vmatpush1.msra.mxu0 0.0
    %3043 = vmatprep.subr.mxu0 0.0
    %3044 = vmatpush1.msra.mxu0 0.0
    %3045 = vmatprep.subr.mxu0 0.0
    %3046 = vmatpush1.msra.mxu0 0.0
    %3047 = vmatprep.subr.mxu0 0.0
    %3048 = vmatpush1.msra.mxu0 0.0
    %3049 = vmatprep.subr.mxu0 0.0
    %3050 = vmatpush1.msra.mxu0 0.0
    %3051 = vmatprep.subr.mxu0 0.0
    %3052 = vmatpush1.msra.mxu0 0.0
    %3053 = vmatprep.subr.mxu0 0.0
    %3054 = vmatpush1.msra.mxu0 0.0
    %3055 = vmatprep.subr.mxu0 0.0
    %3056 = vmatpush1.msra.mxu0 0.0
    %3057 = vmatprep.subr.mxu0 0.0
    %3058 = vmatpush1.msra.mxu0 0.0
    %3059 = vmatprep.subr.mxu0 0.0
    %3060 = vmatpush1.msra.mxu0 0.0
    %3061 = vmatprep.subr.mxu0 0.0
    %3062 = vmatpush1.msra.mxu0 0.0
    %3063 = vmatprep.subr.mxu0 0.0
    %3064 = vmatpush1.msra.mxu0 0.0
    %3065 = vmatprep.subr.mxu0 0.0
    %3066 = vmatpush1.msra.mxu0 0.0
    %3067 = vmatprep.subr.mxu0 0.0
    %3068 = vmatpush1.msra.mxu0 0.0
    %3069 = vmatprep.subr.mxu0 0.0
    %3070 = vmatpush1.msra.mxu0 0.0
    %3071 = vmatprep.subr.mxu0 0.0
    %3072 = vmatpush1.msra.mxu0 0.0
    %3073 = vmatprep.subr.mxu0 0.0
    %3074 = vmatpush1.msra.mxu0 0.0
    %3075 = vmatprep.subr.mxu0 0.0
    %3076 = vmatpush1.msra.mxu0 0.0
    %3077 = vmatprep.subr.mxu0 0.0
    %3078 = vmatpush1.msra.mxu0 0.0
    %3079 = vmatprep.subr.mxu0 0.0
    %3080 = vmatpush1.msra.mxu0 0.0
    %3081 = vmatprep.subr.mxu0 0.0
    %3082 = vmatpush1.msra.mxu0 0.0
    %3083 = vmatprep.subr.mxu0 0.0
    %3084 = vmatpush1.msra.mxu0 0.0
    %3085 = vmatprep.mubr.f32.mxu0 0.0
    %v3086 = vand.u32 %v2740, 4294901760
    %v3087 = vsub.f32 %v2740, %v3086
    %v3088 = vand.u32 %v3087, 4294901760
    %3089 = vmatmul.mubr.f32.gmra.mrb[0].mxu0 %v3088
    %v3090 = vpop.f32.mrb[0].mxu0
    %v3091 = vadd.f32 %v3007, %v3090
    %v3092 = vpop.f32.mrb[0].mxu0
    %3093 = vmatprep.mubr.f32.mxu0 0.0
    %v3094 = vand.u32 %v2742, 4294901760
    %v3095 = vsub.f32 %v2742, %v3094
    %v3096 = vand.u32 %v3095, 4294901760
    %3097 = vmatmul.mubr.f32.gmra.mrb[0].mxu0 %v3096
    %v3098 = vpop.f32.mrb[0].mxu0
    %v3099 = vadd.f32 %v3014, %v3098
    %v3100 = vpop.f32.mrb[0].mxu0
    %3101 = vdwg.mxu0
    %3102 = vmatprep.subr.mxu0 0.0
    %v3103 = vand.u32 %v2723, 4294901760
    %v3104 = vsub.f32 %v2723, %v3103
    %v3105 = vand.u32 %v3104, 4294901760
    %3106 = vmatpush1.msra.mxu0 %v3105
    %3107 = vmatprep.subr.mxu0 0.0
    %v3108 = vand.u32 %v2724, 4294901760
    %v3109 = vsub.f32 %v2724, %v3108
    %v3110 = vand.u32 %v3109, 4294901760
    %3111 = vmatpush1.msra.mxu0 %v3110
    %3112 = vmatprep.subr.mxu0 0.0
    %v3113 = vand.u32 %v2725, 4294901760
    %v3114 = vsub.f32 %v2725, %v3113
    %v3115 = vand.u32 %v3114, 4294901760
    %3116 = vmatpush1.msra.mxu0 %v3115
    %3117 = vmatprep.subr.mxu0 0.0
    %v3118 = vand.u32 %v2726, 4294901760
    %v3119 = vsub.f32 %v2726, %v3118
    %v3120 = vand.u32 %v3119, 4294901760
    %3121 = vmatpush1.msra.mxu0 %v3120
    %3122 = vmatprep.subr.mxu0 0.0
    %3123 = vmatpush1.msra.mxu0 0.0
    %3124 = vmatprep.subr.mxu0 0.0
    %3125 = vmatpush1.msra.mxu0 0.0
    %3126 = vmatprep.subr.mxu0 0.0
    %3127 = vmatpush1.msra.mxu0 0.0
    %3128 = vmatprep.subr.mxu0 0.0
    %3129 = vmatpush1.msra.mxu0 0.0
    %3130 = vmatprep.subr.mxu0 0.0
    %3131 = vmatpush1.msra.mxu0 0.0
    %3132 = vmatprep.subr.mxu0 0.0
    %3133 = vmatpush1.msra.mxu0 0.0
    %3134 = vmatprep.subr.mxu0 0.0
    %3135 = vmatpush1.msra.mxu0 0.0
    %3136 = vmatprep.subr.mxu0 0.0
    %3137 = vmatpush1.msra.mxu0 0.0
    %3138 = vmatprep.subr.mxu0 0.0
    %3139 = vmatpush1.msra.mxu0 0.0
    %3140 = vmatprep.subr.mxu0 0.0
    %3141 = vmatpush1.msra.mxu0 0.0
    %3142 = vmatprep.subr.mxu0 0.0
    %3143 = vmatpush1.msra.mxu0 0.0
    %3144 = vmatprep.subr.mxu0 0.0
    %3145 = vmatpush1.msra.mxu0 0.0
    %3146 = vmatprep.subr.mxu0 0.0
    %3147 = vmatpush1.msra.mxu0 0.0
    %3148 = vmatprep.subr.mxu0 0.0
    %3149 = vmatpush1.msra.mxu0 0.0
    %3150 = vmatprep.subr.mxu0 0.0
    %3151 = vmatpush1.msra.mxu0 0.0
    %3152 = vmatprep.subr.mxu0 0.0
    %3153 = vmatpush1.msra.mxu0 0.0
    %3154 = vmatprep.subr.mxu0 0.0
    %3155 = vmatpush1.msra.mxu0 0.0
    %3156 = vmatprep.subr.mxu0 0.0
    %3157 = vmatpush1.msra.mxu0 0.0
    %3158 = vmatprep.subr.mxu0 0.0
    %3159 = vmatpush1.msra.mxu0 0.0
    %3160 = vmatprep.subr.mxu0 0.0
    %3161 = vmatpush1.msra.mxu0 0.0
    %3162 = vmatprep.subr.mxu0 0.0
    %3163 = vmatpush1.msra.mxu0 0.0
    %3164 = vmatprep.subr.mxu0 0.0
    %3165 = vmatpush1.msra.mxu0 0.0
    %3166 = vmatprep.subr.mxu0 0.0
    %3167 = vmatpush1.msra.mxu0 0.0
    %3168 = vmatprep.subr.mxu0 0.0
    %3169 = vmatpush1.msra.mxu0 0.0
    %3170 = vmatprep.subr.mxu0 0.0
    %3171 = vmatpush1.msra.mxu0 0.0
    %3172 = vmatprep.subr.mxu0 0.0
    %3173 = vmatpush1.msra.mxu0 0.0
    %3174 = vmatprep.subr.mxu0 0.0
    %3175 = vmatpush1.msra.mxu0 0.0
    %3176 = vmatprep.subr.mxu0 0.0
    %3177 = vmatpush1.msra.mxu0 0.0
    %3178 = vmatprep.mubr.f32.mxu0 0.0
    %v3179 = vand.u32 %v2740, 4294901760
    %3180 = vmatmul.mubr.f32.gmra.mrb[0].mxu0 %v3179
    %v3181 = vpop.f32.mrb[0].mxu0
    %v3182 = vadd.f32 %v3091, %v3181
    %v3183 = vpop.f32.mrb[0].mxu0
    %3184 = vmatprep.mubr.f32.mxu0 0.0
    %v3185 = vand.u32 %v2742, 4294901760
    %3186 = vmatmul.mubr.f32.gmra.mrb[0].mxu0 %v3185
    %v3187 = vpop.f32.mrb[0].mxu0
    %v3188 = vadd.f32 %v3099, %v3187
    %v3189 = vpop.f32.mrb[0].mxu0
    %3190 = vdwg.mxu0
    %3191 = vmatprep.subr.mxu0 0.0
    %v3192 = vand.u32 %v2723, 4294901760
    %3193 = vmatpush1.msra.mxu0 %v3192
    %3194 = vmatprep.subr.mxu0 0.0
    %v3195 = vand.u32 %v2724, 4294901760
    %3196 = vmatpush1.msra.mxu0 %v3195
    %3197 = vmatprep.subr.mxu0 0.0
    %v3198 = vand.u32 %v2725, 4294901760
    %3199 = vmatpush1.msra.mxu0 %v3198
    %3200 = vmatprep.subr.mxu0 0.0
    %v3201 = vand.u32 %v2726, 4294901760
    %3202 = vmatpush1.msra.mxu0 %v3201
    %3203 = vmatprep.subr.mxu0 0.0
    %3204 = vmatpush1.msra.mxu0 0.0
    %3205 = vmatprep.subr.mxu0 0.0
    %3206 = vmatpush1.msra.mxu0 0.0
    %3207 = vmatprep.subr.mxu0 0.0
    %3208 = vmatpush1.msra.mxu0 0.0
    %3209 = vmatprep.subr.mxu0 0.0
    %3210 = vmatpush1.msra.mxu0 0.0
    %3211 = vmatprep.subr.mxu0 0.0
    %3212 = vmatpush1.msra.mxu0 0.0
    %3213 = vmatprep.subr.mxu0 0.0
    %3214 = vmatpush1.msra.mxu0 0.0
    %3215 = vmatprep.subr.mxu0 0.0
    %3216 = vmatpush1.msra.mxu0 0.0
    %3217 = vmatprep.subr.mxu0 0.0
    %3218 = vmatpush1.msra.mxu0 0.0
    %3219 = vmatprep.subr.mxu0 0.0
    %3220 = vmatpush1.msra.mxu0 0.0
    %3221 = vmatprep.subr.mxu0 0.0
    %3222 = vmatpush1.msra.mxu0 0.0
    %3223 = vmatprep.subr.mxu0 0.0
    %3224 = vmatpush1.msra.mxu0 0.0
    %3225 = vmatprep.subr.mxu0 0.0
    %3226 = vmatpush1.msra.mxu0 0.0
    %3227 = vmatprep.subr.mxu0 0.0
    %3228 = vmatpush1.msra.mxu0 0.0
    %3229 = vmatprep.subr.mxu0 0.0
    %3230 = vmatpush1.msra.mxu0 0.0
    %3231 = vmatprep.subr.mxu0 0.0
    %3232 = vmatpush1.msra.mxu0 0.0
    %3233 = vmatprep.subr.mxu0 0.0
    %3234 = vmatpush1.msra.mxu0 0.0
    %3235 = vmatprep.subr.mxu0 0.0
    %3236 = vmatpush1.msra.mxu0 0.0
    %3237 = vmatprep.subr.mxu0 0.0
    %3238 = vmatpush1.msra.mxu0 0.0
    %3239 = vmatprep.subr.mxu0 0.0
    %3240 = vmatpush1.msra.mxu0 0.0
    %3241 = vmatprep.subr.mxu0 0.0
    %3242 = vmatpush1.msra.mxu0 0.0
    %3243 = vmatprep.subr.mxu0 0.0
    %3244 = vmatpush1.msra.mxu0 0.0
    %3245 = vmatprep.subr.mxu0 0.0
    %3246 = vmatpush1.msra.mxu0 0.0
    %3247 = vmatprep.subr.mxu0 0.0
    %3248 = vmatpush1.msra.mxu0 0.0
    %3249 = vmatprep.subr.mxu0 0.0
    %3250 = vmatpush1.msra.mxu0 0.0
    %3251 = vmatprep.subr.mxu0 0.0
    %3252 = vmatpush1.msra.mxu0 0.0
    %3253 = vmatprep.subr.mxu0 0.0
    %3254 = vmatpush1.msra.mxu0 0.0
    %3255 = vmatprep.subr.mxu0 0.0
    %3256 = vmatpush1.msra.mxu0 0.0
    %3257 = vmatprep.subr.mxu0 0.0
    %3258 = vmatpush1.msra.mxu0 0.0
    %3259 = vmatprep.mubr.f32.mxu0 0.0
    %v3260 = vand.u32 %v2740, 4294901760
    %3261 = vmatmul.mubr.f32.gmra.mrb[0].mxu0 %v3260
    %v3262 = vpop.f32.mrb[0].mxu0
    %v3263 = vadd.f32 %v3182, %v3262
    %v3264 = vpop.f32.mrb[0].mxu0
    %3265 = vmatprep.mubr.f32.mxu0 0.0
    %v3266 = vand.u32 %v2742, 4294901760
    %3267 = vmatmul.mubr.f32.gmra.mrb[0].mxu0 %v3266
    %v3268 = vpop.f32.mrb[0].mxu0
    %v3269 = vadd.f32 %v3188, %v3268
    %v3270 = vpop.f32.mrb[0].mxu0
    %3271 = vdwg.mxu0
    %3274 = vrot.lane.b32.xlu0 %v3263, 64
    %v3275 = vpop.permute.xlu0 %3274
    %3276 = vrot.lane.b32.xlu0 %v3269, 64
    %v3277 = vpop.permute.xlu0 %3276
    %v3280 = vadd.f32 %v2147, %v3275
    %v3281 = vadd.f32 %v2153, %v3277
    %v3282 = vmul.f32 %v703, %v3280
    %v3283 = vmul.f32 %v708, %v3281
    %v3284 = vtanh.pop %v3282
    %v3285 = vtanh.pop %v3283
    %3288 = vrot.lane.b32.xlu0 %v2712, 64
    %v3289 = vpop.permute.xlu0 %3288
    %3290 = vrot.lane.b32.xlu0 %v2714, 64
    %v3291 = vpop.permute.xlu0 %3290
    %v3294 = vmul.f32 %v3284, %v3289
    %v3295 = vmul.f32 %v3285, %v3291
    %v3296 = vsub.f32 1.0, %v2712
    %v3297 = vsub.f32 1.0, %v2714
    %v3298 = vmul.f32 %v710, %v3296
    %v3299 = vmul.f32 %v711, %v3297
    %3302 = vrot.lane.b32.xlu0 %v3298, 64
    %v3303 = vpop.permute.xlu0 %3302
    %3304 = vrot.lane.b32.xlu0 %v3299, 64
    %v3305 = vpop.permute.xlu0 %3304
    %v3308 = vadd.f32 %v3294, %v3303
    %v3309 = vadd.f32 %v3295, %v3305
    %3311 = vrot.lane.b32.xlu0 %v3308, 64
    %v3312 = vpop.permute.xlu0 %3311
    %3314 = vmatprep.subr.mxu0 0.0
    %v3315 = vand.u32 %v3312, 4294901760
    %3316 = vmatpush1.msra.mxu0 %v3315
    %3317 = vmatprep.subr.mxu0 0.0
    %3318 = vmatpush1.msra.mxu0 0.0
    %3319 = vmatprep.subr.mxu0 0.0
    %3320 = vmatpush1.msra.mxu0 0.0
    %3321 = vmatprep.subr.mxu0 0.0
    %3322 = vmatpush1.msra.mxu0 0.0
    %3323 = vmatprep.subr.mxu0 0.0
    %3324 = vmatpush1.msra.mxu0 0.0
    %3325 = vmatprep.subr.mxu0 0.0
    %3326 = vmatpush1.msra.mxu0 0.0
    %3327 = vmatprep.subr.mxu0 0.0
    %3328 = vmatpush1.msra.mxu0 0.0
    %3329 = vmatprep.subr.mxu0 0.0
    %3330 = vmatpush1.msra.mxu0 0.0
    %3331 = vmatprep.subr.mxu0 0.0
    %3332 = vmatpush1.msra.mxu0 0.0
    %3333 = vmatprep.subr.mxu0 0.0
    %3334 = vmatpush1.msra.mxu0 0.0
    %3335 = vmatprep.subr.mxu0 0.0
    %3336 = vmatpush1.msra.mxu0 0.0
    %3337 = vmatprep.subr.mxu0 0.0
    %3338 = vmatpush1.msra.mxu0 0.0
    %3339 = vmatprep.subr.mxu0 0.0
    %3340 = vmatpush1.msra.mxu0 0.0
    %3341 = vmatprep.subr.mxu0 0.0
    %3342 = vmatpush1.msra.mxu0 0.0
    %3343 = vmatprep.subr.mxu0 0.0
    %3344 = vmatpush1.msra.mxu0 0.0
    %3345 = vmatprep.subr.mxu0 0.0
    %3346 = vmatpush1.msra.mxu0 0.0
    %3347 = vmatprep.subr.mxu0 0.0
    %3348 = vmatpush1.msra.mxu0 0.0
    %3349 = vmatprep.subr.mxu0 0.0
    %3350 = vmatpush1.msra.mxu0 0.0
    %3351 = vmatprep.subr.mxu0 0.0
    %3352 = vmatpush1.msra.mxu0 0.0
    %3353 = vmatprep.subr.mxu0 0.0
    %3354 = vmatpush1.msra.mxu0 0.0
    %3355 = vmatprep.subr.mxu0 0.0
    %3356 = vmatpush1.msra.mxu0 0.0
    %3357 = vmatprep.subr.mxu0 0.0
    %3358 = vmatpush1.msra.mxu0 0.0
    %3359 = vmatprep.subr.mxu0 0.0
    %3360 = vmatpush1.msra.mxu0 0.0
    %3361 = vmatprep.subr.mxu0 0.0
    %3362 = vmatpush1.msra.mxu0 0.0
    %3363 = vmatprep.subr.mxu0 0.0
    %3364 = vmatpush1.msra.mxu0 0.0
    %3365 = vmatprep.subr.mxu0 0.0
    %3366 = vmatpush1.msra.mxu0 0.0
    %3367 = vmatprep.subr.mxu0 0.0
    %3368 = vmatpush1.msra.mxu0 0.0
    %3369 = vmatprep.subr.mxu0 0.0
    %3370 = vmatpush1.msra.mxu0 0.0
    %3371 = vmatprep.subr.mxu0 0.0
    %3372 = vmatpush1.msra.mxu0 0.0
    %3373 = vmatprep.subr.mxu0 0.0
    %3374 = vmatpush1.msra.mxu0 0.0
    %3375 = vmatprep.subr.mxu0 0.0
    %3376 = vmatpush1.msra.mxu0 0.0
    %3377 = vmatprep.subr.mxu0 0.0
    %3378 = vmatpush1.msra.mxu0 0.0
    %3379 = vmatprep.mubr.f32.mxu0 0.0
    %v3380 = vand.u32 %v714, 4294901760
    %v3381 = vsub.f32 %v714, %v3380
    %v3382 = vand.u32 %v3381, 4294901760
    %v3383 = vsub.f32 %v3381, %v3382
    %v3384 = vand.u32 %v3383, 4294901760
    %3385 = vmatmul.mubr.f32.gmra.mrb[0].mxu0 %v3384
    %v3386 = vpop.f32.mrb[0].mxu0
    %v3387 = vadd.f32 0.0, %v3386
    %v3388 = vpop.f32.mrb[0].mxu0
    %3389 = vdwg.mxu0
    %3390 = vmatprep.subr.mxu0 0.0
    %v3391 = vand.u32 %v3312, 4294901760
    %v3392 = vsub.f32 %v3312, %v3391
    %v3393 = vand.u32 %v3392, 4294901760
    %v3394 = vsub.f32 %v3392, %v3393
    %v3395 = vand.u32 %v3394, 4294901760
    %3396 = vmatpush1.msra.mxu0 %v3395
    %3397 = vmatprep.subr.mxu0 0.0
    %3398 = vmatpush1.msra.mxu0 0.0
    %3399 = vmatprep.subr.mxu0 0.0
    %3400 = vmatpush1.msra.mxu0 0.0
    %3401 = vmatprep.subr.mxu0 0.0
    %3402 = vmatpush1.msra.mxu0 0.0
    %3403 = vmatprep.subr.mxu0 0.0
    %3404 = vmatpush1.msra.mxu0 0.0
    %3405 = vmatprep.subr.mxu0 0.0
    %3406 = vmatpush1.msra.mxu0 0.0
    %3407 = vmatprep.subr.mxu0 0.0
    %3408 = vmatpush1.msra.mxu0 0.0
    %3409 = vmatprep.subr.mxu0 0.0
    %3410 = vmatpush1.msra.mxu0 0.0
    %3411 = vmatprep.subr.mxu0 0.0
    %3412 = vmatpush1.msra.mxu0 0.0
    %3413 = vmatprep.subr.mxu0 0.0
    %3414 = vmatpush1.msra.mxu0 0.0
    %3415 = vmatprep.subr.mxu0 0.0
    %3416 = vmatpush1.msra.mxu0 0.0
    %3417 = vmatprep.subr.mxu0 0.0
    %3418 = vmatpush1.msra.mxu0 0.0
    %3419 = vmatprep.subr.mxu0 0.0
    %3420 = vmatpush1.msra.mxu0 0.0
    %3421 = vmatprep.subr.mxu0 0.0
    %3422 = vmatpush1.msra.mxu0 0.0
    %3423 = vmatprep.subr.mxu0 0.0
    %3424 = vmatpush1.msra.mxu0 0.0
    %3425 = vmatprep.subr.mxu0 0.0
    %3426 = vmatpush1.msra.mxu0 0.0
    %3427 = vmatprep.subr.mxu0 0.0
    %3428 = vmatpush1.msra.mxu0 0.0
    %3429 = vmatprep.subr.mxu0 0.0
    %3430 = vmatpush1.msra.mxu0 0.0
    %3431 = vmatprep.subr.mxu0 0.0
    %3432 = vmatpush1.msra.mxu0 0.0
    %3433 = vmatprep.subr.mxu0 0.0
    %3434 = vmatpush1.msra.mxu0 0.0
    %3435 = vmatprep.subr.mxu0 0.0
    %3436 = vmatpush1.msra.mxu0 0.0
    %3437 = vmatprep.subr.mxu0 0.0
    %3438 = vmatpush1.msra.mxu0 0.0
    %3439 = vmatprep.subr.mxu0 0.0
    %3440 = vmatpush1.msra.mxu0 0.0
    %3441 = vmatprep.subr.mxu0 0.0
    %3442 = vmatpush1.msra.mxu0 0.0
    %3443 = vmatprep.subr.mxu0 0.0
    %3444 = vmatpush1.msra.mxu0 0.0
    %3445 = vmatprep.subr.mxu0 0.0
    %3446 = vmatpush1.msra.mxu0 0.0
    %3447 = vmatprep.subr.mxu0 0.0
    %3448 = vmatpush1.msra.mxu0 0.0
    %3449 = vmatprep.subr.mxu0 0.0
    %3450 = vmatpush1.msra.mxu0 0.0
    %3451 = vmatprep.subr.mxu0 0.0
    %3452 = vmatpush1.msra.mxu0 0.0
    %3453 = vmatprep.subr.mxu0 0.0
    %3454 = vmatpush1.msra.mxu0 0.0
    %3455 = vmatprep.subr.mxu0 0.0
    %3456 = vmatpush1.msra.mxu0 0.0
    %3457 = vmatprep.subr.mxu0 0.0
    %3458 = vmatpush1.msra.mxu0 0.0
    %3459 = vmatprep.mubr.f32.mxu0 0.0
    %v3460 = vand.u32 %v714, 4294901760
    %3461 = vmatmul.mubr.f32.gmra.mrb[0].mxu0 %v3460
    %v3462 = vpop.f32.mrb[0].mxu0
    %v3463 = vadd.f32 %v3387, %v3462
    %v3464 = vpop.f32.mrb[0].mxu0
    %3465 = vdwg.mxu0
    %3466 = vmatprep.subr.mxu0 0.0
    %v3467 = vand.u32 %v3312, 4294901760
    %v3468 = vsub.f32 %v3312, %v3467
    %3469 = vmatpush1.msra.mxu0 %v3468
    %3470 = vmatprep.subr.mxu0 0.0
    %3471 = vmatpush1.msra.mxu0 0.0
    %3472 = vmatprep.subr.mxu0 0.0
    %3473 = vmatpush1.msra.mxu0 0.0
    %3474 = vmatprep.subr.mxu0 0.0
    %3475 = vmatpush1.msra.mxu0 0.0
    %3476 = vmatprep.subr.mxu0 0.0
    %3477 = vmatpush1.msra.mxu0 0.0
    %3478 = vmatprep.subr.mxu0 0.0
    %3479 = vmatpush1.msra.mxu0 0.0
    %3480 = vmatprep.subr.mxu0 0.0
    %3481 = vmatpush1.msra.mxu0 0.0
    %3482 = vmatprep.subr.mxu0 0.0
    %3483 = vmatpush1.msra.mxu0 0.0
    %3484 = vmatprep.subr.mxu0 0.0
    %3485 = vmatpush1.msra.mxu0 0.0
    %3486 = vmatprep.subr.mxu0 0.0
    %3487 = vmatpush1.msra.mxu0 0.0
    %3488 = vmatprep.subr.mxu0 0.0
    %3489 = vmatpush1.msra.mxu0 0.0
    %3490 = vmatprep.subr.mxu0 0.0
    %3491 = vmatpush1.msra.mxu0 0.0
    %3492 = vmatprep.subr.mxu0 0.0
    %3493 = vmatpush1.msra.mxu0 0.0
    %3494 = vmatprep.subr.mxu0 0.0
    %3495 = vmatpush1.msra.mxu0 0.0
    %3496 = vmatprep.subr.mxu0 0.0
    %3497 = vmatpush1.msra.mxu0 0.0
    %3498 = vmatprep.subr.mxu0 0.0
    %3499 = vmatpush1.msra.mxu0 0.0
    %3500 = vmatprep.subr.mxu0 0.0
    %3501 = vmatpush1.msra.mxu0 0.0
    %3502 = vmatprep.subr.mxu0 0.0
    %3503 = vmatpush1.msra.mxu0 0.0
    %3504 = vmatprep.subr.mxu0 0.0
    %3505 = vmatpush1.msra.mxu0 0.0
    %3506 = vmatprep.subr.mxu0 0.0
    %3507 = vmatpush1.msra.mxu0 0.0
    %3508 = vmatprep.subr.mxu0 0.0
    %3509 = vmatpush1.msra.mxu0 0.0
    %3510 = vmatprep.subr.mxu0 0.0
    %3511 = vmatpush1.msra.mxu0 0.0
    %3512 = vmatprep.subr.mxu0 0.0
    %3513 = vmatpush1.msra.mxu0 0.0
    %3514 = vmatprep.subr.mxu0 0.0
    %3515 = vmatpush1.msra.mxu0 0.0
    %3516 = vmatprep.subr.mxu0 0.0
    %3517 = vmatpush1.msra.mxu0 0.0
    %3518 = vmatprep.subr.mxu0 0.0
    %3519 = vmatpush1.msra.mxu0 0.0
    %3520 = vmatprep.subr.mxu0 0.0
    %3521 = vmatpush1.msra.mxu0 0.0
    %3522 = vmatprep.subr.mxu0 0.0
    %3523 = vmatpush1.msra.mxu0 0.0
    %3524 = vmatprep.subr.mxu0 0.0
    %3525 = vmatpush1.msra.mxu0 0.0
    %3526 = vmatprep.subr.mxu0 0.0
    %3527 = vmatpush1.msra.mxu0 0.0
    %3528 = vmatprep.subr.mxu0 0.0
    %3529 = vmatpush1.msra.mxu0 0.0
    %3530 = vmatprep.subr.mxu0 0.0
    %3531 = vmatpush1.msra.mxu0 0.0
    %3532 = vmatprep.mubr.f32.mxu0 0.0
    %v3533 = vand.u32 %v714, 4294901760
    %v3534 = vsub.f32 %v714, %v3533
    %3535 = vmatmul.mubr.f32.gmra.mrb[0].mxu0 %v3534
    %v3536 = vpop.f32.mrb[0].mxu0
    %v3537 = vadd.f32 %v3463, %v3536
    %v3538 = vpop.f32.mrb[0].mxu0
    %3539 = vdwg.mxu0
    %3540 = vmatprep.subr.mxu0 0.0
    %v3541 = vand.u32 %v3312, 4294901760
    %3542 = vmatpush1.msra.mxu0 %v3541
    %3543 = vmatprep.subr.mxu0 0.0
    %3544 = vmatpush1.msra.mxu0 0.0
    %3545 = vmatprep.subr.mxu0 0.0
    %3546 = vmatpush1.msra.mxu0 0.0
    %3547 = vmatprep.subr.mxu0 0.0
    %3548 = vmatpush1.msra.mxu0 0.0
    %3549 = vmatprep.subr.mxu0 0.0
    %3550 = vmatpush1.msra.mxu0 0.0
    %3551 = vmatprep.subr.mxu0 0.0
    %3552 = vmatpush1.msra.mxu0 0.0
    %3553 = vmatprep.subr.mxu0 0.0
    %3554 = vmatpush1.msra.mxu0 0.0
    %3555 = vmatprep.subr.mxu0 0.0
    %3556 = vmatpush1.msra.mxu0 0.0
    %3557 = vmatprep.subr.mxu0 0.0
    %3558 = vmatpush1.msra.mxu0 0.0
    %3559 = vmatprep.subr.mxu0 0.0
    %3560 = vmatpush1.msra.mxu0 0.0
    %3561 = vmatprep.subr.mxu0 0.0
    %3562 = vmatpush1.msra.mxu0 0.0
    %3563 = vmatprep.subr.mxu0 0.0
    %3564 = vmatpush1.msra.mxu0 0.0
    %3565 = vmatprep.subr.mxu0 0.0
    %3566 = vmatpush1.msra.mxu0 0.0
    %3567 = vmatprep.subr.mxu0 0.0
    %3568 = vmatpush1.msra.mxu0 0.0
    %3569 = vmatprep.subr.mxu0 0.0
    %3570 = vmatpush1.msra.mxu0 0.0
    %3571 = vmatprep.subr.mxu0 0.0
    %3572 = vmatpush1.msra.mxu0 0.0
    %3573 = vmatprep.subr.mxu0 0.0
    %3574 = vmatpush1.msra.mxu0 0.0
    %3575 = vmatprep.subr.mxu0 0.0
    %3576 = vmatpush1.msra.mxu0 0.0
    %3577 = vmatprep.subr.mxu0 0.0
    %3578 = vmatpush1.msra.mxu0 0.0
    %3579 = vmatprep.subr.mxu0 0.0
    %3580 = vmatpush1.msra.mxu0 0.0
    %3581 = vmatprep.subr.mxu0 0.0
    %3582 = vmatpush1.msra.mxu0 0.0
    %3583 = vmatprep.subr.mxu0 0.0
    %3584 = vmatpush1.msra.mxu0 0.0
    %3585 = vmatprep.subr.mxu0 0.0
    %3586 = vmatpush1.msra.mxu0 0.0
    %3587 = vmatprep.subr.mxu0 0.0
    %3588 = vmatpush1.msra.mxu0 0.0
    %3589 = vmatprep.subr.mxu0 0.0
    %3590 = vmatpush1.msra.mxu0 0.0
    %3591 = vmatprep.subr.mxu0 0.0
    %3592 = vmatpush1.msra.mxu0 0.0
    %3593 = vmatprep.subr.mxu0 0.0
    %3594 = vmatpush1.msra.mxu0 0.0
    %3595 = vmatprep.subr.mxu0 0.0
    %3596 = vmatpush1.msra.mxu0 0.0
    %3597 = vmatprep.subr.mxu0 0.0
    %3598 = vmatpush1.msra.mxu0 0.0
    %3599 = vmatprep.subr.mxu0 0.0
    %3600 = vmatpush1.msra.mxu0 0.0
    %3601 = vmatprep.subr.mxu0 0.0
    %3602 = vmatpush1.msra.mxu0 0.0
    %3603 = vmatprep.subr.mxu0 0.0
    %3604 = vmatpush1.msra.mxu0 0.0
    %3605 = vmatprep.mubr.f32.mxu0 0.0
    %v3606 = vand.u32 %v714, 4294901760
    %v3607 = vsub.f32 %v714, %v3606
    %v3608 = vand.u32 %v3607, 4294901760
    %3609 = vmatmul.mubr.f32.gmra.mrb[0].mxu0 %v3608
    %v3610 = vpop.f32.mrb[0].mxu0
    %v3611 = vadd.f32 %v3537, %v3610
    %v3612 = vpop.f32.mrb[0].mxu0
    %3613 = vdwg.mxu0
    %3614 = vmatprep.subr.mxu0 0.0
    %v3615 = vand.u32 %v3312, 4294901760
    %v3616 = vsub.f32 %v3312, %v3615
    %v3617 = vand.u32 %v3616, 4294901760
    %3618 = vmatpush1.msra.mxu0 %v3617
    %3619 = vmatprep.subr.mxu0 0.0
    %3620 = vmatpush1.msra.mxu0 0.0
    %3621 = vmatprep.subr.mxu0 0.0
    %3622 = vmatpush1.msra.mxu0 0.0
    %3623 = vmatprep.subr.mxu0 0.0
    %3624 = vmatpush1.msra.mxu0 0.0
    %3625 = vmatprep.subr.mxu0 0.0
    %3626 = vmatpush1.msra.mxu0 0.0
    %3627 = vmatprep.subr.mxu0 0.0
    %3628 = vmatpush1.msra.mxu0 0.0
    %3629 = vmatprep.subr.mxu0 0.0
    %3630 = vmatpush1.msra.mxu0 0.0
    %3631 = vmatprep.subr.mxu0 0.0
    %3632 = vmatpush1.msra.mxu0 0.0
    %3633 = vmatprep.subr.mxu0 0.0
    %3634 = vmatpush1.msra.mxu0 0.0
    %3635 = vmatprep.subr.mxu0 0.0
    %3636 = vmatpush1.msra.mxu0 0.0
    %3637 = vmatprep.subr.mxu0 0.0
    %3638 = vmatpush1.msra.mxu0 0.0
    %3639 = vmatprep.subr.mxu0 0.0
    %3640 = vmatpush1.msra.mxu0 0.0
    %3641 = vmatprep.subr.mxu0 0.0
    %3642 = vmatpush1.msra.mxu0 0.0
    %3643 = vmatprep.subr.mxu0 0.0
    %3644 = vmatpush1.msra.mxu0 0.0
    %3645 = vmatprep.subr.mxu0 0.0
    %3646 = vmatpush1.msra.mxu0 0.0
    %3647 = vmatprep.subr.mxu0 0.0
    %3648 = vmatpush1.msra.mxu0 0.0
    %3649 = vmatprep.subr.mxu0 0.0
    %3650 = vmatpush1.msra.mxu0 0.0
    %3651 = vmatprep.subr.mxu0 0.0
    %3652 = vmatpush1.msra.mxu0 0.0
    %3653 = vmatprep.subr.mxu0 0.0
    %3654 = vmatpush1.msra.mxu0 0.0
    %3655 = vmatprep.subr.mxu0 0.0
    %3656 = vmatpush1.msra.mxu0 0.0
    %3657 = vmatprep.subr.mxu0 0.0
    %3658 = vmatpush1.msra.mxu0 0.0
    %3659 = vmatprep.subr.mxu0 0.0
    %3660 = vmatpush1.msra.mxu0 0.0
    %3661 = vmatprep.subr.mxu0 0.0
    %3662 = vmatpush1.msra.mxu0 0.0
    %3663 = vmatprep.subr.mxu0 0.0
    %3664 = vmatpush1.msra.mxu0 0.0
    %3665 = vmatprep.subr.mxu0 0.0
    %3666 = vmatpush1.msra.mxu0 0.0
    %3667 = vmatprep.subr.mxu0 0.0
    %3668 = vmatpush1.msra.mxu0 0.0
    %3669 = vmatprep.subr.mxu0 0.0
    %3670 = vmatpush1.msra.mxu0 0.0
    %3671 = vmatprep.subr.mxu0 0.0
    %3672 = vmatpush1.msra.mxu0 0.0
    %3673 = vmatprep.subr.mxu0 0.0
    %3674 = vmatpush1.msra.mxu0 0.0
    %3675 = vmatprep.subr.mxu0 0.0
    %3676 = vmatpush1.msra.mxu0 0.0
    %3677 = vmatprep.subr.mxu0 0.0
    %3678 = vmatpush1.msra.mxu0 0.0
    %3679 = vmatprep.subr.mxu0 0.0
    %3680 = vmatpush1.msra.mxu0 0.0
    %3681 = vmatprep.mubr.f32.mxu0 0.0
    %v3682 = vand.u32 %v714, 4294901760
    %3683 = vmatmul.mubr.f32.gmra.mrb[0].mxu0 %v3682
    %v3684 = vpop.f32.mrb[0].mxu0
    %v3685 = vadd.f32 %v3611, %v3684
    %v3686 = vpop.f32.mrb[0].mxu0
    %3687 = vdwg.mxu0
    %3688 = vmatprep.subr.mxu0 0.0
    %v3689 = vand.u32 %v3312, 4294901760
    %3690 = vmatpush1.msra.mxu0 %v3689
    %3691 = vmatprep.subr.mxu0 0.0
    %3692 = vmatpush1.msra.mxu0 0.0
    %3693 = vmatprep.subr.mxu0 0.0
    %3694 = vmatpush1.msra.mxu0 0.0
    %3695 = vmatprep.subr.mxu0 0.0
    %3696 = vmatpush1.msra.mxu0 0.0
    %3697 = vmatprep.subr.mxu0 0.0
    %3698 = vmatpush1.msra.mxu0 0.0
    %3699 = vmatprep.subr.mxu0 0.0
    %3700 = vmatpush1.msra.mxu0 0.0
    %3701 = vmatprep.subr.mxu0 0.0
    %3702 = vmatpush1.msra.mxu0 0.0
    %3703 = vmatprep.subr.mxu0 0.0
    %3704 = vmatpush1.msra.mxu0 0.0
    %3705 = vmatprep.subr.mxu0 0.0
    %3706 = vmatpush1.msra.mxu0 0.0
    %3707 = vmatprep.subr.mxu0 0.0
    %3708 = vmatpush1.msra.mxu0 0.0
    %3709 = vmatprep.subr.mxu0 0.0
    %3710 = vmatpush1.msra.mxu0 0.0
    %3711 = vmatprep.subr.mxu0 0.0
    %3712 = vmatpush1.msra.mxu0 0.0
    %3713 = vmatprep.subr.mxu0 0.0
    %3714 = vmatpush1.msra.mxu0 0.0
    %3715 = vmatprep.subr.mxu0 0.0
    %3716 = vmatpush1.msra.mxu0 0.0
    %3717 = vmatprep.subr.mxu0 0.0
    %3718 = vmatpush1.msra.mxu0 0.0
    %3719 = vmatprep.subr.mxu0 0.0
    %3720 = vmatpush1.msra.mxu0 0.0
    %3721 = vmatprep.subr.mxu0 0.0
    %3722 = vmatpush1.msra.mxu0 0.0
    %3723 = vmatprep.subr.mxu0 0.0
    %3724 = vmatpush1.msra.mxu0 0.0
    %3725 = vmatprep.subr.mxu0 0.0
    %3726 = vmatpush1.msra.mxu0 0.0
    %3727 = vmatprep.subr.mxu0 0.0
    %3728 = vmatpush1.msra.mxu0 0.0
    %3729 = vmatprep.subr.mxu0 0.0
    %3730 = vmatpush1.msra.mxu0 0.0
    %3731 = vmatprep.subr.mxu0 0.0
    %3732 = vmatpush1.msra.mxu0 0.0
    %3733 = vmatprep.subr.mxu0 0.0
    %3734 = vmatpush1.msra.mxu0 0.0
    %3735 = vmatprep.subr.mxu0 0.0
    %3736 = vmatpush1.msra.mxu0 0.0
    %3737 = vmatprep.subr.mxu0 0.0
    %3738 = vmatpush1.msra.mxu0 0.0
    %3739 = vmatprep.subr.mxu0 0.0
    %3740 = vmatpush1.msra.mxu0 0.0
    %3741 = vmatprep.subr.mxu0 0.0
    %3742 = vmatpush1.msra.mxu0 0.0
    %3743 = vmatprep.subr.mxu0 0.0
    %3744 = vmatpush1.msra.mxu0 0.0
    %3745 = vmatprep.subr.mxu0 0.0
    %3746 = vmatpush1.msra.mxu0 0.0
    %3747 = vmatprep.subr.mxu0 0.0
    %3748 = vmatpush1.msra.mxu0 0.0
    %3749 = vmatprep.subr.mxu0 0.0
    %3750 = vmatpush1.msra.mxu0 0.0
    %3751 = vmatprep.subr.mxu0 0.0
    %3752 = vmatpush1.msra.mxu0 0.0
    %3753 = vmatprep.mubr.f32.mxu0 0.0
    %v3754 = vand.u32 %v714, 4294901760
    %3755 = vmatmul.mubr.f32.gmra.mrb[0].mxu0 %v3754
    %v3756 = vpop.f32.mrb[0].mxu0
    %v3757 = vadd.f32 %v3685, %v3756
    %v3758 = vpop.f32.mrb[0].mxu0
    %3759 = vdwg.mxu0
    %3761 = vrot.lane.b32.xlu0 %v3309, 64
    %v3762 = vpop.permute.xlu0 %3761
    %3764 = vmatprep.subr.mxu0 0.0
    %v3765 = vand.u32 %v3762, 4294901760
    %3766 = vmatpush1.msra.mxu0 %v3765
    %3767 = vmatprep.subr.mxu0 0.0
    %3768 = vmatpush1.msra.mxu0 0.0
    %3769 = vmatprep.subr.mxu0 0.0
    %3770 = vmatpush1.msra.mxu0 0.0
    %3771 = vmatprep.subr.mxu0 0.0
    %3772 = vmatpush1.msra.mxu0 0.0
    %3773 = vmatprep.subr.mxu0 0.0
    %3774 = vmatpush1.msra.mxu0 0.0
    %3775 = vmatprep.subr.mxu0 0.0
    %3776 = vmatpush1.msra.mxu0 0.0
    %3777 = vmatprep.subr.mxu0 0.0
    %3778 = vmatpush1.msra.mxu0 0.0
    %3779 = vmatprep.subr.mxu0 0.0
    %3780 = vmatpush1.msra.mxu0 0.0
    %3781 = vmatprep.subr.mxu0 0.0
    %3782 = vmatpush1.msra.mxu0 0.0
    %3783 = vmatprep.subr.mxu0 0.0
    %3784 = vmatpush1.msra.mxu0 0.0
    %3785 = vmatprep.subr.mxu0 0.0
    %3786 = vmatpush1.msra.mxu0 0.0
    %3787 = vmatprep.subr.mxu0 0.0
    %3788 = vmatpush1.msra.mxu0 0.0
    %3789 = vmatprep.subr.mxu0 0.0
    %3790 = vmatpush1.msra.mxu0 0.0
    %3791 = vmatprep.subr.mxu0 0.0
    %3792 = vmatpush1.msra.mxu0 0.0
    %3793 = vmatprep.subr.mxu0 0.0
    %3794 = vmatpush1.msra.mxu0 0.0
    %3795 = vmatprep.subr.mxu0 0.0
    %3796 = vmatpush1.msra.mxu0 0.0
    %3797 = vmatprep.subr.mxu0 0.0
    %3798 = vmatpush1.msra.mxu0 0.0
    %3799 = vmatprep.subr.mxu0 0.0
    %3800 = vmatpush1.msra.mxu0 0.0
    %3801 = vmatprep.subr.mxu0 0.0
    %3802 = vmatpush1.msra.mxu0 0.0
    %3803 = vmatprep.subr.mxu0 0.0
    %3804 = vmatpush1.msra.mxu0 0.0
    %3805 = vmatprep.subr.mxu0 0.0
    %3806 = vmatpush1.msra.mxu0 0.0
    %3807 = vmatprep.subr.mxu0 0.0
    %3808 = vmatpush1.msra.mxu0 0.0
    %3809 = vmatprep.subr.mxu0 0.0
    %3810 = vmatpush1.msra.mxu0 0.0
    %3811 = vmatprep.subr.mxu0 0.0
    %3812 = vmatpush1.msra.mxu0 0.0
    %3813 = vmatprep.subr.mxu0 0.0
    %3814 = vmatpush1.msra.mxu0 0.0
    %3815 = vmatprep.subr.mxu0 0.0
    %3816 = vmatpush1.msra.mxu0 0.0
    %3817 = vmatprep.subr.mxu0 0.0
    %3818 = vmatpush1.msra.mxu0 0.0
    %3819 = vmatprep.subr.mxu0 0.0
    %3820 = vmatpush1.msra.mxu0 0.0
    %3821 = vmatprep.subr.mxu0 0.0
    %3822 = vmatpush1.msra.mxu0 0.0
    %3823 = vmatprep.subr.mxu0 0.0
    %3824 = vmatpush1.msra.mxu0 0.0
    %3825 = vmatprep.subr.mxu0 0.0
    %3826 = vmatpush1.msra.mxu0 0.0
    %3827 = vmatprep.subr.mxu0 0.0
    %3828 = vmatpush1.msra.mxu0 0.0
    %3829 = vmatprep.mubr.f32.mxu0 0.0
    %v3830 = vand.u32 %v1163, 4294901760
    %v3831 = vsub.f32 %v1163, %v3830
    %v3832 = vand.u32 %v3831, 4294901760
    %v3833 = vsub.f32 %v3831, %v3832
    %v3834 = vand.u32 %v3833, 4294901760
    %3835 = vmatmul.mubr.f32.gmra.mrb[0].mxu0 %v3834
    %v3836 = vpop.f32.mrb[0].mxu0
    %v3837 = vadd.f32 0.0, %v3836
    %v3838 = vpop.f32.mrb[0].mxu0
    %3839 = vdwg.mxu0
    %3840 = vmatprep.subr.mxu0 0.0
    %v3841 = vand.u32 %v3762, 4294901760
    %v3842 = vsub.f32 %v3762, %v3841
    %v3843 = vand.u32 %v3842, 4294901760
    %v3844 = vsub.f32 %v3842, %v3843
    %v3845 = vand.u32 %v3844, 4294901760
    %3846 = vmatpush1.msra.mxu0 %v3845
    %3847 = vmatprep.subr.mxu0 0.0
    %3848 = vmatpush1.msra.mxu0 0.0
    %3849 = vmatprep.subr.mxu0 0.0
    %3850 = vmatpush1.msra.mxu0 0.0
    %3851 = vmatprep.subr.mxu0 0.0
    %3852 = vmatpush1.msra.mxu0 0.0
    %3853 = vmatprep.subr.mxu0 0.0
    %3854 = vmatpush1.msra.mxu0 0.0
    %3855 = vmatprep.subr.mxu0 0.0
    %3856 = vmatpush1.msra.mxu0 0.0
    %3857 = vmatprep.subr.mxu0 0.0
    %3858 = vmatpush1.msra.mxu0 0.0
    %3859 = vmatprep.subr.mxu0 0.0
    %3860 = vmatpush1.msra.mxu0 0.0
    %3861 = vmatprep.subr.mxu0 0.0
    %3862 = vmatpush1.msra.mxu0 0.0
    %3863 = vmatprep.subr.mxu0 0.0
    %3864 = vmatpush1.msra.mxu0 0.0
    %3865 = vmatprep.subr.mxu0 0.0
    %3866 = vmatpush1.msra.mxu0 0.0
    %3867 = vmatprep.subr.mxu0 0.0
    %3868 = vmatpush1.msra.mxu0 0.0
    %3869 = vmatprep.subr.mxu0 0.0
    %3870 = vmatpush1.msra.mxu0 0.0
    %3871 = vmatprep.subr.mxu0 0.0
    %3872 = vmatpush1.msra.mxu0 0.0
    %3873 = vmatprep.subr.mxu0 0.0
    %3874 = vmatpush1.msra.mxu0 0.0
    %3875 = vmatprep.subr.mxu0 0.0
    %3876 = vmatpush1.msra.mxu0 0.0
    %3877 = vmatprep.subr.mxu0 0.0
    %3878 = vmatpush1.msra.mxu0 0.0
    %3879 = vmatprep.subr.mxu0 0.0
    %3880 = vmatpush1.msra.mxu0 0.0
    %3881 = vmatprep.subr.mxu0 0.0
    %3882 = vmatpush1.msra.mxu0 0.0
    %3883 = vmatprep.subr.mxu0 0.0
    %3884 = vmatpush1.msra.mxu0 0.0
    %3885 = vmatprep.subr.mxu0 0.0
    %3886 = vmatpush1.msra.mxu0 0.0
    %3887 = vmatprep.subr.mxu0 0.0
    %3888 = vmatpush1.msra.mxu0 0.0
    %3889 = vmatprep.subr.mxu0 0.0
    %3890 = vmatpush1.msra.mxu0 0.0
    %3891 = vmatprep.subr.mxu0 0.0
    %3892 = vmatpush1.msra.mxu0 0.0
    %3893 = vmatprep.subr.mxu0 0.0
    %3894 = vmatpush1.msra.mxu0 0.0
    %3895 = vmatprep.subr.mxu0 0.0
    %3896 = vmatpush1.msra.mxu0 0.0
    %3897 = vmatprep.subr.mxu0 0.0
    %3898 = vmatpush1.msra.mxu0 0.0
    %3899 = vmatprep.subr.mxu0 0.0
    %3900 = vmatpush1.msra.mxu0 0.0
    %3901 = vmatprep.subr.mxu0 0.0
    %3902 = vmatpush1.msra.mxu0 0.0
    %3903 = vmatprep.subr.mxu0 0.0
    %3904 = vmatpush1.msra.mxu0 0.0
    %3905 = vmatprep.subr.mxu0 0.0
    %3906 = vmatpush1.msra.mxu0 0.0
    %3907 = vmatprep.subr.mxu0 0.0
    %3908 = vmatpush1.msra.mxu0 0.0
    %3909 = vmatprep.mubr.f32.mxu0 0.0
    %v3910 = vand.u32 %v1163, 4294901760
    %3911 = vmatmul.mubr.f32.gmra.mrb[0].mxu0 %v3910
    %v3912 = vpop.f32.mrb[0].mxu0
    %v3913 = vadd.f32 %v3837, %v3912
    %v3914 = vpop.f32.mrb[0].mxu0
    %3915 = vdwg.mxu0
    %3916 = vmatprep.subr.mxu0 0.0
    %v3917 = vand.u32 %v3762, 4294901760
    %v3918 = vsub.f32 %v3762, %v3917
    %3919 = vmatpush1.msra.mxu0 %v3918
    %3920 = vmatprep.subr.mxu0 0.0
    %3921 = vmatpush1.msra.mxu0 0.0
    %3922 = vmatprep.subr.mxu0 0.0
    %3923 = vmatpush1.msra.mxu0 0.0
    %3924 = vmatprep.subr.mxu0 0.0
    %3925 = vmatpush1.msra.mxu0 0.0
    %3926 = vmatprep.subr.mxu0 0.0
    %3927 = vmatpush1.msra.mxu0 0.0
    %3928 = vmatprep.subr.mxu0 0.0
    %3929 = vmatpush1.msra.mxu0 0.0
    %3930 = vmatprep.subr.mxu0 0.0
    %3931 = vmatpush1.msra.mxu0 0.0
    %3932 = vmatprep.subr.mxu0 0.0
    %3933 = vmatpush1.msra.mxu0 0.0
    %3934 = vmatprep.subr.mxu0 0.0
    %3935 = vmatpush1.msra.mxu0 0.0
    %3936 = vmatprep.subr.mxu0 0.0
    %3937 = vmatpush1.msra.mxu0 0.0
    %3938 = vmatprep.subr.mxu0 0.0
    %3939 = vmatpush1.msra.mxu0 0.0
    %3940 = vmatprep.subr.mxu0 0.0
    %3941 = vmatpush1.msra.mxu0 0.0
    %3942 = vmatprep.subr.mxu0 0.0
    %3943 = vmatpush1.msra.mxu0 0.0
    %3944 = vmatprep.subr.mxu0 0.0
    %3945 = vmatpush1.msra.mxu0 0.0
    %3946 = vmatprep.subr.mxu0 0.0
    %3947 = vmatpush1.msra.mxu0 0.0
    %3948 = vmatprep.subr.mxu0 0.0
    %3949 = vmatpush1.msra.mxu0 0.0
    %3950 = vmatprep.subr.mxu0 0.0
    %3951 = vmatpush1.msra.mxu0 0.0
    %3952 = vmatprep.subr.mxu0 0.0
    %3953 = vmatpush1.msra.mxu0 0.0
    %3954 = vmatprep.subr.mxu0 0.0
    %3955 = vmatpush1.msra.mxu0 0.0
    %3956 = vmatprep.subr.mxu0 0.0
    %3957 = vmatpush1.msra.mxu0 0.0
    %3958 = vmatprep.subr.mxu0 0.0
    %3959 = vmatpush1.msra.mxu0 0.0
    %3960 = vmatprep.subr.mxu0 0.0
    %3961 = vmatpush1.msra.mxu0 0.0
    %3962 = vmatprep.subr.mxu0 0.0
    %3963 = vmatpush1.msra.mxu0 0.0
    %3964 = vmatprep.subr.mxu0 0.0
    %3965 = vmatpush1.msra.mxu0 0.0
    %3966 = vmatprep.subr.mxu0 0.0
    %3967 = vmatpush1.msra.mxu0 0.0
    %3968 = vmatprep.subr.mxu0 0.0
    %3969 = vmatpush1.msra.mxu0 0.0
    %3970 = vmatprep.subr.mxu0 0.0
    %3971 = vmatpush1.msra.mxu0 0.0
    %3972 = vmatprep.subr.mxu0 0.0
    %3973 = vmatpush1.msra.mxu0 0.0
    %3974 = vmatprep.subr.mxu0 0.0
    %3975 = vmatpush1.msra.mxu0 0.0
    %3976 = vmatprep.subr.mxu0 0.0
    %3977 = vmatpush1.msra.mxu0 0.0
    %3978 = vmatprep.subr.mxu0 0.0
    %3979 = vmatpush1.msra.mxu0 0.0
    %3980 = vmatprep.subr.mxu0 0.0
    %3981 = vmatpush1.msra.mxu0 0.0
    %3982 = vmatprep.mubr.f32.mxu0 0.0
    %v3983 = vand.u32 %v1163, 4294901760
    %v3984 = vsub.f32 %v1163, %v3983
    %3985 = vmatmul.mubr.f32.gmra.mrb[0].mxu0 %v3984
    %v3986 = vpop.f32.mrb[0].mxu0
    %v3987 = vadd.f32 %v3913, %v3986
    %v3988 = vpop.f32.mrb[0].mxu0
    %3989 = vdwg.mxu0
    %3990 = vmatprep.subr.mxu0 0.0
    %v3991 = vand.u32 %v3762, 4294901760
    %3992 = vmatpush1.msra.mxu0 %v3991
    %3993 = vmatprep.subr.mxu0 0.0
    %3994 = vmatpush1.msra.mxu0 0.0
    %3995 = vmatprep.subr.mxu0 0.0
    %3996 = vmatpush1.msra.mxu0 0.0
    %3997 = vmatprep.subr.mxu0 0.0
    %3998 = vmatpush1.msra.mxu0 0.0
    %3999 = vmatprep.subr.mxu0 0.0
    %4000 = vmatpush1.msra.mxu0 0.0
    %4001 = vmatprep.subr.mxu0 0.0
    %4002 = vmatpush1.msra.mxu0 0.0
    %4003 = vmatprep.subr.mxu0 0.0
    %4004 = vmatpush1.msra.mxu0 0.0
    %4005 = vmatprep.subr.mxu0 0.0
    %4006 = vmatpush1.msra.mxu0 0.0
    %4007 = vmatprep.subr.mxu0 0.0
    %4008 = vmatpush1.msra.mxu0 0.0
    %4009 = vmatprep.subr.mxu0 0.0
    %4010 = vmatpush1.msra.mxu0 0.0
    %4011 = vmatprep.subr.mxu0 0.0
    %4012 = vmatpush1.msra.mxu0 0.0
    %4013 = vmatprep.subr.mxu0 0.0
    %4014 = vmatpush1.msra.mxu0 0.0
    %4015 = vmatprep.subr.mxu0 0.0
    %4016 = vmatpush1.msra.mxu0 0.0
    %4017 = vmatprep.subr.mxu0 0.0
    %4018 = vmatpush1.msra.mxu0 0.0
    %4019 = vmatprep.subr.mxu0 0.0
    %4020 = vmatpush1.msra.mxu0 0.0
    %4021 = vmatprep.subr.mxu0 0.0
    %4022 = vmatpush1.msra.mxu0 0.0
    %4023 = vmatprep.subr.mxu0 0.0
    %4024 = vmatpush1.msra.mxu0 0.0
    %4025 = vmatprep.subr.mxu0 0.0
    %4026 = vmatpush1.msra.mxu0 0.0
    %4027 = vmatprep.subr.mxu0 0.0
    %4028 = vmatpush1.msra.mxu0 0.0
    %4029 = vmatprep.subr.mxu0 0.0
    %4030 = vmatpush1.msra.mxu0 0.0
    %4031 = vmatprep.subr.mxu0 0.0
    %4032 = vmatpush1.msra.mxu0 0.0
    %4033 = vmatprep.subr.mxu0 0.0
    %4034 = vmatpush1.msra.mxu0 0.0
    %4035 = vmatprep.subr.mxu0 0.0
    %4036 = vmatpush1.msra.mxu0 0.0
    %4037 = vmatprep.subr.mxu0 0.0
    %4038 = vmatpush1.msra.mxu0 0.0
    %4039 = vmatprep.subr.mxu0 0.0
    %4040 = vmatpush1.msra.mxu0 0.0
    %4041 = vmatprep.subr.mxu0 0.0
    %4042 = vmatpush1.msra.mxu0 0.0
    %4043 = vmatprep.subr.mxu0 0.0
    %4044 = vmatpush1.msra.mxu0 0.0
    %4045 = vmatprep.subr.mxu0 0.0
    %4046 = vmatpush1.msra.mxu0 0.0
    %4047 = vmatprep.subr.mxu0 0.0
    %4048 = vmatpush1.msra.mxu0 0.0
    %4049 = vmatprep.subr.mxu0 0.0
    %4050 = vmatpush1.msra.mxu0 0.0
    %4051 = vmatprep.subr.mxu0 0.0
    %4052 = vmatpush1.msra.mxu0 0.0
    %4053 = vmatprep.subr.mxu0 0.0
    %4054 = vmatpush1.msra.mxu0 0.0
    %4055 = vmatprep.mubr.f32.mxu0 0.0
    %v4056 = vand.u32 %v1163, 4294901760
    %v4057 = vsub.f32 %v1163, %v4056
    %v4058 = vand.u32 %v4057, 4294901760
    %4059 = vmatmul.mubr.f32.gmra.mrb[0].mxu0 %v4058
    %v4060 = vpop.f32.mrb[0].mxu0
    %v4061 = vadd.f32 %v3987, %v4060
    %v4062 = vpop.f32.mrb[0].mxu0
    %4063 = vdwg.mxu0
    %4064 = vmatprep.subr.mxu0 0.0
    %v4065 = vand.u32 %v3762, 4294901760
    %v4066 = vsub.f32 %v3762, %v4065
    %v4067 = vand.u32 %v4066, 4294901760
    %4068 = vmatpush1.msra.mxu0 %v4067
    %4069 = vmatprep.subr.mxu0 0.0
    %4070 = vmatpush1.msra.mxu0 0.0
    %4071 = vmatprep.subr.mxu0 0.0
    %4072 = vmatpush1.msra.mxu0 0.0
    %4073 = vmatprep.subr.mxu0 0.0
    %4074 = vmatpush1.msra.mxu0 0.0
    %4075 = vmatprep.subr.mxu0 0.0
    %4076 = vmatpush1.msra.mxu0 0.0
    %4077 = vmatprep.subr.mxu0 0.0
    %4078 = vmatpush1.msra.mxu0 0.0
    %4079 = vmatprep.subr.mxu0 0.0
    %4080 = vmatpush1.msra.mxu0 0.0
    %4081 = vmatprep.subr.mxu0 0.0
    %4082 = vmatpush1.msra.mxu0 0.0
    %4083 = vmatprep.subr.mxu0 0.0
    %4084 = vmatpush1.msra.mxu0 0.0
    %4085 = vmatprep.subr.mxu0 0.0
    %4086 = vmatpush1.msra.mxu0 0.0
    %4087 = vmatprep.subr.mxu0 0.0
    %4088 = vmatpush1.msra.mxu0 0.0
    %4089 = vmatprep.subr.mxu0 0.0
    %4090 = vmatpush1.msra.mxu0 0.0
    %4091 = vmatprep.subr.mxu0 0.0
    %4092 = vmatpush1.msra.mxu0 0.0
    %4093 = vmatprep.subr.mxu0 0.0
    %4094 = vmatpush1.msra.mxu0 0.0
    %4095 = vmatprep.subr.mxu0 0.0
    %4096 = vmatpush1.msra.mxu0 0.0
    %4097 = vmatprep.subr.mxu0 0.0
    %4098 = vmatpush1.msra.mxu0 0.0
    %4099 = vmatprep.subr.mxu0 0.0
    %4100 = vmatpush1.msra.mxu0 0.0
    %4101 = vmatprep.subr.mxu0 0.0
    %4102 = vmatpush1.msra.mxu0 0.0
    %4103 = vmatprep.subr.mxu0 0.0
    %4104 = vmatpush1.msra.mxu0 0.0
    %4105 = vmatprep.subr.mxu0 0.0
    %4106 = vmatpush1.msra.mxu0 0.0
    %4107 = vmatprep.subr.mxu0 0.0
    %4108 = vmatpush1.msra.mxu0 0.0
    %4109 = vmatprep.subr.mxu0 0.0
    %4110 = vmatpush1.msra.mxu0 0.0
    %4111 = vmatprep.subr.mxu0 0.0
    %4112 = vmatpush1.msra.mxu0 0.0
    %4113 = vmatprep.subr.mxu0 0.0
    %4114 = vmatpush1.msra.mxu0 0.0
    %4115 = vmatprep.subr.mxu0 0.0
    %4116 = vmatpush1.msra.mxu0 0.0
    %4117 = vmatprep.subr.mxu0 0.0
    %4118 = vmatpush1.msra.mxu0 0.0
    %4119 = vmatprep.subr.mxu0 0.0
    %4120 = vmatpush1.msra.mxu0 0.0
    %4121 = vmatprep.subr.mxu0 0.0
    %4122 = vmatpush1.msra.mxu0 0.0
    %4123 = vmatprep.subr.mxu0 0.0
    %4124 = vmatpush1.msra.mxu0 0.0
    %4125 = vmatprep.subr.mxu0 0.0
    %4126 = vmatpush1.msra.mxu0 0.0
    %4127 = vmatprep.subr.mxu0 0.0
    %4128 = vmatpush1.msra.mxu0 0.0
    %4129 = vmatprep.subr.mxu0 0.0
    %4130 = vmatpush1.msra.mxu0 0.0
    %4131 = vmatprep.mubr.f32.mxu0 0.0
    %v4132 = vand.u32 %v1163, 4294901760
    %4133 = vmatmul.mubr.f32.gmra.mrb[0].mxu0 %v4132
    %v4134 = vpop.f32.mrb[0].mxu0
    %v4135 = vadd.f32 %v4061, %v4134
    %v4136 = vpop.f32.mrb[0].mxu0
    %4137 = vdwg.mxu0
    %4138 = vmatprep.subr.mxu0 0.0
    %v4139 = vand.u32 %v3762, 4294901760
    %4140 = vmatpush1.msra.mxu0 %v4139
    %4141 = vmatprep.subr.mxu0 0.0
    %4142 = vmatpush1.msra.mxu0 0.0
    %4143 = vmatprep.subr.mxu0 0.0
    %4144 = vmatpush1.msra.mxu0 0.0
    %4145 = vmatprep.subr.mxu0 0.0
    %4146 = vmatpush1.msra.mxu0 0.0
    %4147 = vmatprep.subr.mxu0 0.0
    %4148 = vmatpush1.msra.mxu0 0.0
    %4149 = vmatprep.subr.mxu0 0.0
    %4150 = vmatpush1.msra.mxu0 0.0
    %4151 = vmatprep.subr.mxu0 0.0
    %4152 = vmatpush1.msra.mxu0 0.0
    %4153 = vmatprep.subr.mxu0 0.0
    %4154 = vmatpush1.msra.mxu0 0.0
    %4155 = vmatprep.subr.mxu0 0.0
    %4156 = vmatpush1.msra.mxu0 0.0
    %4157 = vmatprep.subr.mxu0 0.0
    %4158 = vmatpush1.msra.mxu0 0.0
    %4159 = vmatprep.subr.mxu0 0.0
    %4160 = vmatpush1.msra.mxu0 0.0
    %4161 = vmatprep.subr.mxu0 0.0
    %4162 = vmatpush1.msra.mxu0 0.0
    %4163 = vmatprep.subr.mxu0 0.0
    %4164 = vmatpush1.msra.mxu0 0.0
    %4165 = vmatprep.subr.mxu0 0.0
    %4166 = vmatpush1.msra.mxu0 0.0
    %4167 = vmatprep.subr.mxu0 0.0
    %4168 = vmatpush1.msra.mxu0 0.0
    %4169 = vmatprep.subr.mxu0 0.0
    %4170 = vmatpush1.msra.mxu0 0.0
    %4171 = vmatprep.subr.mxu0 0.0
    %4172 = vmatpush1.msra.mxu0 0.0
    %4173 = vmatprep.subr.mxu0 0.0
    %4174 = vmatpush1.msra.mxu0 0.0
    %4175 = vmatprep.subr.mxu0 0.0
    %4176 = vmatpush1.msra.mxu0 0.0
    %4177 = vmatprep.subr.mxu0 0.0
    %4178 = vmatpush1.msra.mxu0 0.0
    %4179 = vmatprep.subr.mxu0 0.0
    %4180 = vmatpush1.msra.mxu0 0.0
    %4181 = vmatprep.subr.mxu0 0.0
    %4182 = vmatpush1.msra.mxu0 0.0
    %4183 = vmatprep.subr.mxu0 0.0
    %4184 = vmatpush1.msra.mxu0 0.0
    %4185 = vmatprep.subr.mxu0 0.0
    %4186 = vmatpush1.msra.mxu0 0.0
    %4187 = vmatprep.subr.mxu0 0.0
    %4188 = vmatpush1.msra.mxu0 0.0
    %4189 = vmatprep.subr.mxu0 0.0
    %4190 = vmatpush1.msra.mxu0 0.0
    %4191 = vmatprep.subr.mxu0 0.0
    %4192 = vmatpush1.msra.mxu0 0.0
    %4193 = vmatprep.subr.mxu0 0.0
    %4194 = vmatpush1.msra.mxu0 0.0
    %4195 = vmatprep.subr.mxu0 0.0
    %4196 = vmatpush1.msra.mxu0 0.0
    %4197 = vmatprep.subr.mxu0 0.0
    %4198 = vmatpush1.msra.mxu0 0.0
    %4199 = vmatprep.subr.mxu0 0.0
    %4200 = vmatpush1.msra.mxu0 0.0
    %4201 = vmatprep.subr.mxu0 0.0
    %4202 = vmatpush1.msra.mxu0 0.0
    %4203 = vmatprep.mubr.f32.mxu0 0.0
    %v4204 = vand.u32 %v1163, 4294901760
    %4205 = vmatmul.mubr.f32.gmra.mrb[0].mxu0 %v4204
    %v4206 = vpop.f32.mrb[0].mxu0
    %v4207 = vadd.f32 %v4135, %v4206
    %v4208 = vpop.f32.mrb[0].mxu0
    %4209 = vdwg.mxu0
    %v4210 = vld [vmem:[%s5] sm:$0xff]
    %v4211 = vld [vmem:[%s5 + $0x8] sm:$0xff]
    %v4212 = vld [vmem:[%s5 + $0x10] sm:$0xff]
    %v4213 = vld [vmem:[%s5 + $0x18] sm:$0xff]
    %v4214 = vld [vmem:[#allocation9] sm:$0x1]
    %v4216 = vlaneseq
    %v4217 = vshrl.u32 %v4216, 7
    %v4218 = vsub.s32 0, %v4217
    %v4219 = vrot.slane %v4214, %v4218
    %v4222 = vsel %vm163, %v3757, 0
    %v4225 = vsel %vm163, %v4207, 0
    %4227 = vmatprep.subr.mxu0 0.0
    %v4228 = vand.u32 %v4210, 4294901760
    %4229 = vmatpush1.msra.mxu0 %v4228
    %4230 = vmatprep.subr.mxu0 0.0
    %v4231 = vand.u32 %v4211, 4294901760
    %4232 = vmatpush1.msra.mxu0 %v4231
    %4233 = vmatprep.subr.mxu0 0.0
    %v4234 = vand.u32 %v4212, 4294901760
    %4235 = vmatpush1.msra.mxu0 %v4234
    %4236 = vmatprep.subr.mxu0 0.0
    %v4237 = vand.u32 %v4213, 4294901760
    %4238 = vmatpush1.msra.mxu0 %v4237
    %4239 = vmatprep.subr.mxu0 0.0
    %4240 = vmatpush1.msra.mxu0 0.0
    %4241 = vmatprep.subr.mxu0 0.0
    %4242 = vmatpush1.msra.mxu0 0.0
    %4243 = vmatprep.subr.mxu0 0.0
    %4244 = vmatpush1.msra.mxu0 0.0
    %4245 = vmatprep.subr.mxu0 0.0
    %4246 = vmatpush1.msra.mxu0 0.0
    %4247 = vmatprep.subr.mxu0 0.0
    %4248 = vmatpush1.msra.mxu0 0.0
    %4249 = vmatprep.subr.mxu0 0.0
    %4250 = vmatpush1.msra.mxu0 0.0
    %4251 = vmatprep.subr.mxu0 0.0
    %4252 = vmatpush1.msra.mxu0 0.0
    %4253 = vmatprep.subr.mxu0 0.0
    %4254 = vmatpush1.msra.mxu0 0.0
    %4255 = vmatprep.subr.mxu0 0.0
    %4256 = vmatpush1.msra.mxu0 0.0
    %4257 = vmatprep.subr.mxu0 0.0
    %4258 = vmatpush1.msra.mxu0 0.0
    %4259 = vmatprep.subr.mxu0 0.0
    %4260 = vmatpush1.msra.mxu0 0.0
    %4261 = vmatprep.subr.mxu0 0.0
    %4262 = vmatpush1.msra.mxu0 0.0
    %4263 = vmatprep.subr.mxu0 0.0
    %4264 = vmatpush1.msra.mxu0 0.0
    %4265 = vmatprep.subr.mxu0 0.0
    %4266 = vmatpush1.msra.mxu0 0.0
    %4267 = vmatprep.subr.mxu0 0.0
    %4268 = vmatpush1.msra.mxu0 0.0
    %4269 = vmatprep.subr.mxu0 0.0
    %4270 = vmatpush1.msra.mxu0 0.0
    %4271 = vmatprep.subr.mxu0 0.0
    %4272 = vmatpush1.msra.mxu0 0.0
    %4273 = vmatprep.subr.mxu0 0.0
    %4274 = vmatpush1.msra.mxu0 0.0
    %4275 = vmatprep.subr.mxu0 0.0
    %4276 = vmatpush1.msra.mxu0 0.0
    %4277 = vmatprep.subr.mxu0 0.0
    %4278 = vmatpush1.msra.mxu0 0.0
    %4279 = vmatprep.subr.mxu0 0.0
    %4280 = vmatpush1.msra.mxu0 0.0
    %4281 = vmatprep.subr.mxu0 0.0
    %4282 = vmatpush1.msra.mxu0 0.0
    %4283 = vmatprep.subr.mxu0 0.0
    %4284 = vmatpush1.msra.mxu0 0.0
    %4285 = vmatprep.subr.mxu0 0.0
    %4286 = vmatpush1.msra.mxu0 0.0
    %4287 = vmatprep.subr.mxu0 0.0
    %4288 = vmatpush1.msra.mxu0 0.0
    %4289 = vmatprep.subr.mxu0 0.0
    %4290 = vmatpush1.msra.mxu0 0.0
    %4291 = vmatprep.subr.mxu0 0.0
    %4292 = vmatpush1.msra.mxu0 0.0
    %4293 = vmatprep.subr.mxu0 0.0
    %4294 = vmatpush1.msra.mxu0 0.0
    %4295 = vmatprep.mubr.f32.mxu0 0.0
    %v4296 = vand.u32 %v4222, 4294901760
    %v4297 = vsub.f32 %v4222, %v4296
    %v4298 = vand.u32 %v4297, 4294901760
    %v4299 = vsub.f32 %v4297, %v4298
    %v4300 = vand.u32 %v4299, 4294901760
    %4301 = vmatmul.mubr.f32.gmra.mrb[0].mxu0 %v4300
    %v4302 = vpop.f32.mrb[0].mxu0
    %v4303 = vadd.f32 %v4219, %v4302
    %v4304 = vpop.f32.mrb[0].mxu0
    %4305 = vmatprep.mubr.f32.mxu0 0.0
    %v4306 = vand.u32 %v4225, 4294901760
    %v4307 = vsub.f32 %v4225, %v4306
    %v4308 = vand.u32 %v4307, 4294901760
    %v4309 = vsub.f32 %v4307, %v4308
    %v4310 = vand.u32 %v4309, 4294901760
    %4311 = vmatmul.mubr.f32.gmra.mrb[0].mxu0 %v4310
    %v4312 = vpop.f32.mrb[0].mxu0
    %v4313 = vadd.f32 %v4219, %v4312
    %v4314 = vpop.f32.mrb[0].mxu0
    %4315 = vdwg.mxu0
    %4316 = vmatprep.subr.mxu0 0.0
    %v4317 = vand.u32 %v4210, 4294901760
    %v4318 = vsub.f32 %v4210, %v4317
    %v4319 = vand.u32 %v4318, 4294901760
    %v4320 = vsub.f32 %v4318, %v4319
    %v4321 = vand.u32 %v4320, 4294901760
    %4322 = vmatpush1.msra.mxu0 %v4321
    %4323 = vmatprep.subr.mxu0 0.0
    %v4324 = vand.u32 %v4211, 4294901760
    %v4325 = vsub.f32 %v4211, %v4324
    %v4326 = vand.u32 %v4325, 4294901760
    %v4327 = vsub.f32 %v4325, %v4326
    %v4328 = vand.u32 %v4327, 4294901760
    %4329 = vmatpush1.msra.mxu0 %v4328
    %4330 = vmatprep.subr.mxu0 0.0
    %v4331 = vand.u32 %v4212, 4294901760
    %v4332 = vsub.f32 %v4212, %v4331
    %v4333 = vand.u32 %v4332, 4294901760
    %v4334 = vsub.f32 %v4332, %v4333
    %v4335 = vand.u32 %v4334, 4294901760
    %4336 = vmatpush1.msra.mxu0 %v4335
    %4337 = vmatprep.subr.mxu0 0.0
    %v4338 = vand.u32 %v4213, 4294901760
    %v4339 = vsub.f32 %v4213, %v4338
    %v4340 = vand.u32 %v4339, 4294901760
    %v4341 = vsub.f32 %v4339, %v4340
    %v4342 = vand.u32 %v4341, 4294901760
    %4343 = vmatpush1.msra.mxu0 %v4342
    %4344 = vmatprep.subr.mxu0 0.0
    %4345 = vmatpush1.msra.mxu0 0.0
    %4346 = vmatprep.subr.mxu0 0.0
    %4347 = vmatpush1.msra.mxu0 0.0
    %4348 = vmatprep.subr.mxu0 0.0
    %4349 = vmatpush1.msra.mxu0 0.0
    %4350 = vmatprep.subr.mxu0 0.0
    %4351 = vmatpush1.msra.mxu0 0.0
    %4352 = vmatprep.subr.mxu0 0.0
    %4353 = vmatpush1.msra.mxu0 0.0
    %4354 = vmatprep.subr.mxu0 0.0
    %4355 = vmatpush1.msra.mxu0 0.0
    %4356 = vmatprep.subr.mxu0 0.0
    %4357 = vmatpush1.msra.mxu0 0.0
    %4358 = vmatprep.subr.mxu0 0.0
    %4359 = vmatpush1.msra.mxu0 0.0
    %4360 = vmatprep.subr.mxu0 0.0
    %4361 = vmatpush1.msra.mxu0 0.0
    %4362 = vmatprep.subr.mxu0 0.0
    %4363 = vmatpush1.msra.mxu0 0.0
    %4364 = vmatprep.subr.mxu0 0.0
    %4365 = vmatpush1.msra.mxu0 0.0
    %4366 = vmatprep.subr.mxu0 0.0
    %4367 = vmatpush1.msra.mxu0 0.0
    %4368 = vmatprep.subr.mxu0 0.0
    %4369 = vmatpush1.msra.mxu0 0.0
    %4370 = vmatprep.subr.mxu0 0.0
    %4371 = vmatpush1.msra.mxu0 0.0
    %4372 = vmatprep.subr.mxu0 0.0
    %4373 = vmatpush1.msra.mxu0 0.0
    %4374 = vmatprep.subr.mxu0 0.0
    %4375 = vmatpush1.msra.mxu0 0.0
    %4376 = vmatprep.subr.mxu0 0.0
    %4377 = vmatpush1.msra.mxu0 0.0
    %4378 = vmatprep.subr.mxu0 0.0
    %4379 = vmatpush1.msra.mxu0 0.0
    %4380 = vmatprep.subr.mxu0 0.0
    %4381 = vmatpush1.msra.mxu0 0.0
    %4382 = vmatprep.subr.mxu0 0.0
    %4383 = vmatpush1.msra.mxu0 0.0
    %4384 = vmatprep.subr.mxu0 0.0
    %4385 = vmatpush1.msra.mxu0 0.0
    %4386 = vmatprep.subr.mxu0 0.0
    %4387 = vmatpush1.msra.mxu0 0.0
    %4388 = vmatprep.subr.mxu0 0.0
    %4389 = vmatpush1.msra.mxu0 0.0
    %4390 = vmatprep.subr.mxu0 0.0
    %4391 = vmatpush1.msra.mxu0 0.0
    %4392 = vmatprep.subr.mxu0 0.0
    %4393 = vmatpush1.msra.mxu0 0.0
    %4394 = vmatprep.subr.mxu0 0.0
    %4395 = vmatpush1.msra.mxu0 0.0
    %4396 = vmatprep.subr.mxu0 0.0
    %4397 = vmatpush1.msra.mxu0 0.0
    %4398 = vmatprep.subr.mxu0 0.0
    %4399 = vmatpush1.msra.mxu0 0.0
    %4400 = vmatprep.mubr.f32.mxu0 0.0
    %v4401 = vand.u32 %v4222, 4294901760
    %4402 = vmatmul.mubr.f32.gmra.mrb[0].mxu0 %v4401
    %v4403 = vpop.f32.mrb[0].mxu0
    %v4404 = vadd.f32 %v4303, %v4403
    %v4405 = vpop.f32.mrb[0].mxu0
    %4406 = vmatprep.mubr.f32.mxu0 0.0
    %v4407 = vand.u32 %v4225, 4294901760
    %4408 = vmatmul.mubr.f32.gmra.mrb[0].mxu0 %v4407
    %v4409 = vpop.f32.mrb[0].mxu0
    %v4410 = vadd.f32 %v4313, %v4409
    %v4411 = vpop.f32.mrb[0].mxu0
    %4412 = vdwg.mxu0
    %4413 = vmatprep.subr.mxu0 0.0
    %v4414 = vand.u32 %v4210, 4294901760
    %v4415 = vsub.f32 %v4210, %v4414
    %4416 = vmatpush1.msra.mxu0 %v4415
    %4417 = vmatprep.subr.mxu0 0.0
    %v4418 = vand.u32 %v4211, 4294901760
    %v4419 = vsub.f32 %v4211, %v4418
    %4420 = vmatpush1.msra.mxu0 %v4419
    %4421 = vmatprep.subr.mxu0 0.0
    %v4422 = vand.u32 %v4212, 4294901760
    %v4423 = vsub.f32 %v4212, %v4422
    %4424 = vmatpush1.msra.mxu0 %v4423
    %4425 = vmatprep.subr.mxu0 0.0
    %v4426 = vand.u32 %v4213, 4294901760
    %v4427 = vsub.f32 %v4213, %v4426
    %4428 = vmatpush1.msra.mxu0 %v4427
    %4429 = vmatprep.subr.mxu0 0.0
    %4430 = vmatpush1.msra.mxu0 0.0
    %4431 = vmatprep.subr.mxu0 0.0
    %4432 = vmatpush1.msra.mxu0 0.0
    %4433 = vmatprep.subr.mxu0 0.0
    %4434 = vmatpush1.msra.mxu0 0.0
    %4435 = vmatprep.subr.mxu0 0.0
    %4436 = vmatpush1.msra.mxu0 0.0
    %4437 = vmatprep.subr.mxu0 0.0
    %4438 = vmatpush1.msra.mxu0 0.0
    %4439 = vmatprep.subr.mxu0 0.0
    %4440 = vmatpush1.msra.mxu0 0.0
    %4441 = vmatprep.subr.mxu0 0.0
    %4442 = vmatpush1.msra.mxu0 0.0
    %4443 = vmatprep.subr.mxu0 0.0
    %4444 = vmatpush1.msra.mxu0 0.0
    %4445 = vmatprep.subr.mxu0 0.0
    %4446 = vmatpush1.msra.mxu0 0.0
    %4447 = vmatprep.subr.mxu0 0.0
    %4448 = vmatpush1.msra.mxu0 0.0
    %4449 = vmatprep.subr.mxu0 0.0
    %4450 = vmatpush1.msra.mxu0 0.0
    %4451 = vmatprep.subr.mxu0 0.0
    %4452 = vmatpush1.msra.mxu0 0.0
    %4453 = vmatprep.subr.mxu0 0.0
    %4454 = vmatpush1.msra.mxu0 0.0
    %4455 = vmatprep.subr.mxu0 0.0
    %4456 = vmatpush1.msra.mxu0 0.0
    %4457 = vmatprep.subr.mxu0 0.0
    %4458 = vmatpush1.msra.mxu0 0.0
    %4459 = vmatprep.subr.mxu0 0.0
    %4460 = vmatpush1.msra.mxu0 0.0
    %4461 = vmatprep.subr.mxu0 0.0
    %4462 = vmatpush1.msra.mxu0 0.0
    %4463 = vmatprep.subr.mxu0 0.0
    %4464 = vmatpush1.msra.mxu0 0.0
    %4465 = vmatprep.subr.mxu0 0.0
    %4466 = vmatpush1.msra.mxu0 0.0
    %4467 = vmatprep.subr.mxu0 0.0
    %4468 = vmatpush1.msra.mxu0 0.0
    %4469 = vmatprep.subr.mxu0 0.0
    %4470 = vmatpush1.msra.mxu0 0.0
    %4471 = vmatprep.subr.mxu0 0.0
    %4472 = vmatpush1.msra.mxu0 0.0
    %4473 = vmatprep.subr.mxu0 0.0
    %4474 = vmatpush1.msra.mxu0 0.0
    %4475 = vmatprep.subr.mxu0 0.0
    %4476 = vmatpush1.msra.mxu0 0.0
    %4477 = vmatprep.subr.mxu0 0.0
    %4478 = vmatpush1.msra.mxu0 0.0
    %4479 = vmatprep.subr.mxu0 0.0
    %4480 = vmatpush1.msra.mxu0 0.0
    %4481 = vmatprep.subr.mxu0 0.0
    %4482 = vmatpush1.msra.mxu0 0.0
    %4483 = vmatprep.subr.mxu0 0.0
    %4484 = vmatpush1.msra.mxu0 0.0
    %4485 = vmatprep.mubr.f32.mxu0 0.0
    %v4486 = vand.u32 %v4222, 4294901760
    %v4487 = vsub.f32 %v4222, %v4486
    %4488 = vmatmul.mubr.f32.gmra.mrb[0].mxu0 %v4487
    %v4489 = vpop.f32.mrb[0].mxu0
    %v4490 = vadd.f32 %v4404, %v4489
    %v4491 = vpop.f32.mrb[0].mxu0
    %4492 = vmatprep.mubr.f32.mxu0 0.0
    %v4493 = vand.u32 %v4225, 4294901760
    %v4494 = vsub.f32 %v4225, %v4493
    %4495 = vmatmul.mubr.f32.gmra.mrb[0].mxu0 %v4494
    %v4496 = vpop.f32.mrb[0].mxu0
    %v4497 = vadd.f32 %v4410, %v4496
    %v4498 = vpop.f32.mrb[0].mxu0
    %4499 = vdwg.mxu0
    %4500 = vmatprep.subr.mxu0 0.0
    %v4501 = vand.u32 %v4210, 4294901760
    %4502 = vmatpush1.msra.mxu0 %v4501
    %4503 = vmatprep.subr.mxu0 0.0
    %v4504 = vand.u32 %v4211, 4294901760
    %4505 = vmatpush1.msra.mxu0 %v4504
    %4506 = vmatprep.subr.mxu0 0.0
    %v4507 = vand.u32 %v4212, 4294901760
    %4508 = vmatpush1.msra.mxu0 %v4507
    %4509 = vmatprep.subr.mxu0 0.0
    %v4510 = vand.u32 %v4213, 4294901760
    %4511 = vmatpush1.msra.mxu0 %v4510
    %4512 = vmatprep.subr.mxu0 0.0
    %4513 = vmatpush1.msra.mxu0 0.0
    %4514 = vmatprep.subr.mxu0 0.0
    %4515 = vmatpush1.msra.mxu0 0.0
    %4516 = vmatprep.subr.mxu0 0.0
    %4517 = vmatpush1.msra.mxu0 0.0
    %4518 = vmatprep.subr.mxu0 0.0
    %4519 = vmatpush1.msra.mxu0 0.0
    %4520 = vmatprep.subr.mxu0 0.0
    %4521 = vmatpush1.msra.mxu0 0.0
    %4522 = vmatprep.subr.mxu0 0.0
    %4523 = vmatpush1.msra.mxu0 0.0
    %4524 = vmatprep.subr.mxu0 0.0
    %4525 = vmatpush1.msra.mxu0 0.0
    %4526 = vmatprep.subr.mxu0 0.0
    %4527 = vmatpush1.msra.mxu0 0.0
    %4528 = vmatprep.subr.mxu0 0.0
    %4529 = vmatpush1.msra.mxu0 0.0
    %4530 = vmatprep.subr.mxu0 0.0
    %4531 = vmatpush1.msra.mxu0 0.0
    %4532 = vmatprep.subr.mxu0 0.0
    %4533 = vmatpush1.msra.mxu0 0.0
    %4534 = vmatprep.subr.mxu0 0.0
    %4535 = vmatpush1.msra.mxu0 0.0
    %4536 = vmatprep.subr.mxu0 0.0
    %4537 = vmatpush1.msra.mxu0 0.0
    %4538 = vmatprep.subr.mxu0 0.0
    %4539 = vmatpush1.msra.mxu0 0.0
    %4540 = vmatprep.subr.mxu0 0.0
    %4541 = vmatpush1.msra.mxu0 0.0
    %4542 = vmatprep.subr.mxu0 0.0
    %4543 = vmatpush1.msra.mxu0 0.0
    %4544 = vmatprep.subr.mxu0 0.0
    %4545 = vmatpush1.msra.mxu0 0.0
    %4546 = vmatprep.subr.mxu0 0.0
    %4547 = vmatpush1.msra.mxu0 0.0
    %4548 = vmatprep.subr.mxu0 0.0
    %4549 = vmatpush1.msra.mxu0 0.0
    %4550 = vmatprep.subr.mxu0 0.0
    %4551 = vmatpush1.msra.mxu0 0.0
    %4552 = vmatprep.subr.mxu0 0.0
    %4553 = vmatpush1.msra.mxu0 0.0
    %4554 = vmatprep.subr.mxu0 0.0
    %4555 = vmatpush1.msra.mxu0 0.0
    %4556 = vmatprep.subr.mxu0 0.0
    %4557 = vmatpush1.msra.mxu0 0.0
    %4558 = vmatprep.subr.mxu0 0.0
    %4559 = vmatpush1.msra.mxu0 0.0
    %4560 = vmatprep.subr.mxu0 0.0
    %4561 = vmatpush1.msra.mxu0 0.0
    %4562 = vmatprep.subr.mxu0 0.0
    %4563 = vmatpush1.msra.mxu0 0.0
    %4564 = vmatprep.subr.mxu0 0.0
    %4565 = vmatpush1.msra.mxu0 0.0
    %4566 = vmatprep.subr.mxu0 0.0
    %4567 = vmatpush1.msra.mxu0 0.0
    %4568 = vmatprep.mubr.f32.mxu0 0.0
    %v4569 = vand.u32 %v4222, 4294901760
    %v4570 = vsub.f32 %v4222, %v4569
    %v4571 = vand.u32 %v4570, 4294901760
    %4572 = vmatmul.mubr.f32.gmra.mrb[0].mxu0 %v4571
    %v4573 = vpop.f32.mrb[0].mxu0
    %v4574 = vadd.f32 %v4490, %v4573
    %v4575 = vpop.f32.mrb[0].mxu0
    %4576 = vmatprep.mubr.f32.mxu0 0.0
    %v4577 = vand.u32 %v4225, 4294901760
    %v4578 = vsub.f32 %v4225, %v4577
    %v4579 = vand.u32 %v4578, 4294901760
    %4580 = vmatmul.mubr.f32.gmra.mrb[0].mxu0 %v4579
    %v4581 = vpop.f32.mrb[0].mxu0
    %v4582 = vadd.f32 %v4497, %v4581
    %v4583 = vpop.f32.mrb[0].mxu0
    %4584 = vdwg.mxu0
    %4585 = vmatprep.subr.mxu0 0.0
    %v4586 = vand.u32 %v4210, 4294901760
    %v4587 = vsub.f32 %v4210, %v4586
    %v4588 = vand.u32 %v4587, 4294901760
    %4589 = vmatpush1.msra.mxu0 %v4588
    %4590 = vmatprep.subr.mxu0 0.0
    %v4591 = vand.u32 %v4211, 4294901760
    %v4592 = vsub.f32 %v4211, %v4591
    %v4593 = vand.u32 %v4592, 4294901760
    %4594 = vmatpush1.msra.mxu0 %v4593
    %4595 = vmatprep.subr.mxu0 0.0
    %v4596 = vand.u32 %v4212, 4294901760
    %v4597 = vsub.f32 %v4212, %v4596
    %v4598 = vand.u32 %v4597, 4294901760
    %4599 = vmatpush1.msra.mxu0 %v4598
    %4600 = vmatprep.subr.mxu0 0.0
    %v4601 = vand.u32 %v4213, 4294901760
    %v4602 = vsub.f32 %v4213, %v4601
    %v4603 = vand.u32 %v4602, 4294901760
    %4604 = vmatpush1.msra.mxu0 %v4603
    %4605 = vmatprep.subr.mxu0 0.0
    %4606 = vmatpush1.msra.mxu0 0.0
    %4607 = vmatprep.subr.mxu0 0.0
    %4608 = vmatpush1.msra.mxu0 0.0
    %4609 = vmatprep.subr.mxu0 0.0
    %4610 = vmatpush1.msra.mxu0 0.0
    %4611 = vmatprep.subr.mxu0 0.0
    %4612 = vmatpush1.msra.mxu0 0.0
    %4613 = vmatprep.subr.mxu0 0.0
    %4614 = vmatpush1.msra.mxu0 0.0
    %4615 = vmatprep.subr.mxu0 0.0
    %4616 = vmatpush1.msra.mxu0 0.0
    %4617 = vmatprep.subr.mxu0 0.0
    %4618 = vmatpush1.msra.mxu0 0.0
    %4619 = vmatprep.subr.mxu0 0.0
    %4620 = vmatpush1.msra.mxu0 0.0
    %4621 = vmatprep.subr.mxu0 0.0
    %4622 = vmatpush1.msra.mxu0 0.0
    %4623 = vmatprep.subr.mxu0 0.0
    %4624 = vmatpush1.msra.mxu0 0.0
    %4625 = vmatprep.subr.mxu0 0.0
    %4626 = vmatpush1.msra.mxu0 0.0
    %4627 = vmatprep.subr.mxu0 0.0
    %4628 = vmatpush1.msra.mxu0 0.0
    %4629 = vmatprep.subr.mxu0 0.0
    %4630 = vmatpush1.msra.mxu0 0.0
    %4631 = vmatprep.subr.mxu0 0.0
    %4632 = vmatpush1.msra.mxu0 0.0
    %4633 = vmatprep.subr.mxu0 0.0
    %4634 = vmatpush1.msra.mxu0 0.0
    %4635 = vmatprep.subr.mxu0 0.0
    %4636 = vmatpush1.msra.mxu0 0.0
    %4637 = vmatprep.subr.mxu0 0.0
    %4638 = vmatpush1.msra.mxu0 0.0
    %4639 = vmatprep.subr.mxu0 0.0
    %4640 = vmatpush1.msra.mxu0 0.0
    %4641 = vmatprep.subr.mxu0 0.0
    %4642 = vmatpush1.msra.mxu0 0.0
    %4643 = vmatprep.subr.mxu0 0.0
    %4644 = vmatpush1.msra.mxu0 0.0
    %4645 = vmatprep.subr.mxu0 0.0
    %4646 = vmatpush1.msra.mxu0 0.0
    %4647 = vmatprep.subr.mxu0 0.0
    %4648 = vmatpush1.msra.mxu0 0.0
    %4649 = vmatprep.subr.mxu0 0.0
    %4650 = vmatpush1.msra.mxu0 0.0
    %4651 = vmatprep.subr.mxu0 0.0
    %4652 = vmatpush1.msra.mxu0 0.0
    %4653 = vmatprep.subr.mxu0 0.0
    %4654 = vmatpush1.msra.mxu0 0.0
    %4655 = vmatprep.subr.mxu0 0.0
    %4656 = vmatpush1.msra.mxu0 0.0
    %4657 = vmatprep.subr.mxu0 0.0
    %4658 = vmatpush1.msra.mxu0 0.0
    %4659 = vmatprep.subr.mxu0 0.0
    %4660 = vmatpush1.msra.mxu0 0.0
    %4661 = vmatprep.mubr.f32.mxu0 0.0
    %v4662 = vand.u32 %v4222, 4294901760
    %4663 = vmatmul.mubr.f32.gmra.mrb[0].mxu0 %v4662
    %v4664 = vpop.f32.mrb[0].mxu0
    %v4665 = vadd.f32 %v4574, %v4664
    %v4666 = vpop.f32.mrb[0].mxu0
    %4667 = vmatprep.mubr.f32.mxu0 0.0
    %v4668 = vand.u32 %v4225, 4294901760
    %4669 = vmatmul.mubr.f32.gmra.mrb[0].mxu0 %v4668
    %v4670 = vpop.f32.mrb[0].mxu0
    %v4671 = vadd.f32 %v4582, %v4670
    %v4672 = vpop.f32.mrb[0].mxu0
    %4673 = vdwg.mxu0
    %4674 = vmatprep.subr.mxu0 0.0
    %v4675 = vand.u32 %v4210, 4294901760
    %4676 = vmatpush1.msra.mxu0 %v4675
    %4677 = vmatprep.subr.mxu0 0.0
    %v4678 = vand.u32 %v4211, 4294901760
    %4679 = vmatpush1.msra.mxu0 %v4678
    %4680 = vmatprep.subr.mxu0 0.0
    %v4681 = vand.u32 %v4212, 4294901760
    %4682 = vmatpush1.msra.mxu0 %v4681
    %4683 = vmatprep.subr.mxu0 0.0
    %v4684 = vand.u32 %v4213, 4294901760
    %4685 = vmatpush1.msra.mxu0 %v4684
    %4686 = vmatprep.subr.mxu0 0.0
    %4687 = vmatpush1.msra.mxu0 0.0
    %4688 = vmatprep.subr.mxu0 0.0
    %4689 = vmatpush1.msra.mxu0 0.0
    %4690 = vmatprep.subr.mxu0 0.0
    %4691 = vmatpush1.msra.mxu0 0.0
    %4692 = vmatprep.subr.mxu0 0.0
    %4693 = vmatpush1.msra.mxu0 0.0
    %4694 = vmatprep.subr.mxu0 0.0
    %4695 = vmatpush1.msra.mxu0 0.0
    %4696 = vmatprep.subr.mxu0 0.0
    %4697 = vmatpush1.msra.mxu0 0.0
    %4698 = vmatprep.subr.mxu0 0.0
    %4699 = vmatpush1.msra.mxu0 0.0
    %4700 = vmatprep.subr.mxu0 0.0
    %4701 = vmatpush1.msra.mxu0 0.0
    %4702 = vmatprep.subr.mxu0 0.0
    %4703 = vmatpush1.msra.mxu0 0.0
    %4704 = vmatprep.subr.mxu0 0.0
    %4705 = vmatpush1.msra.mxu0 0.0
    %4706 = vmatprep.subr.mxu0 0.0
    %4707 = vmatpush1.msra.mxu0 0.0
    %4708 = vmatprep.subr.mxu0 0.0
    %4709 = vmatpush1.msra.mxu0 0.0
    %4710 = vmatprep.subr.mxu0 0.0
    %4711 = vmatpush1.msra.mxu0 0.0
    %4712 = vmatprep.subr.mxu0 0.0
    %4713 = vmatpush1.msra.mxu0 0.0
    %4714 = vmatprep.subr.mxu0 0.0
    %4715 = vmatpush1.msra.mxu0 0.0
    %4716 = vmatprep.subr.mxu0 0.0
    %4717 = vmatpush1.msra.mxu0 0.0
    %4718 = vmatprep.subr.mxu0 0.0
    %4719 = vmatpush1.msra.mxu0 0.0
    %4720 = vmatprep.subr.mxu0 0.0
    %4721 = vmatpush1.msra.mxu0 0.0
    %4722 = vmatprep.subr.mxu0 0.0
    %4723 = vmatpush1.msra.mxu0 0.0
    %4724 = vmatprep.subr.mxu0 0.0
    %4725 = vmatpush1.msra.mxu0 0.0
    %4726 = vmatprep.subr.mxu0 0.0
    %4727 = vmatpush1.msra.mxu0 0.0
    %4728 = vmatprep.subr.mxu0 0.0
    %4729 = vmatpush1.msra.mxu0 0.0
    %4730 = vmatprep.subr.mxu0 0.0
    %4731 = vmatpush1.msra.mxu0 0.0
    %4732 = vmatprep.subr.mxu0 0.0
    %4733 = vmatpush1.msra.mxu0 0.0
    %4734 = vmatprep.subr.mxu0 0.0
    %4735 = vmatpush1.msra.mxu0 0.0
    %4736 = vmatprep.subr.mxu0 0.0
    %4737 = vmatpush1.msra.mxu0 0.0
    %4738 = vmatprep.subr.mxu0 0.0
    %4739 = vmatpush1.msra.mxu0 0.0
    %4740 = vmatprep.subr.mxu0 0.0
    %4741 = vmatpush1.msra.mxu0 0.0
    %4742 = vmatprep.mubr.f32.mxu0 0.0
    %v4743 = vand.u32 %v4222, 4294901760
    %4744 = vmatmul.mubr.f32.gmra.mrb[0].mxu0 %v4743
    %v4745 = vpop.f32.mrb[0].mxu0
    %v4746 = vadd.f32 %v4665, %v4745
    %v4747 = vpop.f32.mrb[0].mxu0
    %4748 = vmatprep.mubr.f32.mxu0 0.0
    %v4749 = vand.u32 %v4225, 4294901760
    %4750 = vmatmul.mubr.f32.gmra.mrb[0].mxu0 %v4749
    %v4751 = vpop.f32.mrb[0].mxu0
    %v4752 = vadd.f32 %v4671, %v4751
    %v4753 = vpop.f32.mrb[0].mxu0
    %4754 = vdwg.mxu0
    %v4755 = vld [vmem:[%s7] sm:$0xff]
    %v4756 = vld [vmem:[%s7 + $0x8] sm:$0xff]
    %v4757 = vld [vmem:[%s7 + $0x10] sm:$0xff]
    %v4758 = vld [vmem:[%s7 + $0x18] sm:$0xff]
    %v4759 = vld [vmem:[#allocation11] sm:$0x1]
    %v4761 = vlaneseq
    %v4762 = vshrl.u32 %v4761, 7
    %v4763 = vsub.s32 0, %v4762
    %v4764 = vrot.slane %v4759, %v4763
    %v4766 = vsel %vm163, %v3312, 0
    %v4768 = vsel %vm163, %v3762, 0
    %4770 = vmatprep.subr.mxu0 0.0
    %v4771 = vand.u32 %v4755, 4294901760
    %4772 = vmatpush1.msra.mxu0 %v4771
    %4773 = vmatprep.subr.mxu0 0.0
    %v4774 = vand.u32 %v4756, 4294901760
    %4775 = vmatpush1.msra.mxu0 %v4774
    %4776 = vmatprep.subr.mxu0 0.0
    %v4777 = vand.u32 %v4757, 4294901760
    %4778 = vmatpush1.msra.mxu0 %v4777
    %4779 = vmatprep.subr.mxu0 0.0
    %v4780 = vand.u32 %v4758, 4294901760
    %4781 = vmatpush1.msra.mxu0 %v4780
    %4782 = vmatprep.subr.mxu0 0.0
    %4783 = vmatpush1.msra.mxu0 0.0
    %4784 = vmatprep.subr.mxu0 0.0
    %4785 = vmatpush1.msra.mxu0 0.0
    %4786 = vmatprep.subr.mxu0 0.0
    %4787 = vmatpush1.msra.mxu0 0.0
    %4788 = vmatprep.subr.mxu0 0.0
    %4789 = vmatpush1.msra.mxu0 0.0
    %4790 = vmatprep.subr.mxu0 0.0
    %4791 = vmatpush1.msra.mxu0 0.0
    %4792 = vmatprep.subr.mxu0 0.0
    %4793 = vmatpush1.msra.mxu0 0.0
    %4794 = vmatprep.subr.mxu0 0.0
    %4795 = vmatpush1.msra.mxu0 0.0
    %4796 = vmatprep.subr.mxu0 0.0
    %4797 = vmatpush1.msra.mxu0 0.0
    %4798 = vmatprep.subr.mxu0 0.0
    %4799 = vmatpush1.msra.mxu0 0.0
    %4800 = vmatprep.subr.mxu0 0.0
    %4801 = vmatpush1.msra.mxu0 0.0
    %4802 = vmatprep.subr.mxu0 0.0
    %4803 = vmatpush1.msra.mxu0 0.0
    %4804 = vmatprep.subr.mxu0 0.0
    %4805 = vmatpush1.msra.mxu0 0.0
    %4806 = vmatprep.subr.mxu0 0.0
    %4807 = vmatpush1.msra.mxu0 0.0
    %4808 = vmatprep.subr.mxu0 0.0
    %4809 = vmatpush1.msra.mxu0 0.0
    %4810 = vmatprep.subr.mxu0 0.0
    %4811 = vmatpush1.msra.mxu0 0.0
    %4812 = vmatprep.subr.mxu0 0.0
    %4813 = vmatpush1.msra.mxu0 0.0
    %4814 = vmatprep.subr.mxu0 0.0
    %4815 = vmatpush1.msra.mxu0 0.0
    %4816 = vmatprep.subr.mxu0 0.0
    %4817 = vmatpush1.msra.mxu0 0.0
    %4818 = vmatprep.subr.mxu0 0.0
    %4819 = vmatpush1.msra.mxu0 0.0
    %4820 = vmatprep.subr.mxu0 0.0
    %4821 = vmatpush1.msra.mxu0 0.0
    %4822 = vmatprep.subr.mxu0 0.0
    %4823 = vmatpush1.msra.mxu0 0.0
    %4824 = vmatprep.subr.mxu0 0.0
    %4825 = vmatpush1.msra.mxu0 0.0
    %4826 = vmatprep.subr.mxu0 0.0
    %4827 = vmatpush1.msra.mxu0 0.0
    %4828 = vmatprep.subr.mxu0 0.0
    %4829 = vmatpush1.msra.mxu0 0.0
    %4830 = vmatprep.subr.mxu0 0.0
    %4831 = vmatpush1.msra.mxu0 0.0
    %4832 = vmatprep.subr.mxu0 0.0
    %4833 = vmatpush1.msra.mxu0 0.0
    %4834 = vmatprep.subr.mxu0 0.0
    %4835 = vmatpush1.msra.mxu0 0.0
    %4836 = vmatprep.subr.mxu0 0.0
    %4837 = vmatpush1.msra.mxu0 0.0
    %4838 = vmatprep.mubr.f32.mxu0 0.0
    %v4839 = vand.u32 %v4766, 4294901760
    %v4840 = vsub.f32 %v4766, %v4839
    %v4841 = vand.u32 %v4840, 4294901760
    %v4842 = vsub.f32 %v4840, %v4841
    %v4843 = vand.u32 %v4842, 4294901760
    %4844 = vmatmul.mubr.f32.gmra.mrb[0].mxu0 %v4843
    %v4845 = vpop.f32.mrb[0].mxu0
    %v4846 = vadd.f32 %v4764, %v4845
    %v4847 = vpop.f32.mrb[0].mxu0
    %4848 = vmatprep.mubr.f32.mxu0 0.0
    %v4849 = vand.u32 %v4768, 4294901760
    %v4850 = vsub.f32 %v4768, %v4849
    %v4851 = vand.u32 %v4850, 4294901760
    %v4852 = vsub.f32 %v4850, %v4851
    %v4853 = vand.u32 %v4852, 4294901760
    %4854 = vmatmul.mubr.f32.gmra.mrb[0].mxu0 %v4853
    %v4855 = vpop.f32.mrb[0].mxu0
    %v4856 = vadd.f32 %v4764, %v4855
    %v4857 = vpop.f32.mrb[0].mxu0
    %4858 = vdwg.mxu0
    %4859 = vmatprep.subr.mxu0 0.0
    %v4860 = vand.u32 %v4755, 4294901760
    %v4861 = vsub.f32 %v4755, %v4860
    %v4862 = vand.u32 %v4861, 4294901760
    %v4863 = vsub.f32 %v4861, %v4862
    %v4864 = vand.u32 %v4863, 4294901760
    %4865 = vmatpush1.msra.mxu0 %v4864
    %4866 = vmatprep.subr.mxu0 0.0
    %v4867 = vand.u32 %v4756, 4294901760
    %v4868 = vsub.f32 %v4756, %v4867
    %v4869 = vand.u32 %v4868, 4294901760
    %v4870 = vsub.f32 %v4868, %v4869
    %v4871 = vand.u32 %v4870, 4294901760
    %4872 = vmatpush1.msra.mxu0 %v4871
    %4873 = vmatprep.subr.mxu0 0.0
    %v4874 = vand.u32 %v4757, 4294901760
    %v4875 = vsub.f32 %v4757, %v4874
    %v4876 = vand.u32 %v4875, 4294901760
    %v4877 = vsub.f32 %v4875, %v4876
    %v4878 = vand.u32 %v4877, 4294901760
    %4879 = vmatpush1.msra.mxu0 %v4878
    %4880 = vmatprep.subr.mxu0 0.0
    %v4881 = vand.u32 %v4758, 4294901760
    %v4882 = vsub.f32 %v4758, %v4881
    %v4883 = vand.u32 %v4882, 4294901760
    %v4884 = vsub.f32 %v4882, %v4883
    %v4885 = vand.u32 %v4884, 4294901760
    %4886 = vmatpush1.msra.mxu0 %v4885
    %4887 = vmatprep.subr.mxu0 0.0
    %4888 = vmatpush1.msra.mxu0 0.0
    %4889 = vmatprep.subr.mxu0 0.0
    %4890 = vmatpush1.msra.mxu0 0.0
    %4891 = vmatprep.subr.mxu0 0.0
    %4892 = vmatpush1.msra.mxu0 0.0
    %4893 = vmatprep.subr.mxu0 0.0
    %4894 = vmatpush1.msra.mxu0 0.0
    %4895 = vmatprep.subr.mxu0 0.0
    %4896 = vmatpush1.msra.mxu0 0.0
    %4897 = vmatprep.subr.mxu0 0.0
    %4898 = vmatpush1.msra.mxu0 0.0
    %4899 = vmatprep.subr.mxu0 0.0
    %4900 = vmatpush1.msra.mxu0 0.0
    %4901 = vmatprep.subr.mxu0 0.0
    %4902 = vmatpush1.msra.mxu0 0.0
    %4903 = vmatprep.subr.mxu0 0.0
    %4904 = vmatpush1.msra.mxu0 0.0
    %4905 = vmatprep.subr.mxu0 0.0
    %4906 = vmatpush1.msra.mxu0 0.0
    %4907 = vmatprep.subr.mxu0 0.0
    %4908 = vmatpush1.msra.mxu0 0.0
    %4909 = vmatprep.subr.mxu0 0.0
    %4910 = vmatpush1.msra.mxu0 0.0
    %4911 = vmatprep.subr.mxu0 0.0
    %4912 = vmatpush1.msra.mxu0 0.0
    %4913 = vmatprep.subr.mxu0 0.0
    %4914 = vmatpush1.msra.mxu0 0.0
    %4915 = vmatprep.subr.mxu0 0.0
    %4916 = vmatpush1.msra.mxu0 0.0
    %4917 = vmatprep.subr.mxu0 0.0
    %4918 = vmatpush1.msra.mxu0 0.0
    %4919 = vmatprep.subr.mxu0 0.0
    %4920 = vmatpush1.msra.mxu0 0.0
    %4921 = vmatprep.subr.mxu0 0.0
    %4922 = vmatpush1.msra.mxu0 0.0
    %4923 = vmatprep.subr.mxu0 0.0
    %4924 = vmatpush1.msra.mxu0 0.0
    %4925 = vmatprep.subr.mxu0 0.0
    %4926 = vmatpush1.msra.mxu0 0.0
    %4927 = vmatprep.subr.mxu0 0.0
    %4928 = vmatpush1.msra.mxu0 0.0
    %4929 = vmatprep.subr.mxu0 0.0
    %4930 = vmatpush1.msra.mxu0 0.0
    %4931 = vmatprep.subr.mxu0 0.0
    %4932 = vmatpush1.msra.mxu0 0.0
    %4933 = vmatprep.subr.mxu0 0.0
    %4934 = vmatpush1.msra.mxu0 0.0
    %4935 = vmatprep.subr.mxu0 0.0
    %4936 = vmatpush1.msra.mxu0 0.0
    %4937 = vmatprep.subr.mxu0 0.0
    %4938 = vmatpush1.msra.mxu0 0.0
    %4939 = vmatprep.subr.mxu0 0.0
    %4940 = vmatpush1.msra.mxu0 0.0
    %4941 = vmatprep.subr.mxu0 0.0
    %4942 = vmatpush1.msra.mxu0 0.0
    %4943 = vmatprep.mubr.f32.mxu0 0.0
    %v4944 = vand.u32 %v4766, 4294901760
    %4945 = vmatmul.mubr.f32.gmra.mrb[0].mxu0 %v4944
    %v4946 = vpop.f32.mrb[0].mxu0
    %v4947 = vadd.f32 %v4846, %v4946
    %v4948 = vpop.f32.mrb[0].mxu0
    %4949 = vmatprep.mubr.f32.mxu0 0.0
    %v4950 = vand.u32 %v4768, 4294901760
    %4951 = vmatmul.mubr.f32.gmra.mrb[0].mxu0 %v4950
    %v4952 = vpop.f32.mrb[0].mxu0
    %v4953 = vadd.f32 %v4856, %v4952
    %v4954 = vpop.f32.mrb[0].mxu0
    %4955 = vdwg.mxu0
    %4956 = vmatprep.subr.mxu0 0.0
    %v4957 = vand.u32 %v4755, 4294901760
    %v4958 = vsub.f32 %v4755, %v4957
    %4959 = vmatpush1.msra.mxu0 %v4958
    %4960 = vmatprep.subr.mxu0 0.0
    %v4961 = vand.u32 %v4756, 4294901760
    %v4962 = vsub.f32 %v4756, %v4961
    %4963 = vmatpush1.msra.mxu0 %v4962
    %4964 = vmatprep.subr.mxu0 0.0
    %v4965 = vand.u32 %v4757, 4294901760
    %v4966 = vsub.f32 %v4757, %v4965
    %4967 = vmatpush1.msra.mxu0 %v4966
    %4968 = vmatprep.subr.mxu0 0.0
    %v4969 = vand.u32 %v4758, 4294901760
    %v4970 = vsub.f32 %v4758, %v4969
    %4971 = vmatpush1.msra.mxu0 %v4970
    %4972 = vmatprep.subr.mxu0 0.0
    %4973 = vmatpush1.msra.mxu0 0.0
    %4974 = vmatprep.subr.mxu0 0.0
    %4975 = vmatpush1.msra.mxu0 0.0
    %4976 = vmatprep.subr.mxu0 0.0
    %4977 = vmatpush1.msra.mxu0 0.0
    %4978 = vmatprep.subr.mxu0 0.0
    %4979 = vmatpush1.msra.mxu0 0.0
    %4980 = vmatprep.subr.mxu0 0.0
    %4981 = vmatpush1.msra.mxu0 0.0
    %4982 = vmatprep.subr.mxu0 0.0
    %4983 = vmatpush1.msra.mxu0 0.0
    %4984 = vmatprep.subr.mxu0 0.0
    %4985 = vmatpush1.msra.mxu0 0.0
    %4986 = vmatprep.subr.mxu0 0.0
    %4987 = vmatpush1.msra.mxu0 0.0
    %4988 = vmatprep.subr.mxu0 0.0
    %4989 = vmatpush1.msra.mxu0 0.0
    %4990 = vmatprep.subr.mxu0 0.0
    %4991 = vmatpush1.msra.mxu0 0.0
    %4992 = vmatprep.subr.mxu0 0.0
    %4993 = vmatpush1.msra.mxu0 0.0
    %4994 = vmatprep.subr.mxu0 0.0
    %4995 = vmatpush1.msra.mxu0 0.0
    %4996 = vmatprep.subr.mxu0 0.0
    %4997 = vmatpush1.msra.mxu0 0.0
    %4998 = vmatprep.subr.mxu0 0.0
    %4999 = vmatpush1.msra.mxu0 0.0
    %5000 = vmatprep.subr.mxu0 0.0
    %5001 = vmatpush1.msra.mxu0 0.0
    %5002 = vmatprep.subr.mxu0 0.0
    %5003 = vmatpush1.msra.mxu0 0.0
    %5004 = vmatprep.subr.mxu0 0.0
    %5005 = vmatpush1.msra.mxu0 0.0
    %5006 = vmatprep.subr.mxu0 0.0
    %5007 = vmatpush1.msra.mxu0 0.0
    %5008 = vmatprep.subr.mxu0 0.0
    %5009 = vmatpush1.msra.mxu0 0.0
    %5010 = vmatprep.subr.mxu0 0.0
    %5011 = vmatpush1.msra.mxu0 0.0
    %5012 = vmatprep.subr.mxu0 0.0
    %5013 = vmatpush1.msra.mxu0 0.0
    %5014 = vmatprep.subr.mxu0 0.0
    %5015 = vmatpush1.msra.mxu0 0.0
    %5016 = vmatprep.subr.mxu0 0.0
    %5017 = vmatpush1.msra.mxu0 0.0
    %5018 = vmatprep.subr.mxu0 0.0
    %5019 = vmatpush1.msra.mxu0 0.0
    %5020 = vmatprep.subr.mxu0 0.0
    %5021 = vmatpush1.msra.mxu0 0.0
    %5022 = vmatprep.subr.mxu0 0.0
    %5023 = vmatpush1.msra.mxu0 0.0
    %5024 = vmatprep.subr.mxu0 0.0
    %5025 = vmatpush1.msra.mxu0 0.0
    %5026 = vmatprep.subr.mxu0 0.0
    %5027 = vmatpush1.msra.mxu0 0.0
    %5028 = vmatprep.mubr.f32.mxu0 0.0
    %v5029 = vand.u32 %v4766, 4294901760
    %v5030 = vsub.f32 %v4766, %v5029
    %5031 = vmatmul.mubr.f32.gmra.mrb[0].mxu0 %v5030
    %v5032 = vpop.f32.mrb[0].mxu0
    %v5033 = vadd.f32 %v4947, %v5032
    %v5034 = vpop.f32.mrb[0].mxu0
    %5035 = vmatprep.mubr.f32.mxu0 0.0
    %v5036 = vand.u32 %v4768, 4294901760
    %v5037 = vsub.f32 %v4768, %v5036
    %5038 = vmatmul.mubr.f32.gmra.mrb[0].mxu0 %v5037
    %v5039 = vpop.f32.mrb[0].mxu0
    %v5040 = vadd.f32 %v4953, %v5039
    %v5041 = vpop.f32.mrb[0].mxu0
    %5042 = vdwg.mxu0
    %5043 = vmatprep.subr.mxu0 0.0
    %v5044 = vand.u32 %v4755, 4294901760
    %5045 = vmatpush1.msra.mxu0 %v5044
    %5046 = vmatprep.subr.mxu0 0.0
    %v5047 = vand.u32 %v4756, 4294901760
    %5048 = vmatpush1.msra.mxu0 %v5047
    %5049 = vmatprep.subr.mxu0 0.0
    %v5050 = vand.u32 %v4757, 4294901760
    %5051 = vmatpush1.msra.mxu0 %v5050
    %5052 = vmatprep.subr.mxu0 0.0
    %v5053 = vand.u32 %v4758, 4294901760
    %5054 = vmatpush1.msra.mxu0 %v5053
    %5055 = vmatprep.subr.mxu0 0.0
    %5056 = vmatpush1.msra.mxu0 0.0
    %5057 = vmatprep.subr.mxu0 0.0
    %5058 = vmatpush1.msra.mxu0 0.0
    %5059 = vmatprep.subr.mxu0 0.0
    %5060 = vmatpush1.msra.mxu0 0.0
    %5061 = vmatprep.subr.mxu0 0.0
    %5062 = vmatpush1.msra.mxu0 0.0
    %5063 = vmatprep.subr.mxu0 0.0
    %5064 = vmatpush1.msra.mxu0 0.0
    %5065 = vmatprep.subr.mxu0 0.0
    %5066 = vmatpush1.msra.mxu0 0.0
    %5067 = vmatprep.subr.mxu0 0.0
    %5068 = vmatpush1.msra.mxu0 0.0
    %5069 = vmatprep.subr.mxu0 0.0
    %5070 = vmatpush1.msra.mxu0 0.0
    %5071 = vmatprep.subr.mxu0 0.0
    %5072 = vmatpush1.msra.mxu0 0.0
    %5073 = vmatprep.subr.mxu0 0.0
    %5074 = vmatpush1.msra.mxu0 0.0
    %5075 = vmatprep.subr.mxu0 0.0
    %5076 = vmatpush1.msra.mxu0 0.0
    %5077 = vmatprep.subr.mxu0 0.0
    %5078 = vmatpush1.msra.mxu0 0.0
    %5079 = vmatprep.subr.mxu0 0.0
    %5080 = vmatpush1.msra.mxu0 0.0
    %5081 = vmatprep.subr.mxu0 0.0
    %5082 = vmatpush1.msra.mxu0 0.0
    %5083 = vmatprep.subr.mxu0 0.0
    %5084 = vmatpush1.msra.mxu0 0.0
    %5085 = vmatprep.subr.mxu0 0.0
    %5086 = vmatpush1.msra.mxu0 0.0
    %5087 = vmatprep.subr.mxu0 0.0
    %5088 = vmatpush1.msra.mxu0 0.0
    %5089 = vmatprep.subr.mxu0 0.0
    %5090 = vmatpush1.msra.mxu0 0.0
    %5091 = vmatprep.subr.mxu0 0.0
    %5092 = vmatpush1.msra.mxu0 0.0
    %5093 = vmatprep.subr.mxu0 0.0
    %5094 = vmatpush1.msra.mxu0 0.0
    %5095 = vmatprep.subr.mxu0 0.0
    %5096 = vmatpush1.msra.mxu0 0.0
    %5097 = vmatprep.subr.mxu0 0.0
    %5098 = vmatpush1.msra.mxu0 0.0
    %5099 = vmatprep.subr.mxu0 0.0
    %5100 = vmatpush1.msra.mxu0 0.0
    %5101 = vmatprep.subr.mxu0 0.0
    %5102 = vmatpush1.msra.mxu0 0.0
    %5103 = vmatprep.subr.mxu0 0.0
    %5104 = vmatpush1.msra.mxu0 0.0
    %5105 = vmatprep.subr.mxu0 0.0
    %5106 = vmatpush1.msra.mxu0 0.0
    %5107 = vmatprep.subr.mxu0 0.0
    %5108 = vmatpush1.msra.mxu0 0.0
    %5109 = vmatprep.subr.mxu0 0.0
    %5110 = vmatpush1.msra.mxu0 0.0
    %5111 = vmatprep.mubr.f32.mxu0 0.0
    %v5112 = vand.u32 %v4766, 4294901760
    %v5113 = vsub.f32 %v4766, %v5112
    %v5114 = vand.u32 %v5113, 4294901760
    %5115 = vmatmul.mubr.f32.gmra.mrb[0].mxu0 %v5114
    %v5116 = vpop.f32.mrb[0].mxu0
    %v5117 = vadd.f32 %v5033, %v5116
    %v5118 = vpop.f32.mrb[0].mxu0
    %5119 = vmatprep.mubr.f32.mxu0 0.0
    %v5120 = vand.u32 %v4768, 4294901760
    %v5121 = vsub.f32 %v4768, %v5120
    %v5122 = vand.u32 %v5121, 4294901760
    %5123 = vmatmul.mubr.f32.gmra.mrb[0].mxu0 %v5122
    %v5124 = vpop.f32.mrb[0].mxu0
    %v5125 = vadd.f32 %v5040, %v5124
    %v5126 = vpop.f32.mrb[0].mxu0
    %5127 = vdwg.mxu0
    %5128 = vmatprep.subr.mxu0 0.0
    %v5129 = vand.u32 %v4755, 4294901760
    %v5130 = vsub.f32 %v4755, %v5129
    %v5131 = vand.u32 %v5130, 4294901760
    %5132 = vmatpush1.msra.mxu0 %v5131
    %5133 = vmatprep.subr.mxu0 0.0
    %v5134 = vand.u32 %v4756, 4294901760
    %v5135 = vsub.f32 %v4756, %v5134
    %v5136 = vand.u32 %v5135, 4294901760
    %5137 = vmatpush1.msra.mxu0 %v5136
    %5138 = vmatprep.subr.mxu0 0.0
    %v5139 = vand.u32 %v4757, 4294901760
    %v5140 = vsub.f32 %v4757, %v5139
    %v5141 = vand.u32 %v5140, 4294901760
    %5142 = vmatpush1.msra.mxu0 %v5141
    %5143 = vmatprep.subr.mxu0 0.0
    %v5144 = vand.u32 %v4758, 4294901760
    %v5145 = vsub.f32 %v4758, %v5144
    %v5146 = vand.u32 %v5145, 4294901760
    %5147 = vmatpush1.msra.mxu0 %v5146
    %5148 = vmatprep.subr.mxu0 0.0
    %5149 = vmatpush1.msra.mxu0 0.0
    %5150 = vmatprep.subr.mxu0 0.0
    %5151 = vmatpush1.msra.mxu0 0.0
    %5152 = vmatprep.subr.mxu0 0.0
    %5153 = vmatpush1.msra.mxu0 0.0
    %5154 = vmatprep.subr.mxu0 0.0
    %5155 = vmatpush1.msra.mxu0 0.0
    %5156 = vmatprep.subr.mxu0 0.0
    %5157 = vmatpush1.msra.mxu0 0.0
    %5158 = vmatprep.subr.mxu0 0.0
    %5159 = vmatpush1.msra.mxu0 0.0
    %5160 = vmatprep.subr.mxu0 0.0
    %5161 = vmatpush1.msra.mxu0 0.0
    %5162 = vmatprep.subr.mxu0 0.0
    %5163 = vmatpush1.msra.mxu0 0.0
    %5164 = vmatprep.subr.mxu0 0.0
    %5165 = vmatpush1.msra.mxu0 0.0
    %5166 = vmatprep.subr.mxu0 0.0
    %5167 = vmatpush1.msra.mxu0 0.0
    %5168 = vmatprep.subr.mxu0 0.0
    %5169 = vmatpush1.msra.mxu0 0.0
    %5170 = vmatprep.subr.mxu0 0.0
    %5171 = vmatpush1.msra.mxu0 0.0
    %5172 = vmatprep.subr.mxu0 0.0
    %5173 = vmatpush1.msra.mxu0 0.0
    %5174 = vmatprep.subr.mxu0 0.0
    %5175 = vmatpush1.msra.mxu0 0.0
    %5176 = vmatprep.subr.mxu0 0.0
    %5177 = vmatpush1.msra.mxu0 0.0
    %5178 = vmatprep.subr.mxu0 0.0
    %5179 = vmatpush1.msra.mxu0 0.0
    %5180 = vmatprep.subr.mxu0 0.0
    %5181 = vmatpush1.msra.mxu0 0.0
    %5182 = vmatprep.subr.mxu0 0.0
    %5183 = vmatpush1.msra.mxu0 0.0
    %5184 = vmatprep.subr.mxu0 0.0
    %5185 = vmatpush1.msra.mxu0 0.0
    %5186 = vmatprep.subr.mxu0 0.0
    %5187 = vmatpush1.msra.mxu0 0.0
    %5188 = vmatprep.subr.mxu0 0.0
    %5189 = vmatpush1.msra.mxu0 0.0
    %5190 = vmatprep.subr.mxu0 0.0
    %5191 = vmatpush1.msra.mxu0 0.0
    %5192 = vmatprep.subr.mxu0 0.0
    %5193 = vmatpush1.msra.mxu0 0.0
    %5194 = vmatprep.subr.mxu0 0.0
    %5195 = vmatpush1.msra.mxu0 0.0
    %5196 = vmatprep.subr.mxu0 0.0
    %5197 = vmatpush1.msra.mxu0 0.0
    %5198 = vmatprep.subr.mxu0 0.0
    %5199 = vmatpush1.msra.mxu0 0.0
    %5200 = vmatprep.subr.mxu0 0.0
    %5201 = vmatpush1.msra.mxu0 0.0
    %5202 = vmatprep.subr.mxu0 0.0
    %5203 = vmatpush1.msra.mxu0 0.0
    %5204 = vmatprep.mubr.f32.mxu0 0.0
    %v5205 = vand.u32 %v4766, 4294901760
    %5206 = vmatmul.mubr.f32.gmra.mrb[0].mxu0 %v5205
    %v5207 = vpop.f32.mrb[0].mxu0
    %v5208 = vadd.f32 %v5117, %v5207
    %v5209 = vpop.f32.mrb[0].mxu0
    %5210 = vmatprep.mubr.f32.mxu0 0.0
    %v5211 = vand.u32 %v4768, 4294901760
    %5212 = vmatmul.mubr.f32.gmra.mrb[0].mxu0 %v5211
    %v5213 = vpop.f32.mrb[0].mxu0
    %v5214 = vadd.f32 %v5125, %v5213
    %v5215 = vpop.f32.mrb[0].mxu0
    %5216 = vdwg.mxu0
    %5217 = vmatprep.subr.mxu0 0.0
    %v5218 = vand.u32 %v4755, 4294901760
    %5219 = vmatpush1.msra.mxu0 %v5218
    %5220 = vmatprep.subr.mxu0 0.0
    %v5221 = vand.u32 %v4756, 4294901760
    %5222 = vmatpush1.msra.mxu0 %v5221
    %5223 = vmatprep.subr.mxu0 0.0
    %v5224 = vand.u32 %v4757, 4294901760
    %5225 = vmatpush1.msra.mxu0 %v5224
    %5226 = vmatprep.subr.mxu0 0.0
    %v5227 = vand.u32 %v4758, 4294901760
    %5228 = vmatpush1.msra.mxu0 %v5227
    %5229 = vmatprep.subr.mxu0 0.0
    %5230 = vmatpush1.msra.mxu0 0.0
    %5231 = vmatprep.subr.mxu0 0.0
    %5232 = vmatpush1.msra.mxu0 0.0
    %5233 = vmatprep.subr.mxu0 0.0
    %5234 = vmatpush1.msra.mxu0 0.0
    %5235 = vmatprep.subr.mxu0 0.0
    %5236 = vmatpush1.msra.mxu0 0.0
    %5237 = vmatprep.subr.mxu0 0.0
    %5238 = vmatpush1.msra.mxu0 0.0
    %5239 = vmatprep.subr.mxu0 0.0
    %5240 = vmatpush1.msra.mxu0 0.0
    %5241 = vmatprep.subr.mxu0 0.0
    %5242 = vmatpush1.msra.mxu0 0.0
    %5243 = vmatprep.subr.mxu0 0.0
    %5244 = vmatpush1.msra.mxu0 0.0
    %5245 = vmatprep.subr.mxu0 0.0
    %5246 = vmatpush1.msra.mxu0 0.0
    %5247 = vmatprep.subr.mxu0 0.0
    %5248 = vmatpush1.msra.mxu0 0.0
    %5249 = vmatprep.subr.mxu0 0.0
    %5250 = vmatpush1.msra.mxu0 0.0
    %5251 = vmatprep.subr.mxu0 0.0
    %5252 = vmatpush1.msra.mxu0 0.0
    %5253 = vmatprep.subr.mxu0 0.0
    %5254 = vmatpush1.msra.mxu0 0.0
    %5255 = vmatprep.subr.mxu0 0.0
    %5256 = vmatpush1.msra.mxu0 0.0
    %5257 = vmatprep.subr.mxu0 0.0
    %5258 = vmatpush1.msra.mxu0 0.0
    %5259 = vmatprep.subr.mxu0 0.0
    %5260 = vmatpush1.msra.mxu0 0.0
    %5261 = vmatprep.subr.mxu0 0.0
    %5262 = vmatpush1.msra.mxu0 0.0
    %5263 = vmatprep.subr.mxu0 0.0
    %5264 = vmatpush1.msra.mxu0 0.0
    %5265 = vmatprep.subr.mxu0 0.0
    %5266 = vmatpush1.msra.mxu0 0.0
    %5267 = vmatprep.subr.mxu0 0.0
    %5268 = vmatpush1.msra.mxu0 0.0
    %5269 = vmatprep.subr.mxu0 0.0
    %5270 = vmatpush1.msra.mxu0 0.0
    %5271 = vmatprep.subr.mxu0 0.0
    %5272 = vmatpush1.msra.mxu0 0.0
    %5273 = vmatprep.subr.mxu0 0.0
    %5274 = vmatpush1.msra.mxu0 0.0
    %5275 = vmatprep.subr.mxu0 0.0
    %5276 = vmatpush1.msra.mxu0 0.0
    %5277 = vmatprep.subr.mxu0 0.0
    %5278 = vmatpush1.msra.mxu0 0.0
    %5279 = vmatprep.subr.mxu0 0.0
    %5280 = vmatpush1.msra.mxu0 0.0
    %5281 = vmatprep.subr.mxu0 0.0
    %5282 = vmatpush1.msra.mxu0 0.0
    %5283 = vmatprep.subr.mxu0 0.0
    %5284 = vmatpush1.msra.mxu0 0.0
    %5285 = vmatprep.mubr.f32.mxu0 0.0
    %v5286 = vand.u32 %v4766, 4294901760
    %5287 = vmatmul.mubr.f32.gmra.mrb[0].mxu0 %v5286
    %v5288 = vpop.f32.mrb[0].mxu0
    %v5289 = vadd.f32 %v5208, %v5288
    %v5290 = vpop.f32.mrb[0].mxu0
    %5291 = vmatprep.mubr.f32.mxu0 0.0
    %v5292 = vand.u32 %v4768, 4294901760
    %5293 = vmatmul.mubr.f32.gmra.mrb[0].mxu0 %v5292
    %v5294 = vpop.f32.mrb[0].mxu0
    %v5295 = vadd.f32 %v5214, %v5294
    %v5296 = vpop.f32.mrb[0].mxu0
    %5297 = vdwg.mxu0
    %v5298 = vadd.f32 %v4746, %v5289
    %v5299 = vadd.f32 %v4752, %v5295
    %v5300 = vxor.u32 %v5298, 2147483648
    %v5301 = vxor.u32 %v5299, 2147483648
    %v5302 = vmul.f32 %v5300, 1.442695
    %v5303 = vpow.pop %v5302
    %v5304 = vmul.f32 %v5301, 1.442695
    %v5305 = vpow.pop %v5304
    %v5306 = vadd.f32 %v5303, 1.0
    %v5307 = vadd.f32 %v5305, 1.0
    %v5308 = vrcp.pop %v5306
    %v5309 = vmul.f32 1.0, %v5308
    %v5310 = vrcp.pop %v5307
    %v5311 = vmul.f32 1.0, %v5310
    %5312 = vrot.lane.b32.xlu0 %v3308, 96
    %v5313 = vpop.permute.xlu0 %5312
    %5314 = vrot.lane.b32.xlu0 %v3309, 96
    %v5315 = vpop.permute.xlu0 %5314
    %v5318 = vmul.f32 %v5309, %v5313
    %v5319 = vmul.f32 %v5311, %v5315
    %v5320 = vld [vmem:[%s9] sm:$0xff]
    %v5321 = vld [vmem:[%s9 + $0x8] sm:$0xff]
    %v5322 = vld [vmem:[%s9 + $0x10] sm:$0xff]
    %v5323 = vld [vmem:[%s9 + $0x18] sm:$0xff]
    %v5324 = vld [vmem:[#allocation12] sm:$0x1]
    %v5326 = vlaneseq
    %v5327 = vshrl.u32 %v5326, 7
    %v5328 = vsub.s32 0, %v5327
    %v5329 = vrot.slane %v5324, %v5328
    %5333 = vrot.lane.b32.xlu0 %v5318, 96
    %v5334 = vpop.permute.xlu0 %5333
    %5335 = vrot.lane.b32.xlu0 %v5319, 96
    %v5336 = vpop.permute.xlu0 %5335
    %v5337 = vsel %vm163, %v5334, 0
    %v5339 = vsel %vm163, %v5336, 0
    %5341 = vmatprep.subr.mxu0 0.0
    %v5342 = vand.u32 %v5320, 4294901760
    %5343 = vmatpush1.msra.mxu0 %v5342
    %5344 = vmatprep.subr.mxu0 0.0
    %v5345 = vand.u32 %v5321, 4294901760
    %5346 = vmatpush1.msra.mxu0 %v5345
    %5347 = vmatprep.subr.mxu0 0.0
    %v5348 = vand.u32 %v5322, 4294901760
    %5349 = vmatpush1.msra.mxu0 %v5348
    %5350 = vmatprep.subr.mxu0 0.0
    %v5351 = vand.u32 %v5323, 4294901760
    %5352 = vmatpush1.msra.mxu0 %v5351
    %5353 = vmatprep.subr.mxu0 0.0
    %5354 = vmatpush1.msra.mxu0 0.0
    %5355 = vmatprep.subr.mxu0 0.0
    %5356 = vmatpush1.msra.mxu0 0.0
    %5357 = vmatprep.subr.mxu0 0.0
    %5358 = vmatpush1.msra.mxu0 0.0
    %5359 = vmatprep.subr.mxu0 0.0
    %5360 = vmatpush1.msra.mxu0 0.0
    %5361 = vmatprep.subr.mxu0 0.0
    %5362 = vmatpush1.msra.mxu0 0.0
    %5363 = vmatprep.subr.mxu0 0.0
    %5364 = vmatpush1.msra.mxu0 0.0
    %5365 = vmatprep.subr.mxu0 0.0
    %5366 = vmatpush1.msra.mxu0 0.0
    %5367 = vmatprep.subr.mxu0 0.0
    %5368 = vmatpush1.msra.mxu0 0.0
    %5369 = vmatprep.subr.mxu0 0.0
    %5370 = vmatpush1.msra.mxu0 0.0
    %5371 = vmatprep.subr.mxu0 0.0
    %5372 = vmatpush1.msra.mxu0 0.0
    %5373 = vmatprep.subr.mxu0 0.0
    %5374 = vmatpush1.msra.mxu0 0.0
    %5375 = vmatprep.subr.mxu0 0.0
    %5376 = vmatpush1.msra.mxu0 0.0
    %5377 = vmatprep.subr.mxu0 0.0
    %5378 = vmatpush1.msra.mxu0 0.0
    %5379 = vmatprep.subr.mxu0 0.0
    %5380 = vmatpush1.msra.mxu0 0.0
    %5381 = vmatprep.subr.mxu0 0.0
    %5382 = vmatpush1.msra.mxu0 0.0
    %5383 = vmatprep.subr.mxu0 0.0
    %5384 = vmatpush1.msra.mxu0 0.0
    %5385 = vmatprep.subr.mxu0 0.0
    %5386 = vmatpush1.msra.mxu0 0.0
    %5387 = vmatprep.subr.mxu0 0.0
    %5388 = vmatpush1.msra.mxu0 0.0
    %5389 = vmatprep.subr.mxu0 0.0
    %5390 = vmatpush1.msra.mxu0 0.0
    %5391 = vmatprep.subr.mxu0 0.0
    %5392 = vmatpush1.msra.mxu0 0.0
    %5393 = vmatprep.subr.mxu0 0.0
    %5394 = vmatpush1.msra.mxu0 0.0
    %5395 = vmatprep.subr.mxu0 0.0
    %5396 = vmatpush1.msra.mxu0 0.0
    %5397 = vmatprep.subr.mxu0 0.0
    %5398 = vmatpush1.msra.mxu0 0.0
    %5399 = vmatprep.subr.mxu0 0.0
    %5400 = vmatpush1.msra.mxu0 0.0
    %5401 = vmatprep.subr.mxu0 0.0
    %5402 = vmatpush1.msra.mxu0 0.0
    %5403 = vmatprep.subr.mxu0 0.0
    %5404 = vmatpush1.msra.mxu0 0.0
    %5405 = vmatprep.subr.mxu0 0.0
    %5406 = vmatpush1.msra.mxu0 0.0
    %5407 = vmatprep.subr.mxu0 0.0
    %5408 = vmatpush1.msra.mxu0 0.0
    %5409 = vmatprep.mubr.f32.mxu0 0.0
    %v5410 = vand.u32 %v5337, 4294901760
    %v5411 = vsub.f32 %v5337, %v5410
    %v5412 = vand.u32 %v5411, 4294901760
    %v5413 = vsub.f32 %v5411, %v5412
    %v5414 = vand.u32 %v5413, 4294901760
    %5415 = vmatmul.mubr.f32.gmra.mrb[0].mxu0 %v5414
    %v5416 = vpop.f32.mrb[0].mxu0
    %v5417 = vadd.f32 %v5329, %v5416
    %v5418 = vpop.f32.mrb[0].mxu0
    %5419 = vmatprep.mubr.f32.mxu0 0.0
    %v5420 = vand.u32 %v5339, 4294901760
    %v5421 = vsub.f32 %v5339, %v5420
    %v5422 = vand.u32 %v5421, 4294901760
    %v5423 = vsub.f32 %v5421, %v5422
    %v5424 = vand.u32 %v5423, 4294901760
    %5425 = vmatmul.mubr.f32.gmra.mrb[0].mxu0 %v5424
    %v5426 = vpop.f32.mrb[0].mxu0
    %v5427 = vadd.f32 %v5329, %v5426
    %v5428 = vpop.f32.mrb[0].mxu0
    %5429 = vdwg.mxu0
    %5430 = vmatprep.subr.mxu0 0.0
    %v5431 = vand.u32 %v5320, 4294901760
    %v5432 = vsub.f32 %v5320, %v5431
    %v5433 = vand.u32 %v5432, 4294901760
    %v5434 = vsub.f32 %v5432, %v5433
    %v5435 = vand.u32 %v5434, 4294901760
    %5436 = vmatpush1.msra.mxu0 %v5435
    %5437 = vmatprep.subr.mxu0 0.0
    %v5438 = vand.u32 %v5321, 4294901760
    %v5439 = vsub.f32 %v5321, %v5438
    %v5440 = vand.u32 %v5439, 4294901760
    %v5441 = vsub.f32 %v5439, %v5440
    %v5442 = vand.u32 %v5441, 4294901760
    %5443 = vmatpush1.msra.mxu0 %v5442
    %5444 = vmatprep.subr.mxu0 0.0
    %v5445 = vand.u32 %v5322, 4294901760
    %v5446 = vsub.f32 %v5322, %v5445
    %v5447 = vand.u32 %v5446, 4294901760
    %v5448 = vsub.f32 %v5446, %v5447
    %v5449 = vand.u32 %v5448, 4294901760
    %5450 = vmatpush1.msra.mxu0 %v5449
    %5451 = vmatprep.subr.mxu0 0.0
    %v5452 = vand.u32 %v5323, 4294901760
    %v5453 = vsub.f32 %v5323, %v5452
    %v5454 = vand.u32 %v5453, 4294901760
    %v5455 = vsub.f32 %v5453, %v5454
    %v5456 = vand.u32 %v5455, 4294901760
    %5457 = vmatpush1.msra.mxu0 %v5456
    %5458 = vmatprep.subr.mxu0 0.0
    %5459 = vmatpush1.msra.mxu0 0.0
    %5460 = vmatprep.subr.mxu0 0.0
    %5461 = vmatpush1.msra.mxu0 0.0
    %5462 = vmatprep.subr.mxu0 0.0
    %5463 = vmatpush1.msra.mxu0 0.0
    %5464 = vmatprep.subr.mxu0 0.0
    %5465 = vmatpush1.msra.mxu0 0.0
    %5466 = vmatprep.subr.mxu0 0.0
    %5467 = vmatpush1.msra.mxu0 0.0
    %5468 = vmatprep.subr.mxu0 0.0
    %5469 = vmatpush1.msra.mxu0 0.0
    %5470 = vmatprep.subr.mxu0 0.0
    %5471 = vmatpush1.msra.mxu0 0.0
    %5472 = vmatprep.subr.mxu0 0.0
    %5473 = vmatpush1.msra.mxu0 0.0
    %5474 = vmatprep.subr.mxu0 0.0
    %5475 = vmatpush1.msra.mxu0 0.0
    %5476 = vmatprep.subr.mxu0 0.0
    %5477 = vmatpush1.msra.mxu0 0.0
    %5478 = vmatprep.subr.mxu0 0.0
    %5479 = vmatpush1.msra.mxu0 0.0
    %5480 = vmatprep.subr.mxu0 0.0
    %5481 = vmatpush1.msra.mxu0 0.0
    %5482 = vmatprep.subr.mxu0 0.0
    %5483 = vmatpush1.msra.mxu0 0.0
    %5484 = vmatprep.subr.mxu0 0.0
    %5485 = vmatpush1.msra.mxu0 0.0
    %5486 = vmatprep.subr.mxu0 0.0
    %5487 = vmatpush1.msra.mxu0 0.0
    %5488 = vmatprep.subr.mxu0 0.0
    %5489 = vmatpush1.msra.mxu0 0.0
    %5490 = vmatprep.subr.mxu0 0.0
    %5491 = vmatpush1.msra.mxu0 0.0
    %5492 = vmatprep.subr.mxu0 0.0
    %5493 = vmatpush1.msra.mxu0 0.0
    %5494 = vmatprep.subr.mxu0 0.0
    %5495 = vmatpush1.msra.mxu0 0.0
    %5496 = vmatprep.subr.mxu0 0.0
    %5497 = vmatpush1.msra.mxu0 0.0
    %5498 = vmatprep.subr.mxu0 0.0
    %5499 = vmatpush1.msra.mxu0 0.0
    %5500 = vmatprep.subr.mxu0 0.0
    %5501 = vmatpush1.msra.mxu0 0.0
    %5502 = vmatprep.subr.mxu0 0.0
    %5503 = vmatpush1.msra.mxu0 0.0
    %5504 = vmatprep.subr.mxu0 0.0
    %5505 = vmatpush1.msra.mxu0 0.0
    %5506 = vmatprep.subr.mxu0 0.0
    %5507 = vmatpush1.msra.mxu0 0.0
    %5508 = vmatprep.subr.mxu0 0.0
    %5509 = vmatpush1.msra.mxu0 0.0
    %5510 = vmatprep.subr.mxu0 0.0
    %5511 = vmatpush1.msra.mxu0 0.0
    %5512 = vmatprep.subr.mxu0 0.0
    %5513 = vmatpush1.msra.mxu0 0.0
    %5514 = vmatprep.mubr.f32.mxu0 0.0
    %v5515 = vand.u32 %v5337, 4294901760
    %5516 = vmatmul.mubr.f32.gmra.mrb[0].mxu0 %v5515
    %v5517 = vpop.f32.mrb[0].mxu0
    %v5518 = vadd.f32 %v5417, %v5517
    %v5519 = vpop.f32.mrb[0].mxu0
    %5520 = vmatprep.mubr.f32.mxu0 0.0
    %v5521 = vand.u32 %v5339, 4294901760
    %5522 = vmatmul.mubr.f32.gmra.mrb[0].mxu0 %v5521
    %v5523 = vpop.f32.mrb[0].mxu0
    %v5524 = vadd.f32 %v5427, %v5523
    %v5525 = vpop.f32.mrb[0].mxu0
    %5526 = vdwg.mxu0
    %5527 = vmatprep.subr.mxu0 0.0
    %v5528 = vand.u32 %v5320, 4294901760
    %v5529 = vsub.f32 %v5320, %v5528
    %5530 = vmatpush1.msra.mxu0 %v5529
    %5531 = vmatprep.subr.mxu0 0.0
    %v5532 = vand.u32 %v5321, 4294901760
    %v5533 = vsub.f32 %v5321, %v5532
    %5534 = vmatpush1.msra.mxu0 %v5533
    %5535 = vmatprep.subr.mxu0 0.0
    %v5536 = vand.u32 %v5322, 4294901760
    %v5537 = vsub.f32 %v5322, %v5536
    %5538 = vmatpush1.msra.mxu0 %v5537
    %5539 = vmatprep.subr.mxu0 0.0
    %v5540 = vand.u32 %v5323, 4294901760
    %v5541 = vsub.f32 %v5323, %v5540
    %5542 = vmatpush1.msra.mxu0 %v5541
    %5543 = vmatprep.subr.mxu0 0.0
    %5544 = vmatpush1.msra.mxu0 0.0
    %5545 = vmatprep.subr.mxu0 0.0
    %5546 = vmatpush1.msra.mxu0 0.0
    %5547 = vmatprep.subr.mxu0 0.0
    %5548 = vmatpush1.msra.mxu0 0.0
    %5549 = vmatprep.subr.mxu0 0.0
    %5550 = vmatpush1.msra.mxu0 0.0
    %5551 = vmatprep.subr.mxu0 0.0
    %5552 = vmatpush1.msra.mxu0 0.0
    %5553 = vmatprep.subr.mxu0 0.0
    %5554 = vmatpush1.msra.mxu0 0.0
    %5555 = vmatprep.subr.mxu0 0.0
    %5556 = vmatpush1.msra.mxu0 0.0
    %5557 = vmatprep.subr.mxu0 0.0
    %5558 = vmatpush1.msra.mxu0 0.0
    %5559 = vmatprep.subr.mxu0 0.0
    %5560 = vmatpush1.msra.mxu0 0.0
    %5561 = vmatprep.subr.mxu0 0.0
    %5562 = vmatpush1.msra.mxu0 0.0
    %5563 = vmatprep.subr.mxu0 0.0
    %5564 = vmatpush1.msra.mxu0 0.0
    %5565 = vmatprep.subr.mxu0 0.0
    %5566 = vmatpush1.msra.mxu0 0.0
    %5567 = vmatprep.subr.mxu0 0.0
    %5568 = vmatpush1.msra.mxu0 0.0
    %5569 = vmatprep.subr.mxu0 0.0
    %5570 = vmatpush1.msra.mxu0 0.0
    %5571 = vmatprep.subr.mxu0 0.0
    %5572 = vmatpush1.msra.mxu0 0.0
    %5573 = vmatprep.subr.mxu0 0.0
    %5574 = vmatpush1.msra.mxu0 0.0
    %5575 = vmatprep.subr.mxu0 0.0
    %5576 = vmatpush1.msra.mxu0 0.0
    %5577 = vmatprep.subr.mxu0 0.0
    %5578 = vmatpush1.msra.mxu0 0.0
    %5579 = vmatprep.subr.mxu0 0.0
    %5580 = vmatpush1.msra.mxu0 0.0
    %5581 = vmatprep.subr.mxu0 0.0
    %5582 = vmatpush1.msra.mxu0 0.0
    %5583 = vmatprep.subr.mxu0 0.0
    %5584 = vmatpush1.msra.mxu0 0.0
    %5585 = vmatprep.subr.mxu0 0.0
    %5586 = vmatpush1.msra.mxu0 0.0
    %5587 = vmatprep.subr.mxu0 0.0
    %5588 = vmatpush1.msra.mxu0 0.0
    %5589 = vmatprep.subr.mxu0 0.0
    %5590 = vmatpush1.msra.mxu0 0.0
    %5591 = vmatprep.subr.mxu0 0.0
    %5592 = vmatpush1.msra.mxu0 0.0
    %5593 = vmatprep.subr.mxu0 0.0
    %5594 = vmatpush1.msra.mxu0 0.0
    %5595 = vmatprep.subr.mxu0 0.0
    %5596 = vmatpush1.msra.mxu0 0.0
    %5597 = vmatprep.subr.mxu0 0.0
    %5598 = vmatpush1.msra.mxu0 0.0
    %5599 = vmatprep.mubr.f32.mxu0 0.0
    %v5600 = vand.u32 %v5337, 4294901760
    %v5601 = vsub.f32 %v5337, %v5600
    %5602 = vmatmul.mubr.f32.gmra.mrb[0].mxu0 %v5601
    %v5603 = vpop.f32.mrb[0].mxu0
    %v5604 = vadd.f32 %v5518, %v5603
    %v5605 = vpop.f32.mrb[0].mxu0
    %5606 = vmatprep.mubr.f32.mxu0 0.0
    %v5607 = vand.u32 %v5339, 4294901760
    %v5608 = vsub.f32 %v5339, %v5607
    %5609 = vmatmul.mubr.f32.gmra.mrb[0].mxu0 %v5608
    %v5610 = vpop.f32.mrb[0].mxu0
    %v5611 = vadd.f32 %v5524, %v5610
    %v5612 = vpop.f32.mrb[0].mxu0
    %5613 = vdwg.mxu0
    %5614 = vmatprep.subr.mxu0 0.0
    %v5615 = vand.u32 %v5320, 4294901760
    %5616 = vmatpush1.msra.mxu0 %v5615
    %5617 = vmatprep.subr.mxu0 0.0
    %v5618 = vand.u32 %v5321, 4294901760
    %5619 = vmatpush1.msra.mxu0 %v5618
    %5620 = vmatprep.subr.mxu0 0.0
    %v5621 = vand.u32 %v5322, 4294901760
    %5622 = vmatpush1.msra.mxu0 %v5621
    %5623 = vmatprep.subr.mxu0 0.0
    %v5624 = vand.u32 %v5323, 4294901760
    %5625 = vmatpush1.msra.mxu0 %v5624
    %5626 = vmatprep.subr.mxu0 0.0
    %5627 = vmatpush1.msra.mxu0 0.0
    %5628 = vmatprep.subr.mxu0 0.0
    %5629 = vmatpush1.msra.mxu0 0.0
    %5630 = vmatprep.subr.mxu0 0.0
    %5631 = vmatpush1.msra.mxu0 0.0
    %5632 = vmatprep.subr.mxu0 0.0
    %5633 = vmatpush1.msra.mxu0 0.0
    %5634 = vmatprep.subr.mxu0 0.0
    %5635 = vmatpush1.msra.mxu0 0.0
    %5636 = vmatprep.subr.mxu0 0.0
    %5637 = vmatpush1.msra.mxu0 0.0
    %5638 = vmatprep.subr.mxu0 0.0
    %5639 = vmatpush1.msra.mxu0 0.0
    %5640 = vmatprep.subr.mxu0 0.0
    %5641 = vmatpush1.msra.mxu0 0.0
    %5642 = vmatprep.subr.mxu0 0.0
    %5643 = vmatpush1.msra.mxu0 0.0
    %5644 = vmatprep.subr.mxu0 0.0
    %5645 = vmatpush1.msra.mxu0 0.0
    %5646 = vmatprep.subr.mxu0 0.0
    %5647 = vmatpush1.msra.mxu0 0.0
    %5648 = vmatprep.subr.mxu0 0.0
    %5649 = vmatpush1.msra.mxu0 0.0
    %5650 = vmatprep.subr.mxu0 0.0
    %5651 = vmatpush1.msra.mxu0 0.0
    %5652 = vmatprep.subr.mxu0 0.0
    %5653 = vmatpush1.msra.mxu0 0.0
    %5654 = vmatprep.subr.mxu0 0.0
    %5655 = vmatpush1.msra.mxu0 0.0
    %5656 = vmatprep.subr.mxu0 0.0
    %5657 = vmatpush1.msra.mxu0 0.0
    %5658 = vmatprep.subr.mxu0 0.0
    %5659 = vmatpush1.msra.mxu0 0.0
    %5660 = vmatprep.subr.mxu0 0.0
    %5661 = vmatpush1.msra.mxu0 0.0
    %5662 = vmatprep.subr.mxu0 0.0
    %5663 = vmatpush1.msra.mxu0 0.0
    %5664 = vmatprep.subr.mxu0 0.0
    %5665 = vmatpush1.msra.mxu0 0.0
    %5666 = vmatprep.subr.mxu0 0.0
    %5667 = vmatpush1.msra.mxu0 0.0
    %5668 = vmatprep.subr.mxu0 0.0
    %5669 = vmatpush1.msra.mxu0 0.0
    %5670 = vmatprep.subr.mxu0 0.0
    %5671 = vmatpush1.msra.mxu0 0.0
    %5672 = vmatprep.subr.mxu0 0.0
    %5673 = vmatpush1.msra.mxu0 0.0
    %5674 = vmatprep.subr.mxu0 0.0
    %5675 = vmatpush1.msra.mxu0 0.0
    %5676 = vmatprep.subr.mxu0 0.0
    %5677 = vmatpush1.msra.mxu0 0.0
    %5678 = vmatprep.subr.mxu0 0.0
    %5679 = vmatpush1.msra.mxu0 0.0
    %5680 = vmatprep.subr.mxu0 0.0
    %5681 = vmatpush1.msra.mxu0 0.0
    %5682 = vmatprep.mubr.f32.mxu0 0.0
    %v5683 = vand.u32 %v5337, 4294901760
    %v5684 = vsub.f32 %v5337, %v5683
    %v5685 = vand.u32 %v5684, 4294901760
    %5686 = vmatmul.mubr.f32.gmra.mrb[0].mxu0 %v5685
    %v5687 = vpop.f32.mrb[0].mxu0
    %v5688 = vadd.f32 %v5604, %v5687
    %v5689 = vpop.f32.mrb[0].mxu0
    %5690 = vmatprep.mubr.f32.mxu0 0.0
    %v5691 = vand.u32 %v5339, 4294901760
    %v5692 = vsub.f32 %v5339, %v5691
    %v5693 = vand.u32 %v5692, 4294901760
    %5694 = vmatmul.mubr.f32.gmra.mrb[0].mxu0 %v5693
    %v5695 = vpop.f32.mrb[0].mxu0
    %v5696 = vadd.f32 %v5611, %v5695
    %v5697 = vpop.f32.mrb[0].mxu0
    %5698 = vdwg.mxu0
    %5699 = vmatprep.subr.mxu0 0.0
    %v5700 = vand.u32 %v5320, 4294901760
    %v5701 = vsub.f32 %v5320, %v5700
    %v5702 = vand.u32 %v5701, 4294901760
    %5703 = vmatpush1.msra.mxu0 %v5702
    %5704 = vmatprep.subr.mxu0 0.0
    %v5705 = vand.u32 %v5321, 4294901760
    %v5706 = vsub.f32 %v5321, %v5705
    %v5707 = vand.u32 %v5706, 4294901760
    %5708 = vmatpush1.msra.mxu0 %v5707
    %5709 = vmatprep.subr.mxu0 0.0
    %v5710 = vand.u32 %v5322, 4294901760
    %v5711 = vsub.f32 %v5322, %v5710
    %v5712 = vand.u32 %v5711, 4294901760
    %5713 = vmatpush1.msra.mxu0 %v5712
    %5714 = vmatprep.subr.mxu0 0.0
    %v5715 = vand.u32 %v5323, 4294901760
    %v5716 = vsub.f32 %v5323, %v5715
    %v5717 = vand.u32 %v5716, 4294901760
    %5718 = vmatpush1.msra.mxu0 %v5717
    %5719 = vmatprep.subr.mxu0 0.0
    %5720 = vmatpush1.msra.mxu0 0.0
    %5721 = vmatprep.subr.mxu0 0.0
    %5722 = vmatpush1.msra.mxu0 0.0
    %5723 = vmatprep.subr.mxu0 0.0
    %5724 = vmatpush1.msra.mxu0 0.0
    %5725 = vmatprep.subr.mxu0 0.0
    %5726 = vmatpush1.msra.mxu0 0.0
    %5727 = vmatprep.subr.mxu0 0.0
    %5728 = vmatpush1.msra.mxu0 0.0
    %5729 = vmatprep.subr.mxu0 0.0
    %5730 = vmatpush1.msra.mxu0 0.0
    %5731 = vmatprep.subr.mxu0 0.0
    %5732 = vmatpush1.msra.mxu0 0.0
    %5733 = vmatprep.subr.mxu0 0.0
    %5734 = vmatpush1.msra.mxu0 0.0
    %5735 = vmatprep.subr.mxu0 0.0
    %5736 = vmatpush1.msra.mxu0 0.0
    %5737 = vmatprep.subr.mxu0 0.0
    %5738 = vmatpush1.msra.mxu0 0.0
    %5739 = vmatprep.subr.mxu0 0.0
    %5740 = vmatpush1.msra.mxu0 0.0
    %5741 = vmatprep.subr.mxu0 0.0
    %5742 = vmatpush1.msra.mxu0 0.0
    %5743 = vmatprep.subr.mxu0 0.0
    %5744 = vmatpush1.msra.mxu0 0.0
    %5745 = vmatprep.subr.mxu0 0.0
    %5746 = vmatpush1.msra.mxu0 0.0
    %5747 = vmatprep.subr.mxu0 0.0
    %5748 = vmatpush1.msra.mxu0 0.0
    %5749 = vmatprep.subr.mxu0 0.0
    %5750 = vmatpush1.msra.mxu0 0.0
    %5751 = vmatprep.subr.mxu0 0.0
    %5752 = vmatpush1.msra.mxu0 0.0
    %5753 = vmatprep.subr.mxu0 0.0
    %5754 = vmatpush1.msra.mxu0 0.0
    %5755 = vmatprep.subr.mxu0 0.0
    %5756 = vmatpush1.msra.mxu0 0.0
    %5757 = vmatprep.subr.mxu0 0.0
    %5758 = vmatpush1.msra.mxu0 0.0
    %5759 = vmatprep.subr.mxu0 0.0
    %5760 = vmatpush1.msra.mxu0 0.0
    %5761 = vmatprep.subr.mxu0 0.0
    %5762 = vmatpush1.msra.mxu0 0.0
    %5763 = vmatprep.subr.mxu0 0.0
    %5764 = vmatpush1.msra.mxu0 0.0
    %5765 = vmatprep.subr.mxu0 0.0
    %5766 = vmatpush1.msra.mxu0 0.0
    %5767 = vmatprep.subr.mxu0 0.0
    %5768 = vmatpush1.msra.mxu0 0.0
    %5769 = vmatprep.subr.mxu0 0.0
    %5770 = vmatpush1.msra.mxu0 0.0
    %5771 = vmatprep.subr.mxu0 0.0
    %5772 = vmatpush1.msra.mxu0 0.0
    %5773 = vmatprep.subr.mxu0 0.0
    %5774 = vmatpush1.msra.mxu0 0.0
    %5775 = vmatprep.mubr.f32.mxu0 0.0
    %v5776 = vand.u32 %v5337, 4294901760
    %5777 = vmatmul.mubr.f32.gmra.mrb[0].mxu0 %v5776
    %v5778 = vpop.f32.mrb[0].mxu0
    %v5779 = vadd.f32 %v5688, %v5778
    %v5780 = vpop.f32.mrb[0].mxu0
    %5781 = vmatprep.mubr.f32.mxu0 0.0
    %v5782 = vand.u32 %v5339, 4294901760
    %5783 = vmatmul.mubr.f32.gmra.mrb[0].mxu0 %v5782
    %v5784 = vpop.f32.mrb[0].mxu0
    %v5785 = vadd.f32 %v5696, %v5784
    %v5786 = vpop.f32.mrb[0].mxu0
    %5787 = vdwg.mxu0
    %5788 = vmatprep.subr.mxu0 0.0
    %v5789 = vand.u32 %v5320, 4294901760
    %5790 = vmatpush1.msra.mxu0 %v5789
    %5791 = vmatprep.subr.mxu0 0.0
    %v5792 = vand.u32 %v5321, 4294901760
    %5793 = vmatpush1.msra.mxu0 %v5792
    %5794 = vmatprep.subr.mxu0 0.0
    %v5795 = vand.u32 %v5322, 4294901760
    %5796 = vmatpush1.msra.mxu0 %v5795
    %5797 = vmatprep.subr.mxu0 0.0
    %v5798 = vand.u32 %v5323, 4294901760
    %5799 = vmatpush1.msra.mxu0 %v5798
    %5800 = vmatprep.subr.mxu0 0.0
    %5801 = vmatpush1.msra.mxu0 0.0
    %5802 = vmatprep.subr.mxu0 0.0
    %5803 = vmatpush1.msra.mxu0 0.0
    %5804 = vmatprep.subr.mxu0 0.0
    %5805 = vmatpush1.msra.mxu0 0.0
    %5806 = vmatprep.subr.mxu0 0.0
    %5807 = vmatpush1.msra.mxu0 0.0
    %5808 = vmatprep.subr.mxu0 0.0
    %5809 = vmatpush1.msra.mxu0 0.0
    %5810 = vmatprep.subr.mxu0 0.0
    %5811 = vmatpush1.msra.mxu0 0.0
    %5812 = vmatprep.subr.mxu0 0.0
    %5813 = vmatpush1.msra.mxu0 0.0
    %5814 = vmatprep.subr.mxu0 0.0
    %5815 = vmatpush1.msra.mxu0 0.0
    %5816 = vmatprep.subr.mxu0 0.0
    %5817 = vmatpush1.msra.mxu0 0.0
    %5818 = vmatprep.subr.mxu0 0.0
    %5819 = vmatpush1.msra.mxu0 0.0
    %5820 = vmatprep.subr.mxu0 0.0
    %5821 = vmatpush1.msra.mxu0 0.0
    %5822 = vmatprep.subr.mxu0 0.0
    %5823 = vmatpush1.msra.mxu0 0.0
    %5824 = vmatprep.subr.mxu0 0.0
    %5825 = vmatpush1.msra.mxu0 0.0
    %5826 = vmatprep.subr.mxu0 0.0
    %5827 = vmatpush1.msra.mxu0 0.0
    %5828 = vmatprep.subr.mxu0 0.0
    %5829 = vmatpush1.msra.mxu0 0.0
    %5830 = vmatprep.subr.mxu0 0.0
    %5831 = vmatpush1.msra.mxu0 0.0
    %5832 = vmatprep.subr.mxu0 0.0
    %5833 = vmatpush1.msra.mxu0 0.0
    %5834 = vmatprep.subr.mxu0 0.0
    %5835 = vmatpush1.msra.mxu0 0.0
    %5836 = vmatprep.subr.mxu0 0.0
    %5837 = vmatpush1.msra.mxu0 0.0
    %5838 = vmatprep.subr.mxu0 0.0
    %5839 = vmatpush1.msra.mxu0 0.0
    %5840 = vmatprep.subr.mxu0 0.0
    %5841 = vmatpush1.msra.mxu0 0.0
    %5842 = vmatprep.subr.mxu0 0.0
    %5843 = vmatpush1.msra.mxu0 0.0
    %5844 = vmatprep.subr.mxu0 0.0
    %5845 = vmatpush1.msra.mxu0 0.0
    %5846 = vmatprep.subr.mxu0 0.0
    %5847 = vmatpush1.msra.mxu0 0.0
    %5848 = vmatprep.subr.mxu0 0.0
    %5849 = vmatpush1.msra.mxu0 0.0
    %5850 = vmatprep.subr.mxu0 0.0
    %5851 = vmatpush1.msra.mxu0 0.0
    %5852 = vmatprep.subr.mxu0 0.0
    %5853 = vmatpush1.msra.mxu0 0.0
    %5854 = vmatprep.subr.mxu0 0.0
    %5855 = vmatpush1.msra.mxu0 0.0
    %5856 = vmatprep.mubr.f32.mxu0 0.0
    %v5857 = vand.u32 %v5337, 4294901760
    %5858 = vmatmul.mubr.f32.gmra.mrb[0].mxu0 %v5857
    %v5859 = vpop.f32.mrb[0].mxu0
    %v5860 = vadd.f32 %v5779, %v5859
    %v5861 = vpop.f32.mrb[0].mxu0
    %5862 = vmatprep.mubr.f32.mxu0 0.0
    %v5863 = vand.u32 %v5339, 4294901760
    %5864 = vmatmul.mubr.f32.gmra.mrb[0].mxu0 %v5863
    %v5865 = vpop.f32.mrb[0].mxu0
    %v5866 = vadd.f32 %v5785, %v5865
    %v5867 = vpop.f32.mrb[0].mxu0
    %5868 = vdwg.mxu0
    %5871 = vrot.lane.b32.xlu0 %v5860, 64
    %v5872 = vpop.permute.xlu0 %5871
    %5873 = vrot.lane.b32.xlu0 %v5866, 64
    %v5874 = vpop.permute.xlu0 %5873
    %v5877 = vadd.f32 %v4746, %v5872
    %v5878 = vadd.f32 %v4752, %v5874
    %v5879 = vmul.f32 %v703, %v5877
    %v5880 = vmul.f32 %v708, %v5878
    %v5881 = vtanh.pop %v5879
    %v5882 = vtanh.pop %v5880
    %5885 = vrot.lane.b32.xlu0 %v5309, 64
    %v5886 = vpop.permute.xlu0 %5885
    %5887 = vrot.lane.b32.xlu0 %v5311, 64
    %v5888 = vpop.permute.xlu0 %5887
    %v5891 = vmul.f32 %v5881, %v5886
    %v5892 = vmul.f32 %v5882, %v5888
    %v5893 = vsub.f32 1.0, %v5309
    %v5894 = vsub.f32 1.0, %v5311
    %5897 = vrot.lane.b32.xlu0 %v5893, 64
    %v5898 = vpop.permute.xlu0 %5897
    %5899 = vrot.lane.b32.xlu0 %v5894, 64
    %v5900 = vpop.permute.xlu0 %5899
    %v5903 = vmul.f32 %v3308, %v5898
    %v5904 = vmul.f32 %v3309, %v5900
    %v5905 = vadd.f32 %v5891, %v5903
    %v5906 = vadd.f32 %v5892, %v5904
    %v5907 = vld [vmem:[%s11] sm:$0xff]
    %v5908 = vld [vmem:[%s11 + $0x8] sm:$0xff]
    %v5909 = vld [vmem:[%s11 + $0x10] sm:$0xff]
    %v5910 = vld [vmem:[%s11 + $0x18] sm:$0xff]
    %v5911 = vld [vmem:[#allocation2] sm:$0x1]
    %v5913 = vlaneseq
    %v5914 = vshrl.u32 %v5913, 7
    %v5915 = vsub.s32 0, %v5914
    %v5916 = vrot.slane %v5911, %v5915
    %5920 = vrot.lane.b32.xlu0 %v5905, 64
    %v5921 = vpop.permute.xlu0 %5920
    %5922 = vrot.lane.b32.xlu0 %v5906, 64
    %v5923 = vpop.permute.xlu0 %5922
    %v5924 = vsel %vm163, %v5921, 0
    %v5926 = vsel %vm163, %v5923, 0
    %5928 = vmatprep.subr.mxu0 0.0
    %v5929 = vand.u32 %v5907, 4294901760
    %5930 = vmatpush1.msra.mxu0 %v5929
    %5931 = vmatprep.subr.mxu0 0.0
    %v5932 = vand.u32 %v5908, 4294901760
    %5933 = vmatpush1.msra.mxu0 %v5932
    %5934 = vmatprep.subr.mxu0 0.0
    %v5935 = vand.u32 %v5909, 4294901760
    %5936 = vmatpush1.msra.mxu0 %v5935
    %5937 = vmatprep.subr.mxu0 0.0
    %v5938 = vand.u32 %v5910, 4294901760
    %5939 = vmatpush1.msra.mxu0 %v5938
    %5940 = vmatprep.subr.mxu0 0.0
    %5941 = vmatpush1.msra.mxu0 0.0
    %5942 = vmatprep.subr.mxu0 0.0
    %5943 = vmatpush1.msra.mxu0 0.0
    %5944 = vmatprep.subr.mxu0 0.0
    %5945 = vmatpush1.msra.mxu0 0.0
    %5946 = vmatprep.subr.mxu0 0.0
    %5947 = vmatpush1.msra.mxu0 0.0
    %5948 = vmatprep.subr.mxu0 0.0
    %5949 = vmatpush1.msra.mxu0 0.0
    %5950 = vmatprep.subr.mxu0 0.0
    %5951 = vmatpush1.msra.mxu0 0.0
    %5952 = vmatprep.subr.mxu0 0.0
    %5953 = vmatpush1.msra.mxu0 0.0
    %5954 = vmatprep.subr.mxu0 0.0
    %5955 = vmatpush1.msra.mxu0 0.0
    %5956 = vmatprep.subr.mxu0 0.0
    %5957 = vmatpush1.msra.mxu0 0.0
    %5958 = vmatprep.subr.mxu0 0.0
    %5959 = vmatpush1.msra.mxu0 0.0
    %5960 = vmatprep.subr.mxu0 0.0
    %5961 = vmatpush1.msra.mxu0 0.0
    %5962 = vmatprep.subr.mxu0 0.0
    %5963 = vmatpush1.msra.mxu0 0.0
    %5964 = vmatprep.subr.mxu0 0.0
    %5965 = vmatpush1.msra.mxu0 0.0
    %5966 = vmatprep.subr.mxu0 0.0
    %5967 = vmatpush1.msra.mxu0 0.0
    %5968 = vmatprep.subr.mxu0 0.0
    %5969 = vmatpush1.msra.mxu0 0.0
    %5970 = vmatprep.subr.mxu0 0.0
    %5971 = vmatpush1.msra.mxu0 0.0
    %5972 = vmatprep.subr.mxu0 0.0
    %5973 = vmatpush1.msra.mxu0 0.0
    %5974 = vmatprep.subr.mxu0 0.0
    %5975 = vmatpush1.msra.mxu0 0.0
    %5976 = vmatprep.subr.mxu0 0.0
    %5977 = vmatpush1.msra.mxu0 0.0
    %5978 = vmatprep.subr.mxu0 0.0
    %5979 = vmatpush1.msra.mxu0 0.0
    %5980 = vmatprep.subr.mxu0 0.0
    %5981 = vmatpush1.msra.mxu0 0.0
    %5982 = vmatprep.subr.mxu0 0.0
    %5983 = vmatpush1.msra.mxu0 0.0
    %5984 = vmatprep.subr.mxu0 0.0
    %5985 = vmatpush1.msra.mxu0 0.0
    %5986 = vmatprep.subr.mxu0 0.0
    %5987 = vmatpush1.msra.mxu0 0.0
    %5988 = vmatprep.subr.mxu0 0.0
    %5989 = vmatpush1.msra.mxu0 0.0
    %5990 = vmatprep.subr.mxu0 0.0
    %5991 = vmatpush1.msra.mxu0 0.0
    %5992 = vmatprep.subr.mxu0 0.0
    %5993 = vmatpush1.msra.mxu0 0.0
    %5994 = vmatprep.subr.mxu0 0.0
    %5995 = vmatpush1.msra.mxu0 0.0
    %5996 = vmatprep.mubr.f32.mxu0 0.0
    %v5997 = vand.u32 %v5924, 4294901760
    %v5998 = vsub.f32 %v5924, %v5997
    %v5999 = vand.u32 %v5998, 4294901760
    %v6000 = vsub.f32 %v5998, %v5999
    %v6001 = vand.u32 %v6000, 4294901760
    %6002 = vmatmul.mubr.f32.gmra.mrb[0].mxu0 %v6001
    %v6003 = vpop.f32.mrb[0].mxu0
    %v6004 = vadd.f32 %v5916, %v6003
    %v6005 = vpop.f32.mrb[0].mxu0
    %6006 = vmatprep.mubr.f32.mxu0 0.0
    %v6007 = vand.u32 %v5926, 4294901760
    %v6008 = vsub.f32 %v5926, %v6007
    %v6009 = vand.u32 %v6008, 4294901760
    %v6010 = vsub.f32 %v6008, %v6009
    %v6011 = vand.u32 %v6010, 4294901760
    %6012 = vmatmul.mubr.f32.gmra.mrb[0].mxu0 %v6011
    %v6013 = vpop.f32.mrb[0].mxu0
    %v6014 = vadd.f32 %v5916, %v6013
    %v6015 = vpop.f32.mrb[0].mxu0
    %6016 = vdwg.mxu0
    %6017 = vmatprep.subr.mxu0 0.0
    %v6018 = vand.u32 %v5907, 4294901760
    %v6019 = vsub.f32 %v5907, %v6018
    %v6020 = vand.u32 %v6019, 4294901760
    %v6021 = vsub.f32 %v6019, %v6020
    %v6022 = vand.u32 %v6021, 4294901760
    %6023 = vmatpush1.msra.mxu0 %v6022
    %6024 = vmatprep.subr.mxu0 0.0
    %v6025 = vand.u32 %v5908, 4294901760
    %v6026 = vsub.f32 %v5908, %v6025
    %v6027 = vand.u32 %v6026, 4294901760
    %v6028 = vsub.f32 %v6026, %v6027
    %v6029 = vand.u32 %v6028, 4294901760
    %6030 = vmatpush1.msra.mxu0 %v6029
    %6031 = vmatprep.subr.mxu0 0.0
    %v6032 = vand.u32 %v5909, 4294901760
    %v6033 = vsub.f32 %v5909, %v6032
    %v6034 = vand.u32 %v6033, 4294901760
    %v6035 = vsub.f32 %v6033, %v6034
    %v6036 = vand.u32 %v6035, 4294901760
    %6037 = vmatpush1.msra.mxu0 %v6036
    %6038 = vmatprep.subr.mxu0 0.0
    %v6039 = vand.u32 %v5910, 4294901760
    %v6040 = vsub.f32 %v5910, %v6039
    %v6041 = vand.u32 %v6040, 4294901760
    %v6042 = vsub.f32 %v6040, %v6041
    %v6043 = vand.u32 %v6042, 4294901760
    %6044 = vmatpush1.msra.mxu0 %v6043
    %6045 = vmatprep.subr.mxu0 0.0
    %6046 = vmatpush1.msra.mxu0 0.0
    %6047 = vmatprep.subr.mxu0 0.0
    %6048 = vmatpush1.msra.mxu0 0.0
    %6049 = vmatprep.subr.mxu0 0.0
    %6050 = vmatpush1.msra.mxu0 0.0
    %6051 = vmatprep.subr.mxu0 0.0
    %6052 = vmatpush1.msra.mxu0 0.0
    %6053 = vmatprep.subr.mxu0 0.0
    %6054 = vmatpush1.msra.mxu0 0.0
    %6055 = vmatprep.subr.mxu0 0.0
    %6056 = vmatpush1.msra.mxu0 0.0
    %6057 = vmatprep.subr.mxu0 0.0
    %6058 = vmatpush1.msra.mxu0 0.0
    %6059 = vmatprep.subr.mxu0 0.0
    %6060 = vmatpush1.msra.mxu0 0.0
    %6061 = vmatprep.subr.mxu0 0.0
    %6062 = vmatpush1.msra.mxu0 0.0
    %6063 = vmatprep.subr.mxu0 0.0
    %6064 = vmatpush1.msra.mxu0 0.0
    %6065 = vmatprep.subr.mxu0 0.0
    %6066 = vmatpush1.msra.mxu0 0.0
    %6067 = vmatprep.subr.mxu0 0.0
    %6068 = vmatpush1.msra.mxu0 0.0
    %6069 = vmatprep.subr.mxu0 0.0
    %6070 = vmatpush1.msra.mxu0 0.0
    %6071 = vmatprep.subr.mxu0 0.0
    %6072 = vmatpush1.msra.mxu0 0.0
    %6073 = vmatprep.subr.mxu0 0.0
    %6074 = vmatpush1.msra.mxu0 0.0
    %6075 = vmatprep.subr.mxu0 0.0
    %6076 = vmatpush1.msra.mxu0 0.0
    %6077 = vmatprep.subr.mxu0 0.0
    %6078 = vmatpush1.msra.mxu0 0.0
    %6079 = vmatprep.subr.mxu0 0.0
    %6080 = vmatpush1.msra.mxu0 0.0
    %6081 = vmatprep.subr.mxu0 0.0
    %6082 = vmatpush1.msra.mxu0 0.0
    %6083 = vmatprep.subr.mxu0 0.0
    %6084 = vmatpush1.msra.mxu0 0.0
    %6085 = vmatprep.subr.mxu0 0.0
    %6086 = vmatpush1.msra.mxu0 0.0
    %6087 = vmatprep.subr.mxu0 0.0
    %6088 = vmatpush1.msra.mxu0 0.0
    %6089 = vmatprep.subr.mxu0 0.0
    %6090 = vmatpush1.msra.mxu0 0.0
    %6091 = vmatprep.subr.mxu0 0.0
    %6092 = vmatpush1.msra.mxu0 0.0
    %6093 = vmatprep.subr.mxu0 0.0
    %6094 = vmatpush1.msra.mxu0 0.0
    %6095 = vmatprep.subr.mxu0 0.0
    %6096 = vmatpush1.msra.mxu0 0.0
    %6097 = vmatprep.subr.mxu0 0.0
    %6098 = vmatpush1.msra.mxu0 0.0
    %6099 = vmatprep.subr.mxu0 0.0
    %6100 = vmatpush1.msra.mxu0 0.0
    %6101 = vmatprep.mubr.f32.mxu0 0.0
    %v6102 = vand.u32 %v5924, 4294901760
    %6103 = vmatmul.mubr.f32.gmra.mrb[0].mxu0 %v6102
    %v6104 = vpop.f32.mrb[0].mxu0
    %v6105 = vadd.f32 %v6004, %v6104
    %v6106 = vpop.f32.mrb[0].mxu0
    %6107 = vmatprep.mubr.f32.mxu0 0.0
    %v6108 = vand.u32 %v5926, 4294901760
    %6109 = vmatmul.mubr.f32.gmra.mrb[0].mxu0 %v6108
    %v6110 = vpop.f32.mrb[0].mxu0
    %v6111 = vadd.f32 %v6014, %v6110
    %v6112 = vpop.f32.mrb[0].mxu0
    %6113 = vdwg.mxu0
    %6114 = vmatprep.subr.mxu0 0.0
    %v6115 = vand.u32 %v5907, 4294901760
    %v6116 = vsub.f32 %v5907, %v6115
    %6117 = vmatpush1.msra.mxu0 %v6116
    %6118 = vmatprep.subr.mxu0 0.0
    %v6119 = vand.u32 %v5908, 4294901760
    %v6120 = vsub.f32 %v5908, %v6119
    %6121 = vmatpush1.msra.mxu0 %v6120
    %6122 = vmatprep.subr.mxu0 0.0
    %v6123 = vand.u32 %v5909, 4294901760
    %v6124 = vsub.f32 %v5909, %v6123
    %6125 = vmatpush1.msra.mxu0 %v6124
    %6126 = vmatprep.subr.mxu0 0.0
    %v6127 = vand.u32 %v5910, 4294901760
    %v6128 = vsub.f32 %v5910, %v6127
    %6129 = vmatpush1.msra.mxu0 %v6128
    %6130 = vmatprep.subr.mxu0 0.0
    %6131 = vmatpush1.msra.mxu0 0.0
    %6132 = vmatprep.subr.mxu0 0.0
    %6133 = vmatpush1.msra.mxu0 0.0
    %6134 = vmatprep.subr.mxu0 0.0
    %6135 = vmatpush1.msra.mxu0 0.0
    %6136 = vmatprep.subr.mxu0 0.0
    %6137 = vmatpush1.msra.mxu0 0.0
    %6138 = vmatprep.subr.mxu0 0.0
    %6139 = vmatpush1.msra.mxu0 0.0
    %6140 = vmatprep.subr.mxu0 0.0
    %6141 = vmatpush1.msra.mxu0 0.0
    %6142 = vmatprep.subr.mxu0 0.0
    %6143 = vmatpush1.msra.mxu0 0.0
    %6144 = vmatprep.subr.mxu0 0.0
    %6145 = vmatpush1.msra.mxu0 0.0
    %6146 = vmatprep.subr.mxu0 0.0
    %6147 = vmatpush1.msra.mxu0 0.0
    %6148 = vmatprep.subr.mxu0 0.0
    %6149 = vmatpush1.msra.mxu0 0.0
    %6150 = vmatprep.subr.mxu0 0.0
    %6151 = vmatpush1.msra.mxu0 0.0
    %6152 = vmatprep.subr.mxu0 0.0
    %6153 = vmatpush1.msra.mxu0 0.0
    %6154 = vmatprep.subr.mxu0 0.0
    %6155 = vmatpush1.msra.mxu0 0.0
    %6156 = vmatprep.subr.mxu0 0.0
    %6157 = vmatpush1.msra.mxu0 0.0
    %6158 = vmatprep.subr.mxu0 0.0
    %6159 = vmatpush1.msra.mxu0 0.0
    %6160 = vmatprep.subr.mxu0 0.0
    %6161 = vmatpush1.msra.mxu0 0.0
    %6162 = vmatprep.subr.mxu0 0.0
    %6163 = vmatpush1.msra.mxu0 0.0
    %6164 = vmatprep.subr.mxu0 0.0
    %6165 = vmatpush1.msra.mxu0 0.0
    %6166 = vmatprep.subr.mxu0 0.0
    %6167 = vmatpush1.msra.mxu0 0.0
    %6168 = vmatprep.subr.mxu0 0.0
    %6169 = vmatpush1.msra.mxu0 0.0
    %6170 = vmatprep.subr.mxu0 0.0
    %6171 = vmatpush1.msra.mxu0 0.0
    %6172 = vmatprep.subr.mxu0 0.0
    %6173 = vmatpush1.msra.mxu0 0.0
    %6174 = vmatprep.subr.mxu0 0.0
    %6175 = vmatpush1.msra.mxu0 0.0
    %6176 = vmatprep.subr.mxu0 0.0
    %6177 = vmatpush1.msra.mxu0 0.0
    %6178 = vmatprep.subr.mxu0 0.0
    %6179 = vmatpush1.msra.mxu0 0.0
    %6180 = vmatprep.subr.mxu0 0.0
    %6181 = vmatpush1.msra.mxu0 0.0
    %6182 = vmatprep.subr.mxu0 0.0
    %6183 = vmatpush1.msra.mxu0 0.0
    %6184 = vmatprep.subr.mxu0 0.0
    %6185 = vmatpush1.msra.mxu0 0.0
    %6186 = vmatprep.mubr.f32.mxu0 0.0
    %v6187 = vand.u32 %v5924, 4294901760
    %v6188 = vsub.f32 %v5924, %v6187
    %6189 = vmatmul.mubr.f32.gmra.mrb[0].mxu0 %v6188
    %v6190 = vpop.f32.mrb[0].mxu0
    %v6191 = vadd.f32 %v6105, %v6190
    %v6192 = vpop.f32.mrb[0].mxu0
    %6193 = vmatprep.mubr.f32.mxu0 0.0
    %v6194 = vand.u32 %v5926, 4294901760
    %v6195 = vsub.f32 %v5926, %v6194
    %6196 = vmatmul.mubr.f32.gmra.mrb[0].mxu0 %v6195
    %v6197 = vpop.f32.mrb[0].mxu0
    %v6198 = vadd.f32 %v6111, %v6197
    %v6199 = vpop.f32.mrb[0].mxu0
    %6200 = vdwg.mxu0
    %6201 = vmatprep.subr.mxu0 0.0
    %v6202 = vand.u32 %v5907, 4294901760
    %6203 = vmatpush1.msra.mxu0 %v6202
    %6204 = vmatprep.subr.mxu0 0.0
    %v6205 = vand.u32 %v5908, 4294901760
    %6206 = vmatpush1.msra.mxu0 %v6205
    %6207 = vmatprep.subr.mxu0 0.0
    %v6208 = vand.u32 %v5909, 4294901760
    %6209 = vmatpush1.msra.mxu0 %v6208
    %6210 = vmatprep.subr.mxu0 0.0
    %v6211 = vand.u32 %v5910, 4294901760
    %6212 = vmatpush1.msra.mxu0 %v6211
    %6213 = vmatprep.subr.mxu0 0.0
    %6214 = vmatpush1.msra.mxu0 0.0
    %6215 = vmatprep.subr.mxu0 0.0
    %6216 = vmatpush1.msra.mxu0 0.0
    %6217 = vmatprep.subr.mxu0 0.0
    %6218 = vmatpush1.msra.mxu0 0.0
    %6219 = vmatprep.subr.mxu0 0.0
    %6220 = vmatpush1.msra.mxu0 0.0
    %6221 = vmatprep.subr.mxu0 0.0
    %6222 = vmatpush1.msra.mxu0 0.0
    %6223 = vmatprep.subr.mxu0 0.0
    %6224 = vmatpush1.msra.mxu0 0.0
    %6225 = vmatprep.subr.mxu0 0.0
    %6226 = vmatpush1.msra.mxu0 0.0
    %6227 = vmatprep.subr.mxu0 0.0
    %6228 = vmatpush1.msra.mxu0 0.0
    %6229 = vmatprep.subr.mxu0 0.0
    %6230 = vmatpush1.msra.mxu0 0.0
    %6231 = vmatprep.subr.mxu0 0.0
    %6232 = vmatpush1.msra.mxu0 0.0
    %6233 = vmatprep.subr.mxu0 0.0
    %6234 = vmatpush1.msra.mxu0 0.0
    %6235 = vmatprep.subr.mxu0 0.0
    %6236 = vmatpush1.msra.mxu0 0.0
    %6237 = vmatprep.subr.mxu0 0.0
    %6238 = vmatpush1.msra.mxu0 0.0
    %6239 = vmatprep.subr.mxu0 0.0
    %6240 = vmatpush1.msra.mxu0 0.0
    %6241 = vmatprep.subr.mxu0 0.0
    %6242 = vmatpush1.msra.mxu0 0.0
    %6243 = vmatprep.subr.mxu0 0.0
    %6244 = vmatpush1.msra.mxu0 0.0
    %6245 = vmatprep.subr.mxu0 0.0
    %6246 = vmatpush1.msra.mxu0 0.0
    %6247 = vmatprep.subr.mxu0 0.0
    %6248 = vmatpush1.msra.mxu0 0.0
    %6249 = vmatprep.subr.mxu0 0.0
    %6250 = vmatpush1.msra.mxu0 0.0
    %6251 = vmatprep.subr.mxu0 0.0
    %6252 = vmatpush1.msra.mxu0 0.0
    %6253 = vmatprep.subr.mxu0 0.0
    %6254 = vmatpush1.msra.mxu0 0.0
    %6255 = vmatprep.subr.mxu0 0.0
    %6256 = vmatpush1.msra.mxu0 0.0
    %6257 = vmatprep.subr.mxu0 0.0
    %6258 = vmatpush1.msra.mxu0 0.0
    %6259 = vmatprep.subr.mxu0 0.0
    %6260 = vmatpush1.msra.mxu0 0.0
    %6261 = vmatprep.subr.mxu0 0.0
    %6262 = vmatpush1.msra.mxu0 0.0
    %6263 = vmatprep.subr.mxu0 0.0
    %6264 = vmatpush1.msra.mxu0 0.0
    %6265 = vmatprep.subr.mxu0 0.0
    %6266 = vmatpush1.msra.mxu0 0.0
    %6267 = vmatprep.subr.mxu0 0.0
    %6268 = vmatpush1.msra.mxu0 0.0
    %6269 = vmatprep.mubr.f32.mxu0 0.0
    %v6270 = vand.u32 %v5924, 4294901760
    %v6271 = vsub.f32 %v5924, %v6270
    %v6272 = vand.u32 %v6271, 4294901760
    %6273 = vmatmul.mubr.f32.gmra.mrb[0].mxu0 %v6272
    %v6274 = vpop.f32.mrb[0].mxu0
    %v6275 = vadd.f32 %v6191, %v6274
    %v6276 = vpop.f32.mrb[0].mxu0
    %6277 = vmatprep.mubr.f32.mxu0 0.0
    %v6278 = vand.u32 %v5926, 4294901760
    %v6279 = vsub.f32 %v5926, %v6278
    %v6280 = vand.u32 %v6279, 4294901760
    %6281 = vmatmul.mubr.f32.gmra.mrb[0].mxu0 %v6280
    %v6282 = vpop.f32.mrb[0].mxu0
    %v6283 = vadd.f32 %v6198, %v6282
    %v6284 = vpop.f32.mrb[0].mxu0
    %6285 = vdwg.mxu0
    %6286 = vmatprep.subr.mxu0 0.0
    %v6287 = vand.u32 %v5907, 4294901760
    %v6288 = vsub.f32 %v5907, %v6287
    %v6289 = vand.u32 %v6288, 4294901760
    %6290 = vmatpush1.msra.mxu0 %v6289
    %6291 = vmatprep.subr.mxu0 0.0
    %v6292 = vand.u32 %v5908, 4294901760
    %v6293 = vsub.f32 %v5908, %v6292
    %v6294 = vand.u32 %v6293, 4294901760
    %6295 = vmatpush1.msra.mxu0 %v6294
    %6296 = vmatprep.subr.mxu0 0.0
    %v6297 = vand.u32 %v5909, 4294901760
    %v6298 = vsub.f32 %v5909, %v6297
    %v6299 = vand.u32 %v6298, 4294901760
    %6300 = vmatpush1.msra.mxu0 %v6299
    %6301 = vmatprep.subr.mxu0 0.0
    %v6302 = vand.u32 %v5910, 4294901760
    %v6303 = vsub.f32 %v5910, %v6302
    %v6304 = vand.u32 %v6303, 4294901760
    %6305 = vmatpush1.msra.mxu0 %v6304
    %6306 = vmatprep.subr.mxu0 0.0
    %6307 = vmatpush1.msra.mxu0 0.0
    %6308 = vmatprep.subr.mxu0 0.0
    %6309 = vmatpush1.msra.mxu0 0.0
    %6310 = vmatprep.subr.mxu0 0.0
    %6311 = vmatpush1.msra.mxu0 0.0
    %6312 = vmatprep.subr.mxu0 0.0
    %6313 = vmatpush1.msra.mxu0 0.0
    %6314 = vmatprep.subr.mxu0 0.0
    %6315 = vmatpush1.msra.mxu0 0.0
    %6316 = vmatprep.subr.mxu0 0.0
    %6317 = vmatpush1.msra.mxu0 0.0
    %6318 = vmatprep.subr.mxu0 0.0
    %6319 = vmatpush1.msra.mxu0 0.0
    %6320 = vmatprep.subr.mxu0 0.0
    %6321 = vmatpush1.msra.mxu0 0.0
    %6322 = vmatprep.subr.mxu0 0.0
    %6323 = vmatpush1.msra.mxu0 0.0
    %6324 = vmatprep.subr.mxu0 0.0
    %6325 = vmatpush1.msra.mxu0 0.0
    %6326 = vmatprep.subr.mxu0 0.0
    %6327 = vmatpush1.msra.mxu0 0.0
    %6328 = vmatprep.subr.mxu0 0.0
    %6329 = vmatpush1.msra.mxu0 0.0
    %6330 = vmatprep.subr.mxu0 0.0
    %6331 = vmatpush1.msra.mxu0 0.0
    %6332 = vmatprep.subr.mxu0 0.0
    %6333 = vmatpush1.msra.mxu0 0.0
    %6334 = vmatprep.subr.mxu0 0.0
    %6335 = vmatpush1.msra.mxu0 0.0
    %6336 = vmatprep.subr.mxu0 0.0
    %6337 = vmatpush1.msra.mxu0 0.0
    %6338 = vmatprep.subr.mxu0 0.0
    %6339 = vmatpush1.msra.mxu0 0.0
    %6340 = vmatprep.subr.mxu0 0.0
    %6341 = vmatpush1.msra.mxu0 0.0
    %6342 = vmatprep.subr.mxu0 0.0
    %6343 = vmatpush1.msra.mxu0 0.0
    %6344 = vmatprep.subr.mxu0 0.0
    %6345 = vmatpush1.msra.mxu0 0.0
    %6346 = vmatprep.subr.mxu0 0.0
    %6347 = vmatpush1.msra.mxu0 0.0
    %6348 = vmatprep.subr.mxu0 0.0
    %6349 = vmatpush1.msra.mxu0 0.0
    %6350 = vmatprep.subr.mxu0 0.0
    %6351 = vmatpush1.msra.mxu0 0.0
    %6352 = vmatprep.subr.mxu0 0.0
    %6353 = vmatpush1.msra.mxu0 0.0
    %6354 = vmatprep.subr.mxu0 0.0
    %6355 = vmatpush1.msra.mxu0 0.0
    %6356 = vmatprep.subr.mxu0 0.0
    %6357 = vmatpush1.msra.mxu0 0.0
    %6358 = vmatprep.subr.mxu0 0.0
    %6359 = vmatpush1.msra.mxu0 0.0
    %6360 = vmatprep.subr.mxu0 0.0
    %6361 = vmatpush1.msra.mxu0 0.0
    %6362 = vmatprep.mubr.f32.mxu0 0.0
    %v6363 = vand.u32 %v5924, 4294901760
    %6364 = vmatmul.mubr.f32.gmra.mrb[0].mxu0 %v6363
    %v6365 = vpop.f32.mrb[0].mxu0
    %v6366 = vadd.f32 %v6275, %v6365
    %v6367 = vpop.f32.mrb[0].mxu0
    %6368 = vmatprep.mubr.f32.mxu0 0.0
    %v6369 = vand.u32 %v5926, 4294901760
    %6370 = vmatmul.mubr.f32.gmra.mrb[0].mxu0 %v6369
    %v6371 = vpop.f32.mrb[0].mxu0
    %v6372 = vadd.f32 %v6283, %v6371
    %v6373 = vpop.f32.mrb[0].mxu0
    %6374 = vdwg.mxu0
    %6375 = vmatprep.subr.mxu0 0.0
    %v6376 = vand.u32 %v5907, 4294901760
    %6377 = vmatpush1.msra.mxu0 %v6376
    %6378 = vmatprep.subr.mxu0 0.0
    %v6379 = vand.u32 %v5908, 4294901760
    %6380 = vmatpush1.msra.mxu0 %v6379
    %6381 = vmatprep.subr.mxu0 0.0
    %v6382 = vand.u32 %v5909, 4294901760
    %6383 = vmatpush1.msra.mxu0 %v6382
    %6384 = vmatprep.subr.mxu0 0.0
    %v6385 = vand.u32 %v5910, 4294901760
    %6386 = vmatpush1.msra.mxu0 %v6385
    %6387 = vmatprep.subr.mxu0 0.0
    %6388 = vmatpush1.msra.mxu0 0.0
    %6389 = vmatprep.subr.mxu0 0.0
    %6390 = vmatpush1.msra.mxu0 0.0
    %6391 = vmatprep.subr.mxu0 0.0
    %6392 = vmatpush1.msra.mxu0 0.0
    %6393 = vmatprep.subr.mxu0 0.0
    %6394 = vmatpush1.msra.mxu0 0.0
    %6395 = vmatprep.subr.mxu0 0.0
    %6396 = vmatpush1.msra.mxu0 0.0
    %6397 = vmatprep.subr.mxu0 0.0
    %6398 = vmatpush1.msra.mxu0 0.0
    %6399 = vmatprep.subr.mxu0 0.0
    %6400 = vmatpush1.msra.mxu0 0.0
    %6401 = vmatprep.subr.mxu0 0.0
    %6402 = vmatpush1.msra.mxu0 0.0
    %6403 = vmatprep.subr.mxu0 0.0
    %6404 = vmatpush1.msra.mxu0 0.0
    %6405 = vmatprep.subr.mxu0 0.0
    %6406 = vmatpush1.msra.mxu0 0.0
    %6407 = vmatprep.subr.mxu0 0.0
    %6408 = vmatpush1.msra.mxu0 0.0
    %6409 = vmatprep.subr.mxu0 0.0
    %6410 = vmatpush1.msra.mxu0 0.0
    %6411 = vmatprep.subr.mxu0 0.0
    %6412 = vmatpush1.msra.mxu0 0.0
    %6413 = vmatprep.subr.mxu0 0.0
    %6414 = vmatpush1.msra.mxu0 0.0
    %6415 = vmatprep.subr.mxu0 0.0
    %6416 = vmatpush1.msra.mxu0 0.0
    %6417 = vmatprep.subr.mxu0 0.0
    %6418 = vmatpush1.msra.mxu0 0.0
    %6419 = vmatprep.subr.mxu0 0.0
    %6420 = vmatpush1.msra.mxu0 0.0
    %6421 = vmatprep.subr.mxu0 0.0
    %6422 = vmatpush1.msra.mxu0 0.0
    %6423 = vmatprep.subr.mxu0 0.0
    %6424 = vmatpush1.msra.mxu0 0.0
    %6425 = vmatprep.subr.mxu0 0.0
    %6426 = vmatpush1.msra.mxu0 0.0
    %6427 = vmatprep.subr.mxu0 0.0
    %6428 = vmatpush1.msra.mxu0 0.0
    %6429 = vmatprep.subr.mxu0 0.0
    %6430 = vmatpush1.msra.mxu0 0.0
    %6431 = vmatprep.subr.mxu0 0.0
    %6432 = vmatpush1.msra.mxu0 0.0
    %6433 = vmatprep.subr.mxu0 0.0
    %6434 = vmatpush1.msra.mxu0 0.0
    %6435 = vmatprep.subr.mxu0 0.0
    %6436 = vmatpush1.msra.mxu0 0.0
    %6437 = vmatprep.subr.mxu0 0.0
    %6438 = vmatpush1.msra.mxu0 0.0
    %6439 = vmatprep.subr.mxu0 0.0
    %6440 = vmatpush1.msra.mxu0 0.0
    %6441 = vmatprep.subr.mxu0 0.0
    %6442 = vmatpush1.msra.mxu0 0.0
    %6443 = vmatprep.mubr.f32.mxu0 0.0
    %v6444 = vand.u32 %v5924, 4294901760
    %6445 = vmatmul.mubr.f32.gmra.mrb[0].mxu0 %v6444
    %v6446 = vpop.f32.mrb[0].mxu0
    %v6447 = vadd.f32 %v6366, %v6446
    %v6448 = vpop.f32.mrb[0].mxu0
    %6449 = vmatprep.mubr.f32.mxu0 0.0
    %v6450 = vand.u32 %v5926, 4294901760
    %6451 = vmatmul.mubr.f32.gmra.mrb[0].mxu0 %v6450
    %v6452 = vpop.f32.mrb[0].mxu0
    %v6453 = vadd.f32 %v6372, %v6452
    %v6454 = vpop.f32.mrb[0].mxu0
    %6455 = vdwg.mxu0
    %v6456 = vxor.u32 %v6447, 2147483648
    %v6457 = vxor.u32 %v6453, 2147483648
    %v6458 = vmul.f32 %v6456, 1.442695
    %v6459 = vpow.pop %v6458
    %v6460 = vmul.f32 %v6457, 1.442695
    %v6461 = vpow.pop %v6460
    %v6462 = vadd.f32 %v6459, 1.0
    %v6463 = vadd.f32 %v6461, 1.0
    %v6464 = vrcp.pop %v6462
    %v6465 = vmul.f32 1.0, %v6464
    %v6466 = vrcp.pop %v6463
    %v6467 = vmul.f32 1.0, %v6466
    %v6468 = vld [vmem:[#allocation14] sm:$0xff]
    %v6469 = vld [vmem:[#allocation14 + $0x8] sm:$0xff]
    %v6470 = vld [vmem:[#allocation14 + $0x10] sm:$0xff]
    %v6471 = vld [vmem:[#allocation14 + $0x18] sm:$0xff]
    %v6472 = vld [vmem:[%s14] sm:$0x1]
    %v6474 = vlaneseq
    %v6475 = vshrl.u32 %v6474, 7
    %v6476 = vsub.s32 0, %v6475
    %v6477 = vrot.slane %v6472, %v6476
    %6479 = vmatprep.subr.mxu0 0.0
    %v6480 = vand.u32 %v6468, 4294901760
    %6481 = vmatpush1.msra.mxu0 %v6480
    %6482 = vmatprep.subr.mxu0 0.0
    %v6483 = vand.u32 %v6469, 4294901760
    %6484 = vmatpush1.msra.mxu0 %v6483
    %6485 = vmatprep.subr.mxu0 0.0
    %v6486 = vand.u32 %v6470, 4294901760
    %6487 = vmatpush1.msra.mxu0 %v6486
    %6488 = vmatprep.subr.mxu0 0.0
    %v6489 = vand.u32 %v6471, 4294901760
    %6490 = vmatpush1.msra.mxu0 %v6489
    %6491 = vmatprep.subr.mxu0 0.0
    %6492 = vmatpush1.msra.mxu0 0.0
    %6493 = vmatprep.subr.mxu0 0.0
    %6494 = vmatpush1.msra.mxu0 0.0
    %6495 = vmatprep.subr.mxu0 0.0
    %6496 = vmatpush1.msra.mxu0 0.0
    %6497 = vmatprep.subr.mxu0 0.0
    %6498 = vmatpush1.msra.mxu0 0.0
    %6499 = vmatprep.subr.mxu0 0.0
    %6500 = vmatpush1.msra.mxu0 0.0
    %6501 = vmatprep.subr.mxu0 0.0
    %6502 = vmatpush1.msra.mxu0 0.0
    %6503 = vmatprep.subr.mxu0 0.0
    %6504 = vmatpush1.msra.mxu0 0.0
    %6505 = vmatprep.subr.mxu0 0.0
    %6506 = vmatpush1.msra.mxu0 0.0
    %6507 = vmatprep.subr.mxu0 0.0
    %6508 = vmatpush1.msra.mxu0 0.0
    %6509 = vmatprep.subr.mxu0 0.0
    %6510 = vmatpush1.msra.mxu0 0.0
    %6511 = vmatprep.subr.mxu0 0.0
    %6512 = vmatpush1.msra.mxu0 0.0
    %6513 = vmatprep.subr.mxu0 0.0
    %6514 = vmatpush1.msra.mxu0 0.0
    %6515 = vmatprep.subr.mxu0 0.0
    %6516 = vmatpush1.msra.mxu0 0.0
    %6517 = vmatprep.subr.mxu0 0.0
    %6518 = vmatpush1.msra.mxu0 0.0
    %6519 = vmatprep.subr.mxu0 0.0
    %6520 = vmatpush1.msra.mxu0 0.0
    %6521 = vmatprep.subr.mxu0 0.0
    %6522 = vmatpush1.msra.mxu0 0.0
    %6523 = vmatprep.subr.mxu0 0.0
    %6524 = vmatpush1.msra.mxu0 0.0
    %6525 = vmatprep.subr.mxu0 0.0
    %6526 = vmatpush1.msra.mxu0 0.0
    %6527 = vmatprep.subr.mxu0 0.0
    %6528 = vmatpush1.msra.mxu0 0.0
    %6529 = vmatprep.subr.mxu0 0.0
    %6530 = vmatpush1.msra.mxu0 0.0
    %6531 = vmatprep.subr.mxu0 0.0
    %6532 = vmatpush1.msra.mxu0 0.0
    %6533 = vmatprep.subr.mxu0 0.0
    %6534 = vmatpush1.msra.mxu0 0.0
    %6535 = vmatprep.subr.mxu0 0.0
    %6536 = vmatpush1.msra.mxu0 0.0
    %6537 = vmatprep.subr.mxu0 0.0
    %6538 = vmatpush1.msra.mxu0 0.0
    %6539 = vmatprep.subr.mxu0 0.0
    %6540 = vmatpush1.msra.mxu0 0.0
    %6541 = vmatprep.subr.mxu0 0.0
    %6542 = vmatpush1.msra.mxu0 0.0
    %6543 = vmatprep.subr.mxu0 0.0
    %6544 = vmatpush1.msra.mxu0 0.0
    %6545 = vmatprep.subr.mxu0 0.0
    %6546 = vmatpush1.msra.mxu0 0.0
    %6547 = vmatprep.mubr.f32.mxu0 0.0
    %v6548 = vand.u32 %v5924, 4294901760
    %v6549 = vsub.f32 %v5924, %v6548
    %v6550 = vand.u32 %v6549, 4294901760
    %v6551 = vsub.f32 %v6549, %v6550
    %v6552 = vand.u32 %v6551, 4294901760
    %6553 = vmatmul.mubr.f32.gmra.mrb[0].mxu0 %v6552
    %v6554 = vpop.f32.mrb[0].mxu0
    %v6555 = vadd.f32 %v6477, %v6554
    %v6556 = vpop.f32.mrb[0].mxu0
    %6557 = vmatprep.mubr.f32.mxu0 0.0
    %v6558 = vand.u32 %v5926, 4294901760
    %v6559 = vsub.f32 %v5926, %v6558
    %v6560 = vand.u32 %v6559, 4294901760
    %v6561 = vsub.f32 %v6559, %v6560
    %v6562 = vand.u32 %v6561, 4294901760
    %6563 = vmatmul.mubr.f32.gmra.mrb[0].mxu0 %v6562
    %v6564 = vpop.f32.mrb[0].mxu0
    %v6565 = vadd.f32 %v6477, %v6564
    %v6566 = vpop.f32.mrb[0].mxu0
    %6567 = vdwg.mxu0
    %6568 = vmatprep.subr.mxu0 0.0
    %v6569 = vand.u32 %v6468, 4294901760
    %v6570 = vsub.f32 %v6468, %v6569
    %v6571 = vand.u32 %v6570, 4294901760
    %v6572 = vsub.f32 %v6570, %v6571
    %v6573 = vand.u32 %v6572, 4294901760
    %6574 = vmatpush1.msra.mxu0 %v6573
    %6575 = vmatprep.subr.mxu0 0.0
    %v6576 = vand.u32 %v6469, 4294901760
    %v6577 = vsub.f32 %v6469, %v6576
    %v6578 = vand.u32 %v6577, 4294901760
    %v6579 = vsub.f32 %v6577, %v6578
    %v6580 = vand.u32 %v6579, 4294901760
    %6581 = vmatpush1.msra.mxu0 %v6580
    %6582 = vmatprep.subr.mxu0 0.0
    %v6583 = vand.u32 %v6470, 4294901760
    %v6584 = vsub.f32 %v6470, %v6583
    %v6585 = vand.u32 %v6584, 4294901760
    %v6586 = vsub.f32 %v6584, %v6585
    %v6587 = vand.u32 %v6586, 4294901760
    %6588 = vmatpush1.msra.mxu0 %v6587
    %6589 = vmatprep.subr.mxu0 0.0
    %v6590 = vand.u32 %v6471, 4294901760
    %v6591 = vsub.f32 %v6471, %v6590
    %v6592 = vand.u32 %v6591, 4294901760
    %v6593 = vsub.f32 %v6591, %v6592
    %v6594 = vand.u32 %v6593, 4294901760
    %6595 = vmatpush1.msra.mxu0 %v6594
    %6596 = vmatprep.subr.mxu0 0.0
    %6597 = vmatpush1.msra.mxu0 0.0
    %6598 = vmatprep.subr.mxu0 0.0
    %6599 = vmatpush1.msra.mxu0 0.0
    %6600 = vmatprep.subr.mxu0 0.0
    %6601 = vmatpush1.msra.mxu0 0.0
    %6602 = vmatprep.subr.mxu0 0.0
    %6603 = vmatpush1.msra.mxu0 0.0
    %6604 = vmatprep.subr.mxu0 0.0
    %6605 = vmatpush1.msra.mxu0 0.0
    %6606 = vmatprep.subr.mxu0 0.0
    %6607 = vmatpush1.msra.mxu0 0.0
    %6608 = vmatprep.subr.mxu0 0.0
    %6609 = vmatpush1.msra.mxu0 0.0
    %6610 = vmatprep.subr.mxu0 0.0
    %6611 = vmatpush1.msra.mxu0 0.0
    %6612 = vmatprep.subr.mxu0 0.0
    %6613 = vmatpush1.msra.mxu0 0.0
    %6614 = vmatprep.subr.mxu0 0.0
    %6615 = vmatpush1.msra.mxu0 0.0
    %6616 = vmatprep.subr.mxu0 0.0
    %6617 = vmatpush1.msra.mxu0 0.0
    %6618 = vmatprep.subr.mxu0 0.0
    %6619 = vmatpush1.msra.mxu0 0.0
    %6620 = vmatprep.subr.mxu0 0.0
    %6621 = vmatpush1.msra.mxu0 0.0
    %6622 = vmatprep.subr.mxu0 0.0
    %6623 = vmatpush1.msra.mxu0 0.0
    %6624 = vmatprep.subr.mxu0 0.0
    %6625 = vmatpush1.msra.mxu0 0.0
    %6626 = vmatprep.subr.mxu0 0.0
    %6627 = vmatpush1.msra.mxu0 0.0
    %6628 = vmatprep.subr.mxu0 0.0
    %6629 = vmatpush1.msra.mxu0 0.0
    %6630 = vmatprep.subr.mxu0 0.0
    %6631 = vmatpush1.msra.mxu0 0.0
    %6632 = vmatprep.subr.mxu0 0.0
    %6633 = vmatpush1.msra.mxu0 0.0
    %6634 = vmatprep.subr.mxu0 0.0
    %6635 = vmatpush1.msra.mxu0 0.0
    %6636 = vmatprep.subr.mxu0 0.0
    %6637 = vmatpush1.msra.mxu0 0.0
    %6638 = vmatprep.subr.mxu0 0.0
    %6639 = vmatpush1.msra.mxu0 0.0
    %6640 = vmatprep.subr.mxu0 0.0
    %6641 = vmatpush1.msra.mxu0 0.0
    %6642 = vmatprep.subr.mxu0 0.0
    %6643 = vmatpush1.msra.mxu0 0.0
    %6644 = vmatprep.subr.mxu0 0.0
    %6645 = vmatpush1.msra.mxu0 0.0
    %6646 = vmatprep.subr.mxu0 0.0
    %6647 = vmatpush1.msra.mxu0 0.0
    %6648 = vmatprep.subr.mxu0 0.0
    %6649 = vmatpush1.msra.mxu0 0.0
    %6650 = vmatprep.subr.mxu0 0.0
    %6651 = vmatpush1.msra.mxu0 0.0
    %6652 = vmatprep.mubr.f32.mxu0 0.0
    %v6653 = vand.u32 %v5924, 4294901760
    %6654 = vmatmul.mubr.f32.gmra.mrb[0].mxu0 %v6653
    %v6655 = vpop.f32.mrb[0].mxu0
    %v6656 = vadd.f32 %v6555, %v6655
    %v6657 = vpop.f32.mrb[0].mxu0
    %6658 = vmatprep.mubr.f32.mxu0 0.0
    %v6659 = vand.u32 %v5926, 4294901760
    %6660 = vmatmul.mubr.f32.gmra.mrb[0].mxu0 %v6659
    %v6661 = vpop.f32.mrb[0].mxu0
    %v6662 = vadd.f32 %v6565, %v6661
    %v6663 = vpop.f32.mrb[0].mxu0
    %6664 = vdwg.mxu0
    %6665 = vmatprep.subr.mxu0 0.0
    %v6666 = vand.u32 %v6468, 4294901760
    %v6667 = vsub.f32 %v6468, %v6666
    %6668 = vmatpush1.msra.mxu0 %v6667
    %6669 = vmatprep.subr.mxu0 0.0
    %v6670 = vand.u32 %v6469, 4294901760
    %v6671 = vsub.f32 %v6469, %v6670
    %6672 = vmatpush1.msra.mxu0 %v6671
    %6673 = vmatprep.subr.mxu0 0.0
    %v6674 = vand.u32 %v6470, 4294901760
    %v6675 = vsub.f32 %v6470, %v6674
    %6676 = vmatpush1.msra.mxu0 %v6675
    %6677 = vmatprep.subr.mxu0 0.0
    %v6678 = vand.u32 %v6471, 4294901760
    %v6679 = vsub.f32 %v6471, %v6678
    %6680 = vmatpush1.msra.mxu0 %v6679
    %6681 = vmatprep.subr.mxu0 0.0
    %6682 = vmatpush1.msra.mxu0 0.0
    %6683 = vmatprep.subr.mxu0 0.0
    %6684 = vmatpush1.msra.mxu0 0.0
    %6685 = vmatprep.subr.mxu0 0.0
    %6686 = vmatpush1.msra.mxu0 0.0
    %6687 = vmatprep.subr.mxu0 0.0
    %6688 = vmatpush1.msra.mxu0 0.0
    %6689 = vmatprep.subr.mxu0 0.0
    %6690 = vmatpush1.msra.mxu0 0.0
    %6691 = vmatprep.subr.mxu0 0.0
    %6692 = vmatpush1.msra.mxu0 0.0
    %6693 = vmatprep.subr.mxu0 0.0
    %6694 = vmatpush1.msra.mxu0 0.0
    %6695 = vmatprep.subr.mxu0 0.0
    %6696 = vmatpush1.msra.mxu0 0.0
    %6697 = vmatprep.subr.mxu0 0.0
    %6698 = vmatpush1.msra.mxu0 0.0
    %6699 = vmatprep.subr.mxu0 0.0
    %6700 = vmatpush1.msra.mxu0 0.0
    %6701 = vmatprep.subr.mxu0 0.0
    %6702 = vmatpush1.msra.mxu0 0.0
    %6703 = vmatprep.subr.mxu0 0.0
    %6704 = vmatpush1.msra.mxu0 0.0
    %6705 = vmatprep.subr.mxu0 0.0
    %6706 = vmatpush1.msra.mxu0 0.0
    %6707 = vmatprep.subr.mxu0 0.0
    %6708 = vmatpush1.msra.mxu0 0.0
    %6709 = vmatprep.subr.mxu0 0.0
    %6710 = vmatpush1.msra.mxu0 0.0
    %6711 = vmatprep.subr.mxu0 0.0
    %6712 = vmatpush1.msra.mxu0 0.0
    %6713 = vmatprep.subr.mxu0 0.0
    %6714 = vmatpush1.msra.mxu0 0.0
    %6715 = vmatprep.subr.mxu0 0.0
    %6716 = vmatpush1.msra.mxu0 0.0
    %6717 = vmatprep.subr.mxu0 0.0
    %6718 = vmatpush1.msra.mxu0 0.0
    %6719 = vmatprep.subr.mxu0 0.0
    %6720 = vmatpush1.msra.mxu0 0.0
    %6721 = vmatprep.subr.mxu0 0.0
    %6722 = vmatpush1.msra.mxu0 0.0
    %6723 = vmatprep.subr.mxu0 0.0
    %6724 = vmatpush1.msra.mxu0 0.0
    %6725 = vmatprep.subr.mxu0 0.0
    %6726 = vmatpush1.msra.mxu0 0.0
    %6727 = vmatprep.subr.mxu0 0.0
    %6728 = vmatpush1.msra.mxu0 0.0
    %6729 = vmatprep.subr.mxu0 0.0
    %6730 = vmatpush1.msra.mxu0 0.0
    %6731 = vmatprep.subr.mxu0 0.0
    %6732 = vmatpush1.msra.mxu0 0.0
    %6733 = vmatprep.subr.mxu0 0.0
    %6734 = vmatpush1.msra.mxu0 0.0
    %6735 = vmatprep.subr.mxu0 0.0
    %6736 = vmatpush1.msra.mxu0 0.0
    %6737 = vmatprep.mubr.f32.mxu0 0.0
    %v6738 = vand.u32 %v5924, 4294901760
    %v6739 = vsub.f32 %v5924, %v6738
    %6740 = vmatmul.mubr.f32.gmra.mrb[0].mxu0 %v6739
    %v6741 = vpop.f32.mrb[0].mxu0
    %v6742 = vadd.f32 %v6656, %v6741
    %v6743 = vpop.f32.mrb[0].mxu0
    %6744 = vmatprep.mubr.f32.mxu0 0.0
    %v6745 = vand.u32 %v5926, 4294901760
    %v6746 = vsub.f32 %v5926, %v6745
    %6747 = vmatmul.mubr.f32.gmra.mrb[0].mxu0 %v6746
    %v6748 = vpop.f32.mrb[0].mxu0
    %v6749 = vadd.f32 %v6662, %v6748
    %v6750 = vpop.f32.mrb[0].mxu0
    %6751 = vdwg.mxu0
    %6752 = vmatprep.subr.mxu0 0.0
    %v6753 = vand.u32 %v6468, 4294901760
    %6754 = vmatpush1.msra.mxu0 %v6753
    %6755 = vmatprep.subr.mxu0 0.0
    %v6756 = vand.u32 %v6469, 4294901760
    %6757 = vmatpush1.msra.mxu0 %v6756
    %6758 = vmatprep.subr.mxu0 0.0
    %v6759 = vand.u32 %v6470, 4294901760
    %6760 = vmatpush1.msra.mxu0 %v6759
    %6761 = vmatprep.subr.mxu0 0.0
    %v6762 = vand.u32 %v6471, 4294901760
    %6763 = vmatpush1.msra.mxu0 %v6762
    %6764 = vmatprep.subr.mxu0 0.0
    %6765 = vmatpush1.msra.mxu0 0.0
    %6766 = vmatprep.subr.mxu0 0.0
    %6767 = vmatpush1.msra.mxu0 0.0
    %6768 = vmatprep.subr.mxu0 0.0
    %6769 = vmatpush1.msra.mxu0 0.0
    %6770 = vmatprep.subr.mxu0 0.0
    %6771 = vmatpush1.msra.mxu0 0.0
    %6772 = vmatprep.subr.mxu0 0.0
    %6773 = vmatpush1.msra.mxu0 0.0
    %6774 = vmatprep.subr.mxu0 0.0
    %6775 = vmatpush1.msra.mxu0 0.0
    %6776 = vmatprep.subr.mxu0 0.0
    %6777 = vmatpush1.msra.mxu0 0.0
    %6778 = vmatprep.subr.mxu0 0.0
    %6779 = vmatpush1.msra.mxu0 0.0
    %6780 = vmatprep.subr.mxu0 0.0
    %6781 = vmatpush1.msra.mxu0 0.0
    %6782 = vmatprep.subr.mxu0 0.0
    %6783 = vmatpush1.msra.mxu0 0.0
    %6784 = vmatprep.subr.mxu0 0.0
    %6785 = vmatpush1.msra.mxu0 0.0
    %6786 = vmatprep.subr.mxu0 0.0
    %6787 = vmatpush1.msra.mxu0 0.0
    %6788 = vmatprep.subr.mxu0 0.0
    %6789 = vmatpush1.msra.mxu0 0.0
    %6790 = vmatprep.subr.mxu0 0.0
    %6791 = vmatpush1.msra.mxu0 0.0
    %6792 = vmatprep.subr.mxu0 0.0
    %6793 = vmatpush1.msra.mxu0 0.0
    %6794 = vmatprep.subr.mxu0 0.0
    %6795 = vmatpush1.msra.mxu0 0.0
    %6796 = vmatprep.subr.mxu0 0.0
    %6797 = vmatpush1.msra.mxu0 0.0
    %6798 = vmatprep.subr.mxu0 0.0
    %6799 = vmatpush1.msra.mxu0 0.0
    %6800 = vmatprep.subr.mxu0 0.0
    %6801 = vmatpush1.msra.mxu0 0.0
    %6802 = vmatprep.subr.mxu0 0.0
    %6803 = vmatpush1.msra.mxu0 0.0
    %6804 = vmatprep.subr.mxu0 0.0
    %6805 = vmatpush1.msra.mxu0 0.0
    %6806 = vmatprep.subr.mxu0 0.0
    %6807 = vmatpush1.msra.mxu0 0.0
    %6808 = vmatprep.subr.mxu0 0.0
    %6809 = vmatpush1.msra.mxu0 0.0
    %6810 = vmatprep.subr.mxu0 0.0
    %6811 = vmatpush1.msra.mxu0 0.0
    %6812 = vmatprep.subr.mxu0 0.0
    %6813 = vmatpush1.msra.mxu0 0.0
    %6814 = vmatprep.subr.mxu0 0.0
    %6815 = vmatpush1.msra.mxu0 0.0
    %6816 = vmatprep.subr.mxu0 0.0
    %6817 = vmatpush1.msra.mxu0 0.0
    %6818 = vmatprep.subr.mxu0 0.0
    %6819 = vmatpush1.msra.mxu0 0.0
    %6820 = vmatprep.mubr.f32.mxu0 0.0
    %v6821 = vand.u32 %v5924, 4294901760
    %v6822 = vsub.f32 %v5924, %v6821
    %v6823 = vand.u32 %v6822, 4294901760
    %6824 = vmatmul.mubr.f32.gmra.mrb[0].mxu0 %v6823
    %v6825 = vpop.f32.mrb[0].mxu0
    %v6826 = vadd.f32 %v6742, %v6825
    %v6827 = vpop.f32.mrb[0].mxu0
    %6828 = vmatprep.mubr.f32.mxu0 0.0
    %v6829 = vand.u32 %v5926, 4294901760
    %v6830 = vsub.f32 %v5926, %v6829
    %v6831 = vand.u32 %v6830, 4294901760
    %6832 = vmatmul.mubr.f32.gmra.mrb[0].mxu0 %v6831
    %v6833 = vpop.f32.mrb[0].mxu0
    %v6834 = vadd.f32 %v6749, %v6833
    %v6835 = vpop.f32.mrb[0].mxu0
    %6836 = vdwg.mxu0
    %6837 = vmatprep.subr.mxu0 0.0
    %v6838 = vand.u32 %v6468, 4294901760
    %v6839 = vsub.f32 %v6468, %v6838
    %v6840 = vand.u32 %v6839, 4294901760
    %6841 = vmatpush1.msra.mxu0 %v6840
    %6842 = vmatprep.subr.mxu0 0.0
    %v6843 = vand.u32 %v6469, 4294901760
    %v6844 = vsub.f32 %v6469, %v6843
    %v6845 = vand.u32 %v6844, 4294901760
    %6846 = vmatpush1.msra.mxu0 %v6845
    %6847 = vmatprep.subr.mxu0 0.0
    %v6848 = vand.u32 %v6470, 4294901760
    %v6849 = vsub.f32 %v6470, %v6848
    %v6850 = vand.u32 %v6849, 4294901760
    %6851 = vmatpush1.msra.mxu0 %v6850
    %6852 = vmatprep.subr.mxu0 0.0
    %v6853 = vand.u32 %v6471, 4294901760
    %v6854 = vsub.f32 %v6471, %v6853
    %v6855 = vand.u32 %v6854, 4294901760
    %6856 = vmatpush1.msra.mxu0 %v6855
    %6857 = vmatprep.subr.mxu0 0.0
    %6858 = vmatpush1.msra.mxu0 0.0
    %6859 = vmatprep.subr.mxu0 0.0
    %6860 = vmatpush1.msra.mxu0 0.0
    %6861 = vmatprep.subr.mxu0 0.0
    %6862 = vmatpush1.msra.mxu0 0.0
    %6863 = vmatprep.subr.mxu0 0.0
    %6864 = vmatpush1.msra.mxu0 0.0
    %6865 = vmatprep.subr.mxu0 0.0
    %6866 = vmatpush1.msra.mxu0 0.0
    %6867 = vmatprep.subr.mxu0 0.0
    %6868 = vmatpush1.msra.mxu0 0.0
    %6869 = vmatprep.subr.mxu0 0.0
    %6870 = vmatpush1.msra.mxu0 0.0
    %6871 = vmatprep.subr.mxu0 0.0
    %6872 = vmatpush1.msra.mxu0 0.0
    %6873 = vmatprep.subr.mxu0 0.0
    %6874 = vmatpush1.msra.mxu0 0.0
    %6875 = vmatprep.subr.mxu0 0.0
    %6876 = vmatpush1.msra.mxu0 0.0
    %6877 = vmatprep.subr.mxu0 0.0
    %6878 = vmatpush1.msra.mxu0 0.0
    %6879 = vmatprep.subr.mxu0 0.0
    %6880 = vmatpush1.msra.mxu0 0.0
    %6881 = vmatprep.subr.mxu0 0.0
    %6882 = vmatpush1.msra.mxu0 0.0
    %6883 = vmatprep.subr.mxu0 0.0
    %6884 = vmatpush1.msra.mxu0 0.0
    %6885 = vmatprep.subr.mxu0 0.0
    %6886 = vmatpush1.msra.mxu0 0.0
    %6887 = vmatprep.subr.mxu0 0.0
    %6888 = vmatpush1.msra.mxu0 0.0
    %6889 = vmatprep.subr.mxu0 0.0
    %6890 = vmatpush1.msra.mxu0 0.0
    %6891 = vmatprep.subr.mxu0 0.0
    %6892 = vmatpush1.msra.mxu0 0.0
    %6893 = vmatprep.subr.mxu0 0.0
    %6894 = vmatpush1.msra.mxu0 0.0
    %6895 = vmatprep.subr.mxu0 0.0
    %6896 = vmatpush1.msra.mxu0 0.0
    %6897 = vmatprep.subr.mxu0 0.0
    %6898 = vmatpush1.msra.mxu0 0.0
    %6899 = vmatprep.subr.mxu0 0.0
    %6900 = vmatpush1.msra.mxu0 0.0
    %6901 = vmatprep.subr.mxu0 0.0
    %6902 = vmatpush1.msra.mxu0 0.0
    %6903 = vmatprep.subr.mxu0 0.0
    %6904 = vmatpush1.msra.mxu0 0.0
    %6905 = vmatprep.subr.mxu0 0.0
    %6906 = vmatpush1.msra.mxu0 0.0
    %6907 = vmatprep.subr.mxu0 0.0
    %6908 = vmatpush1.msra.mxu0 0.0
    %6909 = vmatprep.subr.mxu0 0.0
    %6910 = vmatpush1.msra.mxu0 0.0
    %6911 = vmatprep.subr.mxu0 0.0
    %6912 = vmatpush1.msra.mxu0 0.0
    %6913 = vmatprep.mubr.f32.mxu0 0.0
    %v6914 = vand.u32 %v5924, 4294901760
    %6915 = vmatmul.mubr.f32.gmra.mrb[0].mxu0 %v6914
    %v6916 = vpop.f32.mrb[0].mxu0
    %v6917 = vadd.f32 %v6826, %v6916
    %v6918 = vpop.f32.mrb[0].mxu0
    %6919 = vmatprep.mubr.f32.mxu0 0.0
    %v6920 = vand.u32 %v5926, 4294901760
    %6921 = vmatmul.mubr.f32.gmra.mrb[0].mxu0 %v6920
    %v6922 = vpop.f32.mrb[0].mxu0
    %v6923 = vadd.f32 %v6834, %v6922
    %v6924 = vpop.f32.mrb[0].mxu0
    %6925 = vdwg.mxu0
    %6926 = vmatprep.subr.mxu0 0.0
    %v6927 = vand.u32 %v6468, 4294901760
    %6928 = vmatpush1.msra.mxu0 %v6927
    %6929 = vmatprep.subr.mxu0 0.0
    %v6930 = vand.u32 %v6469, 4294901760
    %6931 = vmatpush1.msra.mxu0 %v6930
    %6932 = vmatprep.subr.mxu0 0.0
    %v6933 = vand.u32 %v6470, 4294901760
    %6934 = vmatpush1.msra.mxu0 %v6933
    %6935 = vmatprep.subr.mxu0 0.0
    %v6936 = vand.u32 %v6471, 4294901760
    %6937 = vmatpush1.msra.mxu0 %v6936
    %6938 = vmatprep.subr.mxu0 0.0
    %6939 = vmatpush1.msra.mxu0 0.0
    %6940 = vmatprep.subr.mxu0 0.0
    %6941 = vmatpush1.msra.mxu0 0.0
    %6942 = vmatprep.subr.mxu0 0.0
    %6943 = vmatpush1.msra.mxu0 0.0
    %6944 = vmatprep.subr.mxu0 0.0
    %6945 = vmatpush1.msra.mxu0 0.0
    %6946 = vmatprep.subr.mxu0 0.0
    %6947 = vmatpush1.msra.mxu0 0.0
    %6948 = vmatprep.subr.mxu0 0.0
    %6949 = vmatpush1.msra.mxu0 0.0
    %6950 = vmatprep.subr.mxu0 0.0
    %6951 = vmatpush1.msra.mxu0 0.0
    %6952 = vmatprep.subr.mxu0 0.0
    %6953 = vmatpush1.msra.mxu0 0.0
    %6954 = vmatprep.subr.mxu0 0.0
    %6955 = vmatpush1.msra.mxu0 0.0
    %6956 = vmatprep.subr.mxu0 0.0
    %6957 = vmatpush1.msra.mxu0 0.0
    %6958 = vmatprep.subr.mxu0 0.0
    %6959 = vmatpush1.msra.mxu0 0.0
    %6960 = vmatprep.subr.mxu0 0.0
    %6961 = vmatpush1.msra.mxu0 0.0
    %6962 = vmatprep.subr.mxu0 0.0
    %6963 = vmatpush1.msra.mxu0 0.0
    %6964 = vmatprep.subr.mxu0 0.0
    %6965 = vmatpush1.msra.mxu0 0.0
    %6966 = vmatprep.subr.mxu0 0.0
    %6967 = vmatpush1.msra.mxu0 0.0
    %6968 = vmatprep.subr.mxu0 0.0
    %6969 = vmatpush1.msra.mxu0 0.0
    %6970 = vmatprep.subr.mxu0 0.0
    %6971 = vmatpush1.msra.mxu0 0.0
    %6972 = vmatprep.subr.mxu0 0.0
    %6973 = vmatpush1.msra.mxu0 0.0
    %6974 = vmatprep.subr.mxu0 0.0
    %6975 = vmatpush1.msra.mxu0 0.0
    %6976 = vmatprep.subr.mxu0 0.0
    %6977 = vmatpush1.msra.mxu0 0.0
    %6978 = vmatprep.subr.mxu0 0.0
    %6979 = vmatpush1.msra.mxu0 0.0
    %6980 = vmatprep.subr.mxu0 0.0
    %6981 = vmatpush1.msra.mxu0 0.0
    %6982 = vmatprep.subr.mxu0 0.0
    %6983 = vmatpush1.msra.mxu0 0.0
    %6984 = vmatprep.subr.mxu0 0.0
    %6985 = vmatpush1.msra.mxu0 0.0
    %6986 = vmatprep.subr.mxu0 0.0
    %6987 = vmatpush1.msra.mxu0 0.0
    %6988 = vmatprep.subr.mxu0 0.0
    %6989 = vmatpush1.msra.mxu0 0.0
    %6990 = vmatprep.subr.mxu0 0.0
    %6991 = vmatpush1.msra.mxu0 0.0
    %6992 = vmatprep.subr.mxu0 0.0
    %6993 = vmatpush1.msra.mxu0 0.0
    %6994 = vmatprep.mubr.f32.mxu0 0.0
    %v6995 = vand.u32 %v5924, 4294901760
    %6996 = vmatmul.mubr.f32.gmra.mrb[0].mxu0 %v6995
    %v6997 = vpop.f32.mrb[0].mxu0
    %v6998 = vadd.f32 %v6917, %v6997
    %v6999 = vpop.f32.mrb[0].mxu0
    %7000 = vmatprep.mubr.f32.mxu0 0.0
    %v7001 = vand.u32 %v5926, 4294901760
    %7002 = vmatmul.mubr.f32.gmra.mrb[0].mxu0 %v7001
    %v7003 = vpop.f32.mrb[0].mxu0
    %v7004 = vadd.f32 %v6923, %v7003
    %v7005 = vpop.f32.mrb[0].mxu0
    %7006 = vdwg.mxu0
    %v7007 = vtanh.pop %v6998
    %v7008 = vtanh.pop %v7004
    %v7009 = vmul.f32 %v150, %v6465
    %v7010 = vmul.f32 %v151, %v6467
    %7012 = vset.pattern.permute.xlu0 0
    %7013 = vperm.xlu0 %7012, %v7009
    %v7014 = vpop.permute.xlu0 %7013
    %7017 = vset.pattern.permute.xlu0 0
    %7018 = vperm.xlu0 %7017, %v7010
    %v7019 = vpop.permute.xlu0 %7018
    %v7021 = vmul.f32 %v7014, %v7007
    %v7022 = vmul.f32 %v7019, %v7008
    %vm7023 = vcmask 7168
    %v7024 = vsel %vm7023, %v150, 0.0
    %v7025 = vrot.slane %v7024, 4
    %v7026 = vadd.f32 %v7024, %v7025
    %v7027 = vrot.slane %v7026, 2
    %v7028 = vadd.f32 %v7026, %v7027
    %v7029 = vrot.slane %v7028, 1
    %v7030 = vadd.f32 %v7028, %v7029
    %v7031 = vsel %vm7023, %v151, 0.0
    %v7032 = vrot.slane %v7031, 4
    %v7033 = vadd.f32 %v7031, %v7032
    %v7034 = vrot.slane %v7033, 2
    %v7035 = vadd.f32 %v7033, %v7034
    %v7036 = vrot.slane %v7035, 1
    %v7037 = vadd.f32 %v7035, %v7036
    %v7038 = vsub.f32 %v150, 1.0
    %v7039 = vsub.f32 %v151, 1.0
    %v7040 = vmul.f32 %v7038, 1e+09
    %v7041 = vmul.f32 %v7039, 1e+09
    %7043 = vset.pattern.permute.xlu0 0
    %7044 = vperm.xlu0 %7043, %v7040
    %v7045 = vpop.permute.xlu0 %7044
    %7048 = vset.pattern.permute.xlu0 0
    %7049 = vperm.xlu0 %7048, %v7041
    %v7050 = vpop.permute.xlu0 %7049
    %v7052 = vadd.f32 %v7021, %v7045
    %v7053 = vadd.f32 %v7022, %v7050
    %v7054 = vsel %vm163, %v7052, -inf
    %v7055 = vrot.slane %v7054, 4
    %v7056 = vmax.f32 %v7054, %v7055
    %v7057 = vrot.slane %v7056, 2
    %v7058 = vmax.f32 %v7056, %v7057
    %v7059 = vrot.slane %v7058, 1
    %v7060 = vmax.f32 %v7058, %v7059
    %v7061 = vsel %vm163, %v7053, -inf
    %v7062 = vrot.slane %v7061, 4
    %v7063 = vmax.f32 %v7061, %v7062
    %v7064 = vrot.slane %v7063, 2
    %v7065 = vmax.f32 %v7063, %v7064
    %v7066 = vrot.slane %v7065, 1
    %v7067 = vmax.f32 %v7065, %v7066
    %v7068 = vsel %vm163, %v7021, 0.0
    %v7069 = vrot.slane %v7068, 4
    %v7070 = vadd.f32 %v7068, %v7069
    %v7071 = vrot.slane %v7070, 2
    %v7072 = vadd.f32 %v7070, %v7071
    %v7073 = vrot.slane %v7072, 1
    %v7074 = vadd.f32 %v7072, %v7073
    %v7075 = vsel %vm163, %v7022, 0.0
    %v7076 = vrot.slane %v7075, 4
    %v7077 = vadd.f32 %v7075, %v7076
    %v7078 = vrot.slane %v7077, 2
    %v7079 = vadd.f32 %v7077, %v7078
    %v7080 = vrot.slane %v7079, 1
    %v7081 = vadd.f32 %v7079, %v7080
    %7083 = vset.pattern.permute.xlu0 0
    %7084 = vperm.xlu0 %7083, %v7030
    %v7085 = vpop.permute.xlu0 %7084
    %7088 = vset.pattern.permute.xlu0 0
    %7089 = vperm.xlu0 %7088, %v7037
    %v7090 = vpop.permute.xlu0 %7089
    %v7092 = vrcp.pop %v7085
    %v7093 = vmul.f32 %v7074, %v7092
    %v7094 = vrcp.pop %v7090
    %v7095 = vmul.f32 %v7081, %v7094
    %v7096 = vadd.f32 %v7093, %v7060
    %v7097 = vadd.f32 %v7095, %v7067
    %v7098 = vld [vmem:[%s15] sm:$0xff]
    %v7099 = vld [vmem:[%s15 + $0x8] sm:$0xff]
    %v7100 = vld [vmem:[%s15 + $0x10] sm:$0xff]
    %v7101 = vld [vmem:[%s15 + $0x18] sm:$0xff]
    %v7102 = vld [vmem:[%s16] sm:$0x1]
    %v7104 = vlaneseq
    %v7105 = vshrl.u32 %v7104, 7
    %v7106 = vsub.s32 0, %v7105
    %v7107 = vrot.slane %v7102, %v7106
    %vm7111 = vcmask 1041409
    %v7112 = vsel %vm7111, %v7097, %v7096
    %v7113 = vsel %vm163, %v7112, 0
    %7115 = vmatprep.subr.mxu0 0.0
    %v7116 = vand.u32 %v7098, 4294901760
    %7117 = vmatpush1.msra.mxu0 %v7116
    %7118 = vmatprep.subr.mxu0 0.0
    %v7119 = vand.u32 %v7099, 4294901760
    %7120 = vmatpush1.msra.mxu0 %v7119
    %7121 = vmatprep.subr.mxu0 0.0
    %v7122 = vand.u32 %v7100, 4294901760
    %7123 = vmatpush1.msra.mxu0 %v7122
    %7124 = vmatprep.subr.mxu0 0.0
    %v7125 = vand.u32 %v7101, 4294901760
    %7126 = vmatpush1.msra.mxu0 %v7125
    %7127 = vmatprep.subr.mxu0 0.0
    %7128 = vmatpush1.msra.mxu0 0.0
    %7129 = vmatprep.subr.mxu0 0.0
    %7130 = vmatpush1.msra.mxu0 0.0
    %7131 = vmatprep.subr.mxu0 0.0
    %7132 = vmatpush1.msra.mxu0 0.0
    %7133 = vmatprep.subr.mxu0 0.0
    %7134 = vmatpush1.msra.mxu0 0.0
    %7135 = vmatprep.subr.mxu0 0.0
    %7136 = vmatpush1.msra.mxu0 0.0
    %7137 = vmatprep.subr.mxu0 0.0
    %7138 = vmatpush1.msra.mxu0 0.0
    %7139 = vmatprep.subr.mxu0 0.0
    %7140 = vmatpush1.msra.mxu0 0.0
    %7141 = vmatprep.subr.mxu0 0.0
    %7142 = vmatpush1.msra.mxu0 0.0
    %7143 = vmatprep.subr.mxu0 0.0
    %7144 = vmatpush1.msra.mxu0 0.0
    %7145 = vmatprep.subr.mxu0 0.0
    %7146 = vmatpush1.msra.mxu0 0.0
    %7147 = vmatprep.subr.mxu0 0.0
    %7148 = vmatpush1.msra.mxu0 0.0
    %7149 = vmatprep.subr.mxu0 0.0
    %7150 = vmatpush1.msra.mxu0 0.0
    %7151 = vmatprep.subr.mxu0 0.0
    %7152 = vmatpush1.msra.mxu0 0.0
    %7153 = vmatprep.subr.mxu0 0.0
    %7154 = vmatpush1.msra.mxu0 0.0
    %7155 = vmatprep.subr.mxu0 0.0
    %7156 = vmatpush1.msra.mxu0 0.0
    %7157 = vmatprep.subr.mxu0 0.0
    %7158 = vmatpush1.msra.mxu0 0.0
    %7159 = vmatprep.subr.mxu0 0.0
    %7160 = vmatpush1.msra.mxu0 0.0
    %7161 = vmatprep.subr.mxu0 0.0
    %7162 = vmatpush1.msra.mxu0 0.0
    %7163 = vmatprep.subr.mxu0 0.0
    %7164 = vmatpush1.msra.mxu0 0.0
    %7165 = vmatprep.subr.mxu0 0.0
    %7166 = vmatpush1.msra.mxu0 0.0
    %7167 = vmatprep.subr.mxu0 0.0
    %7168 = vmatpush1.msra.mxu0 0.0
    %7169 = vmatprep.subr.mxu0 0.0
    %7170 = vmatpush1.msra.mxu0 0.0
    %7171 = vmatprep.subr.mxu0 0.0
    %7172 = vmatpush1.msra.mxu0 0.0
    %7173 = vmatprep.subr.mxu0 0.0
    %7174 = vmatpush1.msra.mxu0 0.0
    %7175 = vmatprep.subr.mxu0 0.0
    %7176 = vmatpush1.msra.mxu0 0.0
    %7177 = vmatprep.subr.mxu0 0.0
    %7178 = vmatpush1.msra.mxu0 0.0
    %7179 = vmatprep.subr.mxu0 0.0
    %7180 = vmatpush1.msra.mxu0 0.0
    %7181 = vmatprep.subr.mxu0 0.0
    %7182 = vmatpush1.msra.mxu0 0.0
    %7183 = vmatprep.mubr.f32.mxu0 0.0
    %v7184 = vand.u32 %v7113, 4294901760
    %v7185 = vsub.f32 %v7113, %v7184
    %v7186 = vand.u32 %v7185, 4294901760
    %v7187 = vsub.f32 %v7185, %v7186
    %v7188 = vand.u32 %v7187, 4294901760
    %7189 = vmatmul.mubr.f32.gmra.mrb[0].mxu0 %v7188
    %v7190 = vpop.f32.mrb[0].mxu0
    %v7191 = vadd.f32 %v7107, %v7190
    %v7192 = vpop.f32.mrb[0].mxu0
    %7193 = vdwg.mxu0
    %7194 = vmatprep.subr.mxu0 0.0
    %v7195 = vand.u32 %v7098, 4294901760
    %v7196 = vsub.f32 %v7098, %v7195
    %v7197 = vand.u32 %v7196, 4294901760
    %v7198 = vsub.f32 %v7196, %v7197
    %v7199 = vand.u32 %v7198, 4294901760
    %7200 = vmatpush1.msra.mxu0 %v7199
    %7201 = vmatprep.subr.mxu0 0.0
    %v7202 = vand.u32 %v7099, 4294901760
    %v7203 = vsub.f32 %v7099, %v7202
    %v7204 = vand.u32 %v7203, 4294901760
    %v7205 = vsub.f32 %v7203, %v7204
    %v7206 = vand.u32 %v7205, 4294901760
    %7207 = vmatpush1.msra.mxu0 %v7206
    %7208 = vmatprep.subr.mxu0 0.0
    %v7209 = vand.u32 %v7100, 4294901760
    %v7210 = vsub.f32 %v7100, %v7209
    %v7211 = vand.u32 %v7210, 4294901760
    %v7212 = vsub.f32 %v7210, %v7211
    %v7213 = vand.u32 %v7212, 4294901760
    %7214 = vmatpush1.msra.mxu0 %v7213
    %7215 = vmatprep.subr.mxu0 0.0
    %v7216 = vand.u32 %v7101, 4294901760
    %v7217 = vsub.f32 %v7101, %v7216
    %v7218 = vand.u32 %v7217, 4294901760
    %v7219 = vsub.f32 %v7217, %v7218
    %v7220 = vand.u32 %v7219, 4294901760
    %7221 = vmatpush1.msra.mxu0 %v7220
    %7222 = vmatprep.subr.mxu0 0.0
    %7223 = vmatpush1.msra.mxu0 0.0
    %7224 = vmatprep.subr.mxu0 0.0
    %7225 = vmatpush1.msra.mxu0 0.0
    %7226 = vmatprep.subr.mxu0 0.0
    %7227 = vmatpush1.msra.mxu0 0.0
    %7228 = vmatprep.subr.mxu0 0.0
    %7229 = vmatpush1.msra.mxu0 0.0
    %7230 = vmatprep.subr.mxu0 0.0
    %7231 = vmatpush1.msra.mxu0 0.0
    %7232 = vmatprep.subr.mxu0 0.0
    %7233 = vmatpush1.msra.mxu0 0.0
    %7234 = vmatprep.subr.mxu0 0.0
    %7235 = vmatpush1.msra.mxu0 0.0
    %7236 = vmatprep.subr.mxu0 0.0
    %7237 = vmatpush1.msra.mxu0 0.0
    %7238 = vmatprep.subr.mxu0 0.0
    %7239 = vmatpush1.msra.mxu0 0.0
    %7240 = vmatprep.subr.mxu0 0.0
    %7241 = vmatpush1.msra.mxu0 0.0
    %7242 = vmatprep.subr.mxu0 0.0
    %7243 = vmatpush1.msra.mxu0 0.0
    %7244 = vmatprep.subr.mxu0 0.0
    %7245 = vmatpush1.msra.mxu0 0.0
    %7246 = vmatprep.subr.mxu0 0.0
    %7247 = vmatpush1.msra.mxu0 0.0
    %7248 = vmatprep.subr.mxu0 0.0
    %7249 = vmatpush1.msra.mxu0 0.0
    %7250 = vmatprep.subr.mxu0 0.0
    %7251 = vmatpush1.msra.mxu0 0.0
    %7252 = vmatprep.subr.mxu0 0.0
    %7253 = vmatpush1.msra.mxu0 0.0
    %7254 = vmatprep.subr.mxu0 0.0
    %7255 = vmatpush1.msra.mxu0 0.0
    %7256 = vmatprep.subr.mxu0 0.0
    %7257 = vmatpush1.msra.mxu0 0.0
    %7258 = vmatprep.subr.mxu0 0.0
    %7259 = vmatpush1.msra.mxu0 0.0
    %7260 = vmatprep.subr.mxu0 0.0
    %7261 = vmatpush1.msra.mxu0 0.0
    %7262 = vmatprep.subr.mxu0 0.0
    %7263 = vmatpush1.msra.mxu0 0.0
    %7264 = vmatprep.subr.mxu0 0.0
    %7265 = vmatpush1.msra.mxu0 0.0
    %7266 = vmatprep.subr.mxu0 0.0
    %7267 = vmatpush1.msra.mxu0 0.0
    %7268 = vmatprep.subr.mxu0 0.0
    %7269 = vmatpush1.msra.mxu0 0.0
    %7270 = vmatprep.subr.mxu0 0.0
    %7271 = vmatpush1.msra.mxu0 0.0
    %7272 = vmatprep.subr.mxu0 0.0
    %7273 = vmatpush1.msra.mxu0 0.0
    %7274 = vmatprep.subr.mxu0 0.0
    %7275 = vmatpush1.msra.mxu0 0.0
    %7276 = vmatprep.subr.mxu0 0.0
    %7277 = vmatpush1.msra.mxu0 0.0
    %7278 = vmatprep.mubr.f32.mxu0 0.0
    %v7279 = vand.u32 %v7113, 4294901760
    %7280 = vmatmul.mubr.f32.gmra.mrb[0].mxu0 %v7279
    %v7281 = vpop.f32.mrb[0].mxu0
    %v7282 = vadd.f32 %v7191, %v7281
    %v7283 = vpop.f32.mrb[0].mxu0
    %7284 = vdwg.mxu0
    %7285 = vmatprep.subr.mxu0 0.0
    %v7286 = vand.u32 %v7098, 4294901760
    %v7287 = vsub.f32 %v7098, %v7286
    %7288 = vmatpush1.msra.mxu0 %v7287
    %7289 = vmatprep.subr.mxu0 0.0
    %v7290 = vand.u32 %v7099, 4294901760
    %v7291 = vsub.f32 %v7099, %v7290
    %7292 = vmatpush1.msra.mxu0 %v7291
    %7293 = vmatprep.subr.mxu0 0.0
    %v7294 = vand.u32 %v7100, 4294901760
    %v7295 = vsub.f32 %v7100, %v7294
    %7296 = vmatpush1.msra.mxu0 %v7295
    %7297 = vmatprep.subr.mxu0 0.0
    %v7298 = vand.u32 %v7101, 4294901760
    %v7299 = vsub.f32 %v7101, %v7298
    %7300 = vmatpush1.msra.mxu0 %v7299
    %7301 = vmatprep.subr.mxu0 0.0
    %7302 = vmatpush1.msra.mxu0 0.0
    %7303 = vmatprep.subr.mxu0 0.0
    %7304 = vmatpush1.msra.mxu0 0.0
    %7305 = vmatprep.subr.mxu0 0.0
    %7306 = vmatpush1.msra.mxu0 0.0
    %7307 = vmatprep.subr.mxu0 0.0
    %7308 = vmatpush1.msra.mxu0 0.0
    %7309 = vmatprep.subr.mxu0 0.0
    %7310 = vmatpush1.msra.mxu0 0.0
    %7311 = vmatprep.subr.mxu0 0.0
    %7312 = vmatpush1.msra.mxu0 0.0
    %7313 = vmatprep.subr.mxu0 0.0
    %7314 = vmatpush1.msra.mxu0 0.0
    %7315 = vmatprep.subr.mxu0 0.0
    %7316 = vmatpush1.msra.mxu0 0.0
    %7317 = vmatprep.subr.mxu0 0.0
    %7318 = vmatpush1.msra.mxu0 0.0
    %7319 = vmatprep.subr.mxu0 0.0
    %7320 = vmatpush1.msra.mxu0 0.0
    %7321 = vmatprep.subr.mxu0 0.0
    %7322 = vmatpush1.msra.mxu0 0.0
    %7323 = vmatprep.subr.mxu0 0.0
    %7324 = vmatpush1.msra.mxu0 0.0
    %7325 = vmatprep.subr.mxu0 0.0
    %7326 = vmatpush1.msra.mxu0 0.0
    %7327 = vmatprep.subr.mxu0 0.0
    %7328 = vmatpush1.msra.mxu0 0.0
    %7329 = vmatprep.subr.mxu0 0.0
    %7330 = vmatpush1.msra.mxu0 0.0
    %7331 = vmatprep.subr.mxu0 0.0
    %7332 = vmatpush1.msra.mxu0 0.0
    %7333 = vmatprep.subr.mxu0 0.0
    %7334 = vmatpush1.msra.mxu0 0.0
    %7335 = vmatprep.subr.mxu0 0.0
    %7336 = vmatpush1.msra.mxu0 0.0
    %7337 = vmatprep.subr.mxu0 0.0
    %7338 = vmatpush1.msra.mxu0 0.0
    %7339 = vmatprep.subr.mxu0 0.0
    %7340 = vmatpush1.msra.mxu0 0.0
    %7341 = vmatprep.subr.mxu0 0.0
    %7342 = vmatpush1.msra.mxu0 0.0
    %7343 = vmatprep.subr.mxu0 0.0
    %7344 = vmatpush1.msra.mxu0 0.0
    %7345 = vmatprep.subr.mxu0 0.0
    %7346 = vmatpush1.msra.mxu0 0.0
    %7347 = vmatprep.subr.mxu0 0.0
    %7348 = vmatpush1.msra.mxu0 0.0
    %7349 = vmatprep.subr.mxu0 0.0
    %7350 = vmatpush1.msra.mxu0 0.0
    %7351 = vmatprep.subr.mxu0 0.0
    %7352 = vmatpush1.msra.mxu0 0.0
    %7353 = vmatprep.subr.mxu0 0.0
    %7354 = vmatpush1.msra.mxu0 0.0
    %7355 = vmatprep.subr.mxu0 0.0
    %7356 = vmatpush1.msra.mxu0 0.0
    %7357 = vmatprep.mubr.f32.mxu0 0.0
    %v7358 = vand.u32 %v7113, 4294901760
    %v7359 = vsub.f32 %v7113, %v7358
    %7360 = vmatmul.mubr.f32.gmra.mrb[0].mxu0 %v7359
    %v7361 = vpop.f32.mrb[0].mxu0
    %v7362 = vadd.f32 %v7282, %v7361
    %v7363 = vpop.f32.mrb[0].mxu0
    %7364 = vdwg.mxu0
    %7365 = vmatprep.subr.mxu0 0.0
    %v7366 = vand.u32 %v7098, 4294901760
    %7367 = vmatpush1.msra.mxu0 %v7366
    %7368 = vmatprep.subr.mxu0 0.0
    %v7369 = vand.u32 %v7099, 4294901760
    %7370 = vmatpush1.msra.mxu0 %v7369
    %7371 = vmatprep.subr.mxu0 0.0
    %v7372 = vand.u32 %v7100, 4294901760
    %7373 = vmatpush1.msra.mxu0 %v7372
    %7374 = vmatprep.subr.mxu0 0.0
    %v7375 = vand.u32 %v7101, 4294901760
    %7376 = vmatpush1.msra.mxu0 %v7375
    %7377 = vmatprep.subr.mxu0 0.0
    %7378 = vmatpush1.msra.mxu0 0.0
    %7379 = vmatprep.subr.mxu0 0.0
    %7380 = vmatpush1.msra.mxu0 0.0
    %7381 = vmatprep.subr.mxu0 0.0
    %7382 = vmatpush1.msra.mxu0 0.0
    %7383 = vmatprep.subr.mxu0 0.0
    %7384 = vmatpush1.msra.mxu0 0.0
    %7385 = vmatprep.subr.mxu0 0.0
    %7386 = vmatpush1.msra.mxu0 0.0
    %7387 = vmatprep.subr.mxu0 0.0
    %7388 = vmatpush1.msra.mxu0 0.0
    %7389 = vmatprep.subr.mxu0 0.0
    %7390 = vmatpush1.msra.mxu0 0.0
    %7391 = vmatprep.subr.mxu0 0.0
    %7392 = vmatpush1.msra.mxu0 0.0
    %7393 = vmatprep.subr.mxu0 0.0
    %7394 = vmatpush1.msra.mxu0 0.0
    %7395 = vmatprep.subr.mxu0 0.0
    %7396 = vmatpush1.msra.mxu0 0.0
    %7397 = vmatprep.subr.mxu0 0.0
    %7398 = vmatpush1.msra.mxu0 0.0
    %7399 = vmatprep.subr.mxu0 0.0
    %7400 = vmatpush1.msra.mxu0 0.0
    %7401 = vmatprep.subr.mxu0 0.0
    %7402 = vmatpush1.msra.mxu0 0.0
    %7403 = vmatprep.subr.mxu0 0.0
    %7404 = vmatpush1.msra.mxu0 0.0
    %7405 = vmatprep.subr.mxu0 0.0
    %7406 = vmatpush1.msra.mxu0 0.0
    %7407 = vmatprep.subr.mxu0 0.0
    %7408 = vmatpush1.msra.mxu0 0.0
    %7409 = vmatprep.subr.mxu0 0.0
    %7410 = vmatpush1.msra.mxu0 0.0
    %7411 = vmatprep.subr.mxu0 0.0
    %7412 = vmatpush1.msra.mxu0 0.0
    %7413 = vmatprep.subr.mxu0 0.0
    %7414 = vmatpush1.msra.mxu0 0.0
    %7415 = vmatprep.subr.mxu0 0.0
    %7416 = vmatpush1.msra.mxu0 0.0
    %7417 = vmatprep.subr.mxu0 0.0
    %7418 = vmatpush1.msra.mxu0 0.0
    %7419 = vmatprep.subr.mxu0 0.0
    %7420 = vmatpush1.msra.mxu0 0.0
    %7421 = vmatprep.subr.mxu0 0.0
    %7422 = vmatpush1.msra.mxu0 0.0
    %7423 = vmatprep.subr.mxu0 0.0
    %7424 = vmatpush1.msra.mxu0 0.0
    %7425 = vmatprep.subr.mxu0 0.0
    %7426 = vmatpush1.msra.mxu0 0.0
    %7427 = vmatprep.subr.mxu0 0.0
    %7428 = vmatpush1.msra.mxu0 0.0
    %7429 = vmatprep.subr.mxu0 0.0
    %7430 = vmatpush1.msra.mxu0 0.0
    %7431 = vmatprep.subr.mxu0 0.0
    %7432 = vmatpush1.msra.mxu0 0.0
    %7433 = vmatprep.mubr.f32.mxu0 0.0
    %v7434 = vand.u32 %v7113, 4294901760
    %v7435 = vsub.f32 %v7113, %v7434
    %v7436 = vand.u32 %v7435, 4294901760
    %7437 = vmatmul.mubr.f32.gmra.mrb[0].mxu0 %v7436
    %v7438 = vpop.f32.mrb[0].mxu0
    %v7439 = vadd.f32 %v7362, %v7438
    %v7440 = vpop.f32.mrb[0].mxu0
    %7441 = vdwg.mxu0
    %7442 = vmatprep.subr.mxu0 0.0
    %v7443 = vand.u32 %v7098, 4294901760
    %v7444 = vsub.f32 %v7098, %v7443
    %v7445 = vand.u32 %v7444, 4294901760
    %7446 = vmatpush1.msra.mxu0 %v7445
    %7447 = vmatprep.subr.mxu0 0.0
    %v7448 = vand.u32 %v7099, 4294901760
    %v7449 = vsub.f32 %v7099, %v7448
    %v7450 = vand.u32 %v7449, 4294901760
    %7451 = vmatpush1.msra.mxu0 %v7450
    %7452 = vmatprep.subr.mxu0 0.0
    %v7453 = vand.u32 %v7100, 4294901760
    %v7454 = vsub.f32 %v7100, %v7453
    %v7455 = vand.u32 %v7454, 4294901760
    %7456 = vmatpush1.msra.mxu0 %v7455
    %7457 = vmatprep.subr.mxu0 0.0
    %v7458 = vand.u32 %v7101, 4294901760
    %v7459 = vsub.f32 %v7101, %v7458
    %v7460 = vand.u32 %v7459, 4294901760
    %7461 = vmatpush1.msra.mxu0 %v7460
    %7462 = vmatprep.subr.mxu0 0.0
    %7463 = vmatpush1.msra.mxu0 0.0
    %7464 = vmatprep.subr.mxu0 0.0
    %7465 = vmatpush1.msra.mxu0 0.0
    %7466 = vmatprep.subr.mxu0 0.0
    %7467 = vmatpush1.msra.mxu0 0.0
    %7468 = vmatprep.subr.mxu0 0.0
    %7469 = vmatpush1.msra.mxu0 0.0
    %7470 = vmatprep.subr.mxu0 0.0
    %7471 = vmatpush1.msra.mxu0 0.0
    %7472 = vmatprep.subr.mxu0 0.0
    %7473 = vmatpush1.msra.mxu0 0.0
    %7474 = vmatprep.subr.mxu0 0.0
    %7475 = vmatpush1.msra.mxu0 0.0
    %7476 = vmatprep.subr.mxu0 0.0
    %7477 = vmatpush1.msra.mxu0 0.0
    %7478 = vmatprep.subr.mxu0 0.0
    %7479 = vmatpush1.msra.mxu0 0.0
    %7480 = vmatprep.subr.mxu0 0.0
    %7481 = vmatpush1.msra.mxu0 0.0
    %7482 = vmatprep.subr.mxu0 0.0
    %7483 = vmatpush1.msra.mxu0 0.0
    %7484 = vmatprep.subr.mxu0 0.0
    %7485 = vmatpush1.msra.mxu0 0.0
    %7486 = vmatprep.subr.mxu0 0.0
    %7487 = vmatpush1.msra.mxu0 0.0
    %7488 = vmatprep.subr.mxu0 0.0
    %7489 = vmatpush1.msra.mxu0 0.0
    %7490 = vmatprep.subr.mxu0 0.0
    %7491 = vmatpush1.msra.mxu0 0.0
    %7492 = vmatprep.subr.mxu0 0.0
    %7493 = vmatpush1.msra.mxu0 0.0
    %7494 = vmatprep.subr.mxu0 0.0
    %7495 = vmatpush1.msra.mxu0 0.0
    %7496 = vmatprep.subr.mxu0 0.0
    %7497 = vmatpush1.msra.mxu0 0.0
    %7498 = vmatprep.subr.mxu0 0.0
    %7499 = vmatpush1.msra.mxu0 0.0
    %7500 = vmatprep.subr.mxu0 0.0
    %7501 = vmatpush1.msra.mxu0 0.0
    %7502 = vmatprep.subr.mxu0 0.0
    %7503 = vmatpush1.msra.mxu0 0.0
    %7504 = vmatprep.subr.mxu0 0.0
    %7505 = vmatpush1.msra.mxu0 0.0
    %7506 = vmatprep.subr.mxu0 0.0
    %7507 = vmatpush1.msra.mxu0 0.0
    %7508 = vmatprep.subr.mxu0 0.0
    %7509 = vmatpush1.msra.mxu0 0.0
    %7510 = vmatprep.subr.mxu0 0.0
    %7511 = vmatpush1.msra.mxu0 0.0
    %7512 = vmatprep.subr.mxu0 0.0
    %7513 = vmatpush1.msra.mxu0 0.0
    %7514 = vmatprep.subr.mxu0 0.0
    %7515 = vmatpush1.msra.mxu0 0.0
    %7516 = vmatprep.subr.mxu0 0.0
    %7517 = vmatpush1.msra.mxu0 0.0
    %7518 = vmatprep.mubr.f32.mxu0 0.0
    %v7519 = vand.u32 %v7113, 4294901760
    %7520 = vmatmul.mubr.f32.gmra.mrb[0].mxu0 %v7519
    %v7521 = vpop.f32.mrb[0].mxu0
    %v7522 = vadd.f32 %v7439, %v7521
    %v7523 = vpop.f32.mrb[0].mxu0
    %7524 = vdwg.mxu0
    %7525 = vmatprep.subr.mxu0 0.0
    %v7526 = vand.u32 %v7098, 4294901760
    %7527 = vmatpush1.msra.mxu0 %v7526
    %7528 = vmatprep.subr.mxu0 0.0
    %v7529 = vand.u32 %v7099, 4294901760
    %7530 = vmatpush1.msra.mxu0 %v7529
    %7531 = vmatprep.subr.mxu0 0.0
    %v7532 = vand.u32 %v7100, 4294901760
    %7533 = vmatpush1.msra.mxu0 %v7532
    %7534 = vmatprep.subr.mxu0 0.0
    %v7535 = vand.u32 %v7101, 4294901760
    %7536 = vmatpush1.msra.mxu0 %v7535
    %7537 = vmatprep.subr.mxu0 0.0
    %7538 = vmatpush1.msra.mxu0 0.0
    %7539 = vmatprep.subr.mxu0 0.0
    %7540 = vmatpush1.msra.mxu0 0.0
    %7541 = vmatprep.subr.mxu0 0.0
    %7542 = vmatpush1.msra.mxu0 0.0
    %7543 = vmatprep.subr.mxu0 0.0
    %7544 = vmatpush1.msra.mxu0 0.0
    %7545 = vmatprep.subr.mxu0 0.0
    %7546 = vmatpush1.msra.mxu0 0.0
    %7547 = vmatprep.subr.mxu0 0.0
    %7548 = vmatpush1.msra.mxu0 0.0
    %7549 = vmatprep.subr.mxu0 0.0
    %7550 = vmatpush1.msra.mxu0 0.0
    %7551 = vmatprep.subr.mxu0 0.0
    %7552 = vmatpush1.msra.mxu0 0.0
    %7553 = vmatprep.subr.mxu0 0.0
    %7554 = vmatpush1.msra.mxu0 0.0
    %7555 = vmatprep.subr.mxu0 0.0
    %7556 = vmatpush1.msra.mxu0 0.0
    %7557 = vmatprep.subr.mxu0 0.0
    %7558 = vmatpush1.msra.mxu0 0.0
    %7559 = vmatprep.subr.mxu0 0.0
    %7560 = vmatpush1.msra.mxu0 0.0
    %7561 = vmatprep.subr.mxu0 0.0
    %7562 = vmatpush1.msra.mxu0 0.0
    %7563 = vmatprep.subr.mxu0 0.0
    %7564 = vmatpush1.msra.mxu0 0.0
    %7565 = vmatprep.subr.mxu0 0.0
    %7566 = vmatpush1.msra.mxu0 0.0
    %7567 = vmatprep.subr.mxu0 0.0
    %7568 = vmatpush1.msra.mxu0 0.0
    %7569 = vmatprep.subr.mxu0 0.0
    %7570 = vmatpush1.msra.mxu0 0.0
    %7571 = vmatprep.subr.mxu0 0.0
    %7572 = vmatpush1.msra.mxu0 0.0
    %7573 = vmatprep.subr.mxu0 0.0
    %7574 = vmatpush1.msra.mxu0 0.0
    %7575 = vmatprep.subr.mxu0 0.0
    %7576 = vmatpush1.msra.mxu0 0.0
    %7577 = vmatprep.subr.mxu0 0.0
    %7578 = vmatpush1.msra.mxu0 0.0
    %7579 = vmatprep.subr.mxu0 0.0
    %7580 = vmatpush1.msra.mxu0 0.0
    %7581 = vmatprep.subr.mxu0 0.0
    %7582 = vmatpush1.msra.mxu0 0.0
    %7583 = vmatprep.subr.mxu0 0.0
    %7584 = vmatpush1.msra.mxu0 0.0
    %7585 = vmatprep.subr.mxu0 0.0
    %7586 = vmatpush1.msra.mxu0 0.0
    %7587 = vmatprep.subr.mxu0 0.0
    %7588 = vmatpush1.msra.mxu0 0.0
    %7589 = vmatprep.subr.mxu0 0.0
    %7590 = vmatpush1.msra.mxu0 0.0
    %7591 = vmatprep.subr.mxu0 0.0
    %7592 = vmatpush1.msra.mxu0 0.0
    %7593 = vmatprep.mubr.f32.mxu0 0.0
    %v7594 = vand.u32 %v7113, 4294901760
    %7595 = vmatmul.mubr.f32.gmra.mrb[0].mxu0 %v7594
    %v7596 = vpop.f32.mrb[0].mxu0
    %v7597 = vadd.f32 %v7522, %v7596
    %v7598 = vpop.f32.mrb[0].mxu0
    %7599 = vdwg.mxu0
    %vm7600 = vcmask 58368
    %7601 = vst.msk [vmem:[#allocation15] sm:$0x3] %vm7600, %v7597
    // Predicated region
    $region98: #{tpu_custom_call.1} parent=1 // pred_check
      _
    $region99: #{tpu_custom_call.1} parent=1 // pred_check_branch
      %7603 = sbr.rel (0) target = $region101
    $region100: #{tpu_custom_call.1} parent=1 // pred_region
      %s7605 = ssub.s32 32, 32
      %7606 = vsyncadd [#allocation5], %s7605
      %s7608 = sshll.u32 [#allocation15], 4
      %s7609 = int_to_ptr.vmem [resolvable:$true] %s7608
      %7611 = dma.vmem_to_hbm [thread:$0]  %s7609, 32, %s17, [#allocation5]
    $region101: #{tpu_custom_call.1} parent=1 // pred_fallthru
      _
    // Predicated region
    $region102: #{tpu_custom_call.1} parent=1 // pred_check
      _
    $region103: #{tpu_custom_call.1} parent=1 // pred_check_branch
      %7613 = sbr.rel (0) target = $region105
    $region104: #{tpu_custom_call.1} parent=1 // pred_region
      %7614 = dma.done [#allocation5], 32
    $region105: #{tpu_custom_call.1} parent=1 // pred_fallthru
      _
    %7615 = vsyncpa [#allocation4], 1
    %7616 = vsyncpa [#allocation7], 1
    %7617 = vsyncpa [#allocation10], 1
    %7618 = vsyncpa [#allocation13], 1
    %7619 = vsyncpa [#allocation5], 1

</llo_original>
